<compile_context>
chip_gen: v7x
topology: tpu7x:2x2x1
jax: 0.10.0
libtpu: 0.0.40
codegen_flags: <defaults>
</compile_context>

<pallas_src>
import functools

import jax
import jax.numpy as jnp
from jax.experimental import pallas as pl
from jax.experimental.pallas import tpu as pltpu

LANE = 128


def _round_up(v, m):
    return (v + m - 1) // m * m


def _pick_batch_tile(n, per_image_bytes, budget=8 << 20):
    """Largest divisor of n fitting a VMEM activation budget; keep >=2 grid steps."""
    cap = max(1, budget // max(1, 5 * per_image_bytes))
    if n >= 2:
        cap = min(cap, max(1, n // 2))   # >= 2 grid steps so both v7x TCs get work
    bt = 1
    for d in range(1, n + 1):
        if n % d == 0 and d <= cap:
            bt = d
    return bt


def _conv3x3_tap_masks(bt, h, w):
    """(bt*h*w, 9) f32 validity masks for the 9 taps of a 3x3 / pad=1 conv."""
    yy = jnp.tile(jnp.repeat(jnp.arange(h), w), bt)
    xx = jnp.tile(jnp.tile(jnp.arange(w), h), bt)
    cols = []
    for ky in range(3):
        for kx in range(3):
            dy, dx = ky - 1, kx - 1
            valid = ((yy + dy >= 0) & (yy + dy < h) &
                     (xx + dx >= 0) & (xx + dx < w))
            cols.append(valid)
    return jnp.stack(cols, axis=1).astype(jnp.float32)


def _bottleneck_kernel(x_ref, m_ref, b1_ref, w1_ref, b2_ref, w2_ref, b3_ref, w3_ref,
                       out_ref, buf_ref, *, H, W, pad_rows):
    """One grid step = `Bt` images, NHWC with C padded to a multiple of 128 lanes."""
    Bt, _, _, C = x_ref.shape
    M = Bt * H * W

    # One-time init of the scratch pad rows (reads of them are masked anyway).
    @pl.when(pl.program_id(0) == 0)
    def _():
        buf_ref[0:pad_rows, :] = jnp.zeros((pad_rows, C), jnp.bfloat16)
        buf_ref[pad_rows + M:pad_rows + M + pad_rows, :] = jnp.zeros(
            (pad_rows, C), jnp.bfloat16)

    x = x_ref[...].reshape(M, C)                       # f32; doubles as the shortcut

    # bn1 + conv1(1x1) + bn2 folded into one matmul + bias; relu.
    h = jnp.dot(x.astype(jnp.bfloat16), w1_ref[...],
                preferred_element_type=jnp.float32)
    h = jnp.maximum(h + b1_ref[...], 0.0)

    # conv2 (3x3, stride 1, pad 1) + bn3: store the activation once (bf16) into a
    # row-padded scratch; 3 MXU contractions (K = 3*C), one per kernel row, reading
    # sublane-shifted slices; image borders handled by the precomputed tap masks.
    buf_ref[pad_rows:pad_rows + M, :] = h.astype(jnp.bfloat16)
    acc = None
    for ky in range(3):
        taps = []
        for kx in range(3):
            start = pad_rows + (ky - 1) * W + (kx - 1)
            patch = buf_ref[start:start + M, :]                  # (M, C) bf16
            if ky == 1 and kx == 1:                               # center tap: always valid
                taps.append(patch)
            else:
                k = ky * 3 + kx
                keep = m_ref[:, k:k + 1] > 0.5                    # (M, 1) bool
                taps.append(jnp.where(keep, patch, jnp.zeros_like(patch)))
        slab = jnp.concatenate(taps, axis=-1)                     # (M, 3C) bf16
        part = jnp.dot(slab, w2_ref[ky], preferred_element_type=jnp.float32)
        acc = part if acc is None else acc + part
    h = jnp.maximum(acc + b2_ref[...], 0.0)

    # conv3(1x1) + bn4 + ShakeDrop(eval) folded into w3/bias3; residual add
    # (shortcut already channel-padded -> plain add, padded lanes stay exactly zero).
    h = jnp.dot(h.astype(jnp.bfloat16), w3_ref[...],
                preferred_element_type=jnp.float32)
    out_ref[...] = (h + b3_ref[...] + x).reshape(Bt, H, W, C).astype(out_ref.dtype)


def prepare_params(params, cin, planes, c, p_shakedrop):
    """Fold eval BN affines + ShakeDrop eval scale into conv weights/biases,
    zero-pad channels to `c` lanes, pack conv2 per kernel row as (3, 3c, c)."""
    f32 = jnp.float32
    q = 1.0 - float(p_shakedrop)

    s1 = params["s1"].reshape(-1).astype(f32); b1 = params["b1"].reshape(-1).astype(f32)
    s2 = params["s2"].reshape(-1).astype(f32); b2 = params["b2"].reshape(-1).astype(f32)
    s3 = params["s3"].reshape(-1).astype(f32); b3 = params["b3"].reshape(-1).astype(f32)
    s4 = params["s4"].reshape(-1).astype(f32); b4 = params["b4"].reshape(-1).astype(f32)
    w1 = params["w1"].astype(f32)                     # (cin, planes)     (in, out)
    w2 = params["w2"].astype(f32)                     # (3, 3, planes, planes)  HWIO
    w3 = params["w3"].astype(f32)                     # (planes, planes)  (in, out)

    # bn1 -> conv1 -> bn2   ==>   x @ W1f + bias1
    w1f = (s1[:, None] * w1) * s2[None, :]
    bias1 = (b1 @ w1) * s2 + b2
    # conv2 -> bn3          ==>   conv3x3(h, W2f) + bias2
    w2f = w2 * s3[None, None, None, :]
    bias2 = b3
    # conv3 -> bn4 -> shakedrop(eval)   ==>   h @ W3f + bias3
    w3f = w3 * (s4 * q)[None, :]
    bias3 = b4 * q

    def padv(v, n):                                   # (n,) -> (1, c), padded lanes = 0
        return jnp.pad(v, (0, c - n)).reshape(1, c)

    def padm(m, r, s):                                # (r, s) -> (c, c)
        return jnp.pad(m, ((0, c - r), (0, c - s)))

    w1p = padm(w1f, cin, planes).astype(jnp.bfloat16)
    w3p = padm(w3f, planes, planes).astype(jnp.bfloat16)
    w2p = jnp.stack(
        [jnp.concatenate([padm(w2f[ky, kx], planes, planes) for kx in range(3)], axis=0)
         for ky in range(3)], axis=0).astype(jnp.bfloat16)        # (3, 3c, c)

    return dict(b1=padv(bias1, planes), w1=w1p,
                b2=padv(bias2, planes), w2=w2p,
                b3=padv(bias3, planes), w3=w3p)


def bottleneck_pallas_nhwc(x_nhwc, prep, *, batch_tile=None, out_dtype=None):
    """Core entry: NHWC activations with channels already padded to a multiple of 128."""
    N, H, W, C = x_nhwc.shape
    assert C % LANE == 0
    if out_dtype is None:
        out_dtype = x_nhwc.dtype
    bt = batch_tile if batch_tile is not None else _pick_batch_tile(N, H * W * C * 4)
    assert N % bt == 0
    M = bt * H * W
    pad_rows = _round_up(W + 1, 16)            # bf16 sublane-pack aligned interior start
    masks = _conv3x3_tap_masks(bt, H, W)       # (M, 9) f32

    kern = functools.partial(_bottleneck_kernel, H=H, W=W, pad_rows=pad_rows)
    full2 = lambda n: (0, 0)

    return pl.pallas_call(
        kern,
        out_shape=jax.ShapeDtypeStruct((N, H, W, C), out_dtype),
        grid=(N // bt,),
        in_specs=[
            pl.BlockSpec((bt, H, W, C), lambda n: (n, 0, 0, 0)),   # x
            pl.BlockSpec((M, 9), full2),                           # conv2 tap masks
            pl.BlockSpec((1, C), full2),                           # bias1 (bn1/bn2 folded)
            pl.BlockSpec((C, C), full2),                           # w1
            pl.BlockSpec((1, C), full2),                           # bias2 (bn3 folded)
            pl.BlockSpec((3, 3 * C, C), lambda n: (0, 0, 0)),      # w2, per-row packed
            pl.BlockSpec((1, C), full2),                           # bias3 (bn4 + shake)
            pl.BlockSpec((C, C), full2),                           # w3
        ],
        out_specs=pl.BlockSpec((bt, H, W, C), lambda n: (n, 0, 0, 0)),
        scratch_shapes=[pltpu.VMEM((M + 2 * pad_rows, C), jnp.bfloat16)],
        compiler_params=pltpu.CompilerParams(
            dimension_semantics=("parallel",),
            vmem_limit_bytes=48 * 1024 * 1024),
    )(x_nhwc, masks, prep["b1"], prep["w1"], prep["b2"], prep["w2"],
      prep["b3"], prep["w3"])


def bottleneck_pallas(x_nchw, params, p_shakedrop):
    """NCHW convenience wrapper matching the PyTorch interface (demo only).
    A real network should keep activations NHWC / channel-padded end-to-end."""
    N, Cin, H, W = x_nchw.shape
    P = params["w1"].shape[1]
    C = _round_up(max(Cin, P), LANE)
    x = jnp.transpose(x_nchw, (0, 2, 3, 1))                        # NCHW -> NHWC
    x = jnp.pad(x, ((0, 0), (0, 0), (0, 0), (0, C - Cin)))         # channel pad (lane dense)
    prep = prepare_params(params, Cin, P, C, p_shakedrop)
    out = bottleneck_pallas_nhwc(x, prep)
    return jnp.transpose(out[..., :P], (0, 3, 1, 2))               # NHWC -> NCHW


def bottleneck_reference(x_nchw, params, p_shakedrop):
    """Pure-JAX reference (unfused math, f32, HIGHEST precision convolutions)."""
    x = jnp.transpose(x_nchw, (0, 2, 3, 1))
    N, H, W, Cin = x.shape
    P = params["w1"].shape[1]
    dn = ("NHWC", "HWIO", "NHWC")
    prec = jax.lax.Precision.HIGHEST

    def conv(h, w_hwio, padding):
        return jax.lax.conv_general_dilated(
            h, w_hwio, (1, 1), padding, dimension_numbers=dn, precision=prec)

    s1, b1 = params["s1"][0], params["b1"][0]
    s2, b2 = params["s2"][0], params["b2"][0]
    s3, b3 = params["s3"][0], params["b3"][0]
    s4, b4 = params["s4"][0], params["b4"][0]

    h = x * s1 + b1
    h = conv(h, params["w1"].reshape(1, 1, Cin, P), "VALID")
    h = jnp.maximum(h * s2 + b2, 0.0)
    h = conv(h, params["w2"], [(1, 1), (1, 1)])
    h = jnp.maximum(h * s3 + b3, 0.0)
    h = conv(h, params["w3"].reshape(1, 1, P, P), "VALID")
    h = (h * s4 + b4) * (1.0 - p_shakedrop)
    if P > Cin:
        shortcut = jnp.concatenate(
            [x, jnp.zeros((N, H, W, P - Cin), jnp.float32)], axis=-1)
    else:
        shortcut = x
    return jnp.transpose(h + shortcut, (0, 3, 1, 2))


def _bn_affine(key, C, eps=1e-5):
    k1, k2, k3, k4 = jax.random.split(key, 4)
    gamma = jax.random.uniform(k1, (C,), jnp.float32, 0.5, 1.5)
    beta = 0.1 * jax.random.normal(k2, (C,), jnp.float32)
    mean = 0.1 * jax.random.normal(k3, (C,), jnp.float32)
    var = jax.random.uniform(k4, (C,), jnp.float32, 0.5, 1.5)
    scale = gamma / jnp.sqrt(var + eps)
    shift = beta - mean * scale
    return scale.reshape(1, C), shift.reshape(1, C)


if __name__ == "__main__":
    key = jax.random.PRNGKey(0)
    ks = jax.random.split(key, 9)

    N, Cin, H, W = 2, 4, 16, 16        # inplanes=4
    P = 8                              # planes=8 (outchannel_ratio=1)
    p_shakedrop = 0.5                  # ShakeDrop p_drop (eval: out *= 1 - p)

    x = jax.random.normal(ks[0], (N, Cin, H, W), jnp.float32)

    s1, b1 = _bn_affine(ks[1], Cin)
    s2, b2 = _bn_affine(ks[2], P)
    s3, b3 = _bn_affine(ks[3], P)
    s4, b4 = _bn_affine(ks[4], P)
    params = {
        "s1": s1, "b1": b1,
        "w1": 0.1 * jax.random.normal(ks[5], (Cin, P), jnp.float32),       # conv1 (1x1), (in, out)
        "s2": s2, "b2": b2,
        "w2": 0.1 * jax.random.normal(ks[6], (3, 3, P, P), jnp.float32),   # conv2 (3x3), HWIO
        "s3": s3, "b3": b3,
        "w3": 0.1 * jax.random.normal(ks[7], (P, P), jnp.float32),         # conv3 (1x1), (in, out)
        "s4": s4, "b4": b4,
    }

    y = bottleneck_pallas(x, params, p_shakedrop)
    jax.block_until_ready(y)

    y_ref = bottleneck_reference(x, params, p_shakedrop)
    err = float(jnp.max(jnp.abs(y - y_ref)))
    assert y.shape == (N, P, H, W), y.shape
    # Precision contract: bf16 MXU operands (f32 accumulation) vs f32 reference.
    assert err < 3e-2, f"max abs error {err}"

    print("KERNEL_OK")
</pallas_src>

<mosaic_0001>
module attributes {stable_mosaic.version = 11 : i64} {
  func.func @_bottleneck_kernel(%arg0: i32, %arg1: memref<1x16x16x128xf32, #tpu.memory_space<vmem>>, %arg2: memref<256x9xf32, #tpu.memory_space<vmem>>, %arg3: memref<1x128xf32, #tpu.memory_space<vmem>>, %arg4: memref<128x128xbf16, #tpu.memory_space<vmem>>, %arg5: memref<1x128xf32, #tpu.memory_space<vmem>>, %arg6: memref<3x384x128xbf16, #tpu.memory_space<vmem>>, %arg7: memref<1x128xf32, #tpu.memory_space<vmem>>, %arg8: memref<128x128xbf16, #tpu.memory_space<vmem>>, %arg9: memref<1x16x16x128xf32, #tpu.memory_space<vmem>>, %arg10: memref<320x128xbf16, #tpu.memory_space<vmem>>) attributes {dimension_semantics = [#tpu.dimension_semantics<parallel>], iteration_bounds = array<i64: 2>, scalar_prefetch = 0 : i64, scratch_operands = 1 : i64, tpu.core_type = #tpu.core_type<tc>, window_params = [{transform_indices = @transform_0, window_bounds = array<i64: 1, 16, 16, 128>}, {pipeline_mode = #tpu.pipeline_mode<synchronous>, transform_indices = @transform_1, window_bounds = array<i64: 256, 9>}, {pipeline_mode = #tpu.pipeline_mode<synchronous>, transform_indices = @transform_2, window_bounds = array<i64: 1, 128>}, {pipeline_mode = #tpu.pipeline_mode<synchronous>, transform_indices = @transform_3, window_bounds = array<i64: 128, 128>}, {pipeline_mode = #tpu.pipeline_mode<synchronous>, transform_indices = @transform_4, window_bounds = array<i64: 1, 128>}, {pipeline_mode = #tpu.pipeline_mode<synchronous>, transform_indices = @transform_5, window_bounds = array<i64: 3, 384, 128>}, {pipeline_mode = #tpu.pipeline_mode<synchronous>, transform_indices = @transform_6, window_bounds = array<i64: 1, 128>}, {pipeline_mode = #tpu.pipeline_mode<synchronous>, transform_indices = @transform_7, window_bounds = array<i64: 128, 128>}, {transform_indices = @transform_8, window_bounds = array<i64: 1, 16, 16, 128>}]} {
    %c0_i32 = arith.constant 0 : i32
    %0 = arith.cmpi eq, %arg0, %c0_i32 : i32
    %1 = arith.extui %0 : i1 to i32
    %c0_i32_0 = arith.constant 0 : i32
    %2 = arith.cmpi ne, %1, %c0_i32_0 : i32
    scf.if %2 {
      %cst_69 = arith.constant 0.000000e+00 : bf16
      %108 = vector.broadcast %cst_69 : bf16 to vector<32x128xbf16>
      %c0_70 = arith.constant 0 : index
      %c0_71 = arith.constant 0 : index
      %109 = vector.load %arg10[%c0_70, %c0_71] : memref<320x128xbf16, #tpu.memory_space<vmem>>, vector<32x128xbf16>
      tpu.vector_store %arg10[%c0_70, %c0_71], %108 {strides = array<i32>} : memref<320x128xbf16, #tpu.memory_space<vmem>>, vector<32x128xbf16>,
      %cst_72 = arith.constant 0.000000e+00 : bf16
      %110 = vector.broadcast %cst_72 : bf16 to vector<32x128xbf16>
      %c288 = arith.constant 288 : index
      %c0_73 = arith.constant 0 : index
      %111 = vector.load %arg10[%c288, %c0_73] : memref<320x128xbf16, #tpu.memory_space<vmem>>, vector<32x128xbf16>
      tpu.vector_store %arg10[%c288, %c0_73], %110 {strides = array<i32>} : memref<320x128xbf16, #tpu.memory_space<vmem>>, vector<32x128xbf16>,
    } else {
    }
    %c0 = arith.constant 0 : index
    %c0_1 = arith.constant 0 : index
    %c0_2 = arith.constant 0 : index
    %c0_3 = arith.constant 0 : index
    %3 = vector.load %arg1[%c0, %c0_1, %c0_2, %c0_3] : memref<1x16x16x128xf32, #tpu.memory_space<vmem>>, vector<1x16x16x128xf32>
    %4 = vector.shape_cast %3 : vector<1x16x16x128xf32> to vector<256x128xf32>
    %5 = arith.truncf %4 : vector<256x128xf32> to vector<256x128xbf16>
    %c0_4 = arith.constant 0 : index
    %c0_5 = arith.constant 0 : index
    %6 = vector.load %arg4[%c0_4, %c0_5] : memref<128x128xbf16, #tpu.memory_space<vmem>>, vector<128x128xbf16>
    %cst = arith.constant dense<0.000000e+00> : vector<256x128xf32>
    %7 = tpu.matmul %5, %6, %cst {dimension_numbers = #tpu.dot_dimension_numbers<[1], [0], [0], [1], [0, 0, 1, 1], [], []>} : vector<256x128xbf16>, vector<128x128xbf16>, vector<256x128xf32> -> vector<256x128xf32>
    %c0_6 = arith.constant 0 : index
    %c0_7 = arith.constant 0 : index
    %8 = vector.load %arg3[%c0_6, %c0_7] : memref<1x128xf32, #tpu.memory_space<vmem>>, vector<1x128xf32>
    %9 = vector.broadcast %8 : vector<1x128xf32> to vector<256x128xf32>
    %10 = arith.addf %7, %9 : vector<256x128xf32>
    %cst_8 = arith.constant 0.000000e+00 : f32
    %11 = vector.broadcast %cst_8 : f32 to vector<256x128xf32>
    %12 = arith.maximumf %10, %11 : vector<256x128xf32>
    %13 = arith.truncf %12 : vector<256x128xf32> to vector<256x128xbf16>
    %c32 = arith.constant 32 : index
    %c0_9 = arith.constant 0 : index
    %14 = vector.load %arg10[%c32, %c0_9] : memref<320x128xbf16, #tpu.memory_space<vmem>>, vector<256x128xbf16>
    tpu.vector_store %arg10[%c32, %c0_9], %13 {strides = array<i32>} : memref<320x128xbf16, #tpu.memory_space<vmem>>, vector<256x128xbf16>,
    %c15 = arith.constant 15 : index
    %c0_10 = arith.constant 0 : index
    %15 = vector.load %arg10[%c15, %c0_10] : memref<320x128xbf16, #tpu.memory_space<vmem>>, vector<256x128xbf16>
    %c0_11 = arith.constant 0 : index
    %c0_12 = arith.constant 0 : index
    %16 = vector.load %arg2[%c0_11, %c0_12] : memref<256x9xf32, #tpu.memory_space<vmem>>, vector<256x1xf32>
    %cst_13 = arith.constant 5.000000e-01 : f32
    %17 = vector.broadcast %cst_13 : f32 to vector<256x1xf32>
    %18 = arith.cmpf ogt, %16, %17 : vector<256x1xf32>
    %cst_14 = arith.constant 0.000000e+00 : bf16
    %19 = vector.broadcast %cst_14 : bf16 to vector<256x128xbf16>
    %20 = vector.shape_cast %18 : vector<256x1xi1> to vector<256x1xi1>
    %21 = vector.broadcast %20 : vector<256x1xi1> to vector<256x128xi1>
    %22 = arith.select %21, %15, %19 : vector<256x128xi1>, vector<256x128xbf16>
    %c16 = arith.constant 16 : index
    %c0_15 = arith.constant 0 : index
    %23 = vector.load %arg10[%c16, %c0_15] : memref<320x128xbf16, #tpu.memory_space<vmem>>, vector<256x128xbf16>
    %c0_16 = arith.constant 0 : index
    %c1 = arith.constant 1 : index
    %24 = vector.load %arg2[%c0_16, %c1] : memref<256x9xf32, #tpu.memory_space<vmem>>, vector<256x1xf32>
    %cst_17 = arith.constant 5.000000e-01 : f32
    %25 = vector.broadcast %cst_17 : f32 to vector<256x1xf32>
    %26 = arith.cmpf ogt, %24, %25 : vector<256x1xf32>
    %cst_18 = arith.constant 0.000000e+00 : bf16
    %27 = vector.broadcast %cst_18 : bf16 to vector<256x128xbf16>
    %28 = vector.shape_cast %26 : vector<256x1xi1> to vector<256x1xi1>
    %29 = vector.broadcast %28 : vector<256x1xi1> to vector<256x128xi1>
    %30 = arith.select %29, %23, %27 : vector<256x128xi1>, vector<256x128xbf16>
    %c17 = arith.constant 17 : index
    %c0_19 = arith.constant 0 : index
    %31 = vector.load %arg10[%c17, %c0_19] : memref<320x128xbf16, #tpu.memory_space<vmem>>, vector<256x128xbf16>
    %c0_20 = arith.constant 0 : index
    %c2 = arith.constant 2 : index
    %32 = vector.load %arg2[%c0_20, %c2] : memref<256x9xf32, #tpu.memory_space<vmem>>, vector<256x1xf32>
    %cst_21 = arith.constant 5.000000e-01 : f32
    %33 = vector.broadcast %cst_21 : f32 to vector<256x1xf32>
    %34 = arith.cmpf ogt, %32, %33 : vector<256x1xf32>
    %cst_22 = arith.constant 0.000000e+00 : bf16
    %35 = vector.broadcast %cst_22 : bf16 to vector<256x128xbf16>
    %36 = vector.shape_cast %34 : vector<256x1xi1> to vector<256x1xi1>
    %37 = vector.broadcast %36 : vector<256x1xi1> to vector<256x128xi1>
    %38 = arith.select %37, %31, %35 : vector<256x128xi1>, vector<256x128xbf16>
    %39 = tpu.concatenate %22, %30, %38 in 1 : vector<256x128xbf16>, vector<256x128xbf16>, vector<256x128xbf16> -> vector<256x384xbf16>
    %c0_23 = arith.constant 0 : index
    %c0_24 = arith.constant 0 : index
    %c0_25 = arith.constant 0 : index
    %40 = vector.load %arg6[%c0_23, %c0_24, %c0_25] : memref<3x384x128xbf16, #tpu.memory_space<vmem>>, vector<1x384x128xbf16>
    %41 = vector.shape_cast %40 : vector<1x384x128xbf16> to vector<384x128xbf16>
    %cst_26 = arith.constant dense<0.000000e+00> : vector<256x128xf32>
    %42 = tpu.matmul %39, %41, %cst_26 {dimension_numbers = #tpu.dot_dimension_numbers<[1], [0], [0], [1], [0, 0, 1, 1], [], []>} : vector<256x384xbf16>, vector<384x128xbf16>, vector<256x128xf32> -> vector<256x128xf32>
    %c31 = arith.constant 31 : index
    %c0_27 = arith.constant 0 : index
    %43 = vector.load %arg10[%c31, %c0_27] : memref<320x128xbf16, #tpu.memory_space<vmem>>, vector<256x128xbf16>
    %c0_28 = arith.constant 0 : index
    %c3 = arith.constant 3 : index
    %44 = vector.load %arg2[%c0_28, %c3] : memref<256x9xf32, #tpu.memory_space<vmem>>, vector<256x1xf32>
    %cst_29 = arith.constant 5.000000e-01 : f32
    %45 = vector.broadcast %cst_29 : f32 to vector<256x1xf32>
    %46 = arith.cmpf ogt, %44, %45 : vector<256x1xf32>
    %cst_30 = arith.constant 0.000000e+00 : bf16
    %47 = vector.broadcast %cst_30 : bf16 to vector<256x128xbf16>
    %48 = vector.shape_cast %46 : vector<256x1xi1> to vector<256x1xi1>
    %49 = vector.broadcast %48 : vector<256x1xi1> to vector<256x128xi1>
    %50 = arith.select %49, %43, %47 : vector<256x128xi1>, vector<256x128xbf16>
    %c32_31 = arith.constant 32 : index
    %c0_32 = arith.constant 0 : index
    %51 = vector.load %arg10[%c32_31, %c0_32] : memref<320x128xbf16, #tpu.memory_space<vmem>>, vector<256x128xbf16>
    %c33 = arith.constant 33 : index
    %c0_33 = arith.constant 0 : index
    %52 = vector.load %arg10[%c33, %c0_33] : memref<320x128xbf16, #tpu.memory_space<vmem>>, vector<256x128xbf16>
    %c0_34 = arith.constant 0 : index
    %c5 = arith.constant 5 : index
    %53 = vector.load %arg2[%c0_34, %c5] : memref<256x9xf32, #tpu.memory_space<vmem>>, vector<256x1xf32>
    %cst_35 = arith.constant 5.000000e-01 : f32
    %54 = vector.broadcast %cst_35 : f32 to vector<256x1xf32>
    %55 = arith.cmpf ogt, %53, %54 : vector<256x1xf32>
    %cst_36 = arith.constant 0.000000e+00 : bf16
    %56 = vector.broadcast %cst_36 : bf16 to vector<256x128xbf16>
    %57 = vector.shape_cast %55 : vector<256x1xi1> to vector<256x1xi1>
    %58 = vector.broadcast %57 : vector<256x1xi1> to vector<256x128xi1>
    %59 = arith.select %58, %52, %56 : vector<256x128xi1>, vector<256x128xbf16>
    %60 = tpu.concatenate %50, %51, %59 in 1 : vector<256x128xbf16>, vector<256x128xbf16>, vector<256x128xbf16> -> vector<256x384xbf16>
    %c1_37 = arith.constant 1 : index
    %c0_38 = arith.constant 0 : index
    %c0_39 = arith.constant 0 : index
    %61 = vector.load %arg6[%c1_37, %c0_38, %c0_39] : memref<3x384x128xbf16, #tpu.memory_space<vmem>>, vector<1x384x128xbf16>
    %62 = vector.shape_cast %61 : vector<1x384x128xbf16> to vector<384x128xbf16>
    %cst_40 = arith.constant dense<0.000000e+00> : vector<256x128xf32>
    %63 = tpu.matmul %60, %62, %cst_40 {dimension_numbers = #tpu.dot_dimension_numbers<[1], [0], [0], [1], [0, 0, 1, 1], [], []>} : vector<256x384xbf16>, vector<384x128xbf16>, vector<256x128xf32> -> vector<256x128xf32>
    %64 = arith.addf %42, %63 : vector<256x128xf32>
    %c47 = arith.constant 47 : index
    %c0_41 = arith.constant 0 : index
    %65 = vector.load %arg10[%c47, %c0_41] : memref<320x128xbf16, #tpu.memory_space<vmem>>, vector<256x128xbf16>
    %c0_42 = arith.constant 0 : index
    %c6 = arith.constant 6 : index
    %66 = vector.load %arg2[%c0_42, %c6] : memref<256x9xf32, #tpu.memory_space<vmem>>, vector<256x1xf32>
    %cst_43 = arith.constant 5.000000e-01 : f32
    %67 = vector.broadcast %cst_43 : f32 to vector<256x1xf32>
    %68 = arith.cmpf ogt, %66, %67 : vector<256x1xf32>
    %cst_44 = arith.constant 0.000000e+00 : bf16
    %69 = vector.broadcast %cst_44 : bf16 to vector<256x128xbf16>
    %70 = vector.shape_cast %68 : vector<256x1xi1> to vector<256x1xi1>
    %71 = vector.broadcast %70 : vector<256x1xi1> to vector<256x128xi1>
    %72 = arith.select %71, %65, %69 : vector<256x128xi1>, vector<256x128xbf16>
    %c48 = arith.constant 48 : index
    %c0_45 = arith.constant 0 : index
    %73 = vector.load %arg10[%c48, %c0_45] : memref<320x128xbf16, #tpu.memory_space<vmem>>, vector<256x128xbf16>
    %c0_46 = arith.constant 0 : index
    %c7 = arith.constant 7 : index
    %74 = vector.load %arg2[%c0_46, %c7] : memref<256x9xf32, #tpu.memory_space<vmem>>, vector<256x1xf32>
    %cst_47 = arith.constant 5.000000e-01 : f32
    %75 = vector.broadcast %cst_47 : f32 to vector<256x1xf32>
    %76 = arith.cmpf ogt, %74, %75 : vector<256x1xf32>
    %cst_48 = arith.constant 0.000000e+00 : bf16
    %77 = vector.broadcast %cst_48 : bf16 to vector<256x128xbf16>
    %78 = vector.shape_cast %76 : vector<256x1xi1> to vector<256x1xi1>
    %79 = vector.broadcast %78 : vector<256x1xi1> to vector<256x128xi1>
    %80 = arith.select %79, %73, %77 : vector<256x128xi1>, vector<256x128xbf16>
    %c49 = arith.constant 49 : index
    %c0_49 = arith.constant 0 : index
    %81 = vector.load %arg10[%c49, %c0_49] : memref<320x128xbf16, #tpu.memory_space<vmem>>, vector<256x128xbf16>
    %c0_50 = arith.constant 0 : index
    %c8 = arith.constant 8 : index
    %82 = vector.load %arg2[%c0_50, %c8] : memref<256x9xf32, #tpu.memory_space<vmem>>, vector<256x1xf32>
    %cst_51 = arith.constant 5.000000e-01 : f32
    %83 = vector.broadcast %cst_51 : f32 to vector<256x1xf32>
    %84 = arith.cmpf ogt, %82, %83 : vector<256x1xf32>
    %cst_52 = arith.constant 0.000000e+00 : bf16
    %85 = vector.broadcast %cst_52 : bf16 to vector<256x128xbf16>
    %86 = vector.shape_cast %84 : vector<256x1xi1> to vector<256x1xi1>
    %87 = vector.broadcast %86 : vector<256x1xi1> to vector<256x128xi1>
    %88 = arith.select %87, %81, %85 : vector<256x128xi1>, vector<256x128xbf16>
    %89 = tpu.concatenate %72, %80, %88 in 1 : vector<256x128xbf16>, vector<256x128xbf16>, vector<256x128xbf16> -> vector<256x384xbf16>
    %c2_53 = arith.constant 2 : index
    %c0_54 = arith.constant 0 : index
    %c0_55 = arith.constant 0 : index
    %90 = vector.load %arg6[%c2_53, %c0_54, %c0_55] : memref<3x384x128xbf16, #tpu.memory_space<vmem>>, vector<1x384x128xbf16>
    %91 = vector.shape_cast %90 : vector<1x384x128xbf16> to vector<384x128xbf16>
    %cst_56 = arith.constant dense<0.000000e+00> : vector<256x128xf32>
    %92 = tpu.matmul %89, %91, %cst_56 {dimension_numbers = #tpu.dot_dimension_numbers<[1], [0], [0], [1], [0, 0, 1, 1], [], []>} : vector<256x384xbf16>, vector<384x128xbf16>, vector<256x128xf32> -> vector<256x128xf32>
    %93 = arith.addf %64, %92 : vector<256x128xf32>
    %c0_57 = arith.constant 0 : index
    %c0_58 = arith.constant 0 : index
    %94 = vector.load %arg5[%c0_57, %c0_58] : memref<1x128xf32, #tpu.memory_space<vmem>>, vector<1x128xf32>
    %95 = vector.broadcast %94 : vector<1x128xf32> to vector<256x128xf32>
    %96 = arith.addf %93, %95 : vector<256x128xf32>
    %cst_59 = arith.constant 0.000000e+00 : f32
    %97 = vector.broadcast %cst_59 : f32 to vector<256x128xf32>
    %98 = arith.maximumf %96, %97 : vector<256x128xf32>
    %99 = arith.truncf %98 : vector<256x128xf32> to vector<256x128xbf16>
    %c0_60 = arith.constant 0 : index
    %c0_61 = arith.constant 0 : index
    %100 = vector.load %arg8[%c0_60, %c0_61] : memref<128x128xbf16, #tpu.memory_space<vmem>>, vector<128x128xbf16>
    %cst_62 = arith.constant dense<0.000000e+00> : vector<256x128xf32>
    %101 = tpu.matmul %99, %100, %cst_62 {dimension_numbers = #tpu.dot_dimension_numbers<[1], [0], [0], [1], [0, 0, 1, 1], [], []>} : vector<256x128xbf16>, vector<128x128xbf16>, vector<256x128xf32> -> vector<256x128xf32>
    %c0_63 = arith.constant 0 : index
    %c0_64 = arith.constant 0 : index
    %102 = vector.load %arg7[%c0_63, %c0_64] : memref<1x128xf32, #tpu.memory_space<vmem>>, vector<1x128xf32>
    %103 = vector.broadcast %102 : vector<1x128xf32> to vector<256x128xf32>
    %104 = arith.addf %101, %103 : vector<256x128xf32>
    %105 = arith.addf %104, %4 : vector<256x128xf32>
    %106 = vector.shape_cast %105 : vector<256x128xf32> to vector<1x16x16x128xf32>
    %c0_65 = arith.constant 0 : index
    %c0_66 = arith.constant 0 : index
    %c0_67 = arith.constant 0 : index
    %c0_68 = arith.constant 0 : index
    %107 = vector.load %arg9[%c0_65, %c0_66, %c0_67, %c0_68] : memref<1x16x16x128xf32, #tpu.memory_space<vmem>>, vector<1x16x16x128xf32>
    tpu.vector_store %arg9[%c0_65, %c0_66, %c0_67, %c0_68], %106 {strides = array<i32>} : memref<1x16x16x128xf32, #tpu.memory_space<vmem>>, vector<1x16x16x128xf32>,
    return
  }
  func.func @transform_0(%arg0: i32) -> (i32, i32, i32, i32) {
    %c0_i32 = arith.constant 0 : i32
    %c0_i32_0 = arith.constant 0 : i32
    %c0_i32_1 = arith.constant 0 : i32
    %c0_i32_2 = arith.constant 0 : i32
    return %arg0, %c0_i32, %c0_i32_0, %c0_i32_1 : i32, i32, i32, i32
  }
  func.func @transform_1(%arg0: i32) -> (i32, i32) {
    %c0_i32 = arith.constant 0 : i32
    %c0_i32_0 = arith.constant 0 : i32
    %c0_i32_1 = arith.constant 0 : i32
    return %c0_i32, %c0_i32_0 : i32, i32
  }
  func.func @transform_2(%arg0: i32) -> (i32, i32) {
    %c0_i32 = arith.constant 0 : i32
    %c0_i32_0 = arith.constant 0 : i32
    %c0_i32_1 = arith.constant 0 : i32
    return %c0_i32, %c0_i32_0 : i32, i32
  }
  func.func @transform_3(%arg0: i32) -> (i32, i32) {
    %c0_i32 = arith.constant 0 : i32
    %c0_i32_0 = arith.constant 0 : i32
    %c0_i32_1 = arith.constant 0 : i32
    return %c0_i32, %c0_i32_0 : i32, i32
  }
  func.func @transform_4(%arg0: i32) -> (i32, i32) {
    %c0_i32 = arith.constant 0 : i32
    %c0_i32_0 = arith.constant 0 : i32
    %c0_i32_1 = arith.constant 0 : i32
    return %c0_i32, %c0_i32_0 : i32, i32
  }
  func.func @transform_5(%arg0: i32) -> (i32, i32, i32) {
    %c0_i32 = arith.constant 0 : i32
    %c0_i32_0 = arith.constant 0 : i32
    %c0_i32_1 = arith.constant 0 : i32
    %c0_i32_2 = arith.constant 0 : i32
    return %c0_i32, %c0_i32_0, %c0_i32_1 : i32, i32, i32
  }
  func.func @transform_6(%arg0: i32) -> (i32, i32) {
    %c0_i32 = arith.constant 0 : i32
    %c0_i32_0 = arith.constant 0 : i32
    %c0_i32_1 = arith.constant 0 : i32
    return %c0_i32, %c0_i32_0 : i32, i32
  }
  func.func @transform_7(%arg0: i32) -> (i32, i32) {
    %c0_i32 = arith.constant 0 : i32
    %c0_i32_0 = arith.constant 0 : i32
    %c0_i32_1 = arith.constant 0 : i32
    return %c0_i32, %c0_i32_0 : i32, i32
  }
  func.func @transform_8(%arg0: i32) -> (i32, i32, i32, i32) {
    %c0_i32 = arith.constant 0 : i32
    %c0_i32_0 = arith.constant 0 : i32
    %c0_i32_1 = arith.constant 0 : i32
    %c0_i32_2 = arith.constant 0 : i32
    return %arg0, %c0_i32, %c0_i32_0, %c0_i32_1 : i32, i32, i32, i32
  }
}

</mosaic_0001>

<llo_original>
// kernel: tpu_custom_call.1
$region0: #{tpu_custom_call.1}
  #allocation0 [shape = 'u32[]', space=smem, size = 0x4, offset = 0x4, fixed_abs, tag = 'smem constant byte address 0x4 - core index']
  #allocation1 [shape = 'u32[144,128]{1,0:T(1,128)}', space=vmem, size = 0x12000, scoped, tag = 'internal scratch']
  #allocation2 [shape = 'bf16[320,128]{1,0:T(16,128)(2,1)}', space=vmem, size = 0x14000, scoped, tag = 'scratch operand']
  %s0 = inlined_call_operand.hbm [shape: f32[2,16,16,128], index: 0, kind: input, shape index: {}]
  %s1 = inlined_call_operand.vmem [shape: f32[256,9], index: 1, kind: input, shape index: {}]
  %s2 = inlined_call_operand.vmem [shape: f32[1,128], index: 2, kind: input, shape index: {}]
  %s3 = inlined_call_operand.vmem [shape: bf16[128,128], index: 3, kind: input, shape index: {}]
  %s4 = inlined_call_operand.vmem [shape: f32[1,128], index: 4, kind: input, shape index: {}]
  %s5 = inlined_call_operand.hbm [shape: bf16[3,384,128], index: 5, kind: input, shape index: {}]
  %s6 = inlined_call_operand.vmem [shape: f32[1,128], index: 6, kind: input, shape index: {}]
  %s7 = inlined_call_operand.vmem [shape: bf16[128,128], index: 7, kind: input, shape index: {}]
  %s8 = inlined_call_operand.hbm [shape: f32[2,16,16,128], index: 8, kind: output, shape index: {}]
  %s9 = sld [smem:[#allocation0]]
  $region77: #{tpu_custom_call.1} parent=0
    _
  %s11 = ssub.s32 1, %s9
  %s12 = scalar_select 0, %s11, %s9
  $region1: #{tpu_custom_call.1} parent=0
    #allocation3 [shape = 'u8[262144]{0}', space=vmem, size = 0x40000, scoped, tag = 'input window, operand 0']
    #allocation4 [shape = 's32[2]{0}', space=sflag, size = 0x8, scoped, tag = 'scoped memory for tpu_custom_call.1']
    #allocation5 [shape = 's32[2]{0}', space=sflag, size = 0x8, scoped, tag = 'scoped memory for tpu_custom_call.1']
    #allocation6 [shape = 'u8[294912]{0}', space=vmem, size = 0x48000, scoped, tag = 'input window, operand 5, single buffered']
    #allocation7 [shape = 's32[1]{0}', space=sflag, size = 0x4, scoped, tag = 'scoped memory for tpu_custom_call.1']
    #allocation8 [shape = 'u8[262144]{0}', space=vmem, size = 0x40000, scoped, tag = 'output window, operand 0']
    %13 = vsyncpa [#allocation4], 0
    %s14 = scalar_lea.sflag [#allocation4], 1
    %15 = vsyncpa %s14, 0
    %16 = vsyncpa [#allocation7], 0
    %17 = vsyncpa [#allocation5], 0
    %s18 = scalar_lea.sflag [#allocation5], 1
    %19 = vsyncpa %s18, 0
    loop: start=0, step=1, limit=4
    $region2: #{tpu_custom_call.1} parent=1 // loop_pre_header
      _
    $region3: #{tpu_custom_call.1} parent=1 // loop_header
      %s21 = sphi 0, %s25
      %p22 = scmp.ge.s32.totalorder %s21, 4
      %s31 = sphi 0, %s33
      %s34 = sphi 0, %s31
      %s35 = sphi 0, %s34
      %s51 = sphi 0, %s35
      %s55 = sphi 0, %s55
      %s57 = sphi 0, %s55
      %s58 = sphi 0, %s57
      %s72 = sphi 0, %s58
      %s76 = sphi 0, %s76
      %s78 = sphi 0, %s76
      %s79 = sphi 0, %s78
      %s93 = sphi 0, %s79
      %s97 = sphi 0, %s97
      %s99 = sphi 0, %s97
      %s100 = sphi 0, %s99
      %s114 = sphi 0, %s100
      %s118 = sphi 0, %s118
      %s120 = sphi 0, %s118
      %s121 = sphi 0, %s120
      %s135 = sphi 0, %s121
      %s139 = sphi 0, %s139
      %s141 = sphi 0, %s139
      %s142 = sphi 0, %s141
      %s156 = sphi 0, %s142
      %s160 = sphi 0, %s160
      %s162 = sphi 0, %s160
      %s163 = sphi 0, %s162
      %s177 = sphi 0, %s163
      %s181 = sphi 0, %s181
      %s183 = sphi 0, %s181
      %s184 = sphi 0, %s183
      %s198 = sphi 0, %s184
      %s204 = sphi 0, %s206
      %s207 = sphi 0, %s204
      %s208 = sphi 0, %s207
      %s224 = sphi 0, %s208
    $region4: #{tpu_custom_call.1} parent=1 // loop_header_branch
      %24 = sbr.rel (%p22) target = $region8
    $region5: #{tpu_custom_call.1} parent=1 // loop_body
      %s26 = ssub.s32 %s21, 1
      %s27 = ssub.s32 %s21, 2
      %s28 = sadd.s32 %s21, 1
      %s29 = ssub.s32 %s21, %s28
      %p30 = scmp.eq.s32.totalorder %s29, 0
      %s32 = sadd.s32 %s31, 1
      %s33 = scalar_select %p30, %s31, %s32
      %p36 = pneg %p30
      %p37 = scmp.eq.s32.totalorder %s21, 1
      %p38 = por %p36, %p37
      %p39 = scmp.ne.s32.totalorder %s31, %s34
      %p40 = scmp.eq.s32.totalorder %s21, 0
      %p41 = por %p39, %p40
      %p42 = scmp.ne.s32.totalorder %s31, %s34
      %p43 = scmp.eq.s32.totalorder %s26, 1
      %p44 = por %p42, %p43
      %p45 = scmp.ne.s32.totalorder %s34, %s35
      %p46 = scmp.eq.s32.totalorder %s26, 0
      %p47 = por %p45, %p46
      %p48 = scmp.ne.s32.totalorder %s34, %s35
      %p49 = scmp.eq.s32.totalorder %s27, 1
      %p50 = por %p48, %p49
      %p52 = scmp.ne.s32.totalorder %s35, %s51
      %p53 = scmp.eq.s32.totalorder %s27, 0
      %p54 = por %p52, %p53
      %s56 = sadd.s32 %s55, 1
      %p59 = scmp.eq.s32.totalorder %s21, 1
      %p60 = scmp.ne.s32.totalorder %s55, %s57
      %p61 = scmp.eq.s32.totalorder %s21, 0
      %p62 = por %p60, %p61
      %p63 = scmp.ne.s32.totalorder %s55, %s57
      %p64 = scmp.eq.s32.totalorder %s26, 1
      %p65 = por %p63, %p64
      %p66 = scmp.ne.s32.totalorder %s57, %s58
      %p67 = scmp.eq.s32.totalorder %s26, 0
      %p68 = por %p66, %p67
      %p69 = scmp.ne.s32.totalorder %s57, %s58
      %p70 = scmp.eq.s32.totalorder %s27, 1
      %p71 = por %p69, %p70
      %p73 = scmp.ne.s32.totalorder %s58, %s72
      %p74 = scmp.eq.s32.totalorder %s27, 0
      %p75 = por %p73, %p74
      %s77 = sadd.s32 %s76, 1
      %p80 = scmp.eq.s32.totalorder %s21, 1
      %p81 = scmp.ne.s32.totalorder %s76, %s78
      %p82 = scmp.eq.s32.totalorder %s21, 0
      %p83 = por %p81, %p82
      %p84 = scmp.ne.s32.totalorder %s76, %s78
      %p85 = scmp.eq.s32.totalorder %s26, 1
      %p86 = por %p84, %p85
      %p87 = scmp.ne.s32.totalorder %s78, %s79
      %p88 = scmp.eq.s32.totalorder %s26, 0
      %p89 = por %p87, %p88
      %p90 = scmp.ne.s32.totalorder %s78, %s79
      %p91 = scmp.eq.s32.totalorder %s27, 1
      %p92 = por %p90, %p91
      %p94 = scmp.ne.s32.totalorder %s79, %s93
      %p95 = scmp.eq.s32.totalorder %s27, 0
      %p96 = por %p94, %p95
      %s98 = sadd.s32 %s97, 1
      %p101 = scmp.eq.s32.totalorder %s21, 1
      %p102 = scmp.ne.s32.totalorder %s97, %s99
      %p103 = scmp.eq.s32.totalorder %s21, 0
      %p104 = por %p102, %p103
      %p105 = scmp.ne.s32.totalorder %s97, %s99
      %p106 = scmp.eq.s32.totalorder %s26, 1
      %p107 = por %p105, %p106
      %p108 = scmp.ne.s32.totalorder %s99, %s100
      %p109 = scmp.eq.s32.totalorder %s26, 0
      %p110 = por %p108, %p109
      %p111 = scmp.ne.s32.totalorder %s99, %s100
      %p112 = scmp.eq.s32.totalorder %s27, 1
      %p113 = por %p111, %p112
      %p115 = scmp.ne.s32.totalorder %s100, %s114
      %p116 = scmp.eq.s32.totalorder %s27, 0
      %p117 = por %p115, %p116
      %s119 = sadd.s32 %s118, 1
      %p122 = scmp.eq.s32.totalorder %s21, 1
      %p123 = scmp.ne.s32.totalorder %s118, %s120
      %p124 = scmp.eq.s32.totalorder %s21, 0
      %p125 = por %p123, %p124
      %p126 = scmp.ne.s32.totalorder %s118, %s120
      %p127 = scmp.eq.s32.totalorder %s26, 1
      %p128 = por %p126, %p127
      %p129 = scmp.ne.s32.totalorder %s120, %s121
      %p130 = scmp.eq.s32.totalorder %s26, 0
      %p131 = por %p129, %p130
      %p132 = scmp.ne.s32.totalorder %s120, %s121
      %p133 = scmp.eq.s32.totalorder %s27, 1
      %p134 = por %p132, %p133
      %p136 = scmp.ne.s32.totalorder %s121, %s135
      %p137 = scmp.eq.s32.totalorder %s27, 0
      %p138 = por %p136, %p137
      %s140 = sadd.s32 %s139, 1
      %p143 = scmp.eq.s32.totalorder %s21, 1
      %p144 = scmp.ne.s32.totalorder %s139, %s141
      %p145 = scmp.eq.s32.totalorder %s21, 0
      %p146 = por %p144, %p145
      %p147 = scmp.ne.s32.totalorder %s139, %s141
      %p148 = scmp.eq.s32.totalorder %s26, 1
      %p149 = por %p147, %p148
      %p150 = scmp.ne.s32.totalorder %s141, %s142
      %p151 = scmp.eq.s32.totalorder %s26, 0
      %p152 = por %p150, %p151
      %p153 = scmp.ne.s32.totalorder %s141, %s142
      %p154 = scmp.eq.s32.totalorder %s27, 1
      %p155 = por %p153, %p154
      %p157 = scmp.ne.s32.totalorder %s142, %s156
      %p158 = scmp.eq.s32.totalorder %s27, 0
      %p159 = por %p157, %p158
      %s161 = sadd.s32 %s160, 1
      %p164 = scmp.eq.s32.totalorder %s21, 1
      %p165 = scmp.ne.s32.totalorder %s160, %s162
      %p166 = scmp.eq.s32.totalorder %s21, 0
      %p167 = por %p165, %p166
      %p168 = scmp.ne.s32.totalorder %s160, %s162
      %p169 = scmp.eq.s32.totalorder %s26, 1
      %p170 = por %p168, %p169
      %p171 = scmp.ne.s32.totalorder %s162, %s163
      %p172 = scmp.eq.s32.totalorder %s26, 0
      %p173 = por %p171, %p172
      %p174 = scmp.ne.s32.totalorder %s162, %s163
      %p175 = scmp.eq.s32.totalorder %s27, 1
      %p176 = por %p174, %p175
      %p178 = scmp.ne.s32.totalorder %s163, %s177
      %p179 = scmp.eq.s32.totalorder %s27, 0
      %p180 = por %p178, %p179
      %s182 = sadd.s32 %s181, 1
      %p185 = scmp.eq.s32.totalorder %s21, 1
      %p186 = scmp.ne.s32.totalorder %s181, %s183
      %p187 = scmp.eq.s32.totalorder %s21, 0
      %p188 = por %p186, %p187
      %p189 = scmp.ne.s32.totalorder %s181, %s183
      %p190 = scmp.eq.s32.totalorder %s26, 1
      %p191 = por %p189, %p190
      %p192 = scmp.ne.s32.totalorder %s183, %s184
      %p193 = scmp.eq.s32.totalorder %s26, 0
      %p194 = por %p192, %p193
      %p195 = scmp.ne.s32.totalorder %s183, %s184
      %p196 = scmp.eq.s32.totalorder %s27, 1
      %p197 = por %p195, %p196
      %p199 = scmp.ne.s32.totalorder %s184, %s198
      %p200 = scmp.eq.s32.totalorder %s27, 0
      %p201 = por %p199, %p200
      %s202 = ssub.s32 %s21, %s28
      %p203 = scmp.eq.s32.totalorder %s202, 0
      %s205 = sadd.s32 %s204, 1
      %s206 = scalar_select %p203, %s204, %s205
      %p209 = pneg %p203
      %p210 = scmp.eq.s32.totalorder %s21, 1
      %p211 = por %p209, %p210
      %p212 = scmp.ne.s32.totalorder %s204, %s207
      %p213 = scmp.eq.s32.totalorder %s21, 0
      %p214 = por %p212, %p213
      %p215 = scmp.ne.s32.totalorder %s204, %s207
      %p216 = scmp.eq.s32.totalorder %s26, 1
      %p217 = por %p215, %p216
      %p218 = scmp.ne.s32.totalorder %s207, %s208
      %p219 = scmp.eq.s32.totalorder %s26, 0
      %p220 = por %p218, %p219
      %p221 = scmp.ne.s32.totalorder %s207, %s208
      %p222 = scmp.eq.s32.totalorder %s27, 1
      %p223 = por %p221, %p222
      %p225 = scmp.ne.s32.totalorder %s208, %s224
      %p226 = scmp.eq.s32.totalorder %s27, 0
      %p227 = por %p225, %p226
      %p228 = scmp.le.s32.totalorder 1, %s21
      %p229 = scmp.lt.s32.totalorder %s21, 3
      %p230 = pnand %p228, %p229
      %p231 = pneg %p230
      // Predicated region
      $region9: #{tpu_custom_call.1} parent=5 // pred_check
        _
      $region10: #{tpu_custom_call.1} parent=5 // pred_check_branch
        %233 = sbr.rel (%p230) target = $region12
      $region11: #{tpu_custom_call.1} parent=5 // pred_region
        %s234 = ssub.s32 %s21, 1
        // Predicated region
        $region13: #{tpu_custom_call.1} parent=11 // pred_check
          %p235 = pneg %p68
        $region14: #{tpu_custom_call.1} parent=11 // pred_check_branch
          %237 = sbr.rel (%p235) target = $region16
        $region15: #{tpu_custom_call.1} parent=11 // pred_region
          _
        $region16: #{tpu_custom_call.1} parent=11 // pred_fallthru
          _
        // Predicated region
        $region17: #{tpu_custom_call.1} parent=11 // pred_check
          %p238 = pneg %p89
        $region18: #{tpu_custom_call.1} parent=11 // pred_check_branch
          %240 = sbr.rel (%p238) target = $region20
        $region19: #{tpu_custom_call.1} parent=11 // pred_region
          _
        $region20: #{tpu_custom_call.1} parent=11 // pred_fallthru
          _
        // Predicated region
        $region21: #{tpu_custom_call.1} parent=11 // pred_check
          %p241 = pneg %p110
        $region22: #{tpu_custom_call.1} parent=11 // pred_check_branch
          %243 = sbr.rel (%p241) target = $region24
        $region23: #{tpu_custom_call.1} parent=11 // pred_region
          _
        $region24: #{tpu_custom_call.1} parent=11 // pred_fallthru
          _
        // Predicated region
        $region25: #{tpu_custom_call.1} parent=11 // pred_check
          %p244 = pneg %p131
        $region26: #{tpu_custom_call.1} parent=11 // pred_check_branch
          %246 = sbr.rel (%p244) target = $region28
        $region27: #{tpu_custom_call.1} parent=11 // pred_region
          _
        $region28: #{tpu_custom_call.1} parent=11 // pred_fallthru
          _
        // Predicated region
        $region29: #{tpu_custom_call.1} parent=11 // pred_check
          %p247 = pneg %p152
        $region30: #{tpu_custom_call.1} parent=11 // pred_check_branch
          %249 = sbr.rel (%p247) target = $region32
        $region31: #{tpu_custom_call.1} parent=11 // pred_region
          %s251 = ssub.s32 9216, 9216
          %252 = vsyncadd [#allocation7], %s251
          %s253 = sshll.u32 [#allocation6], 4
          %s254 = int_to_ptr.vmem [resolvable:$true] %s253
          %259 = dma.hbm_to_vmem [thread:$0]  %s5, 9216, %s254, [#allocation7], 64, 64, 4
        $region32: #{tpu_custom_call.1} parent=11 // pred_fallthru
          _
        // Predicated region
        $region33: #{tpu_custom_call.1} parent=11 // pred_check
          %p260 = pneg %p173
        $region34: #{tpu_custom_call.1} parent=11 // pred_check_branch
          %262 = sbr.rel (%p260) target = $region36
        $region35: #{tpu_custom_call.1} parent=11 // pred_region
          _
        $region36: #{tpu_custom_call.1} parent=11 // pred_fallthru
          _
        // Predicated region
        $region37: #{tpu_custom_call.1} parent=11 // pred_check
          %p263 = pneg %p194
        $region38: #{tpu_custom_call.1} parent=11 // pred_check_branch
          %265 = sbr.rel (%p263) target = $region40
        $region39: #{tpu_custom_call.1} parent=11 // pred_region
          _
        $region40: #{tpu_custom_call.1} parent=11 // pred_fallthru
          _
      $region12: #{tpu_custom_call.1} parent=5 // pred_fallthru
        _
      %p266 = scmp.lt.s32.totalorder %s21, 2
      // Predicated region
      $region41: #{tpu_custom_call.1} parent=5 // pred_check
        %p267 = pneg %p266
      $region42: #{tpu_custom_call.1} parent=5 // pred_check_branch
        %269 = sbr.rel (%p267) target = $region44
      $region43: #{tpu_custom_call.1} parent=5 // pred_region
        // Predicated region
        $region45: #{tpu_custom_call.1} parent=43 // pred_check
          %p270 = pneg %p41
        $region46: #{tpu_custom_call.1} parent=43 // pred_check_branch
          %272 = sbr.rel (%p270) target = $region48
        $region47: #{tpu_custom_call.1} parent=43 // pred_region
          %s273 = sand.u32 %s31, 1
          %s274 = scalar_lea.sflag [#allocation4], %s273
          %s275 = sand.u32 %s31, 1
          %s276 = smul.addr %s275, 256
          %s277 = scalar_lea.vmem [#allocation3], %s276
          %s279 = ssub.s32 4096, 4096
          %280 = vsyncadd %s274, %s279
          %s281 = smul.addr %s21, 32
          %s282 = smul.addr %s281, 128
          %s283 = scalar_lea.hbm %s0, %s282
          %s284 = sshll.u32 %s277, 4
          %s285 = int_to_ptr.vmem [resolvable:$true] %s284
          %290 = dma.hbm_to_vmem [thread:$0]  %s283, 4096, %s285, %s274, 128, 128, 8
        $region48: #{tpu_custom_call.1} parent=43 // pred_fallthru
          _
      $region44: #{tpu_custom_call.1} parent=5 // pred_fallthru
        _
      %p291 = scmp.le.s32.totalorder 1, %s21
      %p292 = scmp.lt.s32.totalorder %s21, 3
      %p293 = pnand %p291, %p292
      %p294 = pneg %p293
      // Predicated region
      $region49: #{tpu_custom_call.1} parent=5 // pred_check
        _
      $region50: #{tpu_custom_call.1} parent=5 // pred_check_branch
        %296 = sbr.rel (%p293) target = $region52
      $region51: #{tpu_custom_call.1} parent=5 // pred_region
        %s297 = ssub.s32 %s21, 1
        %s298 = sand.u32 %s34, 1
        %s299 = scalar_lea.sflag [#allocation4], %s298
        %s300 = sand.u32 %s34, 1
        %s301 = smul.addr %s300, 256
        %s302 = scalar_lea.vmem [#allocation3], %s301
        // Predicated region
        $region53: #{tpu_custom_call.1} parent=51 // pred_check
          %p303 = pneg %p47
        $region54: #{tpu_custom_call.1} parent=51 // pred_check_branch
          %305 = sbr.rel (%p303) target = $region56
        $region55: #{tpu_custom_call.1} parent=51 // pred_region
          %306 = dma.done %s299, 4096
        $region56: #{tpu_custom_call.1} parent=51 // pred_fallthru
          _
        // Predicated region
        $region57: #{tpu_custom_call.1} parent=51 // pred_check
          %p307 = pneg %p152
        $region58: #{tpu_custom_call.1} parent=51 // pred_check_branch
          %309 = sbr.rel (%p307) target = $region60
        $region59: #{tpu_custom_call.1} parent=51 // pred_region
          %310 = dma.done [#allocation7], 9216
        $region60: #{tpu_custom_call.1} parent=51 // pred_fallthru
          _
        %s311 = sand.u32 %s34, 1
        %s312 = scalar_lea.sflag [#allocation4], %s311
        %s313 = sand.u32 %s34, 1
        %s314 = smul.addr %s313, 256
        %s315 = scalar_lea.vmem [#allocation3], %s314
        %p316 = pneg %p47
        %p317 = pneg %p44
        %p318 = pneg %p68
        %p319 = pneg %p65
        %p320 = pneg %p89
        %p321 = pneg %p86
        %p322 = pneg %p110
        %p323 = pneg %p107
        %p324 = pneg %p131
        %p325 = pneg %p128
        %p326 = pneg %p152
        %p327 = pneg %p149
        %p328 = pneg %p173
        %p329 = pneg %p170
        %p330 = pneg %p194
        %p331 = pneg %p191
        %p332 = pneg %p220
        %p333 = pneg %p217
        %s334 = sand.u32 %s207, 1
        %s335 = scalar_lea.sflag [#allocation5], %s334
        %s336 = sand.u32 %s207, 1
        %s337 = smul.addr %s336, 256
        %s338 = scalar_lea.vmem [#allocation8], %s337
        %p342 = scmp.eq.s32.totalorder %s26, 0
        // Predicated region
        $region61: #{tpu_custom_call.1} parent=51 // pred_check
          %p343 = pneg %p342
        $region62: #{tpu_custom_call.1} parent=51 // pred_check_branch
          %345 = sbr.rel (%p343) target = $region64
        $region63: #{tpu_custom_call.1} parent=51 // pred_region
          %346 = vst [vmem:[#allocation2] sm:$0xff] 0
          %347 = vst [vmem:[#allocation2 + $0x8] sm:$0xff] 0
          %348 = vst [vmem:[#allocation2 + $0x90] sm:$0xff] 0
          %349 = vst [vmem:[#allocation2 + $0x98] sm:$0xff] 0
        $region64: #{tpu_custom_call.1} parent=51 // pred_fallthru
          _
        %v350 = vld [vmem:[%s302] sm:$0xff]
        %v351 = vld [vmem:[%s302 + $0x8] sm:$0xff]
        %v352 = vld [vmem:[%s302 + $0x10] sm:$0xff]
        %v353 = vld [vmem:[%s302 + $0x18] sm:$0xff]
        %v354 = vld [vmem:[%s302 + $0x20] sm:$0xff]
        %v355 = vld [vmem:[%s302 + $0x28] sm:$0xff]
        %v356 = vld [vmem:[%s302 + $0x30] sm:$0xff]
        %v357 = vld [vmem:[%s302 + $0x38] sm:$0xff]
        %v358 = vld [vmem:[%s302 + $0x40] sm:$0xff]
        %v359 = vld [vmem:[%s302 + $0x48] sm:$0xff]
        %v360 = vld [vmem:[%s302 + $0x50] sm:$0xff]
        %v361 = vld [vmem:[%s302 + $0x58] sm:$0xff]
        %v362 = vld [vmem:[%s302 + $0x60] sm:$0xff]
        %v363 = vld [vmem:[%s302 + $0x68] sm:$0xff]
        %v364 = vld [vmem:[%s302 + $0x70] sm:$0xff]
        %v365 = vld [vmem:[%s302 + $0x78] sm:$0xff]
        %v366 = vld [vmem:[%s302 + $0x80] sm:$0xff]
        %v367 = vld [vmem:[%s302 + $0x88] sm:$0xff]
        %v368 = vld [vmem:[%s302 + $0x90] sm:$0xff]
        %v369 = vld [vmem:[%s302 + $0x98] sm:$0xff]
        %v370 = vld [vmem:[%s302 + $0xa0] sm:$0xff]
        %v371 = vld [vmem:[%s302 + $0xa8] sm:$0xff]
        %v372 = vld [vmem:[%s302 + $0xb0] sm:$0xff]
        %v373 = vld [vmem:[%s302 + $0xb8] sm:$0xff]
        %v374 = vld [vmem:[%s302 + $0xc0] sm:$0xff]
        %v375 = vld [vmem:[%s302 + $0xc8] sm:$0xff]
        %v376 = vld [vmem:[%s302 + $0xd0] sm:$0xff]
        %v377 = vld [vmem:[%s302 + $0xd8] sm:$0xff]
        %v378 = vld [vmem:[%s302 + $0xe0] sm:$0xff]
        %v379 = vld [vmem:[%s302 + $0xe8] sm:$0xff]
        %v380 = vld [vmem:[%s302 + $0xf0] sm:$0xff]
        %v381 = vld [vmem:[%s302 + $0xf8] sm:$0xff]
        %v382 = vpack.c.bf16 %v351, %v350
        %v383 = vpack.c.bf16 %v353, %v352
        %v384 = vpack.c.bf16 %v355, %v354
        %v385 = vpack.c.bf16 %v357, %v356
        %v386 = vpack.c.bf16 %v359, %v358
        %v387 = vpack.c.bf16 %v361, %v360
        %v388 = vpack.c.bf16 %v363, %v362
        %v389 = vpack.c.bf16 %v365, %v364
        %v390 = vpack.c.bf16 %v367, %v366
        %v391 = vpack.c.bf16 %v369, %v368
        %v392 = vpack.c.bf16 %v371, %v370
        %v393 = vpack.c.bf16 %v373, %v372
        %v394 = vpack.c.bf16 %v375, %v374
        %v395 = vpack.c.bf16 %v377, %v376
        %v396 = vpack.c.bf16 %v379, %v378
        %v397 = vpack.c.bf16 %v381, %v380
        %v398 = vld [vmem:[%s3] sm:$0xf]
        %v399 = vld [vmem:[%s3 + $0x4] sm:$0xf]
        %v400 = vld [vmem:[%s3 + $0x8] sm:$0xf]
        %v401 = vld [vmem:[%s3 + $0xc] sm:$0xf]
        %v402 = vld [vmem:[%s3 + $0x10] sm:$0xf]
        %v403 = vld [vmem:[%s3 + $0x14] sm:$0xf]
        %v404 = vld [vmem:[%s3 + $0x18] sm:$0xf]
        %v405 = vld [vmem:[%s3 + $0x1c] sm:$0xf]
        %v406 = vld [vmem:[%s3 + $0x20] sm:$0xf]
        %v407 = vld [vmem:[%s3 + $0x24] sm:$0xf]
        %v408 = vld [vmem:[%s3 + $0x28] sm:$0xf]
        %v409 = vld [vmem:[%s3 + $0x2c] sm:$0xf]
        %v410 = vld [vmem:[%s3 + $0x30] sm:$0xf]
        %v411 = vld [vmem:[%s3 + $0x34] sm:$0xf]
        %v412 = vld [vmem:[%s3 + $0x38] sm:$0xf]
        %v413 = vld [vmem:[%s3 + $0x3c] sm:$0xf]
        %v414 = vld [vmem:[%s2] sm:$0x1]
        %v416 = vlaneseq
        %v417 = vshrl.u32 %v416, 7
        %v418 = vsub.s32 0, %v417
        %v419 = vrot.slane %v414, %v418
        %v437 = vunpack.c.l.b16 %v398
        %v438 = vunpack.c.l.b16 %v399
        %v439 = vunpack.c.l.b16 %v400
        %v440 = vunpack.c.l.b16 %v401
        %v441 = vunpack.c.l.b16 %v402
        %v442 = vunpack.c.l.b16 %v403
        %v443 = vunpack.c.l.b16 %v404
        %v444 = vunpack.c.l.b16 %v405
        %v445 = vunpack.c.l.b16 %v406
        %v446 = vunpack.c.l.b16 %v407
        %v447 = vunpack.c.l.b16 %v408
        %v448 = vunpack.c.l.b16 %v409
        %v449 = vunpack.c.l.b16 %v410
        %v450 = vunpack.c.l.b16 %v411
        %v451 = vunpack.c.l.b16 %v412
        %v452 = vunpack.c.l.b16 %v413
        %v453 = vpack.c.b16 %v438, %v437
        %v454 = vpack.c.b16 %v440, %v439
        %v455 = vpack.c.b16 %v442, %v441
        %v456 = vpack.c.b16 %v444, %v443
        %v457 = vpack.c.b16 %v446, %v445
        %v458 = vpack.c.b16 %v448, %v447
        %v459 = vpack.c.b16 %v450, %v449
        %v460 = vpack.c.b16 %v452, %v451
        %469 = vmatprep.subr.bf16.mxu0 0
        %470 = vmatpush1.bf16.msra.mxu0 %v453
        %471 = vmatprep.subr.bf16.mxu0 0
        %472 = vmatpush1.bf16.msra.mxu0 %v454
        %473 = vmatprep.subr.bf16.mxu0 0
        %474 = vmatpush1.bf16.msra.mxu0 %v455
        %475 = vmatprep.subr.bf16.mxu0 0
        %476 = vmatpush1.bf16.msra.mxu0 %v456
        %477 = vmatprep.subr.bf16.mxu0 0
        %478 = vmatpush1.bf16.msra.mxu0 %v457
        %479 = vmatprep.subr.bf16.mxu0 0
        %480 = vmatpush1.bf16.msra.mxu0 %v458
        %481 = vmatprep.subr.bf16.mxu0 0
        %482 = vmatpush1.bf16.msra.mxu0 %v459
        %483 = vmatprep.subr.bf16.mxu0 0
        %484 = vmatpush1.bf16.msra.mxu0 %v460
        %485 = vmatprep.subr.bf16.mxu0 0
        %486 = vmatpush1.bf16.msra.mxu0 0
        %487 = vmatprep.subr.bf16.mxu0 0
        %488 = vmatpush1.bf16.msra.mxu0 0
        %489 = vmatprep.subr.bf16.mxu0 0
        %490 = vmatpush1.bf16.msra.mxu0 0
        %491 = vmatprep.subr.bf16.mxu0 0
        %492 = vmatpush1.bf16.msra.mxu0 0
        %493 = vmatprep.subr.bf16.mxu0 0
        %494 = vmatpush1.bf16.msra.mxu0 0
        %495 = vmatprep.subr.bf16.mxu0 0
        %496 = vmatpush1.bf16.msra.mxu0 0
        %497 = vmatprep.subr.bf16.mxu0 0
        %498 = vmatpush1.bf16.msra.mxu0 0
        %499 = vmatprep.subr.bf16.mxu0 0
        %500 = vmatpush1.bf16.msra.mxu0 0
        %501 = vmatprep.mubr.bf16.mxu0 0
        %502 = vmatmul.mubr.bf16.gmra.mrb[0].mxu0 %v382
        %v503 = vpop.f32.mrb[0].mxu0
        %v504 = vadd.f32 %v419, %v503
        %v505 = vpop.f32.mrb[0].mxu0
        %v506 = vpop.f32.mrb[0].mxu0
        %v507 = vadd.f32 %v419, %v506
        %v508 = vpop.f32.mrb[0].mxu0
        %509 = vmatprep.mubr.bf16.mxu0 0
        %510 = vmatmul.mubr.bf16.gmra.mrb[0].mxu0 %v383
        %v511 = vpop.f32.mrb[0].mxu0
        %v512 = vadd.f32 %v419, %v511
        %v513 = vpop.f32.mrb[0].mxu0
        %v514 = vpop.f32.mrb[0].mxu0
        %v515 = vadd.f32 %v419, %v514
        %v516 = vpop.f32.mrb[0].mxu0
        %517 = vmatprep.mubr.bf16.mxu0 0
        %518 = vmatmul.mubr.bf16.gmra.mrb[0].mxu0 %v384
        %v519 = vpop.f32.mrb[0].mxu0
        %v520 = vadd.f32 %v419, %v519
        %v521 = vpop.f32.mrb[0].mxu0
        %v522 = vpop.f32.mrb[0].mxu0
        %v523 = vadd.f32 %v419, %v522
        %v524 = vpop.f32.mrb[0].mxu0
        %525 = vmatprep.mubr.bf16.mxu0 0
        %526 = vmatmul.mubr.bf16.gmra.mrb[0].mxu0 %v385
        %v527 = vpop.f32.mrb[0].mxu0
        %v528 = vadd.f32 %v419, %v527
        %v529 = vpop.f32.mrb[0].mxu0
        %v530 = vpop.f32.mrb[0].mxu0
        %v531 = vadd.f32 %v419, %v530
        %v532 = vpop.f32.mrb[0].mxu0
        %533 = vmatprep.mubr.bf16.mxu0 0
        %534 = vmatmul.mubr.bf16.gmra.mrb[0].mxu0 %v386
        %v535 = vpop.f32.mrb[0].mxu0
        %v536 = vadd.f32 %v419, %v535
        %v537 = vpop.f32.mrb[0].mxu0
        %v538 = vpop.f32.mrb[0].mxu0
        %v539 = vadd.f32 %v419, %v538
        %v540 = vpop.f32.mrb[0].mxu0
        %541 = vmatprep.mubr.bf16.mxu0 0
        %542 = vmatmul.mubr.bf16.gmra.mrb[0].mxu0 %v387
        %v543 = vpop.f32.mrb[0].mxu0
        %v544 = vadd.f32 %v419, %v543
        %v545 = vpop.f32.mrb[0].mxu0
        %v546 = vpop.f32.mrb[0].mxu0
        %v547 = vadd.f32 %v419, %v546
        %v548 = vpop.f32.mrb[0].mxu0
        %549 = vmatprep.mubr.bf16.mxu0 0
        %550 = vmatmul.mubr.bf16.gmra.mrb[0].mxu0 %v388
        %v551 = vpop.f32.mrb[0].mxu0
        %v552 = vadd.f32 %v419, %v551
        %v553 = vpop.f32.mrb[0].mxu0
        %v554 = vpop.f32.mrb[0].mxu0
        %v555 = vadd.f32 %v419, %v554
        %v556 = vpop.f32.mrb[0].mxu0
        %557 = vmatprep.mubr.bf16.mxu0 0
        %558 = vmatmul.mubr.bf16.gmra.mrb[0].mxu0 %v389
        %v559 = vpop.f32.mrb[0].mxu0
        %v560 = vadd.f32 %v419, %v559
        %v561 = vpop.f32.mrb[0].mxu0
        %v562 = vpop.f32.mrb[0].mxu0
        %v563 = vadd.f32 %v419, %v562
        %v564 = vpop.f32.mrb[0].mxu0
        %565 = vmatprep.mubr.bf16.mxu0 0
        %566 = vmatmul.mubr.bf16.gmra.mrb[0].mxu0 %v390
        %v567 = vpop.f32.mrb[0].mxu0
        %v568 = vadd.f32 %v419, %v567
        %v569 = vpop.f32.mrb[0].mxu0
        %v570 = vpop.f32.mrb[0].mxu0
        %v571 = vadd.f32 %v419, %v570
        %v572 = vpop.f32.mrb[0].mxu0
        %573 = vmatprep.mubr.bf16.mxu0 0
        %574 = vmatmul.mubr.bf16.gmra.mrb[0].mxu0 %v391
        %v575 = vpop.f32.mrb[0].mxu0
        %v576 = vadd.f32 %v419, %v575
        %v577 = vpop.f32.mrb[0].mxu0
        %v578 = vpop.f32.mrb[0].mxu0
        %v579 = vadd.f32 %v419, %v578
        %v580 = vpop.f32.mrb[0].mxu0
        %581 = vmatprep.mubr.bf16.mxu0 0
        %582 = vmatmul.mubr.bf16.gmra.mrb[0].mxu0 %v392
        %v583 = vpop.f32.mrb[0].mxu0
        %v584 = vadd.f32 %v419, %v583
        %v585 = vpop.f32.mrb[0].mxu0
        %v586 = vpop.f32.mrb[0].mxu0
        %v587 = vadd.f32 %v419, %v586
        %v588 = vpop.f32.mrb[0].mxu0
        %589 = vmatprep.mubr.bf16.mxu0 0
        %590 = vmatmul.mubr.bf16.gmra.mrb[0].mxu0 %v393
        %v591 = vpop.f32.mrb[0].mxu0
        %v592 = vadd.f32 %v419, %v591
        %v593 = vpop.f32.mrb[0].mxu0
        %v594 = vpop.f32.mrb[0].mxu0
        %v595 = vadd.f32 %v419, %v594
        %v596 = vpop.f32.mrb[0].mxu0
        %597 = vmatprep.mubr.bf16.mxu0 0
        %598 = vmatmul.mubr.bf16.gmra.mrb[0].mxu0 %v394
        %v599 = vpop.f32.mrb[0].mxu0
        %v600 = vadd.f32 %v419, %v599
        %v601 = vpop.f32.mrb[0].mxu0
        %v602 = vpop.f32.mrb[0].mxu0
        %v603 = vadd.f32 %v419, %v602
        %v604 = vpop.f32.mrb[0].mxu0
        %605 = vmatprep.mubr.bf16.mxu0 0
        %606 = vmatmul.mubr.bf16.gmra.mrb[0].mxu0 %v395
        %v607 = vpop.f32.mrb[0].mxu0
        %v608 = vadd.f32 %v419, %v607
        %v609 = vpop.f32.mrb[0].mxu0
        %v610 = vpop.f32.mrb[0].mxu0
        %v611 = vadd.f32 %v419, %v610
        %v612 = vpop.f32.mrb[0].mxu0
        %613 = vmatprep.mubr.bf16.mxu0 0
        %614 = vmatmul.mubr.bf16.gmra.mrb[0].mxu0 %v396
        %v615 = vpop.f32.mrb[0].mxu0
        %v616 = vadd.f32 %v419, %v615
        %v617 = vpop.f32.mrb[0].mxu0
        %v618 = vpop.f32.mrb[0].mxu0
        %v619 = vadd.f32 %v419, %v618
        %v620 = vpop.f32.mrb[0].mxu0
        %621 = vmatprep.mubr.bf16.mxu0 0
        %622 = vmatmul.mubr.bf16.gmra.mrb[0].mxu0 %v397
        %v623 = vpop.f32.mrb[0].mxu0
        %v624 = vadd.f32 %v419, %v623
        %v625 = vpop.f32.mrb[0].mxu0
        %v626 = vpop.f32.mrb[0].mxu0
        %v627 = vadd.f32 %v419, %v626
        %v628 = vpop.f32.mrb[0].mxu0
        %629 = vdwg.mxu0
        %v630 = vmax.f32 %v504, 0.0
        %v631 = vmax.f32 %v507, 0.0
        %v632 = vmax.f32 %v512, 0.0
        %v633 = vmax.f32 %v515, 0.0
        %v634 = vmax.f32 %v520, 0.0
        %v635 = vmax.f32 %v523, 0.0
        %v636 = vmax.f32 %v528, 0.0
        %v637 = vmax.f32 %v531, 0.0
        %v638 = vmax.f32 %v536, 0.0
        %v639 = vmax.f32 %v539, 0.0
        %v640 = vmax.f32 %v544, 0.0
        %v641 = vmax.f32 %v547, 0.0
        %v642 = vmax.f32 %v552, 0.0
        %v643 = vmax.f32 %v555, 0.0
        %v644 = vmax.f32 %v560, 0.0
        %v645 = vmax.f32 %v563, 0.0
        %v646 = vmax.f32 %v568, 0.0
        %v647 = vmax.f32 %v571, 0.0
        %v648 = vmax.f32 %v576, 0.0
        %v649 = vmax.f32 %v579, 0.0
        %v650 = vmax.f32 %v584, 0.0
        %v651 = vmax.f32 %v587, 0.0
        %v652 = vmax.f32 %v592, 0.0
        %v653 = vmax.f32 %v595, 0.0
        %v654 = vmax.f32 %v600, 0.0
        %v655 = vmax.f32 %v603, 0.0
        %v656 = vmax.f32 %v608, 0.0
        %v657 = vmax.f32 %v611, 0.0
        %v658 = vmax.f32 %v616, 0.0
        %v659 = vmax.f32 %v619, 0.0
        %v660 = vmax.f32 %v624, 0.0
        %v661 = vmax.f32 %v627, 0.0
        %v662 = vpack.c.bf16 %v631, %v630
        %v663 = vpack.c.bf16 %v633, %v632
        %v664 = vpack.c.bf16 %v635, %v634
        %v665 = vpack.c.bf16 %v637, %v636
        %v666 = vpack.c.bf16 %v639, %v638
        %v667 = vpack.c.bf16 %v641, %v640
        %v668 = vpack.c.bf16 %v643, %v642
        %v669 = vpack.c.bf16 %v645, %v644
        %v670 = vpack.c.bf16 %v647, %v646
        %v671 = vpack.c.bf16 %v649, %v648
        %v672 = vpack.c.bf16 %v651, %v650
        %v673 = vpack.c.bf16 %v653, %v652
        %v674 = vpack.c.bf16 %v655, %v654
        %v675 = vpack.c.bf16 %v657, %v656
        %v676 = vpack.c.bf16 %v659, %v658
        %v677 = vpack.c.bf16 %v661, %v660
        %678 = vst [vmem:[#allocation2 + $0x10] sm:$0xff] %v662
        %679 = vst [vmem:[#allocation2 + $0x18] sm:$0xff] %v663
        %680 = vst [vmem:[#allocation2 + $0x20] sm:$0xff] %v664
        %681 = vst [vmem:[#allocation2 + $0x28] sm:$0xff] %v665
        %682 = vst [vmem:[#allocation2 + $0x30] sm:$0xff] %v666
        %683 = vst [vmem:[#allocation2 + $0x38] sm:$0xff] %v667
        %684 = vst [vmem:[#allocation2 + $0x40] sm:$0xff] %v668
        %685 = vst [vmem:[#allocation2 + $0x48] sm:$0xff] %v669
        %686 = vst [vmem:[#allocation2 + $0x50] sm:$0xff] %v670
        %687 = vst [vmem:[#allocation2 + $0x58] sm:$0xff] %v671
        %688 = vst [vmem:[#allocation2 + $0x60] sm:$0xff] %v672
        %689 = vst [vmem:[#allocation2 + $0x68] sm:$0xff] %v673
        %690 = vst [vmem:[#allocation2 + $0x70] sm:$0xff] %v674
        %691 = vst [vmem:[#allocation2 + $0x78] sm:$0xff] %v675
        %692 = vst [vmem:[#allocation2 + $0x80] sm:$0xff] %v676
        %693 = vst [vmem:[#allocation2 + $0x88] sm:$0xff] %v677
        %v694 = vld [vmem:[#allocation2] sm:$0x80]
        %v695 = vld [vmem:[#allocation2 + $0x8] sm:$0xff]
        %v696 = vld [vmem:[#allocation2 + $0x10] sm:$0xff]
        %v697 = vld [vmem:[#allocation2 + $0x18] sm:$0xff]
        %v698 = vld [vmem:[#allocation2 + $0x20] sm:$0xff]
        %v699 = vld [vmem:[#allocation2 + $0x28] sm:$0xff]
        %v700 = vld [vmem:[#allocation2 + $0x30] sm:$0xff]
        %v701 = vld [vmem:[#allocation2 + $0x38] sm:$0xff]
        %v702 = vld [vmem:[#allocation2 + $0x40] sm:$0xff]
        %v703 = vld [vmem:[#allocation2 + $0x48] sm:$0xff]
        %v704 = vld [vmem:[#allocation2 + $0x50] sm:$0xff]
        %v705 = vld [vmem:[#allocation2 + $0x58] sm:$0xff]
        %v706 = vld [vmem:[#allocation2 + $0x60] sm:$0xff]
        %v707 = vld [vmem:[#allocation2 + $0x68] sm:$0xff]
        %v708 = vld [vmem:[#allocation2 + $0x70] sm:$0xff]
        %v709 = vld [vmem:[#allocation2 + $0x78] sm:$0xff]
        %v710 = vld [vmem:[#allocation2 + $0x80] sm:$0xff]
        %v711 = vld [vmem:[%s1] sm:$0xff]
        %v712 = vld [vmem:[%s1 + $0x8] sm:$0xff]
        %v713 = vld [vmem:[%s1 + $0x10] sm:$0xff]
        %v714 = vld [vmem:[%s1 + $0x18] sm:$0xff]
        %v715 = vld [vmem:[%s1 + $0x20] sm:$0xff]
        %v716 = vld [vmem:[%s1 + $0x28] sm:$0xff]
        %v717 = vld [vmem:[%s1 + $0x30] sm:$0xff]
        %v718 = vld [vmem:[%s1 + $0x38] sm:$0xff]
        %v719 = vld [vmem:[%s1 + $0x40] sm:$0xff]
        %v720 = vld [vmem:[%s1 + $0x48] sm:$0xff]
        %v721 = vld [vmem:[%s1 + $0x50] sm:$0xff]
        %v722 = vld [vmem:[%s1 + $0x58] sm:$0xff]
        %v723 = vld [vmem:[%s1 + $0x60] sm:$0xff]
        %v724 = vld [vmem:[%s1 + $0x68] sm:$0xff]
        %v725 = vld [vmem:[%s1 + $0x70] sm:$0xff]
        %v726 = vld [vmem:[%s1 + $0x78] sm:$0xff]
        %v727 = vld [vmem:[%s1 + $0x80] sm:$0xff]
        %v728 = vld [vmem:[%s1 + $0x88] sm:$0xff]
        %v729 = vld [vmem:[%s1 + $0x90] sm:$0xff]
        %v730 = vld [vmem:[%s1 + $0x98] sm:$0xff]
        %v731 = vld [vmem:[%s1 + $0xa0] sm:$0xff]
        %v732 = vld [vmem:[%s1 + $0xa8] sm:$0xff]
        %v733 = vld [vmem:[%s1 + $0xb0] sm:$0xff]
        %v734 = vld [vmem:[%s1 + $0xb8] sm:$0xff]
        %v735 = vld [vmem:[%s1 + $0xc0] sm:$0xff]
        %v736 = vld [vmem:[%s1 + $0xc8] sm:$0xff]
        %v737 = vld [vmem:[%s1 + $0xd0] sm:$0xff]
        %v738 = vld [vmem:[%s1 + $0xd8] sm:$0xff]
        %v739 = vld [vmem:[%s1 + $0xe0] sm:$0xff]
        %v740 = vld [vmem:[%s1 + $0xe8] sm:$0xff]
        %v741 = vld [vmem:[%s1 + $0xf0] sm:$0xff]
        %v742 = vld [vmem:[%s1 + $0xf8] sm:$0xff]
        %vm743 = vcmp.gt.f32.partialorder %v711, 0.5
        %vm744 = vcmp.gt.f32.partialorder %v712, 0.5
        %vm745 = vcmp.gt.f32.partialorder %v713, 0.5
        %vm746 = vcmp.gt.f32.partialorder %v714, 0.5
        %vm747 = vcmp.gt.f32.partialorder %v715, 0.5
        %vm748 = vcmp.gt.f32.partialorder %v716, 0.5
        %vm749 = vcmp.gt.f32.partialorder %v717, 0.5
        %vm750 = vcmp.gt.f32.partialorder %v718, 0.5
        %vm751 = vcmp.gt.f32.partialorder %v719, 0.5
        %vm752 = vcmp.gt.f32.partialorder %v720, 0.5
        %vm753 = vcmp.gt.f32.partialorder %v721, 0.5
        %vm754 = vcmp.gt.f32.partialorder %v722, 0.5
        %vm755 = vcmp.gt.f32.partialorder %v723, 0.5
        %vm756 = vcmp.gt.f32.partialorder %v724, 0.5
        %vm757 = vcmp.gt.f32.partialorder %v725, 0.5
        %vm758 = vcmp.gt.f32.partialorder %v726, 0.5
        %vm759 = vcmp.gt.f32.partialorder %v727, 0.5
        %vm760 = vcmp.gt.f32.partialorder %v728, 0.5
        %vm761 = vcmp.gt.f32.partialorder %v729, 0.5
        %vm762 = vcmp.gt.f32.partialorder %v730, 0.5
        %vm763 = vcmp.gt.f32.partialorder %v731, 0.5
        %vm764 = vcmp.gt.f32.partialorder %v732, 0.5
        %vm765 = vcmp.gt.f32.partialorder %v733, 0.5
        %vm766 = vcmp.gt.f32.partialorder %v734, 0.5
        %vm767 = vcmp.gt.f32.partialorder %v735, 0.5
        %vm768 = vcmp.gt.f32.partialorder %v736, 0.5
        %vm769 = vcmp.gt.f32.partialorder %v737, 0.5
        %vm770 = vcmp.gt.f32.partialorder %v738, 0.5
        %vm771 = vcmp.gt.f32.partialorder %v739, 0.5
        %vm772 = vcmp.gt.f32.partialorder %v740, 0.5
        %vm773 = vcmp.gt.f32.partialorder %v741, 0.5
        %vm774 = vcmp.gt.f32.partialorder %v742, 0.5
        %v775 = vsel %vm743, 1, 0
        %v776 = vsel %vm744, 1, 0
        %v777 = vsel %vm745, 1, 0
        %v778 = vsel %vm746, 1, 0
        %v779 = vsel %vm747, 1, 0
        %v780 = vsel %vm748, 1, 0
        %v781 = vsel %vm749, 1, 0
        %v782 = vsel %vm750, 1, 0
        %v783 = vsel %vm751, 1, 0
        %v784 = vsel %vm752, 1, 0
        %v785 = vsel %vm753, 1, 0
        %v786 = vsel %vm754, 1, 0
        %v787 = vsel %vm755, 1, 0
        %v788 = vsel %vm756, 1, 0
        %v789 = vsel %vm757, 1, 0
        %v790 = vsel %vm758, 1, 0
        %v791 = vsel %vm759, 1, 0
        %v792 = vsel %vm760, 1, 0
        %v793 = vsel %vm761, 1, 0
        %v794 = vsel %vm762, 1, 0
        %v795 = vsel %vm763, 1, 0
        %v796 = vsel %vm764, 1, 0
        %v797 = vsel %vm765, 1, 0
        %v798 = vsel %vm766, 1, 0
        %v799 = vsel %vm767, 1, 0
        %v800 = vsel %vm768, 1, 0
        %v801 = vsel %vm769, 1, 0
        %v802 = vsel %vm770, 1, 0
        %v803 = vsel %vm771, 1, 0
        %v804 = vsel %vm772, 1, 0
        %v805 = vsel %vm773, 1, 0
        %v806 = vsel %vm774, 1, 0
        %807 = vset.pattern.permute.xlu0 0
        %808 = vperm.xlu0 %807, %v775
        %v809 = vpop.permute.xlu0 %808
        %810 = vset.pattern.permute.xlu0 0
        %811 = vperm.xlu0 %810, %v776
        %v812 = vpop.permute.xlu0 %811
        %813 = vset.pattern.permute.xlu0 0
        %814 = vperm.xlu0 %813, %v777
        %v815 = vpop.permute.xlu0 %814
        %816 = vset.pattern.permute.xlu0 0
        %817 = vperm.xlu0 %816, %v778
        %v818 = vpop.permute.xlu0 %817
        %819 = vset.pattern.permute.xlu0 0
        %820 = vperm.xlu0 %819, %v779
        %v821 = vpop.permute.xlu0 %820
        %822 = vset.pattern.permute.xlu0 0
        %823 = vperm.xlu0 %822, %v780
        %v824 = vpop.permute.xlu0 %823
        %825 = vset.pattern.permute.xlu0 0
        %826 = vperm.xlu0 %825, %v781
        %v827 = vpop.permute.xlu0 %826
        %828 = vset.pattern.permute.xlu0 0
        %829 = vperm.xlu0 %828, %v782
        %v830 = vpop.permute.xlu0 %829
        %831 = vset.pattern.permute.xlu0 0
        %832 = vperm.xlu0 %831, %v783
        %v833 = vpop.permute.xlu0 %832
        %834 = vset.pattern.permute.xlu0 0
        %835 = vperm.xlu0 %834, %v784
        %v836 = vpop.permute.xlu0 %835
        %837 = vset.pattern.permute.xlu0 0
        %838 = vperm.xlu0 %837, %v785
        %v839 = vpop.permute.xlu0 %838
        %840 = vset.pattern.permute.xlu0 0
        %841 = vperm.xlu0 %840, %v786
        %v842 = vpop.permute.xlu0 %841
        %843 = vset.pattern.permute.xlu0 0
        %844 = vperm.xlu0 %843, %v787
        %v845 = vpop.permute.xlu0 %844
        %846 = vset.pattern.permute.xlu0 0
        %847 = vperm.xlu0 %846, %v788
        %v848 = vpop.permute.xlu0 %847
        %849 = vset.pattern.permute.xlu0 0
        %850 = vperm.xlu0 %849, %v789
        %v851 = vpop.permute.xlu0 %850
        %852 = vset.pattern.permute.xlu0 0
        %853 = vperm.xlu0 %852, %v790
        %v854 = vpop.permute.xlu0 %853
        %855 = vset.pattern.permute.xlu0 0
        %856 = vperm.xlu0 %855, %v791
        %v857 = vpop.permute.xlu0 %856
        %858 = vset.pattern.permute.xlu0 0
        %859 = vperm.xlu0 %858, %v792
        %v860 = vpop.permute.xlu0 %859
        %861 = vset.pattern.permute.xlu0 0
        %862 = vperm.xlu0 %861, %v793
        %v863 = vpop.permute.xlu0 %862
        %864 = vset.pattern.permute.xlu0 0
        %865 = vperm.xlu0 %864, %v794
        %v866 = vpop.permute.xlu0 %865
        %867 = vset.pattern.permute.xlu0 0
        %868 = vperm.xlu0 %867, %v795
        %v869 = vpop.permute.xlu0 %868
        %870 = vset.pattern.permute.xlu0 0
        %871 = vperm.xlu0 %870, %v796
        %v872 = vpop.permute.xlu0 %871
        %873 = vset.pattern.permute.xlu0 0
        %874 = vperm.xlu0 %873, %v797
        %v875 = vpop.permute.xlu0 %874
        %876 = vset.pattern.permute.xlu0 0
        %877 = vperm.xlu0 %876, %v798
        %v878 = vpop.permute.xlu0 %877
        %879 = vset.pattern.permute.xlu0 0
        %880 = vperm.xlu0 %879, %v799
        %v881 = vpop.permute.xlu0 %880
        %882 = vset.pattern.permute.xlu0 0
        %883 = vperm.xlu0 %882, %v800
        %v884 = vpop.permute.xlu0 %883
        %885 = vset.pattern.permute.xlu0 0
        %886 = vperm.xlu0 %885, %v801
        %v887 = vpop.permute.xlu0 %886
        %888 = vset.pattern.permute.xlu0 0
        %889 = vperm.xlu0 %888, %v802
        %v890 = vpop.permute.xlu0 %889
        %891 = vset.pattern.permute.xlu0 0
        %892 = vperm.xlu0 %891, %v803
        %v893 = vpop.permute.xlu0 %892
        %894 = vset.pattern.permute.xlu0 0
        %895 = vperm.xlu0 %894, %v804
        %v896 = vpop.permute.xlu0 %895
        %897 = vset.pattern.permute.xlu0 0
        %898 = vperm.xlu0 %897, %v805
        %v899 = vpop.permute.xlu0 %898
        %900 = vset.pattern.permute.xlu0 0
        %901 = vperm.xlu0 %900, %v806
        %v902 = vpop.permute.xlu0 %901
        %vm903 = vcmp.eq.s32.totalorder %v809, 1
        %vm904 = vcmp.eq.s32.totalorder %v812, 1
        %vm905 = vcmp.eq.s32.totalorder %v815, 1
        %vm906 = vcmp.eq.s32.totalorder %v818, 1
        %vm907 = vcmp.eq.s32.totalorder %v821, 1
        %vm908 = vcmp.eq.s32.totalorder %v824, 1
        %vm909 = vcmp.eq.s32.totalorder %v827, 1
        %vm910 = vcmp.eq.s32.totalorder %v830, 1
        %vm911 = vcmp.eq.s32.totalorder %v833, 1
        %vm912 = vcmp.eq.s32.totalorder %v836, 1
        %vm913 = vcmp.eq.s32.totalorder %v839, 1
        %vm914 = vcmp.eq.s32.totalorder %v842, 1
        %vm915 = vcmp.eq.s32.totalorder %v845, 1
        %vm916 = vcmp.eq.s32.totalorder %v848, 1
        %vm917 = vcmp.eq.s32.totalorder %v851, 1
        %vm918 = vcmp.eq.s32.totalorder %v854, 1
        %vm919 = vcmp.eq.s32.totalorder %v857, 1
        %vm920 = vcmp.eq.s32.totalorder %v860, 1
        %vm921 = vcmp.eq.s32.totalorder %v863, 1
        %vm922 = vcmp.eq.s32.totalorder %v866, 1
        %vm923 = vcmp.eq.s32.totalorder %v869, 1
        %vm924 = vcmp.eq.s32.totalorder %v872, 1
        %vm925 = vcmp.eq.s32.totalorder %v875, 1
        %vm926 = vcmp.eq.s32.totalorder %v878, 1
        %vm927 = vcmp.eq.s32.totalorder %v881, 1
        %vm928 = vcmp.eq.s32.totalorder %v884, 1
        %vm929 = vcmp.eq.s32.totalorder %v887, 1
        %vm930 = vcmp.eq.s32.totalorder %v890, 1
        %vm931 = vcmp.eq.s32.totalorder %v893, 1
        %vm932 = vcmp.eq.s32.totalorder %v896, 1
        %vm933 = vcmp.eq.s32.totalorder %v899, 1
        %vm934 = vcmp.eq.s32.totalorder %v902, 1
        %vm935 = vmpackc.low %vm903, %vm903
        %vm936 = vmpackc.low %vm904, %vm904
        %vm937 = vmpackc.low %vm905, %vm905
        %vm938 = vmpackc.low %vm906, %vm906
        %vm939 = vmpackc.low %vm907, %vm907
        %vm940 = vmpackc.low %vm908, %vm908
        %vm941 = vmpackc.low %vm909, %vm909
        %vm942 = vmpackc.low %vm910, %vm910
        %vm943 = vmpackc.low %vm911, %vm911
        %vm944 = vmpackc.low %vm912, %vm912
        %vm945 = vmpackc.low %vm913, %vm913
        %vm946 = vmpackc.low %vm914, %vm914
        %vm947 = vmpackc.low %vm915, %vm915
        %vm948 = vmpackc.low %vm916, %vm916
        %vm949 = vmpackc.low %vm917, %vm917
        %vm950 = vmpackc.low %vm918, %vm918
        %vm951 = vmpackc.low %vm919, %vm919
        %vm952 = vmpackc.low %vm920, %vm920
        %vm953 = vmpackc.low %vm921, %vm921
        %vm954 = vmpackc.low %vm922, %vm922
        %vm955 = vmpackc.low %vm923, %vm923
        %vm956 = vmpackc.low %vm924, %vm924
        %vm957 = vmpackc.low %vm925, %vm925
        %vm958 = vmpackc.low %vm926, %vm926
        %vm959 = vmpackc.low %vm927, %vm927
        %vm960 = vmpackc.low %vm928, %vm928
        %vm961 = vmpackc.low %vm929, %vm929
        %vm962 = vmpackc.low %vm930, %vm930
        %vm963 = vmpackc.low %vm931, %vm931
        %vm964 = vmpackc.low %vm932, %vm932
        %vm965 = vmpackc.low %vm933, %vm933
        %vm966 = vmpackc.low %vm934, %vm934
        %v967 = vsel %vm935, 65537, 0
        %v968 = vsel %vm936, 65537, 0
        %v969 = vsel %vm937, 65537, 0
        %v970 = vsel %vm938, 65537, 0
        %v971 = vsel %vm939, 65537, 0
        %v972 = vsel %vm940, 65537, 0
        %v973 = vsel %vm941, 65537, 0
        %v974 = vsel %vm942, 65537, 0
        %v975 = vsel %vm943, 65537, 0
        %v976 = vsel %vm944, 65537, 0
        %v977 = vsel %vm945, 65537, 0
        %v978 = vsel %vm946, 65537, 0
        %v979 = vsel %vm947, 65537, 0
        %v980 = vsel %vm948, 65537, 0
        %v981 = vsel %vm949, 65537, 0
        %v982 = vsel %vm950, 65537, 0
        %v983 = vsel %vm951, 65537, 0
        %v984 = vsel %vm952, 65537, 0
        %v985 = vsel %vm953, 65537, 0
        %v986 = vsel %vm954, 65537, 0
        %v987 = vsel %vm955, 65537, 0
        %v988 = vsel %vm956, 65537, 0
        %v989 = vsel %vm957, 65537, 0
        %v990 = vsel %vm958, 65537, 0
        %v991 = vsel %vm959, 65537, 0
        %v992 = vsel %vm960, 65537, 0
        %v993 = vsel %vm961, 65537, 0
        %v994 = vsel %vm962, 65537, 0
        %v995 = vsel %vm963, 65537, 0
        %v996 = vsel %vm964, 65537, 0
        %v997 = vsel %vm965, 65537, 0
        %v998 = vsel %vm966, 65537, 0
        %v999 = vunpack.c.l.b16 %v967
        %v1000 = vunpack.c.l.b16 %v968
        %v1001 = vunpack.c.l.b16 %v969
        %v1002 = vunpack.c.l.b16 %v970
        %v1003 = vunpack.c.l.b16 %v971
        %v1004 = vunpack.c.l.b16 %v972
        %v1005 = vunpack.c.l.b16 %v973
        %v1006 = vunpack.c.l.b16 %v974
        %v1007 = vunpack.c.l.b16 %v975
        %v1008 = vunpack.c.l.b16 %v976
        %v1009 = vunpack.c.l.b16 %v977
        %v1010 = vunpack.c.l.b16 %v978
        %v1011 = vunpack.c.l.b16 %v979
        %v1012 = vunpack.c.l.b16 %v980
        %v1013 = vunpack.c.l.b16 %v981
        %v1014 = vunpack.c.l.b16 %v982
        %v1015 = vunpack.c.l.b16 %v983
        %v1016 = vunpack.c.l.b16 %v984
        %v1017 = vunpack.c.l.b16 %v985
        %v1018 = vunpack.c.l.b16 %v986
        %v1019 = vunpack.c.l.b16 %v987
        %v1020 = vunpack.c.l.b16 %v988
        %v1021 = vunpack.c.l.b16 %v989
        %v1022 = vunpack.c.l.b16 %v990
        %v1023 = vunpack.c.l.b16 %v991
        %v1024 = vunpack.c.l.b16 %v992
        %v1025 = vunpack.c.l.b16 %v993
        %v1026 = vunpack.c.l.b16 %v994
        %v1027 = vunpack.c.l.b16 %v995
        %v1028 = vunpack.c.l.b16 %v996
        %v1029 = vunpack.c.l.b16 %v997
        %v1030 = vunpack.c.l.b16 %v998
        %v1031 = vpack.c.b16 %v1000, %v999
        %v1032 = vpack.c.b16 %v1002, %v1001
        %v1033 = vpack.c.b16 %v1004, %v1003
        %v1034 = vpack.c.b16 %v1006, %v1005
        %v1035 = vpack.c.b16 %v1008, %v1007
        %v1036 = vpack.c.b16 %v1010, %v1009
        %v1037 = vpack.c.b16 %v1012, %v1011
        %v1038 = vpack.c.b16 %v1014, %v1013
        %v1039 = vpack.c.b16 %v1016, %v1015
        %v1040 = vpack.c.b16 %v1018, %v1017
        %v1041 = vpack.c.b16 %v1020, %v1019
        %v1042 = vpack.c.b16 %v1022, %v1021
        %v1043 = vpack.c.b16 %v1024, %v1023
        %v1044 = vpack.c.b16 %v1026, %v1025
        %v1045 = vpack.c.b16 %v1028, %v1027
        %v1046 = vpack.c.b16 %v1030, %v1029
        %vm1047 = vsmask.f32 7424
        %v1049 = vshll.u32 %v1031, 16
        %v1051 = vrot.slane %v1049, 1
        %v1052 = vshrl.u32 %v1031, 16
        %v1054 = vor.u32 %v1052, %v1051
        %v1056 = vshll.u32 %v1032, 16
        %v1058 = vrot.slane %v1056, 1
        %v1059 = vsel %vm1047, %v1054, %v1058
        %v1060 = vshrl.u32 %v1032, 16
        %v1062 = vor.u32 %v1060, %v1058
        %v1064 = vshll.u32 %v1033, 16
        %v1066 = vrot.slane %v1064, 1
        %v1067 = vsel %vm1047, %v1062, %v1066
        %v1068 = vshrl.u32 %v1033, 16
        %v1070 = vor.u32 %v1068, %v1066
        %v1072 = vshll.u32 %v1034, 16
        %v1074 = vrot.slane %v1072, 1
        %v1075 = vsel %vm1047, %v1070, %v1074
        %v1076 = vshrl.u32 %v1034, 16
        %v1078 = vor.u32 %v1076, %v1074
        %v1080 = vshll.u32 %v1035, 16
        %v1082 = vrot.slane %v1080, 1
        %v1083 = vsel %vm1047, %v1078, %v1082
        %v1084 = vshrl.u32 %v1035, 16
        %v1086 = vor.u32 %v1084, %v1082
        %v1088 = vshll.u32 %v1036, 16
        %v1090 = vrot.slane %v1088, 1
        %v1091 = vsel %vm1047, %v1086, %v1090
        %v1092 = vshrl.u32 %v1036, 16
        %v1094 = vor.u32 %v1092, %v1090
        %v1096 = vshll.u32 %v1037, 16
        %v1098 = vrot.slane %v1096, 1
        %v1099 = vsel %vm1047, %v1094, %v1098
        %v1100 = vshrl.u32 %v1037, 16
        %v1102 = vor.u32 %v1100, %v1098
        %v1104 = vshll.u32 %v1038, 16
        %v1106 = vrot.slane %v1104, 1
        %v1107 = vsel %vm1047, %v1102, %v1106
        %v1108 = vshrl.u32 %v1038, 16
        %v1110 = vor.u32 %v1108, %v1106
        %v1112 = vshll.u32 %v1039, 16
        %v1114 = vrot.slane %v1112, 1
        %v1115 = vsel %vm1047, %v1110, %v1114
        %v1116 = vshrl.u32 %v1039, 16
        %v1118 = vor.u32 %v1116, %v1114
        %v1120 = vshll.u32 %v1040, 16
        %v1122 = vrot.slane %v1120, 1
        %v1123 = vsel %vm1047, %v1118, %v1122
        %v1124 = vshrl.u32 %v1040, 16
        %v1126 = vor.u32 %v1124, %v1122
        %v1128 = vshll.u32 %v1041, 16
        %v1130 = vrot.slane %v1128, 1
        %v1131 = vsel %vm1047, %v1126, %v1130
        %v1132 = vshrl.u32 %v1041, 16
        %v1134 = vor.u32 %v1132, %v1130
        %v1136 = vshll.u32 %v1042, 16
        %v1138 = vrot.slane %v1136, 1
        %v1139 = vsel %vm1047, %v1134, %v1138
        %v1140 = vshrl.u32 %v1042, 16
        %v1142 = vor.u32 %v1140, %v1138
        %v1144 = vshll.u32 %v1043, 16
        %v1146 = vrot.slane %v1144, 1
        %v1147 = vsel %vm1047, %v1142, %v1146
        %v1148 = vshrl.u32 %v1043, 16
        %v1150 = vor.u32 %v1148, %v1146
        %v1152 = vshll.u32 %v1044, 16
        %v1154 = vrot.slane %v1152, 1
        %v1155 = vsel %vm1047, %v1150, %v1154
        %v1156 = vshrl.u32 %v1044, 16
        %v1158 = vor.u32 %v1156, %v1154
        %v1160 = vshll.u32 %v1045, 16
        %v1162 = vrot.slane %v1160, 1
        %v1163 = vsel %vm1047, %v1158, %v1162
        %v1164 = vshrl.u32 %v1045, 16
        %v1166 = vor.u32 %v1164, %v1162
        %v1168 = vshll.u32 %v1046, 16
        %v1170 = vrot.slane %v1168, 1
        %v1171 = vsel %vm1047, %v1166, %v1170
        %v1172 = vshrl.u32 %v1046, 16
        %v1174 = vor.u32 %v1172, %v1170
        %vm1175 = vcmp.ne.s16.totalorder %v1051, 0
        %vm1176 = vcmp.ne.s16.totalorder %v1059, 0
        %vm1177 = vcmp.ne.s16.totalorder %v1067, 0
        %vm1178 = vcmp.ne.s16.totalorder %v1075, 0
        %vm1179 = vcmp.ne.s16.totalorder %v1083, 0
        %vm1180 = vcmp.ne.s16.totalorder %v1091, 0
        %vm1181 = vcmp.ne.s16.totalorder %v1099, 0
        %vm1182 = vcmp.ne.s16.totalorder %v1107, 0
        %vm1183 = vcmp.ne.s16.totalorder %v1115, 0
        %vm1184 = vcmp.ne.s16.totalorder %v1123, 0
        %vm1185 = vcmp.ne.s16.totalorder %v1131, 0
        %vm1186 = vcmp.ne.s16.totalorder %v1139, 0
        %vm1187 = vcmp.ne.s16.totalorder %v1147, 0
        %vm1188 = vcmp.ne.s16.totalorder %v1155, 0
        %vm1189 = vcmp.ne.s16.totalorder %v1163, 0
        %vm1190 = vcmp.ne.s16.totalorder %v1171, 0
        %vm1191 = vcmp.ne.s16.totalorder %v1174, 0
        %v1192 = vsel %vm1175, %v694, 0
        %v1193 = vsel %vm1176, %v695, 0
        %v1194 = vsel %vm1177, %v696, 0
        %v1195 = vsel %vm1178, %v697, 0
        %v1196 = vsel %vm1179, %v698, 0
        %v1197 = vsel %vm1180, %v699, 0
        %v1198 = vsel %vm1181, %v700, 0
        %v1199 = vsel %vm1182, %v701, 0
        %v1200 = vsel %vm1183, %v702, 0
        %v1201 = vsel %vm1184, %v703, 0
        %v1202 = vsel %vm1185, %v704, 0
        %v1203 = vsel %vm1186, %v705, 0
        %v1204 = vsel %vm1187, %v706, 0
        %v1205 = vsel %vm1188, %v707, 0
        %v1206 = vsel %vm1189, %v708, 0
        %v1207 = vsel %vm1190, %v709, 0
        %v1208 = vsel %vm1191, %v710, 0
        %1209 = vset.pattern.permute.xlu0 1
        %1210 = vperm.xlu0 %1209, %v775
        %v1211 = vpop.permute.xlu0 %1210
        %1212 = vset.pattern.permute.xlu0 1
        %1213 = vperm.xlu0 %1212, %v776
        %v1214 = vpop.permute.xlu0 %1213
        %1215 = vset.pattern.permute.xlu0 1
        %1216 = vperm.xlu0 %1215, %v777
        %v1217 = vpop.permute.xlu0 %1216
        %1218 = vset.pattern.permute.xlu0 1
        %1219 = vperm.xlu0 %1218, %v778
        %v1220 = vpop.permute.xlu0 %1219
        %1221 = vset.pattern.permute.xlu0 1
        %1222 = vperm.xlu0 %1221, %v779
        %v1223 = vpop.permute.xlu0 %1222
        %1224 = vset.pattern.permute.xlu0 1
        %1225 = vperm.xlu0 %1224, %v780
        %v1226 = vpop.permute.xlu0 %1225
        %1227 = vset.pattern.permute.xlu0 1
        %1228 = vperm.xlu0 %1227, %v781
        %v1229 = vpop.permute.xlu0 %1228
        %1230 = vset.pattern.permute.xlu0 1
        %1231 = vperm.xlu0 %1230, %v782
        %v1232 = vpop.permute.xlu0 %1231
        %1233 = vset.pattern.permute.xlu0 1
        %1234 = vperm.xlu0 %1233, %v783
        %v1235 = vpop.permute.xlu0 %1234
        %1236 = vset.pattern.permute.xlu0 1
        %1237 = vperm.xlu0 %1236, %v784
        %v1238 = vpop.permute.xlu0 %1237
        %1239 = vset.pattern.permute.xlu0 1
        %1240 = vperm.xlu0 %1239, %v785
        %v1241 = vpop.permute.xlu0 %1240
        %1242 = vset.pattern.permute.xlu0 1
        %1243 = vperm.xlu0 %1242, %v786
        %v1244 = vpop.permute.xlu0 %1243
        %1245 = vset.pattern.permute.xlu0 1
        %1246 = vperm.xlu0 %1245, %v787
        %v1247 = vpop.permute.xlu0 %1246
        %1248 = vset.pattern.permute.xlu0 1
        %1249 = vperm.xlu0 %1248, %v788
        %v1250 = vpop.permute.xlu0 %1249
        %1251 = vset.pattern.permute.xlu0 1
        %1252 = vperm.xlu0 %1251, %v789
        %v1253 = vpop.permute.xlu0 %1252
        %1254 = vset.pattern.permute.xlu0 1
        %1255 = vperm.xlu0 %1254, %v790
        %v1256 = vpop.permute.xlu0 %1255
        %1257 = vset.pattern.permute.xlu0 1
        %1258 = vperm.xlu0 %1257, %v791
        %v1259 = vpop.permute.xlu0 %1258
        %1260 = vset.pattern.permute.xlu0 1
        %1261 = vperm.xlu0 %1260, %v792
        %v1262 = vpop.permute.xlu0 %1261
        %1263 = vset.pattern.permute.xlu0 1
        %1264 = vperm.xlu0 %1263, %v793
        %v1265 = vpop.permute.xlu0 %1264
        %1266 = vset.pattern.permute.xlu0 1
        %1267 = vperm.xlu0 %1266, %v794
        %v1268 = vpop.permute.xlu0 %1267
        %1269 = vset.pattern.permute.xlu0 1
        %1270 = vperm.xlu0 %1269, %v795
        %v1271 = vpop.permute.xlu0 %1270
        %1272 = vset.pattern.permute.xlu0 1
        %1273 = vperm.xlu0 %1272, %v796
        %v1274 = vpop.permute.xlu0 %1273
        %1275 = vset.pattern.permute.xlu0 1
        %1276 = vperm.xlu0 %1275, %v797
        %v1277 = vpop.permute.xlu0 %1276
        %1278 = vset.pattern.permute.xlu0 1
        %1279 = vperm.xlu0 %1278, %v798
        %v1280 = vpop.permute.xlu0 %1279
        %1281 = vset.pattern.permute.xlu0 1
        %1282 = vperm.xlu0 %1281, %v799
        %v1283 = vpop.permute.xlu0 %1282
        %1284 = vset.pattern.permute.xlu0 1
        %1285 = vperm.xlu0 %1284, %v800
        %v1286 = vpop.permute.xlu0 %1285
        %1287 = vset.pattern.permute.xlu0 1
        %1288 = vperm.xlu0 %1287, %v801
        %v1289 = vpop.permute.xlu0 %1288
        %1290 = vset.pattern.permute.xlu0 1
        %1291 = vperm.xlu0 %1290, %v802
        %v1292 = vpop.permute.xlu0 %1291
        %1293 = vset.pattern.permute.xlu0 1
        %1294 = vperm.xlu0 %1293, %v803
        %v1295 = vpop.permute.xlu0 %1294
        %1296 = vset.pattern.permute.xlu0 1
        %1297 = vperm.xlu0 %1296, %v804
        %v1298 = vpop.permute.xlu0 %1297
        %1299 = vset.pattern.permute.xlu0 1
        %1300 = vperm.xlu0 %1299, %v805
        %v1301 = vpop.permute.xlu0 %1300
        %1302 = vset.pattern.permute.xlu0 1
        %1303 = vperm.xlu0 %1302, %v806
        %v1304 = vpop.permute.xlu0 %1303
        %vm1305 = vcmp.eq.s32.totalorder %v1211, 1
        %vm1306 = vcmp.eq.s32.totalorder %v1214, 1
        %vm1307 = vcmp.eq.s32.totalorder %v1217, 1
        %vm1308 = vcmp.eq.s32.totalorder %v1220, 1
        %vm1309 = vcmp.eq.s32.totalorder %v1223, 1
        %vm1310 = vcmp.eq.s32.totalorder %v1226, 1
        %vm1311 = vcmp.eq.s32.totalorder %v1229, 1
        %vm1312 = vcmp.eq.s32.totalorder %v1232, 1
        %vm1313 = vcmp.eq.s32.totalorder %v1235, 1
        %vm1314 = vcmp.eq.s32.totalorder %v1238, 1
        %vm1315 = vcmp.eq.s32.totalorder %v1241, 1
        %vm1316 = vcmp.eq.s32.totalorder %v1244, 1
        %vm1317 = vcmp.eq.s32.totalorder %v1247, 1
        %vm1318 = vcmp.eq.s32.totalorder %v1250, 1
        %vm1319 = vcmp.eq.s32.totalorder %v1253, 1
        %vm1320 = vcmp.eq.s32.totalorder %v1256, 1
        %vm1321 = vcmp.eq.s32.totalorder %v1259, 1
        %vm1322 = vcmp.eq.s32.totalorder %v1262, 1
        %vm1323 = vcmp.eq.s32.totalorder %v1265, 1
        %vm1324 = vcmp.eq.s32.totalorder %v1268, 1
        %vm1325 = vcmp.eq.s32.totalorder %v1271, 1
        %vm1326 = vcmp.eq.s32.totalorder %v1274, 1
        %vm1327 = vcmp.eq.s32.totalorder %v1277, 1
        %vm1328 = vcmp.eq.s32.totalorder %v1280, 1
        %vm1329 = vcmp.eq.s32.totalorder %v1283, 1
        %vm1330 = vcmp.eq.s32.totalorder %v1286, 1
        %vm1331 = vcmp.eq.s32.totalorder %v1289, 1
        %vm1332 = vcmp.eq.s32.totalorder %v1292, 1
        %vm1333 = vcmp.eq.s32.totalorder %v1295, 1
        %vm1334 = vcmp.eq.s32.totalorder %v1298, 1
        %vm1335 = vcmp.eq.s32.totalorder %v1301, 1
        %vm1336 = vcmp.eq.s32.totalorder %v1304, 1
        %vm1337 = vmpackc.low %vm1305, %vm1305
        %vm1338 = vmpackc.low %vm1306, %vm1306
        %vm1339 = vmpackc.low %vm1307, %vm1307
        %vm1340 = vmpackc.low %vm1308, %vm1308
        %vm1341 = vmpackc.low %vm1309, %vm1309
        %vm1342 = vmpackc.low %vm1310, %vm1310
        %vm1343 = vmpackc.low %vm1311, %vm1311
        %vm1344 = vmpackc.low %vm1312, %vm1312
        %vm1345 = vmpackc.low %vm1313, %vm1313
        %vm1346 = vmpackc.low %vm1314, %vm1314
        %vm1347 = vmpackc.low %vm1315, %vm1315
        %vm1348 = vmpackc.low %vm1316, %vm1316
        %vm1349 = vmpackc.low %vm1317, %vm1317
        %vm1350 = vmpackc.low %vm1318, %vm1318
        %vm1351 = vmpackc.low %vm1319, %vm1319
        %vm1352 = vmpackc.low %vm1320, %vm1320
        %vm1353 = vmpackc.low %vm1321, %vm1321
        %vm1354 = vmpackc.low %vm1322, %vm1322
        %vm1355 = vmpackc.low %vm1323, %vm1323
        %vm1356 = vmpackc.low %vm1324, %vm1324
        %vm1357 = vmpackc.low %vm1325, %vm1325
        %vm1358 = vmpackc.low %vm1326, %vm1326
        %vm1359 = vmpackc.low %vm1327, %vm1327
        %vm1360 = vmpackc.low %vm1328, %vm1328
        %vm1361 = vmpackc.low %vm1329, %vm1329
        %vm1362 = vmpackc.low %vm1330, %vm1330
        %vm1363 = vmpackc.low %vm1331, %vm1331
        %vm1364 = vmpackc.low %vm1332, %vm1332
        %vm1365 = vmpackc.low %vm1333, %vm1333
        %vm1366 = vmpackc.low %vm1334, %vm1334
        %vm1367 = vmpackc.low %vm1335, %vm1335
        %vm1368 = vmpackc.low %vm1336, %vm1336
        %v1369 = vsel %vm1337, 65537, 0
        %v1370 = vsel %vm1338, 65537, 0
        %v1371 = vsel %vm1339, 65537, 0
        %v1372 = vsel %vm1340, 65537, 0
        %v1373 = vsel %vm1341, 65537, 0
        %v1374 = vsel %vm1342, 65537, 0
        %v1375 = vsel %vm1343, 65537, 0
        %v1376 = vsel %vm1344, 65537, 0
        %v1377 = vsel %vm1345, 65537, 0
        %v1378 = vsel %vm1346, 65537, 0
        %v1379 = vsel %vm1347, 65537, 0
        %v1380 = vsel %vm1348, 65537, 0
        %v1381 = vsel %vm1349, 65537, 0
        %v1382 = vsel %vm1350, 65537, 0
        %v1383 = vsel %vm1351, 65537, 0
        %v1384 = vsel %vm1352, 65537, 0
        %v1385 = vsel %vm1353, 65537, 0
        %v1386 = vsel %vm1354, 65537, 0
        %v1387 = vsel %vm1355, 65537, 0
        %v1388 = vsel %vm1356, 65537, 0
        %v1389 = vsel %vm1357, 65537, 0
        %v1390 = vsel %vm1358, 65537, 0
        %v1391 = vsel %vm1359, 65537, 0
        %v1392 = vsel %vm1360, 65537, 0
        %v1393 = vsel %vm1361, 65537, 0
        %v1394 = vsel %vm1362, 65537, 0
        %v1395 = vsel %vm1363, 65537, 0
        %v1396 = vsel %vm1364, 65537, 0
        %v1397 = vsel %vm1365, 65537, 0
        %v1398 = vsel %vm1366, 65537, 0
        %v1399 = vsel %vm1367, 65537, 0
        %v1400 = vsel %vm1368, 65537, 0
        %v1401 = vunpack.c.l.b16 %v1369
        %v1402 = vunpack.c.l.b16 %v1370
        %v1403 = vunpack.c.l.b16 %v1371
        %v1404 = vunpack.c.l.b16 %v1372
        %v1405 = vunpack.c.l.b16 %v1373
        %v1406 = vunpack.c.l.b16 %v1374
        %v1407 = vunpack.c.l.b16 %v1375
        %v1408 = vunpack.c.l.b16 %v1376
        %v1409 = vunpack.c.l.b16 %v1377
        %v1410 = vunpack.c.l.b16 %v1378
        %v1411 = vunpack.c.l.b16 %v1379
        %v1412 = vunpack.c.l.b16 %v1380
        %v1413 = vunpack.c.l.b16 %v1381
        %v1414 = vunpack.c.l.b16 %v1382
        %v1415 = vunpack.c.l.b16 %v1383
        %v1416 = vunpack.c.l.b16 %v1384
        %v1417 = vunpack.c.l.b16 %v1385
        %v1418 = vunpack.c.l.b16 %v1386
        %v1419 = vunpack.c.l.b16 %v1387
        %v1420 = vunpack.c.l.b16 %v1388
        %v1421 = vunpack.c.l.b16 %v1389
        %v1422 = vunpack.c.l.b16 %v1390
        %v1423 = vunpack.c.l.b16 %v1391
        %v1424 = vunpack.c.l.b16 %v1392
        %v1425 = vunpack.c.l.b16 %v1393
        %v1426 = vunpack.c.l.b16 %v1394
        %v1427 = vunpack.c.l.b16 %v1395
        %v1428 = vunpack.c.l.b16 %v1396
        %v1429 = vunpack.c.l.b16 %v1397
        %v1430 = vunpack.c.l.b16 %v1398
        %v1431 = vunpack.c.l.b16 %v1399
        %v1432 = vunpack.c.l.b16 %v1400
        %v1433 = vpack.c.b16 %v1402, %v1401
        %v1434 = vpack.c.b16 %v1404, %v1403
        %v1435 = vpack.c.b16 %v1406, %v1405
        %v1436 = vpack.c.b16 %v1408, %v1407
        %v1437 = vpack.c.b16 %v1410, %v1409
        %v1438 = vpack.c.b16 %v1412, %v1411
        %v1439 = vpack.c.b16 %v1414, %v1413
        %v1440 = vpack.c.b16 %v1416, %v1415
        %v1441 = vpack.c.b16 %v1418, %v1417
        %v1442 = vpack.c.b16 %v1420, %v1419
        %v1443 = vpack.c.b16 %v1422, %v1421
        %v1444 = vpack.c.b16 %v1424, %v1423
        %v1445 = vpack.c.b16 %v1426, %v1425
        %v1446 = vpack.c.b16 %v1428, %v1427
        %v1447 = vpack.c.b16 %v1430, %v1429
        %v1448 = vpack.c.b16 %v1432, %v1431
        %vm1449 = vcmp.ne.s16.totalorder %v1433, 0
        %vm1450 = vcmp.ne.s16.totalorder %v1434, 0
        %vm1451 = vcmp.ne.s16.totalorder %v1435, 0
        %vm1452 = vcmp.ne.s16.totalorder %v1436, 0
        %vm1453 = vcmp.ne.s16.totalorder %v1437, 0
        %vm1454 = vcmp.ne.s16.totalorder %v1438, 0
        %vm1455 = vcmp.ne.s16.totalorder %v1439, 0
        %vm1456 = vcmp.ne.s16.totalorder %v1440, 0
        %vm1457 = vcmp.ne.s16.totalorder %v1441, 0
        %vm1458 = vcmp.ne.s16.totalorder %v1442, 0
        %vm1459 = vcmp.ne.s16.totalorder %v1443, 0
        %vm1460 = vcmp.ne.s16.totalorder %v1444, 0
        %vm1461 = vcmp.ne.s16.totalorder %v1445, 0
        %vm1462 = vcmp.ne.s16.totalorder %v1446, 0
        %vm1463 = vcmp.ne.s16.totalorder %v1447, 0
        %vm1464 = vcmp.ne.s16.totalorder %v1448, 0
        %v1465 = vsel %vm1449, %v695, 0
        %v1466 = vsel %vm1450, %v696, 0
        %v1467 = vsel %vm1451, %v697, 0
        %v1468 = vsel %vm1452, %v698, 0
        %v1469 = vsel %vm1453, %v699, 0
        %v1470 = vsel %vm1454, %v700, 0
        %v1471 = vsel %vm1455, %v701, 0
        %v1472 = vsel %vm1456, %v702, 0
        %v1473 = vsel %vm1457, %v703, 0
        %v1474 = vsel %vm1458, %v704, 0
        %v1475 = vsel %vm1459, %v705, 0
        %v1476 = vsel %vm1460, %v706, 0
        %v1477 = vsel %vm1461, %v707, 0
        %v1478 = vsel %vm1462, %v708, 0
        %v1479 = vsel %vm1463, %v709, 0
        %v1480 = vsel %vm1464, %v710, 0
        %v1481 = vld [vmem:[#allocation2 + $0x8] sm:$0xff]
        %v1482 = vld [vmem:[#allocation2 + $0x10] sm:$0xff]
        %v1483 = vld [vmem:[#allocation2 + $0x18] sm:$0xff]
        %v1484 = vld [vmem:[#allocation2 + $0x20] sm:$0xff]
        %v1485 = vld [vmem:[#allocation2 + $0x28] sm:$0xff]
        %v1486 = vld [vmem:[#allocation2 + $0x30] sm:$0xff]
        %v1487 = vld [vmem:[#allocation2 + $0x38] sm:$0xff]
        %v1488 = vld [vmem:[#allocation2 + $0x40] sm:$0xff]
        %v1489 = vld [vmem:[#allocation2 + $0x48] sm:$0xff]
        %v1490 = vld [vmem:[#allocation2 + $0x50] sm:$0xff]
        %v1491 = vld [vmem:[#allocation2 + $0x58] sm:$0xff]
        %v1492 = vld [vmem:[#allocation2 + $0x60] sm:$0xff]
        %v1493 = vld [vmem:[#allocation2 + $0x68] sm:$0xff]
        %v1494 = vld [vmem:[#allocation2 + $0x70] sm:$0xff]
        %v1495 = vld [vmem:[#allocation2 + $0x78] sm:$0xff]
        %v1496 = vld [vmem:[#allocation2 + $0x80] sm:$0xff]
        %v1497 = vld [vmem:[#allocation2 + $0x88] sm:$0x1]
        %1498 = vset.pattern.permute.xlu0 2
        %1499 = vperm.xlu0 %1498, %v775
        %v1500 = vpop.permute.xlu0 %1499
        %1501 = vset.pattern.permute.xlu0 2
        %1502 = vperm.xlu0 %1501, %v776
        %v1503 = vpop.permute.xlu0 %1502
        %1504 = vset.pattern.permute.xlu0 2
        %1505 = vperm.xlu0 %1504, %v777
        %v1506 = vpop.permute.xlu0 %1505
        %1507 = vset.pattern.permute.xlu0 2
        %1508 = vperm.xlu0 %1507, %v778
        %v1509 = vpop.permute.xlu0 %1508
        %1510 = vset.pattern.permute.xlu0 2
        %1511 = vperm.xlu0 %1510, %v779
        %v1512 = vpop.permute.xlu0 %1511
        %1513 = vset.pattern.permute.xlu0 2
        %1514 = vperm.xlu0 %1513, %v780
        %v1515 = vpop.permute.xlu0 %1514
        %1516 = vset.pattern.permute.xlu0 2
        %1517 = vperm.xlu0 %1516, %v781
        %v1518 = vpop.permute.xlu0 %1517
        %1519 = vset.pattern.permute.xlu0 2
        %1520 = vperm.xlu0 %1519, %v782
        %v1521 = vpop.permute.xlu0 %1520
        %1522 = vset.pattern.permute.xlu0 2
        %1523 = vperm.xlu0 %1522, %v783
        %v1524 = vpop.permute.xlu0 %1523
        %1525 = vset.pattern.permute.xlu0 2
        %1526 = vperm.xlu0 %1525, %v784
        %v1527 = vpop.permute.xlu0 %1526
        %1528 = vset.pattern.permute.xlu0 2
        %1529 = vperm.xlu0 %1528, %v785
        %v1530 = vpop.permute.xlu0 %1529
        %1531 = vset.pattern.permute.xlu0 2
        %1532 = vperm.xlu0 %1531, %v786
        %v1533 = vpop.permute.xlu0 %1532
        %1534 = vset.pattern.permute.xlu0 2
        %1535 = vperm.xlu0 %1534, %v787
        %v1536 = vpop.permute.xlu0 %1535
        %1537 = vset.pattern.permute.xlu0 2
        %1538 = vperm.xlu0 %1537, %v788
        %v1539 = vpop.permute.xlu0 %1538
        %1540 = vset.pattern.permute.xlu0 2
        %1541 = vperm.xlu0 %1540, %v789
        %v1542 = vpop.permute.xlu0 %1541
        %1543 = vset.pattern.permute.xlu0 2
        %1544 = vperm.xlu0 %1543, %v790
        %v1545 = vpop.permute.xlu0 %1544
        %1546 = vset.pattern.permute.xlu0 2
        %1547 = vperm.xlu0 %1546, %v791
        %v1548 = vpop.permute.xlu0 %1547
        %1549 = vset.pattern.permute.xlu0 2
        %1550 = vperm.xlu0 %1549, %v792
        %v1551 = vpop.permute.xlu0 %1550
        %1552 = vset.pattern.permute.xlu0 2
        %1553 = vperm.xlu0 %1552, %v793
        %v1554 = vpop.permute.xlu0 %1553
        %1555 = vset.pattern.permute.xlu0 2
        %1556 = vperm.xlu0 %1555, %v794
        %v1557 = vpop.permute.xlu0 %1556
        %1558 = vset.pattern.permute.xlu0 2
        %1559 = vperm.xlu0 %1558, %v795
        %v1560 = vpop.permute.xlu0 %1559
        %1561 = vset.pattern.permute.xlu0 2
        %1562 = vperm.xlu0 %1561, %v796
        %v1563 = vpop.permute.xlu0 %1562
        %1564 = vset.pattern.permute.xlu0 2
        %1565 = vperm.xlu0 %1564, %v797
        %v1566 = vpop.permute.xlu0 %1565
        %1567 = vset.pattern.permute.xlu0 2
        %1568 = vperm.xlu0 %1567, %v798
        %v1569 = vpop.permute.xlu0 %1568
        %1570 = vset.pattern.permute.xlu0 2
        %1571 = vperm.xlu0 %1570, %v799
        %v1572 = vpop.permute.xlu0 %1571
        %1573 = vset.pattern.permute.xlu0 2
        %1574 = vperm.xlu0 %1573, %v800
        %v1575 = vpop.permute.xlu0 %1574
        %1576 = vset.pattern.permute.xlu0 2
        %1577 = vperm.xlu0 %1576, %v801
        %v1578 = vpop.permute.xlu0 %1577
        %1579 = vset.pattern.permute.xlu0 2
        %1580 = vperm.xlu0 %1579, %v802
        %v1581 = vpop.permute.xlu0 %1580
        %1582 = vset.pattern.permute.xlu0 2
        %1583 = vperm.xlu0 %1582, %v803
        %v1584 = vpop.permute.xlu0 %1583
        %1585 = vset.pattern.permute.xlu0 2
        %1586 = vperm.xlu0 %1585, %v804
        %v1587 = vpop.permute.xlu0 %1586
        %1588 = vset.pattern.permute.xlu0 2
        %1589 = vperm.xlu0 %1588, %v805
        %v1590 = vpop.permute.xlu0 %1589
        %1591 = vset.pattern.permute.xlu0 2
        %1592 = vperm.xlu0 %1591, %v806
        %v1593 = vpop.permute.xlu0 %1592
        %vm1594 = vcmp.eq.s32.totalorder %v1500, 1
        %vm1595 = vcmp.eq.s32.totalorder %v1503, 1
        %vm1596 = vcmp.eq.s32.totalorder %v1506, 1
        %vm1597 = vcmp.eq.s32.totalorder %v1509, 1
        %vm1598 = vcmp.eq.s32.totalorder %v1512, 1
        %vm1599 = vcmp.eq.s32.totalorder %v1515, 1
        %vm1600 = vcmp.eq.s32.totalorder %v1518, 1
        %vm1601 = vcmp.eq.s32.totalorder %v1521, 1
        %vm1602 = vcmp.eq.s32.totalorder %v1524, 1
        %vm1603 = vcmp.eq.s32.totalorder %v1527, 1
        %vm1604 = vcmp.eq.s32.totalorder %v1530, 1
        %vm1605 = vcmp.eq.s32.totalorder %v1533, 1
        %vm1606 = vcmp.eq.s32.totalorder %v1536, 1
        %vm1607 = vcmp.eq.s32.totalorder %v1539, 1
        %vm1608 = vcmp.eq.s32.totalorder %v1542, 1
        %vm1609 = vcmp.eq.s32.totalorder %v1545, 1
        %vm1610 = vcmp.eq.s32.totalorder %v1548, 1
        %vm1611 = vcmp.eq.s32.totalorder %v1551, 1
        %vm1612 = vcmp.eq.s32.totalorder %v1554, 1
        %vm1613 = vcmp.eq.s32.totalorder %v1557, 1
        %vm1614 = vcmp.eq.s32.totalorder %v1560, 1
        %vm1615 = vcmp.eq.s32.totalorder %v1563, 1
        %vm1616 = vcmp.eq.s32.totalorder %v1566, 1
        %vm1617 = vcmp.eq.s32.totalorder %v1569, 1
        %vm1618 = vcmp.eq.s32.totalorder %v1572, 1
        %vm1619 = vcmp.eq.s32.totalorder %v1575, 1
        %vm1620 = vcmp.eq.s32.totalorder %v1578, 1
        %vm1621 = vcmp.eq.s32.totalorder %v1581, 1
        %vm1622 = vcmp.eq.s32.totalorder %v1584, 1
        %vm1623 = vcmp.eq.s32.totalorder %v1587, 1
        %vm1624 = vcmp.eq.s32.totalorder %v1590, 1
        %vm1625 = vcmp.eq.s32.totalorder %v1593, 1
        %vm1626 = vmpackc.low %vm1594, %vm1594
        %vm1627 = vmpackc.low %vm1595, %vm1595
        %vm1628 = vmpackc.low %vm1596, %vm1596
        %vm1629 = vmpackc.low %vm1597, %vm1597
        %vm1630 = vmpackc.low %vm1598, %vm1598
        %vm1631 = vmpackc.low %vm1599, %vm1599
        %vm1632 = vmpackc.low %vm1600, %vm1600
        %vm1633 = vmpackc.low %vm1601, %vm1601
        %vm1634 = vmpackc.low %vm1602, %vm1602
        %vm1635 = vmpackc.low %vm1603, %vm1603
        %vm1636 = vmpackc.low %vm1604, %vm1604
        %vm1637 = vmpackc.low %vm1605, %vm1605
        %vm1638 = vmpackc.low %vm1606, %vm1606
        %vm1639 = vmpackc.low %vm1607, %vm1607
        %vm1640 = vmpackc.low %vm1608, %vm1608
        %vm1641 = vmpackc.low %vm1609, %vm1609
        %vm1642 = vmpackc.low %vm1610, %vm1610
        %vm1643 = vmpackc.low %vm1611, %vm1611
        %vm1644 = vmpackc.low %vm1612, %vm1612
        %vm1645 = vmpackc.low %vm1613, %vm1613
        %vm1646 = vmpackc.low %vm1614, %vm1614
        %vm1647 = vmpackc.low %vm1615, %vm1615
        %vm1648 = vmpackc.low %vm1616, %vm1616
        %vm1649 = vmpackc.low %vm1617, %vm1617
        %vm1650 = vmpackc.low %vm1618, %vm1618
        %vm1651 = vmpackc.low %vm1619, %vm1619
        %vm1652 = vmpackc.low %vm1620, %vm1620
        %vm1653 = vmpackc.low %vm1621, %vm1621
        %vm1654 = vmpackc.low %vm1622, %vm1622
        %vm1655 = vmpackc.low %vm1623, %vm1623
        %vm1656 = vmpackc.low %vm1624, %vm1624
        %vm1657 = vmpackc.low %vm1625, %vm1625
        %v1658 = vsel %vm1626, 65537, 0
        %v1659 = vsel %vm1627, 65537, 0
        %v1660 = vsel %vm1628, 65537, 0
        %v1661 = vsel %vm1629, 65537, 0
        %v1662 = vsel %vm1630, 65537, 0
        %v1663 = vsel %vm1631, 65537, 0
        %v1664 = vsel %vm1632, 65537, 0
        %v1665 = vsel %vm1633, 65537, 0
        %v1666 = vsel %vm1634, 65537, 0
        %v1667 = vsel %vm1635, 65537, 0
        %v1668 = vsel %vm1636, 65537, 0
        %v1669 = vsel %vm1637, 65537, 0
        %v1670 = vsel %vm1638, 65537, 0
        %v1671 = vsel %vm1639, 65537, 0
        %v1672 = vsel %vm1640, 65537, 0
        %v1673 = vsel %vm1641, 65537, 0
        %v1674 = vsel %vm1642, 65537, 0
        %v1675 = vsel %vm1643, 65537, 0
        %v1676 = vsel %vm1644, 65537, 0
        %v1677 = vsel %vm1645, 65537, 0
        %v1678 = vsel %vm1646, 65537, 0
        %v1679 = vsel %vm1647, 65537, 0
        %v1680 = vsel %vm1648, 65537, 0
        %v1681 = vsel %vm1649, 65537, 0
        %v1682 = vsel %vm1650, 65537, 0
        %v1683 = vsel %vm1651, 65537, 0
        %v1684 = vsel %vm1652, 65537, 0
        %v1685 = vsel %vm1653, 65537, 0
        %v1686 = vsel %vm1654, 65537, 0
        %v1687 = vsel %vm1655, 65537, 0
        %v1688 = vsel %vm1656, 65537, 0
        %v1689 = vsel %vm1657, 65537, 0
        %v1690 = vunpack.c.l.b16 %v1658
        %v1691 = vunpack.c.l.b16 %v1659
        %v1692 = vunpack.c.l.b16 %v1660
        %v1693 = vunpack.c.l.b16 %v1661
        %v1694 = vunpack.c.l.b16 %v1662
        %v1695 = vunpack.c.l.b16 %v1663
        %v1696 = vunpack.c.l.b16 %v1664
        %v1697 = vunpack.c.l.b16 %v1665
        %v1698 = vunpack.c.l.b16 %v1666
        %v1699 = vunpack.c.l.b16 %v1667
        %v1700 = vunpack.c.l.b16 %v1668
        %v1701 = vunpack.c.l.b16 %v1669
        %v1702 = vunpack.c.l.b16 %v1670
        %v1703 = vunpack.c.l.b16 %v1671
        %v1704 = vunpack.c.l.b16 %v1672
        %v1705 = vunpack.c.l.b16 %v1673
        %v1706 = vunpack.c.l.b16 %v1674
        %v1707 = vunpack.c.l.b16 %v1675
        %v1708 = vunpack.c.l.b16 %v1676
        %v1709 = vunpack.c.l.b16 %v1677
        %v1710 = vunpack.c.l.b16 %v1678
        %v1711 = vunpack.c.l.b16 %v1679
        %v1712 = vunpack.c.l.b16 %v1680
        %v1713 = vunpack.c.l.b16 %v1681
        %v1714 = vunpack.c.l.b16 %v1682
        %v1715 = vunpack.c.l.b16 %v1683
        %v1716 = vunpack.c.l.b16 %v1684
        %v1717 = vunpack.c.l.b16 %v1685
        %v1718 = vunpack.c.l.b16 %v1686
        %v1719 = vunpack.c.l.b16 %v1687
        %v1720 = vunpack.c.l.b16 %v1688
        %v1721 = vunpack.c.l.b16 %v1689
        %v1722 = vpack.c.b16 %v1691, %v1690
        %v1723 = vpack.c.b16 %v1693, %v1692
        %v1724 = vpack.c.b16 %v1695, %v1694
        %v1725 = vpack.c.b16 %v1697, %v1696
        %v1726 = vpack.c.b16 %v1699, %v1698
        %v1727 = vpack.c.b16 %v1701, %v1700
        %v1728 = vpack.c.b16 %v1703, %v1702
        %v1729 = vpack.c.b16 %v1705, %v1704
        %v1730 = vpack.c.b16 %v1707, %v1706
        %v1731 = vpack.c.b16 %v1709, %v1708
        %v1732 = vpack.c.b16 %v1711, %v1710
        %v1733 = vpack.c.b16 %v1713, %v1712
        %v1734 = vpack.c.b16 %v1715, %v1714
        %v1735 = vpack.c.b16 %v1717, %v1716
        %v1736 = vpack.c.b16 %v1719, %v1718
        %v1737 = vpack.c.b16 %v1721, %v1720
        %vm1738 = vsmask.f32 256
        %v1740 = vshrl.u32 %v1722, 16
        %v1742 = vrot.slane %v1740, 7
        %v1743 = vshll.u32 %v1722, 16
        %v1745 = vor.u32 %v1742, %v1743
        %v1747 = vshrl.u32 %v1723, 16
        %v1749 = vrot.slane %v1747, 7
        %v1750 = vshll.u32 %v1723, 16
        %v1752 = vor.u32 %v1749, %v1750
        %v1753 = vsel %vm1738, %v1742, %v1752
        %v1755 = vshrl.u32 %v1724, 16
        %v1757 = vrot.slane %v1755, 7
        %v1758 = vshll.u32 %v1724, 16
        %v1760 = vor.u32 %v1757, %v1758
        %v1761 = vsel %vm1738, %v1749, %v1760
        %v1763 = vshrl.u32 %v1725, 16
        %v1765 = vrot.slane %v1763, 7
        %v1766 = vshll.u32 %v1725, 16
        %v1768 = vor.u32 %v1765, %v1766
        %v1769 = vsel %vm1738, %v1757, %v1768
        %v1771 = vshrl.u32 %v1726, 16
        %v1773 = vrot.slane %v1771, 7
        %v1774 = vshll.u32 %v1726, 16
        %v1776 = vor.u32 %v1773, %v1774
        %v1777 = vsel %vm1738, %v1765, %v1776
        %v1779 = vshrl.u32 %v1727, 16
        %v1781 = vrot.slane %v1779, 7
        %v1782 = vshll.u32 %v1727, 16
        %v1784 = vor.u32 %v1781, %v1782
        %v1785 = vsel %vm1738, %v1773, %v1784
        %v1787 = vshrl.u32 %v1728, 16
        %v1789 = vrot.slane %v1787, 7
        %v1790 = vshll.u32 %v1728, 16
        %v1792 = vor.u32 %v1789, %v1790
        %v1793 = vsel %vm1738, %v1781, %v1792
        %v1795 = vshrl.u32 %v1729, 16
        %v1797 = vrot.slane %v1795, 7
        %v1798 = vshll.u32 %v1729, 16
        %v1800 = vor.u32 %v1797, %v1798
        %v1801 = vsel %vm1738, %v1789, %v1800
        %v1803 = vshrl.u32 %v1730, 16
        %v1805 = vrot.slane %v1803, 7
        %v1806 = vshll.u32 %v1730, 16
        %v1808 = vor.u32 %v1805, %v1806
        %v1809 = vsel %vm1738, %v1797, %v1808
        %v1811 = vshrl.u32 %v1731, 16
        %v1813 = vrot.slane %v1811, 7
        %v1814 = vshll.u32 %v1731, 16
        %v1816 = vor.u32 %v1813, %v1814
        %v1817 = vsel %vm1738, %v1805, %v1816
        %v1819 = vshrl.u32 %v1732, 16
        %v1821 = vrot.slane %v1819, 7
        %v1822 = vshll.u32 %v1732, 16
        %v1824 = vor.u32 %v1821, %v1822
        %v1825 = vsel %vm1738, %v1813, %v1824
        %v1827 = vshrl.u32 %v1733, 16
        %v1829 = vrot.slane %v1827, 7
        %v1830 = vshll.u32 %v1733, 16
        %v1832 = vor.u32 %v1829, %v1830
        %v1833 = vsel %vm1738, %v1821, %v1832
        %v1835 = vshrl.u32 %v1734, 16
        %v1837 = vrot.slane %v1835, 7
        %v1838 = vshll.u32 %v1734, 16
        %v1840 = vor.u32 %v1837, %v1838
        %v1841 = vsel %vm1738, %v1829, %v1840
        %v1843 = vshrl.u32 %v1735, 16
        %v1845 = vrot.slane %v1843, 7
        %v1846 = vshll.u32 %v1735, 16
        %v1848 = vor.u32 %v1845, %v1846
        %v1849 = vsel %vm1738, %v1837, %v1848
        %v1851 = vshrl.u32 %v1736, 16
        %v1853 = vrot.slane %v1851, 7
        %v1854 = vshll.u32 %v1736, 16
        %v1856 = vor.u32 %v1853, %v1854
        %v1857 = vsel %vm1738, %v1845, %v1856
        %v1859 = vshrl.u32 %v1737, 16
        %v1861 = vrot.slane %v1859, 7
        %v1862 = vshll.u32 %v1737, 16
        %v1864 = vor.u32 %v1861, %v1862
        %v1865 = vsel %vm1738, %v1853, %v1864
        %vm1866 = vcmp.ne.s16.totalorder %v1745, 0
        %vm1867 = vcmp.ne.s16.totalorder %v1753, 0
        %vm1868 = vcmp.ne.s16.totalorder %v1761, 0
        %vm1869 = vcmp.ne.s16.totalorder %v1769, 0
        %vm1870 = vcmp.ne.s16.totalorder %v1777, 0
        %vm1871 = vcmp.ne.s16.totalorder %v1785, 0
        %vm1872 = vcmp.ne.s16.totalorder %v1793, 0
        %vm1873 = vcmp.ne.s16.totalorder %v1801, 0
        %vm1874 = vcmp.ne.s16.totalorder %v1809, 0
        %vm1875 = vcmp.ne.s16.totalorder %v1817, 0
        %vm1876 = vcmp.ne.s16.totalorder %v1825, 0
        %vm1877 = vcmp.ne.s16.totalorder %v1833, 0
        %vm1878 = vcmp.ne.s16.totalorder %v1841, 0
        %vm1879 = vcmp.ne.s16.totalorder %v1849, 0
        %vm1880 = vcmp.ne.s16.totalorder %v1857, 0
        %vm1881 = vcmp.ne.s16.totalorder %v1865, 0
        %vm1882 = vcmp.ne.s16.totalorder %v1861, 0
        %v1883 = vsel %vm1866, %v1481, 0
        %v1884 = vsel %vm1867, %v1482, 0
        %v1885 = vsel %vm1868, %v1483, 0
        %v1886 = vsel %vm1869, %v1484, 0
        %v1887 = vsel %vm1870, %v1485, 0
        %v1888 = vsel %vm1871, %v1486, 0
        %v1889 = vsel %vm1872, %v1487, 0
        %v1890 = vsel %vm1873, %v1488, 0
        %v1891 = vsel %vm1874, %v1489, 0
        %v1892 = vsel %vm1875, %v1490, 0
        %v1893 = vsel %vm1876, %v1491, 0
        %v1894 = vsel %vm1877, %v1492, 0
        %v1895 = vsel %vm1878, %v1493, 0
        %v1896 = vsel %vm1879, %v1494, 0
        %v1897 = vsel %vm1880, %v1495, 0
        %v1898 = vsel %vm1881, %v1496, 0
        %v1899 = vsel %vm1882, %v1497, 0
        %v1901 = vshll.u32 %v1465, 16
        %v1903 = vrot.slane %v1901, 1
        %v1904 = vshrl.u32 %v1465, 16
        %v1906 = vor.u32 %v1904, %v1903
        %v1908 = vshll.u32 %v1466, 16
        %v1910 = vrot.slane %v1908, 1
        %v1911 = vsel %vm1047, %v1906, %v1910
        %v1912 = vshrl.u32 %v1466, 16
        %v1914 = vor.u32 %v1912, %v1910
        %v1916 = vshll.u32 %v1467, 16
        %v1918 = vrot.slane %v1916, 1
        %v1919 = vsel %vm1047, %v1914, %v1918
        %v1920 = vshrl.u32 %v1467, 16
        %v1922 = vor.u32 %v1920, %v1918
        %v1924 = vshll.u32 %v1468, 16
        %v1926 = vrot.slane %v1924, 1
        %v1927 = vsel %vm1047, %v1922, %v1926
        %v1928 = vshrl.u32 %v1468, 16
        %v1930 = vor.u32 %v1928, %v1926
        %v1932 = vshll.u32 %v1469, 16
        %v1934 = vrot.slane %v1932, 1
        %v1935 = vsel %vm1047, %v1930, %v1934
        %v1936 = vshrl.u32 %v1469, 16
        %v1938 = vor.u32 %v1936, %v1934
        %v1940 = vshll.u32 %v1470, 16
        %v1942 = vrot.slane %v1940, 1
        %v1943 = vsel %vm1047, %v1938, %v1942
        %v1944 = vshrl.u32 %v1470, 16
        %v1946 = vor.u32 %v1944, %v1942
        %v1948 = vshll.u32 %v1471, 16
        %v1950 = vrot.slane %v1948, 1
        %v1951 = vsel %vm1047, %v1946, %v1950
        %v1952 = vshrl.u32 %v1471, 16
        %v1954 = vor.u32 %v1952, %v1950
        %v1956 = vshll.u32 %v1472, 16
        %v1958 = vrot.slane %v1956, 1
        %v1959 = vsel %vm1047, %v1954, %v1958
        %v1960 = vshrl.u32 %v1472, 16
        %v1962 = vor.u32 %v1960, %v1958
        %v1964 = vshll.u32 %v1473, 16
        %v1966 = vrot.slane %v1964, 1
        %v1967 = vsel %vm1047, %v1962, %v1966
        %v1968 = vshrl.u32 %v1473, 16
        %v1970 = vor.u32 %v1968, %v1966
        %v1972 = vshll.u32 %v1474, 16
        %v1974 = vrot.slane %v1972, 1
        %v1975 = vsel %vm1047, %v1970, %v1974
        %v1976 = vshrl.u32 %v1474, 16
        %v1978 = vor.u32 %v1976, %v1974
        %v1980 = vshll.u32 %v1475, 16
        %v1982 = vrot.slane %v1980, 1
        %v1983 = vsel %vm1047, %v1978, %v1982
        %v1984 = vshrl.u32 %v1475, 16
        %v1986 = vor.u32 %v1984, %v1982
        %v1988 = vshll.u32 %v1476, 16
        %v1990 = vrot.slane %v1988, 1
        %v1991 = vsel %vm1047, %v1986, %v1990
        %v1992 = vshrl.u32 %v1476, 16
        %v1994 = vor.u32 %v1992, %v1990
        %v1996 = vshll.u32 %v1477, 16
        %v1998 = vrot.slane %v1996, 1
        %v1999 = vsel %vm1047, %v1994, %v1998
        %v2000 = vshrl.u32 %v1477, 16
        %v2002 = vor.u32 %v2000, %v1998
        %v2004 = vshll.u32 %v1478, 16
        %v2006 = vrot.slane %v2004, 1
        %v2007 = vsel %vm1047, %v2002, %v2006
        %v2008 = vshrl.u32 %v1478, 16
        %v2010 = vor.u32 %v2008, %v2006
        %v2012 = vshll.u32 %v1479, 16
        %v2014 = vrot.slane %v2012, 1
        %v2015 = vsel %vm1047, %v2010, %v2014
        %v2016 = vshrl.u32 %v1479, 16
        %v2018 = vor.u32 %v2016, %v2014
        %v2020 = vshll.u32 %v1480, 16
        %v2022 = vrot.slane %v2020, 1
        %v2023 = vsel %vm1047, %v2018, %v2022
        %v2024 = vshrl.u32 %v1480, 16
        %v2026 = vor.u32 %v2024, %v2022
        %vm2044 = vcmask 1046528
        %v2045 = vrot.slane %v1883, 1
        %v2046 = vrot.slane %v1884, 1
        %v2047 = vsel %vm2044, %v2045, %v2046
        %v2048 = vrot.slane %v1885, 1
        %v2049 = vsel %vm2044, %v2046, %v2048
        %v2050 = vrot.slane %v1886, 1
        %v2051 = vsel %vm2044, %v2048, %v2050
        %v2052 = vrot.slane %v1887, 1
        %v2053 = vsel %vm2044, %v2050, %v2052
        %v2054 = vrot.slane %v1888, 1
        %v2055 = vsel %vm2044, %v2052, %v2054
        %v2056 = vrot.slane %v1889, 1
        %v2057 = vsel %vm2044, %v2054, %v2056
        %v2058 = vrot.slane %v1890, 1
        %v2059 = vsel %vm2044, %v2056, %v2058
        %v2060 = vrot.slane %v1891, 1
        %v2061 = vsel %vm2044, %v2058, %v2060
        %v2062 = vrot.slane %v1892, 1
        %v2063 = vsel %vm2044, %v2060, %v2062
        %v2064 = vrot.slane %v1893, 1
        %v2065 = vsel %vm2044, %v2062, %v2064
        %v2066 = vrot.slane %v1894, 1
        %v2067 = vsel %vm2044, %v2064, %v2066
        %v2068 = vrot.slane %v1895, 1
        %v2069 = vsel %vm2044, %v2066, %v2068
        %v2070 = vrot.slane %v1896, 1
        %v2071 = vsel %vm2044, %v2068, %v2070
        %v2072 = vrot.slane %v1897, 1
        %v2073 = vsel %vm2044, %v2070, %v2072
        %v2074 = vrot.slane %v1898, 1
        %v2075 = vsel %vm2044, %v2072, %v2074
        %v2076 = vrot.slane %v1899, 1
        %v2077 = vsel %vm2044, %v2074, %v2076
        %v2078 = vld [vmem:[#allocation6] sm:$0xf]
        %v2079 = vld [vmem:[#allocation6 + $0x4] sm:$0xf]
        %v2080 = vld [vmem:[#allocation6 + $0x8] sm:$0xf]
        %v2081 = vld [vmem:[#allocation6 + $0xc] sm:$0xf]
        %v2082 = vld [vmem:[#allocation6 + $0x10] sm:$0xf]
        %v2083 = vld [vmem:[#allocation6 + $0x14] sm:$0xf]
        %v2084 = vld [vmem:[#allocation6 + $0x18] sm:$0xf]
        %v2085 = vld [vmem:[#allocation6 + $0x1c] sm:$0xf]
        %v2086 = vld [vmem:[#allocation6 + $0x20] sm:$0xf]
        %v2087 = vld [vmem:[#allocation6 + $0x24] sm:$0xf]
        %v2088 = vld [vmem:[#allocation6 + $0x28] sm:$0xf]
        %v2089 = vld [vmem:[#allocation6 + $0x2c] sm:$0xf]
        %v2090 = vld [vmem:[#allocation6 + $0x30] sm:$0xf]
        %v2091 = vld [vmem:[#allocation6 + $0x34] sm:$0xf]
        %v2092 = vld [vmem:[#allocation6 + $0x38] sm:$0xf]
        %v2093 = vld [vmem:[#allocation6 + $0x3c] sm:$0xf]
        %v2094 = vld [vmem:[#allocation6 + $0x40] sm:$0xf]
        %v2095 = vld [vmem:[#allocation6 + $0x44] sm:$0xf]
        %v2096 = vld [vmem:[#allocation6 + $0x48] sm:$0xf]
        %v2097 = vld [vmem:[#allocation6 + $0x4c] sm:$0xf]
        %v2098 = vld [vmem:[#allocation6 + $0x50] sm:$0xf]
        %v2099 = vld [vmem:[#allocation6 + $0x54] sm:$0xf]
        %v2100 = vld [vmem:[#allocation6 + $0x58] sm:$0xf]
        %v2101 = vld [vmem:[#allocation6 + $0x5c] sm:$0xf]
        %v2102 = vld [vmem:[#allocation6 + $0x60] sm:$0xf]
        %v2103 = vld [vmem:[#allocation6 + $0x64] sm:$0xf]
        %v2104 = vld [vmem:[#allocation6 + $0x68] sm:$0xf]
        %v2105 = vld [vmem:[#allocation6 + $0x6c] sm:$0xf]
        %v2106 = vld [vmem:[#allocation6 + $0x70] sm:$0xf]
        %v2107 = vld [vmem:[#allocation6 + $0x74] sm:$0xf]
        %v2108 = vld [vmem:[#allocation6 + $0x78] sm:$0xf]
        %v2109 = vld [vmem:[#allocation6 + $0x7c] sm:$0xf]
        %v2110 = vld [vmem:[#allocation6 + $0x80] sm:$0xf]
        %v2111 = vld [vmem:[#allocation6 + $0x84] sm:$0xf]
        %v2112 = vld [vmem:[#allocation6 + $0x88] sm:$0xf]
        %v2113 = vld [vmem:[#allocation6 + $0x8c] sm:$0xf]
        %v2114 = vld [vmem:[#allocation6 + $0x90] sm:$0xf]
        %v2115 = vld [vmem:[#allocation6 + $0x94] sm:$0xf]
        %v2116 = vld [vmem:[#allocation6 + $0x98] sm:$0xf]
        %v2117 = vld [vmem:[#allocation6 + $0x9c] sm:$0xf]
        %v2118 = vld [vmem:[#allocation6 + $0xa0] sm:$0xf]
        %v2119 = vld [vmem:[#allocation6 + $0xa4] sm:$0xf]
        %v2120 = vld [vmem:[#allocation6 + $0xa8] sm:$0xf]
        %v2121 = vld [vmem:[#allocation6 + $0xac] sm:$0xf]
        %v2122 = vld [vmem:[#allocation6 + $0xb0] sm:$0xf]
        %v2123 = vld [vmem:[#allocation6 + $0xb4] sm:$0xf]
        %v2124 = vld [vmem:[#allocation6 + $0xb8] sm:$0xf]
        %v2125 = vld [vmem:[#allocation6 + $0xbc] sm:$0xf]
        %v2126 = vld [vmem:[#allocation2 + $0x8] sm:$0x80]
        %v2127 = vld [vmem:[#allocation2 + $0x88] sm:$0xff]
        %2128 = vset.pattern.permute.xlu0 3
        %2129 = vperm.xlu0 %2128, %v775
        %v2130 = vpop.permute.xlu0 %2129
        %2131 = vset.pattern.permute.xlu0 3
        %2132 = vperm.xlu0 %2131, %v776
        %v2133 = vpop.permute.xlu0 %2132
        %2134 = vset.pattern.permute.xlu0 3
        %2135 = vperm.xlu0 %2134, %v777
        %v2136 = vpop.permute.xlu0 %2135
        %2137 = vset.pattern.permute.xlu0 3
        %2138 = vperm.xlu0 %2137, %v778
        %v2139 = vpop.permute.xlu0 %2138
        %2140 = vset.pattern.permute.xlu0 3
        %2141 = vperm.xlu0 %2140, %v779
        %v2142 = vpop.permute.xlu0 %2141
        %2143 = vset.pattern.permute.xlu0 3
        %2144 = vperm.xlu0 %2143, %v780
        %v2145 = vpop.permute.xlu0 %2144
        %2146 = vset.pattern.permute.xlu0 3
        %2147 = vperm.xlu0 %2146, %v781
        %v2148 = vpop.permute.xlu0 %2147
        %2149 = vset.pattern.permute.xlu0 3
        %2150 = vperm.xlu0 %2149, %v782
        %v2151 = vpop.permute.xlu0 %2150
        %2152 = vset.pattern.permute.xlu0 3
        %2153 = vperm.xlu0 %2152, %v783
        %v2154 = vpop.permute.xlu0 %2153
        %2155 = vset.pattern.permute.xlu0 3
        %2156 = vperm.xlu0 %2155, %v784
        %v2157 = vpop.permute.xlu0 %2156
        %2158 = vset.pattern.permute.xlu0 3
        %2159 = vperm.xlu0 %2158, %v785
        %v2160 = vpop.permute.xlu0 %2159
        %2161 = vset.pattern.permute.xlu0 3
        %2162 = vperm.xlu0 %2161, %v786
        %v2163 = vpop.permute.xlu0 %2162
        %2164 = vset.pattern.permute.xlu0 3
        %2165 = vperm.xlu0 %2164, %v787
        %v2166 = vpop.permute.xlu0 %2165
        %2167 = vset.pattern.permute.xlu0 3
        %2168 = vperm.xlu0 %2167, %v788
        %v2169 = vpop.permute.xlu0 %2168
        %2170 = vset.pattern.permute.xlu0 3
        %2171 = vperm.xlu0 %2170, %v789
        %v2172 = vpop.permute.xlu0 %2171
        %2173 = vset.pattern.permute.xlu0 3
        %2174 = vperm.xlu0 %2173, %v790
        %v2175 = vpop.permute.xlu0 %2174
        %2176 = vset.pattern.permute.xlu0 3
        %2177 = vperm.xlu0 %2176, %v791
        %v2178 = vpop.permute.xlu0 %2177
        %2179 = vset.pattern.permute.xlu0 3
        %2180 = vperm.xlu0 %2179, %v792
        %v2181 = vpop.permute.xlu0 %2180
        %2182 = vset.pattern.permute.xlu0 3
        %2183 = vperm.xlu0 %2182, %v793
        %v2184 = vpop.permute.xlu0 %2183
        %2185 = vset.pattern.permute.xlu0 3
        %2186 = vperm.xlu0 %2185, %v794
        %v2187 = vpop.permute.xlu0 %2186
        %2188 = vset.pattern.permute.xlu0 3
        %2189 = vperm.xlu0 %2188, %v795
        %v2190 = vpop.permute.xlu0 %2189
        %2191 = vset.pattern.permute.xlu0 3
        %2192 = vperm.xlu0 %2191, %v796
        %v2193 = vpop.permute.xlu0 %2192
        %2194 = vset.pattern.permute.xlu0 3
        %2195 = vperm.xlu0 %2194, %v797
        %v2196 = vpop.permute.xlu0 %2195
        %2197 = vset.pattern.permute.xlu0 3
        %2198 = vperm.xlu0 %2197, %v798
        %v2199 = vpop.permute.xlu0 %2198
        %2200 = vset.pattern.permute.xlu0 3
        %2201 = vperm.xlu0 %2200, %v799
        %v2202 = vpop.permute.xlu0 %2201
        %2203 = vset.pattern.permute.xlu0 3
        %2204 = vperm.xlu0 %2203, %v800
        %v2205 = vpop.permute.xlu0 %2204
        %2206 = vset.pattern.permute.xlu0 3
        %2207 = vperm.xlu0 %2206, %v801
        %v2208 = vpop.permute.xlu0 %2207
        %2209 = vset.pattern.permute.xlu0 3
        %2210 = vperm.xlu0 %2209, %v802
        %v2211 = vpop.permute.xlu0 %2210
        %2212 = vset.pattern.permute.xlu0 3
        %2213 = vperm.xlu0 %2212, %v803
        %v2214 = vpop.permute.xlu0 %2213
        %2215 = vset.pattern.permute.xlu0 3
        %2216 = vperm.xlu0 %2215, %v804
        %v2217 = vpop.permute.xlu0 %2216
        %2218 = vset.pattern.permute.xlu0 3
        %2219 = vperm.xlu0 %2218, %v805
        %v2220 = vpop.permute.xlu0 %2219
        %2221 = vset.pattern.permute.xlu0 3
        %2222 = vperm.xlu0 %2221, %v806
        %v2223 = vpop.permute.xlu0 %2222
        %vm2224 = vcmp.eq.s32.totalorder %v2130, 1
        %vm2225 = vcmp.eq.s32.totalorder %v2133, 1
        %vm2226 = vcmp.eq.s32.totalorder %v2136, 1
        %vm2227 = vcmp.eq.s32.totalorder %v2139, 1
        %vm2228 = vcmp.eq.s32.totalorder %v2142, 1
        %vm2229 = vcmp.eq.s32.totalorder %v2145, 1
        %vm2230 = vcmp.eq.s32.totalorder %v2148, 1
        %vm2231 = vcmp.eq.s32.totalorder %v2151, 1
        %vm2232 = vcmp.eq.s32.totalorder %v2154, 1
        %vm2233 = vcmp.eq.s32.totalorder %v2157, 1
        %vm2234 = vcmp.eq.s32.totalorder %v2160, 1
        %vm2235 = vcmp.eq.s32.totalorder %v2163, 1
        %vm2236 = vcmp.eq.s32.totalorder %v2166, 1
        %vm2237 = vcmp.eq.s32.totalorder %v2169, 1
        %vm2238 = vcmp.eq.s32.totalorder %v2172, 1
        %vm2239 = vcmp.eq.s32.totalorder %v2175, 1
        %vm2240 = vcmp.eq.s32.totalorder %v2178, 1
        %vm2241 = vcmp.eq.s32.totalorder %v2181, 1
        %vm2242 = vcmp.eq.s32.totalorder %v2184, 1
        %vm2243 = vcmp.eq.s32.totalorder %v2187, 1
        %vm2244 = vcmp.eq.s32.totalorder %v2190, 1
        %vm2245 = vcmp.eq.s32.totalorder %v2193, 1
        %vm2246 = vcmp.eq.s32.totalorder %v2196, 1
        %vm2247 = vcmp.eq.s32.totalorder %v2199, 1
        %vm2248 = vcmp.eq.s32.totalorder %v2202, 1
        %vm2249 = vcmp.eq.s32.totalorder %v2205, 1
        %vm2250 = vcmp.eq.s32.totalorder %v2208, 1
        %vm2251 = vcmp.eq.s32.totalorder %v2211, 1
        %vm2252 = vcmp.eq.s32.totalorder %v2214, 1
        %vm2253 = vcmp.eq.s32.totalorder %v2217, 1
        %vm2254 = vcmp.eq.s32.totalorder %v2220, 1
        %vm2255 = vcmp.eq.s32.totalorder %v2223, 1
        %vm2256 = vmpackc.low %vm2224, %vm2224
        %vm2257 = vmpackc.low %vm2225, %vm2225
        %vm2258 = vmpackc.low %vm2226, %vm2226
        %vm2259 = vmpackc.low %vm2227, %vm2227
        %vm2260 = vmpackc.low %vm2228, %vm2228
        %vm2261 = vmpackc.low %vm2229, %vm2229
        %vm2262 = vmpackc.low %vm2230, %vm2230
        %vm2263 = vmpackc.low %vm2231, %vm2231
        %vm2264 = vmpackc.low %vm2232, %vm2232
        %vm2265 = vmpackc.low %vm2233, %vm2233
        %vm2266 = vmpackc.low %vm2234, %vm2234
        %vm2267 = vmpackc.low %vm2235, %vm2235
        %vm2268 = vmpackc.low %vm2236, %vm2236
        %vm2269 = vmpackc.low %vm2237, %vm2237
        %vm2270 = vmpackc.low %vm2238, %vm2238
        %vm2271 = vmpackc.low %vm2239, %vm2239
        %vm2272 = vmpackc.low %vm2240, %vm2240
        %vm2273 = vmpackc.low %vm2241, %vm2241
        %vm2274 = vmpackc.low %vm2242, %vm2242
        %vm2275 = vmpackc.low %vm2243, %vm2243
        %vm2276 = vmpackc.low %vm2244, %vm2244
        %vm2277 = vmpackc.low %vm2245, %vm2245
        %vm2278 = vmpackc.low %vm2246, %vm2246
        %vm2279 = vmpackc.low %vm2247, %vm2247
        %vm2280 = vmpackc.low %vm2248, %vm2248
        %vm2281 = vmpackc.low %vm2249, %vm2249
        %vm2282 = vmpackc.low %vm2250, %vm2250
        %vm2283 = vmpackc.low %vm2251, %vm2251
        %vm2284 = vmpackc.low %vm2252, %vm2252
        %vm2285 = vmpackc.low %vm2253, %vm2253
        %vm2286 = vmpackc.low %vm2254, %vm2254
        %vm2287 = vmpackc.low %vm2255, %vm2255
        %v2288 = vsel %vm2256, 65537, 0
        %v2289 = vsel %vm2257, 65537, 0
        %v2290 = vsel %vm2258, 65537, 0
        %v2291 = vsel %vm2259, 65537, 0
        %v2292 = vsel %vm2260, 65537, 0
        %v2293 = vsel %vm2261, 65537, 0
        %v2294 = vsel %vm2262, 65537, 0
        %v2295 = vsel %vm2263, 65537, 0
        %v2296 = vsel %vm2264, 65537, 0
        %v2297 = vsel %vm2265, 65537, 0
        %v2298 = vsel %vm2266, 65537, 0
        %v2299 = vsel %vm2267, 65537, 0
        %v2300 = vsel %vm2268, 65537, 0
        %v2301 = vsel %vm2269, 65537, 0
        %v2302 = vsel %vm2270, 65537, 0
        %v2303 = vsel %vm2271, 65537, 0
        %v2304 = vsel %vm2272, 65537, 0
        %v2305 = vsel %vm2273, 65537, 0
        %v2306 = vsel %vm2274, 65537, 0
        %v2307 = vsel %vm2275, 65537, 0
        %v2308 = vsel %vm2276, 65537, 0
        %v2309 = vsel %vm2277, 65537, 0
        %v2310 = vsel %vm2278, 65537, 0
        %v2311 = vsel %vm2279, 65537, 0
        %v2312 = vsel %vm2280, 65537, 0
        %v2313 = vsel %vm2281, 65537, 0
        %v2314 = vsel %vm2282, 65537, 0
        %v2315 = vsel %vm2283, 65537, 0
        %v2316 = vsel %vm2284, 65537, 0
        %v2317 = vsel %vm2285, 65537, 0
        %v2318 = vsel %vm2286, 65537, 0
        %v2319 = vsel %vm2287, 65537, 0
        %v2320 = vunpack.c.l.b16 %v2288
        %v2321 = vunpack.c.l.b16 %v2289
        %v2322 = vunpack.c.l.b16 %v2290
        %v2323 = vunpack.c.l.b16 %v2291
        %v2324 = vunpack.c.l.b16 %v2292
        %v2325 = vunpack.c.l.b16 %v2293
        %v2326 = vunpack.c.l.b16 %v2294
        %v2327 = vunpack.c.l.b16 %v2295
        %v2328 = vunpack.c.l.b16 %v2296
        %v2329 = vunpack.c.l.b16 %v2297
        %v2330 = vunpack.c.l.b16 %v2298
        %v2331 = vunpack.c.l.b16 %v2299
        %v2332 = vunpack.c.l.b16 %v2300
        %v2333 = vunpack.c.l.b16 %v2301
        %v2334 = vunpack.c.l.b16 %v2302
        %v2335 = vunpack.c.l.b16 %v2303
        %v2336 = vunpack.c.l.b16 %v2304
        %v2337 = vunpack.c.l.b16 %v2305
        %v2338 = vunpack.c.l.b16 %v2306
        %v2339 = vunpack.c.l.b16 %v2307
        %v2340 = vunpack.c.l.b16 %v2308
        %v2341 = vunpack.c.l.b16 %v2309
        %v2342 = vunpack.c.l.b16 %v2310
        %v2343 = vunpack.c.l.b16 %v2311
        %v2344 = vunpack.c.l.b16 %v2312
        %v2345 = vunpack.c.l.b16 %v2313
        %v2346 = vunpack.c.l.b16 %v2314
        %v2347 = vunpack.c.l.b16 %v2315
        %v2348 = vunpack.c.l.b16 %v2316
        %v2349 = vunpack.c.l.b16 %v2317
        %v2350 = vunpack.c.l.b16 %v2318
        %v2351 = vunpack.c.l.b16 %v2319
        %v2352 = vpack.c.b16 %v2321, %v2320
        %v2353 = vpack.c.b16 %v2323, %v2322
        %v2354 = vpack.c.b16 %v2325, %v2324
        %v2355 = vpack.c.b16 %v2327, %v2326
        %v2356 = vpack.c.b16 %v2329, %v2328
        %v2357 = vpack.c.b16 %v2331, %v2330
        %v2358 = vpack.c.b16 %v2333, %v2332
        %v2359 = vpack.c.b16 %v2335, %v2334
        %v2360 = vpack.c.b16 %v2337, %v2336
        %v2361 = vpack.c.b16 %v2339, %v2338
        %v2362 = vpack.c.b16 %v2341, %v2340
        %v2363 = vpack.c.b16 %v2343, %v2342
        %v2364 = vpack.c.b16 %v2345, %v2344
        %v2365 = vpack.c.b16 %v2347, %v2346
        %v2366 = vpack.c.b16 %v2349, %v2348
        %v2367 = vpack.c.b16 %v2351, %v2350
        %v2369 = vshll.u32 %v2352, 16
        %v2371 = vrot.slane %v2369, 1
        %v2372 = vshrl.u32 %v2352, 16
        %v2374 = vor.u32 %v2372, %v2371
        %v2376 = vshll.u32 %v2353, 16
        %v2378 = vrot.slane %v2376, 1
        %v2379 = vsel %vm1047, %v2374, %v2378
        %v2380 = vshrl.u32 %v2353, 16
        %v2382 = vor.u32 %v2380, %v2378
        %v2384 = vshll.u32 %v2354, 16
        %v2386 = vrot.slane %v2384, 1
        %v2387 = vsel %vm1047, %v2382, %v2386
        %v2388 = vshrl.u32 %v2354, 16
        %v2390 = vor.u32 %v2388, %v2386
        %v2392 = vshll.u32 %v2355, 16
        %v2394 = vrot.slane %v2392, 1
        %v2395 = vsel %vm1047, %v2390, %v2394
        %v2396 = vshrl.u32 %v2355, 16
        %v2398 = vor.u32 %v2396, %v2394
        %v2400 = vshll.u32 %v2356, 16
        %v2402 = vrot.slane %v2400, 1
        %v2403 = vsel %vm1047, %v2398, %v2402
        %v2404 = vshrl.u32 %v2356, 16
        %v2406 = vor.u32 %v2404, %v2402
        %v2408 = vshll.u32 %v2357, 16
        %v2410 = vrot.slane %v2408, 1
        %v2411 = vsel %vm1047, %v2406, %v2410
        %v2412 = vshrl.u32 %v2357, 16
        %v2414 = vor.u32 %v2412, %v2410
        %v2416 = vshll.u32 %v2358, 16
        %v2418 = vrot.slane %v2416, 1
        %v2419 = vsel %vm1047, %v2414, %v2418
        %v2420 = vshrl.u32 %v2358, 16
        %v2422 = vor.u32 %v2420, %v2418
        %v2424 = vshll.u32 %v2359, 16
        %v2426 = vrot.slane %v2424, 1
        %v2427 = vsel %vm1047, %v2422, %v2426
        %v2428 = vshrl.u32 %v2359, 16
        %v2430 = vor.u32 %v2428, %v2426
        %v2432 = vshll.u32 %v2360, 16
        %v2434 = vrot.slane %v2432, 1
        %v2435 = vsel %vm1047, %v2430, %v2434
        %v2436 = vshrl.u32 %v2360, 16
        %v2438 = vor.u32 %v2436, %v2434
        %v2440 = vshll.u32 %v2361, 16
        %v2442 = vrot.slane %v2440, 1
        %v2443 = vsel %vm1047, %v2438, %v2442
        %v2444 = vshrl.u32 %v2361, 16
        %v2446 = vor.u32 %v2444, %v2442
        %v2448 = vshll.u32 %v2362, 16
        %v2450 = vrot.slane %v2448, 1
        %v2451 = vsel %vm1047, %v2446, %v2450
        %v2452 = vshrl.u32 %v2362, 16
        %v2454 = vor.u32 %v2452, %v2450
        %v2456 = vshll.u32 %v2363, 16
        %v2458 = vrot.slane %v2456, 1
        %v2459 = vsel %vm1047, %v2454, %v2458
        %v2460 = vshrl.u32 %v2363, 16
        %v2462 = vor.u32 %v2460, %v2458
        %v2464 = vshll.u32 %v2364, 16
        %v2466 = vrot.slane %v2464, 1
        %v2467 = vsel %vm1047, %v2462, %v2466
        %v2468 = vshrl.u32 %v2364, 16
        %v2470 = vor.u32 %v2468, %v2466
        %v2472 = vshll.u32 %v2365, 16
        %v2474 = vrot.slane %v2472, 1
        %v2475 = vsel %vm1047, %v2470, %v2474
        %v2476 = vshrl.u32 %v2365, 16
        %v2478 = vor.u32 %v2476, %v2474
        %v2480 = vshll.u32 %v2366, 16
        %v2482 = vrot.slane %v2480, 1
        %v2483 = vsel %vm1047, %v2478, %v2482
        %v2484 = vshrl.u32 %v2366, 16
        %v2486 = vor.u32 %v2484, %v2482
        %v2488 = vshll.u32 %v2367, 16
        %v2490 = vrot.slane %v2488, 1
        %v2491 = vsel %vm1047, %v2486, %v2490
        %v2492 = vshrl.u32 %v2367, 16
        %v2494 = vor.u32 %v2492, %v2490
        %vm2495 = vcmp.ne.s16.totalorder %v2371, 0
        %vm2496 = vcmp.ne.s16.totalorder %v2379, 0
        %vm2497 = vcmp.ne.s16.totalorder %v2387, 0
        %vm2498 = vcmp.ne.s16.totalorder %v2395, 0
        %vm2499 = vcmp.ne.s16.totalorder %v2403, 0
        %vm2500 = vcmp.ne.s16.totalorder %v2411, 0
        %vm2501 = vcmp.ne.s16.totalorder %v2419, 0
        %vm2502 = vcmp.ne.s16.totalorder %v2427, 0
        %vm2503 = vcmp.ne.s16.totalorder %v2435, 0
        %vm2504 = vcmp.ne.s16.totalorder %v2443, 0
        %vm2505 = vcmp.ne.s16.totalorder %v2451, 0
        %vm2506 = vcmp.ne.s16.totalorder %v2459, 0
        %vm2507 = vcmp.ne.s16.totalorder %v2467, 0
        %vm2508 = vcmp.ne.s16.totalorder %v2475, 0
        %vm2509 = vcmp.ne.s16.totalorder %v2483, 0
        %vm2510 = vcmp.ne.s16.totalorder %v2491, 0
        %vm2511 = vcmp.ne.s16.totalorder %v2494, 0
        %v2512 = vsel %vm2495, %v2126, 0
        %v2513 = vsel %vm2496, %v1482, 0
        %v2514 = vsel %vm2497, %v1483, 0
        %v2515 = vsel %vm2498, %v1484, 0
        %v2516 = vsel %vm2499, %v1485, 0
        %v2517 = vsel %vm2500, %v1486, 0
        %v2518 = vsel %vm2501, %v1487, 0
        %v2519 = vsel %vm2502, %v1488, 0
        %v2520 = vsel %vm2503, %v1489, 0
        %v2521 = vsel %vm2504, %v1490, 0
        %v2522 = vsel %vm2505, %v1491, 0
        %v2523 = vsel %vm2506, %v1492, 0
        %v2524 = vsel %vm2507, %v1493, 0
        %v2525 = vsel %vm2508, %v1494, 0
        %v2526 = vsel %vm2509, %v1495, 0
        %v2527 = vsel %vm2510, %v1496, 0
        %v2528 = vsel %vm2511, %v2127, 0
        %v2529 = vld [vmem:[#allocation2 + $0x10] sm:$0xff]
        %v2530 = vld [vmem:[#allocation2 + $0x18] sm:$0xff]
        %v2531 = vld [vmem:[#allocation2 + $0x20] sm:$0xff]
        %v2532 = vld [vmem:[#allocation2 + $0x28] sm:$0xff]
        %v2533 = vld [vmem:[#allocation2 + $0x30] sm:$0xff]
        %v2534 = vld [vmem:[#allocation2 + $0x38] sm:$0xff]
        %v2535 = vld [vmem:[#allocation2 + $0x40] sm:$0xff]
        %v2536 = vld [vmem:[#allocation2 + $0x48] sm:$0xff]
        %v2537 = vld [vmem:[#allocation2 + $0x50] sm:$0xff]
        %v2538 = vld [vmem:[#allocation2 + $0x58] sm:$0xff]
        %v2539 = vld [vmem:[#allocation2 + $0x60] sm:$0xff]
        %v2540 = vld [vmem:[#allocation2 + $0x68] sm:$0xff]
        %v2541 = vld [vmem:[#allocation2 + $0x70] sm:$0xff]
        %v2542 = vld [vmem:[#allocation2 + $0x78] sm:$0xff]
        %v2543 = vld [vmem:[#allocation2 + $0x80] sm:$0xff]
        %v2544 = vld [vmem:[#allocation2 + $0x88] sm:$0xff]
        %v2545 = vld [vmem:[#allocation2 + $0x90] sm:$0x1]
        %2546 = vset.pattern.permute.xlu0 5
        %2547 = vperm.xlu0 %2546, %v775
        %v2548 = vpop.permute.xlu0 %2547
        %2549 = vset.pattern.permute.xlu0 5
        %2550 = vperm.xlu0 %2549, %v776
        %v2551 = vpop.permute.xlu0 %2550
        %2552 = vset.pattern.permute.xlu0 5
        %2553 = vperm.xlu0 %2552, %v777
        %v2554 = vpop.permute.xlu0 %2553
        %2555 = vset.pattern.permute.xlu0 5
        %2556 = vperm.xlu0 %2555, %v778
        %v2557 = vpop.permute.xlu0 %2556
        %2558 = vset.pattern.permute.xlu0 5
        %2559 = vperm.xlu0 %2558, %v779
        %v2560 = vpop.permute.xlu0 %2559
        %2561 = vset.pattern.permute.xlu0 5
        %2562 = vperm.xlu0 %2561, %v780
        %v2563 = vpop.permute.xlu0 %2562
        %2564 = vset.pattern.permute.xlu0 5
        %2565 = vperm.xlu0 %2564, %v781
        %v2566 = vpop.permute.xlu0 %2565
        %2567 = vset.pattern.permute.xlu0 5
        %2568 = vperm.xlu0 %2567, %v782
        %v2569 = vpop.permute.xlu0 %2568
        %2570 = vset.pattern.permute.xlu0 5
        %2571 = vperm.xlu0 %2570, %v783
        %v2572 = vpop.permute.xlu0 %2571
        %2573 = vset.pattern.permute.xlu0 5
        %2574 = vperm.xlu0 %2573, %v784
        %v2575 = vpop.permute.xlu0 %2574
        %2576 = vset.pattern.permute.xlu0 5
        %2577 = vperm.xlu0 %2576, %v785
        %v2578 = vpop.permute.xlu0 %2577
        %2579 = vset.pattern.permute.xlu0 5
        %2580 = vperm.xlu0 %2579, %v786
        %v2581 = vpop.permute.xlu0 %2580
        %2582 = vset.pattern.permute.xlu0 5
        %2583 = vperm.xlu0 %2582, %v787
        %v2584 = vpop.permute.xlu0 %2583
        %2585 = vset.pattern.permute.xlu0 5
        %2586 = vperm.xlu0 %2585, %v788
        %v2587 = vpop.permute.xlu0 %2586
        %2588 = vset.pattern.permute.xlu0 5
        %2589 = vperm.xlu0 %2588, %v789
        %v2590 = vpop.permute.xlu0 %2589
        %2591 = vset.pattern.permute.xlu0 5
        %2592 = vperm.xlu0 %2591, %v790
        %v2593 = vpop.permute.xlu0 %2592
        %2594 = vset.pattern.permute.xlu0 5
        %2595 = vperm.xlu0 %2594, %v791
        %v2596 = vpop.permute.xlu0 %2595
        %2597 = vset.pattern.permute.xlu0 5
        %2598 = vperm.xlu0 %2597, %v792
        %v2599 = vpop.permute.xlu0 %2598
        %2600 = vset.pattern.permute.xlu0 5
        %2601 = vperm.xlu0 %2600, %v793
        %v2602 = vpop.permute.xlu0 %2601
        %2603 = vset.pattern.permute.xlu0 5
        %2604 = vperm.xlu0 %2603, %v794
        %v2605 = vpop.permute.xlu0 %2604
        %2606 = vset.pattern.permute.xlu0 5
        %2607 = vperm.xlu0 %2606, %v795
        %v2608 = vpop.permute.xlu0 %2607
        %2609 = vset.pattern.permute.xlu0 5
        %2610 = vperm.xlu0 %2609, %v796
        %v2611 = vpop.permute.xlu0 %2610
        %2612 = vset.pattern.permute.xlu0 5
        %2613 = vperm.xlu0 %2612, %v797
        %v2614 = vpop.permute.xlu0 %2613
        %2615 = vset.pattern.permute.xlu0 5
        %2616 = vperm.xlu0 %2615, %v798
        %v2617 = vpop.permute.xlu0 %2616
        %2618 = vset.pattern.permute.xlu0 5
        %2619 = vperm.xlu0 %2618, %v799
        %v2620 = vpop.permute.xlu0 %2619
        %2621 = vset.pattern.permute.xlu0 5
        %2622 = vperm.xlu0 %2621, %v800
        %v2623 = vpop.permute.xlu0 %2622
        %2624 = vset.pattern.permute.xlu0 5
        %2625 = vperm.xlu0 %2624, %v801
        %v2626 = vpop.permute.xlu0 %2625
        %2627 = vset.pattern.permute.xlu0 5
        %2628 = vperm.xlu0 %2627, %v802
        %v2629 = vpop.permute.xlu0 %2628
        %2630 = vset.pattern.permute.xlu0 5
        %2631 = vperm.xlu0 %2630, %v803
        %v2632 = vpop.permute.xlu0 %2631
        %2633 = vset.pattern.permute.xlu0 5
        %2634 = vperm.xlu0 %2633, %v804
        %v2635 = vpop.permute.xlu0 %2634
        %2636 = vset.pattern.permute.xlu0 5
        %2637 = vperm.xlu0 %2636, %v805
        %v2638 = vpop.permute.xlu0 %2637
        %2639 = vset.pattern.permute.xlu0 5
        %2640 = vperm.xlu0 %2639, %v806
        %v2641 = vpop.permute.xlu0 %2640
        %vm2642 = vcmp.eq.s32.totalorder %v2548, 1
        %vm2643 = vcmp.eq.s32.totalorder %v2551, 1
        %vm2644 = vcmp.eq.s32.totalorder %v2554, 1
        %vm2645 = vcmp.eq.s32.totalorder %v2557, 1
        %vm2646 = vcmp.eq.s32.totalorder %v2560, 1
        %vm2647 = vcmp.eq.s32.totalorder %v2563, 1
        %vm2648 = vcmp.eq.s32.totalorder %v2566, 1
        %vm2649 = vcmp.eq.s32.totalorder %v2569, 1
        %vm2650 = vcmp.eq.s32.totalorder %v2572, 1
        %vm2651 = vcmp.eq.s32.totalorder %v2575, 1
        %vm2652 = vcmp.eq.s32.totalorder %v2578, 1
        %vm2653 = vcmp.eq.s32.totalorder %v2581, 1
        %vm2654 = vcmp.eq.s32.totalorder %v2584, 1
        %vm2655 = vcmp.eq.s32.totalorder %v2587, 1
        %vm2656 = vcmp.eq.s32.totalorder %v2590, 1
        %vm2657 = vcmp.eq.s32.totalorder %v2593, 1
        %vm2658 = vcmp.eq.s32.totalorder %v2596, 1
        %vm2659 = vcmp.eq.s32.totalorder %v2599, 1
        %vm2660 = vcmp.eq.s32.totalorder %v2602, 1
        %vm2661 = vcmp.eq.s32.totalorder %v2605, 1
        %vm2662 = vcmp.eq.s32.totalorder %v2608, 1
        %vm2663 = vcmp.eq.s32.totalorder %v2611, 1
        %vm2664 = vcmp.eq.s32.totalorder %v2614, 1
        %vm2665 = vcmp.eq.s32.totalorder %v2617, 1
        %vm2666 = vcmp.eq.s32.totalorder %v2620, 1
        %vm2667 = vcmp.eq.s32.totalorder %v2623, 1
        %vm2668 = vcmp.eq.s32.totalorder %v2626, 1
        %vm2669 = vcmp.eq.s32.totalorder %v2629, 1
        %vm2670 = vcmp.eq.s32.totalorder %v2632, 1
        %vm2671 = vcmp.eq.s32.totalorder %v2635, 1
        %vm2672 = vcmp.eq.s32.totalorder %v2638, 1
        %vm2673 = vcmp.eq.s32.totalorder %v2641, 1
        %vm2674 = vmpackc.low %vm2642, %vm2642
        %vm2675 = vmpackc.low %vm2643, %vm2643
        %vm2676 = vmpackc.low %vm2644, %vm2644
        %vm2677 = vmpackc.low %vm2645, %vm2645
        %vm2678 = vmpackc.low %vm2646, %vm2646
        %vm2679 = vmpackc.low %vm2647, %vm2647
        %vm2680 = vmpackc.low %vm2648, %vm2648
        %vm2681 = vmpackc.low %vm2649, %vm2649
        %vm2682 = vmpackc.low %vm2650, %vm2650
        %vm2683 = vmpackc.low %vm2651, %vm2651
        %vm2684 = vmpackc.low %vm2652, %vm2652
        %vm2685 = vmpackc.low %vm2653, %vm2653
        %vm2686 = vmpackc.low %vm2654, %vm2654
        %vm2687 = vmpackc.low %vm2655, %vm2655
        %vm2688 = vmpackc.low %vm2656, %vm2656
        %vm2689 = vmpackc.low %vm2657, %vm2657
        %vm2690 = vmpackc.low %vm2658, %vm2658
        %vm2691 = vmpackc.low %vm2659, %vm2659
        %vm2692 = vmpackc.low %vm2660, %vm2660
        %vm2693 = vmpackc.low %vm2661, %vm2661
        %vm2694 = vmpackc.low %vm2662, %vm2662
        %vm2695 = vmpackc.low %vm2663, %vm2663
        %vm2696 = vmpackc.low %vm2664, %vm2664
        %vm2697 = vmpackc.low %vm2665, %vm2665
        %vm2698 = vmpackc.low %vm2666, %vm2666
        %vm2699 = vmpackc.low %vm2667, %vm2667
        %vm2700 = vmpackc.low %vm2668, %vm2668
        %vm2701 = vmpackc.low %vm2669, %vm2669
        %vm2702 = vmpackc.low %vm2670, %vm2670
        %vm2703 = vmpackc.low %vm2671, %vm2671
        %vm2704 = vmpackc.low %vm2672, %vm2672
        %vm2705 = vmpackc.low %vm2673, %vm2673
        %v2706 = vsel %vm2674, 65537, 0
        %v2707 = vsel %vm2675, 65537, 0
        %v2708 = vsel %vm2676, 65537, 0
        %v2709 = vsel %vm2677, 65537, 0
        %v2710 = vsel %vm2678, 65537, 0
        %v2711 = vsel %vm2679, 65537, 0
        %v2712 = vsel %vm2680, 65537, 0
        %v2713 = vsel %vm2681, 65537, 0
        %v2714 = vsel %vm2682, 65537, 0
        %v2715 = vsel %vm2683, 65537, 0
        %v2716 = vsel %vm2684, 65537, 0
        %v2717 = vsel %vm2685, 65537, 0
        %v2718 = vsel %vm2686, 65537, 0
        %v2719 = vsel %vm2687, 65537, 0
        %v2720 = vsel %vm2688, 65537, 0
        %v2721 = vsel %vm2689, 65537, 0
        %v2722 = vsel %vm2690, 65537, 0
        %v2723 = vsel %vm2691, 65537, 0
        %v2724 = vsel %vm2692, 65537, 0
        %v2725 = vsel %vm2693, 65537, 0
        %v2726 = vsel %vm2694, 65537, 0
        %v2727 = vsel %vm2695, 65537, 0
        %v2728 = vsel %vm2696, 65537, 0
        %v2729 = vsel %vm2697, 65537, 0
        %v2730 = vsel %vm2698, 65537, 0
        %v2731 = vsel %vm2699, 65537, 0
        %v2732 = vsel %vm2700, 65537, 0
        %v2733 = vsel %vm2701, 65537, 0
        %v2734 = vsel %vm2702, 65537, 0
        %v2735 = vsel %vm2703, 65537, 0
        %v2736 = vsel %vm2704, 65537, 0
        %v2737 = vsel %vm2705, 65537, 0
        %v2738 = vunpack.c.l.b16 %v2706
        %v2739 = vunpack.c.l.b16 %v2707
        %v2740 = vunpack.c.l.b16 %v2708
        %v2741 = vunpack.c.l.b16 %v2709
        %v2742 = vunpack.c.l.b16 %v2710
        %v2743 = vunpack.c.l.b16 %v2711
        %v2744 = vunpack.c.l.b16 %v2712
        %v2745 = vunpack.c.l.b16 %v2713
        %v2746 = vunpack.c.l.b16 %v2714
        %v2747 = vunpack.c.l.b16 %v2715
        %v2748 = vunpack.c.l.b16 %v2716
        %v2749 = vunpack.c.l.b16 %v2717
        %v2750 = vunpack.c.l.b16 %v2718
        %v2751 = vunpack.c.l.b16 %v2719
        %v2752 = vunpack.c.l.b16 %v2720
        %v2753 = vunpack.c.l.b16 %v2721
        %v2754 = vunpack.c.l.b16 %v2722
        %v2755 = vunpack.c.l.b16 %v2723
        %v2756 = vunpack.c.l.b16 %v2724
        %v2757 = vunpack.c.l.b16 %v2725
        %v2758 = vunpack.c.l.b16 %v2726
        %v2759 = vunpack.c.l.b16 %v2727
        %v2760 = vunpack.c.l.b16 %v2728
        %v2761 = vunpack.c.l.b16 %v2729
        %v2762 = vunpack.c.l.b16 %v2730
        %v2763 = vunpack.c.l.b16 %v2731
        %v2764 = vunpack.c.l.b16 %v2732
        %v2765 = vunpack.c.l.b16 %v2733
        %v2766 = vunpack.c.l.b16 %v2734
        %v2767 = vunpack.c.l.b16 %v2735
        %v2768 = vunpack.c.l.b16 %v2736
        %v2769 = vunpack.c.l.b16 %v2737
        %v2770 = vpack.c.b16 %v2739, %v2738
        %v2771 = vpack.c.b16 %v2741, %v2740
        %v2772 = vpack.c.b16 %v2743, %v2742
        %v2773 = vpack.c.b16 %v2745, %v2744
        %v2774 = vpack.c.b16 %v2747, %v2746
        %v2775 = vpack.c.b16 %v2749, %v2748
        %v2776 = vpack.c.b16 %v2751, %v2750
        %v2777 = vpack.c.b16 %v2753, %v2752
        %v2778 = vpack.c.b16 %v2755, %v2754
        %v2779 = vpack.c.b16 %v2757, %v2756
        %v2780 = vpack.c.b16 %v2759, %v2758
        %v2781 = vpack.c.b16 %v2761, %v2760
        %v2782 = vpack.c.b16 %v2763, %v2762
        %v2783 = vpack.c.b16 %v2765, %v2764
        %v2784 = vpack.c.b16 %v2767, %v2766
        %v2785 = vpack.c.b16 %v2769, %v2768
        %v2787 = vshrl.u32 %v2770, 16
        %v2789 = vrot.slane %v2787, 7
        %v2790 = vshll.u32 %v2770, 16
        %v2792 = vor.u32 %v2789, %v2790
        %v2794 = vshrl.u32 %v2771, 16
        %v2796 = vrot.slane %v2794, 7
        %v2797 = vshll.u32 %v2771, 16
        %v2799 = vor.u32 %v2796, %v2797
        %v2800 = vsel %vm1738, %v2789, %v2799
        %v2802 = vshrl.u32 %v2772, 16
        %v2804 = vrot.slane %v2802, 7
        %v2805 = vshll.u32 %v2772, 16
        %v2807 = vor.u32 %v2804, %v2805
        %v2808 = vsel %vm1738, %v2796, %v2807
        %v2810 = vshrl.u32 %v2773, 16
        %v2812 = vrot.slane %v2810, 7
        %v2813 = vshll.u32 %v2773, 16
        %v2815 = vor.u32 %v2812, %v2813
        %v2816 = vsel %vm1738, %v2804, %v2815
        %v2818 = vshrl.u32 %v2774, 16
        %v2820 = vrot.slane %v2818, 7
        %v2821 = vshll.u32 %v2774, 16
        %v2823 = vor.u32 %v2820, %v2821
        %v2824 = vsel %vm1738, %v2812, %v2823
        %v2826 = vshrl.u32 %v2775, 16
        %v2828 = vrot.slane %v2826, 7
        %v2829 = vshll.u32 %v2775, 16
        %v2831 = vor.u32 %v2828, %v2829
        %v2832 = vsel %vm1738, %v2820, %v2831
        %v2834 = vshrl.u32 %v2776, 16
        %v2836 = vrot.slane %v2834, 7
        %v2837 = vshll.u32 %v2776, 16
        %v2839 = vor.u32 %v2836, %v2837
        %v2840 = vsel %vm1738, %v2828, %v2839
        %v2842 = vshrl.u32 %v2777, 16
        %v2844 = vrot.slane %v2842, 7
        %v2845 = vshll.u32 %v2777, 16
        %v2847 = vor.u32 %v2844, %v2845
        %v2848 = vsel %vm1738, %v2836, %v2847
        %v2850 = vshrl.u32 %v2778, 16
        %v2852 = vrot.slane %v2850, 7
        %v2853 = vshll.u32 %v2778, 16
        %v2855 = vor.u32 %v2852, %v2853
        %v2856 = vsel %vm1738, %v2844, %v2855
        %v2858 = vshrl.u32 %v2779, 16
        %v2860 = vrot.slane %v2858, 7
        %v2861 = vshll.u32 %v2779, 16
        %v2863 = vor.u32 %v2860, %v2861
        %v2864 = vsel %vm1738, %v2852, %v2863
        %v2866 = vshrl.u32 %v2780, 16
        %v2868 = vrot.slane %v2866, 7
        %v2869 = vshll.u32 %v2780, 16
        %v2871 = vor.u32 %v2868, %v2869
        %v2872 = vsel %vm1738, %v2860, %v2871
        %v2874 = vshrl.u32 %v2781, 16
        %v2876 = vrot.slane %v2874, 7
        %v2877 = vshll.u32 %v2781, 16
        %v2879 = vor.u32 %v2876, %v2877
        %v2880 = vsel %vm1738, %v2868, %v2879
        %v2882 = vshrl.u32 %v2782, 16
        %v2884 = vrot.slane %v2882, 7
        %v2885 = vshll.u32 %v2782, 16
        %v2887 = vor.u32 %v2884, %v2885
        %v2888 = vsel %vm1738, %v2876, %v2887
        %v2890 = vshrl.u32 %v2783, 16
        %v2892 = vrot.slane %v2890, 7
        %v2893 = vshll.u32 %v2783, 16
        %v2895 = vor.u32 %v2892, %v2893
        %v2896 = vsel %vm1738, %v2884, %v2895
        %v2898 = vshrl.u32 %v2784, 16
        %v2900 = vrot.slane %v2898, 7
        %v2901 = vshll.u32 %v2784, 16
        %v2903 = vor.u32 %v2900, %v2901
        %v2904 = vsel %vm1738, %v2892, %v2903
        %v2906 = vshrl.u32 %v2785, 16
        %v2908 = vrot.slane %v2906, 7
        %v2909 = vshll.u32 %v2785, 16
        %v2911 = vor.u32 %v2908, %v2909
        %v2912 = vsel %vm1738, %v2900, %v2911
        %vm2913 = vcmp.ne.s16.totalorder %v2792, 0
        %vm2914 = vcmp.ne.s16.totalorder %v2800, 0
        %vm2915 = vcmp.ne.s16.totalorder %v2808, 0
        %vm2916 = vcmp.ne.s16.totalorder %v2816, 0
        %vm2917 = vcmp.ne.s16.totalorder %v2824, 0
        %vm2918 = vcmp.ne.s16.totalorder %v2832, 0
        %vm2919 = vcmp.ne.s16.totalorder %v2840, 0
        %vm2920 = vcmp.ne.s16.totalorder %v2848, 0
        %vm2921 = vcmp.ne.s16.totalorder %v2856, 0
        %vm2922 = vcmp.ne.s16.totalorder %v2864, 0
        %vm2923 = vcmp.ne.s16.totalorder %v2872, 0
        %vm2924 = vcmp.ne.s16.totalorder %v2880, 0
        %vm2925 = vcmp.ne.s16.totalorder %v2888, 0
        %vm2926 = vcmp.ne.s16.totalorder %v2896, 0
        %vm2927 = vcmp.ne.s16.totalorder %v2904, 0
        %vm2928 = vcmp.ne.s16.totalorder %v2912, 0
        %vm2929 = vcmp.ne.s16.totalorder %v2908, 0
        %v2930 = vsel %vm2913, %v2529, 0
        %v2931 = vsel %vm2914, %v2530, 0
        %v2932 = vsel %vm2915, %v2531, 0
        %v2933 = vsel %vm2916, %v2532, 0
        %v2934 = vsel %vm2917, %v2533, 0
        %v2935 = vsel %vm2918, %v2534, 0
        %v2936 = vsel %vm2919, %v2535, 0
        %v2937 = vsel %vm2920, %v2536, 0
        %v2938 = vsel %vm2921, %v2537, 0
        %v2939 = vsel %vm2922, %v2538, 0
        %v2940 = vsel %vm2923, %v2539, 0
        %v2941 = vsel %vm2924, %v2540, 0
        %v2942 = vsel %vm2925, %v2541, 0
        %v2943 = vsel %vm2926, %v2542, 0
        %v2944 = vsel %vm2927, %v2543, 0
        %v2945 = vsel %vm2928, %v2544, 0
        %v2946 = vsel %vm2929, %v2545, 0
        %v2948 = vshll.u32 %v1482, 16
        %v2950 = vrot.slane %v2948, 1
        %v2951 = vshrl.u32 %v1482, 16
        %v2953 = vor.u32 %v2951, %v2950
        %v2955 = vshll.u32 %v1483, 16
        %v2957 = vrot.slane %v2955, 1
        %v2958 = vsel %vm1047, %v2953, %v2957
        %v2959 = vshrl.u32 %v1483, 16
        %v2961 = vor.u32 %v2959, %v2957
        %v2963 = vshll.u32 %v1484, 16
        %v2965 = vrot.slane %v2963, 1
        %v2966 = vsel %vm1047, %v2961, %v2965
        %v2967 = vshrl.u32 %v1484, 16
        %v2969 = vor.u32 %v2967, %v2965
        %v2971 = vshll.u32 %v1485, 16
        %v2973 = vrot.slane %v2971, 1
        %v2974 = vsel %vm1047, %v2969, %v2973
        %v2975 = vshrl.u32 %v1485, 16
        %v2977 = vor.u32 %v2975, %v2973
        %v2979 = vshll.u32 %v1486, 16
        %v2981 = vrot.slane %v2979, 1
        %v2982 = vsel %vm1047, %v2977, %v2981
        %v2983 = vshrl.u32 %v1486, 16
        %v2985 = vor.u32 %v2983, %v2981
        %v2987 = vshll.u32 %v1487, 16
        %v2989 = vrot.slane %v2987, 1
        %v2990 = vsel %vm1047, %v2985, %v2989
        %v2991 = vshrl.u32 %v1487, 16
        %v2993 = vor.u32 %v2991, %v2989
        %v2995 = vshll.u32 %v1488, 16
        %v2997 = vrot.slane %v2995, 1
        %v2998 = vsel %vm1047, %v2993, %v2997
        %v2999 = vshrl.u32 %v1488, 16
        %v3001 = vor.u32 %v2999, %v2997
        %v3003 = vshll.u32 %v1489, 16
        %v3005 = vrot.slane %v3003, 1
        %v3006 = vsel %vm1047, %v3001, %v3005
        %v3007 = vshrl.u32 %v1489, 16
        %v3009 = vor.u32 %v3007, %v3005
        %v3011 = vshll.u32 %v1490, 16
        %v3013 = vrot.slane %v3011, 1
        %v3014 = vsel %vm1047, %v3009, %v3013
        %v3015 = vshrl.u32 %v1490, 16
        %v3017 = vor.u32 %v3015, %v3013
        %v3019 = vshll.u32 %v1491, 16
        %v3021 = vrot.slane %v3019, 1
        %v3022 = vsel %vm1047, %v3017, %v3021
        %v3023 = vshrl.u32 %v1491, 16
        %v3025 = vor.u32 %v3023, %v3021
        %v3027 = vshll.u32 %v1492, 16
        %v3029 = vrot.slane %v3027, 1
        %v3030 = vsel %vm1047, %v3025, %v3029
        %v3031 = vshrl.u32 %v1492, 16
        %v3033 = vor.u32 %v3031, %v3029
        %v3035 = vshll.u32 %v1493, 16
        %v3037 = vrot.slane %v3035, 1
        %v3038 = vsel %vm1047, %v3033, %v3037
        %v3039 = vshrl.u32 %v1493, 16
        %v3041 = vor.u32 %v3039, %v3037
        %v3043 = vshll.u32 %v1494, 16
        %v3045 = vrot.slane %v3043, 1
        %v3046 = vsel %vm1047, %v3041, %v3045
        %v3047 = vshrl.u32 %v1494, 16
        %v3049 = vor.u32 %v3047, %v3045
        %v3051 = vshll.u32 %v1495, 16
        %v3053 = vrot.slane %v3051, 1
        %v3054 = vsel %vm1047, %v3049, %v3053
        %v3055 = vshrl.u32 %v1495, 16
        %v3057 = vor.u32 %v3055, %v3053
        %v3059 = vshll.u32 %v1496, 16
        %v3061 = vrot.slane %v3059, 1
        %v3062 = vsel %vm1047, %v3057, %v3061
        %v3063 = vshrl.u32 %v1496, 16
        %v3065 = vor.u32 %v3063, %v3061
        %v3067 = vshll.u32 %v2127, 16
        %v3069 = vrot.slane %v3067, 1
        %v3070 = vsel %vm1047, %v3065, %v3069
        %v3071 = vshrl.u32 %v2127, 16
        %v3073 = vor.u32 %v3071, %v3069
        %v3091 = vrot.slane %v2930, 1
        %v3092 = vrot.slane %v2931, 1
        %v3093 = vsel %vm2044, %v3091, %v3092
        %v3094 = vrot.slane %v2932, 1
        %v3095 = vsel %vm2044, %v3092, %v3094
        %v3096 = vrot.slane %v2933, 1
        %v3097 = vsel %vm2044, %v3094, %v3096
        %v3098 = vrot.slane %v2934, 1
        %v3099 = vsel %vm2044, %v3096, %v3098
        %v3100 = vrot.slane %v2935, 1
        %v3101 = vsel %vm2044, %v3098, %v3100
        %v3102 = vrot.slane %v2936, 1
        %v3103 = vsel %vm2044, %v3100, %v3102
        %v3104 = vrot.slane %v2937, 1
        %v3105 = vsel %vm2044, %v3102, %v3104
        %v3106 = vrot.slane %v2938, 1
        %v3107 = vsel %vm2044, %v3104, %v3106
        %v3108 = vrot.slane %v2939, 1
        %v3109 = vsel %vm2044, %v3106, %v3108
        %v3110 = vrot.slane %v2940, 1
        %v3111 = vsel %vm2044, %v3108, %v3110
        %v3112 = vrot.slane %v2941, 1
        %v3113 = vsel %vm2044, %v3110, %v3112
        %v3114 = vrot.slane %v2942, 1
        %v3115 = vsel %vm2044, %v3112, %v3114
        %v3116 = vrot.slane %v2943, 1
        %v3117 = vsel %vm2044, %v3114, %v3116
        %v3118 = vrot.slane %v2944, 1
        %v3119 = vsel %vm2044, %v3116, %v3118
        %v3120 = vrot.slane %v2945, 1
        %v3121 = vsel %vm2044, %v3118, %v3120
        %v3122 = vrot.slane %v2946, 1
        %v3123 = vsel %vm2044, %v3120, %v3122
        %s3124 = scalar_lea.vmem [#allocation6], 192
        %v3125 = vld [vmem:[%s3124] sm:$0xf]
        %v3126 = vld [vmem:[%s3124 + $0x4] sm:$0xf]
        %v3127 = vld [vmem:[%s3124 + $0x8] sm:$0xf]
        %v3128 = vld [vmem:[%s3124 + $0xc] sm:$0xf]
        %v3129 = vld [vmem:[%s3124 + $0x10] sm:$0xf]
        %v3130 = vld [vmem:[%s3124 + $0x14] sm:$0xf]
        %v3131 = vld [vmem:[%s3124 + $0x18] sm:$0xf]
        %v3132 = vld [vmem:[%s3124 + $0x1c] sm:$0xf]
        %v3133 = vld [vmem:[%s3124 + $0x20] sm:$0xf]
        %v3134 = vld [vmem:[%s3124 + $0x24] sm:$0xf]
        %v3135 = vld [vmem:[%s3124 + $0x28] sm:$0xf]
        %v3136 = vld [vmem:[%s3124 + $0x2c] sm:$0xf]
        %v3137 = vld [vmem:[%s3124 + $0x30] sm:$0xf]
        %v3138 = vld [vmem:[%s3124 + $0x34] sm:$0xf]
        %v3139 = vld [vmem:[%s3124 + $0x38] sm:$0xf]
        %v3140 = vld [vmem:[%s3124 + $0x3c] sm:$0xf]
        %v3141 = vld [vmem:[%s3124 + $0x40] sm:$0xf]
        %v3142 = vld [vmem:[%s3124 + $0x44] sm:$0xf]
        %v3143 = vld [vmem:[%s3124 + $0x48] sm:$0xf]
        %v3144 = vld [vmem:[%s3124 + $0x4c] sm:$0xf]
        %v3145 = vld [vmem:[%s3124 + $0x50] sm:$0xf]
        %v3146 = vld [vmem:[%s3124 + $0x54] sm:$0xf]
        %v3147 = vld [vmem:[%s3124 + $0x58] sm:$0xf]
        %v3148 = vld [vmem:[%s3124 + $0x5c] sm:$0xf]
        %v3149 = vld [vmem:[%s3124 + $0x60] sm:$0xf]
        %v3150 = vld [vmem:[%s3124 + $0x64] sm:$0xf]
        %v3151 = vld [vmem:[%s3124 + $0x68] sm:$0xf]
        %v3152 = vld [vmem:[%s3124 + $0x6c] sm:$0xf]
        %v3153 = vld [vmem:[%s3124 + $0x70] sm:$0xf]
        %v3154 = vld [vmem:[%s3124 + $0x74] sm:$0xf]
        %v3155 = vld [vmem:[%s3124 + $0x78] sm:$0xf]
        %v3156 = vld [vmem:[%s3124 + $0x7c] sm:$0xf]
        %v3157 = vld [vmem:[%s3124 + $0x80] sm:$0xf]
        %v3158 = vld [vmem:[%s3124 + $0x84] sm:$0xf]
        %v3159 = vld [vmem:[%s3124 + $0x88] sm:$0xf]
        %v3160 = vld [vmem:[%s3124 + $0x8c] sm:$0xf]
        %v3161 = vld [vmem:[%s3124 + $0x90] sm:$0xf]
        %v3162 = vld [vmem:[%s3124 + $0x94] sm:$0xf]
        %v3163 = vld [vmem:[%s3124 + $0x98] sm:$0xf]
        %v3164 = vld [vmem:[%s3124 + $0x9c] sm:$0xf]
        %v3165 = vld [vmem:[%s3124 + $0xa0] sm:$0xf]
        %v3166 = vld [vmem:[%s3124 + $0xa4] sm:$0xf]
        %v3167 = vld [vmem:[%s3124 + $0xa8] sm:$0xf]
        %v3168 = vld [vmem:[%s3124 + $0xac] sm:$0xf]
        %v3169 = vld [vmem:[%s3124 + $0xb0] sm:$0xf]
        %v3170 = vld [vmem:[%s3124 + $0xb4] sm:$0xf]
        %v3171 = vld [vmem:[%s3124 + $0xb8] sm:$0xf]
        %v3172 = vld [vmem:[%s3124 + $0xbc] sm:$0xf]
        %v3174 = vshrl.u32 %v2512, 16
        %v3176 = vrot.slane %v3174, 7
        %v3178 = vshrl.u32 %v2513, 16
        %v3180 = vrot.slane %v3178, 7
        %v3181 = vshll.u32 %v2513, 16
        %v3183 = vor.u32 %v3180, %v3181
        %v3184 = vsel %vm1738, %v3176, %v3183
        %v3186 = vshrl.u32 %v2950, 16
        %v3188 = vrot.slane %v3186, 7
        %v3190 = vshrl.u32 %v2958, 16
        %v3192 = vrot.slane %v3190, 7
        %v3193 = vshll.u32 %v2958, 16
        %v3195 = vor.u32 %v3192, %v3193
        %v3196 = vsel %vm1738, %v3188, %v3195
        %v3198 = vshrl.u32 %v3091, 16
        %v3200 = vrot.slane %v3198, 7
        %v3202 = vshrl.u32 %v3093, 16
        %v3204 = vrot.slane %v3202, 7
        %v3205 = vshll.u32 %v3093, 16
        %v3207 = vor.u32 %v3204, %v3205
        %v3208 = vsel %vm1738, %v3200, %v3207
        %v3210 = vshrl.u32 %v2514, 16
        %v3212 = vrot.slane %v3210, 7
        %v3213 = vshll.u32 %v2514, 16
        %v3215 = vor.u32 %v3212, %v3213
        %v3216 = vsel %vm1738, %v3180, %v3215
        %v3218 = vshrl.u32 %v2966, 16
        %v3220 = vrot.slane %v3218, 7
        %v3221 = vshll.u32 %v2966, 16
        %v3223 = vor.u32 %v3220, %v3221
        %v3224 = vsel %vm1738, %v3192, %v3223
        %v3226 = vshrl.u32 %v3095, 16
        %v3228 = vrot.slane %v3226, 7
        %v3229 = vshll.u32 %v3095, 16
        %v3231 = vor.u32 %v3228, %v3229
        %v3232 = vsel %vm1738, %v3204, %v3231
        %v3234 = vshrl.u32 %v2515, 16
        %v3236 = vrot.slane %v3234, 7
        %v3237 = vshll.u32 %v2515, 16
        %v3239 = vor.u32 %v3236, %v3237
        %v3240 = vsel %vm1738, %v3212, %v3239
        %v3242 = vshrl.u32 %v2974, 16
        %v3244 = vrot.slane %v3242, 7
        %v3245 = vshll.u32 %v2974, 16
        %v3247 = vor.u32 %v3244, %v3245
        %v3248 = vsel %vm1738, %v3220, %v3247
        %v3250 = vshrl.u32 %v3097, 16
        %v3252 = vrot.slane %v3250, 7
        %v3253 = vshll.u32 %v3097, 16
        %v3255 = vor.u32 %v3252, %v3253
        %v3256 = vsel %vm1738, %v3228, %v3255
        %v3258 = vshrl.u32 %v2516, 16
        %v3260 = vrot.slane %v3258, 7
        %v3261 = vshll.u32 %v2516, 16
        %v3263 = vor.u32 %v3260, %v3261
        %v3264 = vsel %vm1738, %v3236, %v3263
        %v3266 = vshrl.u32 %v2982, 16
        %v3268 = vrot.slane %v3266, 7
        %v3269 = vshll.u32 %v2982, 16
        %v3271 = vor.u32 %v3268, %v3269
        %v3272 = vsel %vm1738, %v3244, %v3271
        %v3274 = vshrl.u32 %v3099, 16
        %v3276 = vrot.slane %v3274, 7
        %v3277 = vshll.u32 %v3099, 16
        %v3279 = vor.u32 %v3276, %v3277
        %v3280 = vsel %vm1738, %v3252, %v3279
        %v3282 = vshrl.u32 %v2517, 16
        %v3284 = vrot.slane %v3282, 7
        %v3285 = vshll.u32 %v2517, 16
        %v3287 = vor.u32 %v3284, %v3285
        %v3288 = vsel %vm1738, %v3260, %v3287
        %v3290 = vshrl.u32 %v2990, 16
        %v3292 = vrot.slane %v3290, 7
        %v3293 = vshll.u32 %v2990, 16
        %v3295 = vor.u32 %v3292, %v3293
        %v3296 = vsel %vm1738, %v3268, %v3295
        %v3298 = vshrl.u32 %v3101, 16
        %v3300 = vrot.slane %v3298, 7
        %v3301 = vshll.u32 %v3101, 16
        %v3303 = vor.u32 %v3300, %v3301
        %v3304 = vsel %vm1738, %v3276, %v3303
        %v3306 = vshrl.u32 %v2518, 16
        %v3308 = vrot.slane %v3306, 7
        %v3309 = vshll.u32 %v2518, 16
        %v3311 = vor.u32 %v3308, %v3309
        %v3312 = vsel %vm1738, %v3284, %v3311
        %v3314 = vshrl.u32 %v2998, 16
        %v3316 = vrot.slane %v3314, 7
        %v3317 = vshll.u32 %v2998, 16
        %v3319 = vor.u32 %v3316, %v3317
        %v3320 = vsel %vm1738, %v3292, %v3319
        %v3322 = vshrl.u32 %v3103, 16
        %v3324 = vrot.slane %v3322, 7
        %v3325 = vshll.u32 %v3103, 16
        %v3327 = vor.u32 %v3324, %v3325
        %v3328 = vsel %vm1738, %v3300, %v3327
        %v3330 = vshrl.u32 %v2519, 16
        %v3332 = vrot.slane %v3330, 7
        %v3333 = vshll.u32 %v2519, 16
        %v3335 = vor.u32 %v3332, %v3333
        %v3336 = vsel %vm1738, %v3308, %v3335
        %v3338 = vshrl.u32 %v3006, 16
        %v3340 = vrot.slane %v3338, 7
        %v3341 = vshll.u32 %v3006, 16
        %v3343 = vor.u32 %v3340, %v3341
        %v3344 = vsel %vm1738, %v3316, %v3343
        %v3346 = vshrl.u32 %v3105, 16
        %v3348 = vrot.slane %v3346, 7
        %v3349 = vshll.u32 %v3105, 16
        %v3351 = vor.u32 %v3348, %v3349
        %v3352 = vsel %vm1738, %v3324, %v3351
        %v3354 = vshrl.u32 %v2520, 16
        %v3356 = vrot.slane %v3354, 7
        %v3357 = vshll.u32 %v2520, 16
        %v3359 = vor.u32 %v3356, %v3357
        %v3360 = vsel %vm1738, %v3332, %v3359
        %v3362 = vshrl.u32 %v3014, 16
        %v3364 = vrot.slane %v3362, 7
        %v3365 = vshll.u32 %v3014, 16
        %v3367 = vor.u32 %v3364, %v3365
        %v3368 = vsel %vm1738, %v3340, %v3367
        %v3370 = vshrl.u32 %v3107, 16
        %v3372 = vrot.slane %v3370, 7
        %v3373 = vshll.u32 %v3107, 16
        %v3375 = vor.u32 %v3372, %v3373
        %v3376 = vsel %vm1738, %v3348, %v3375
        %v3378 = vshrl.u32 %v2521, 16
        %v3380 = vrot.slane %v3378, 7
        %v3381 = vshll.u32 %v2521, 16
        %v3383 = vor.u32 %v3380, %v3381
        %v3384 = vsel %vm1738, %v3356, %v3383
        %v3386 = vshrl.u32 %v3022, 16
        %v3388 = vrot.slane %v3386, 7
        %v3389 = vshll.u32 %v3022, 16
        %v3391 = vor.u32 %v3388, %v3389
        %v3392 = vsel %vm1738, %v3364, %v3391
        %v3394 = vshrl.u32 %v3109, 16
        %v3396 = vrot.slane %v3394, 7
        %v3397 = vshll.u32 %v3109, 16
        %v3399 = vor.u32 %v3396, %v3397
        %v3400 = vsel %vm1738, %v3372, %v3399
        %v3402 = vshrl.u32 %v2522, 16
        %v3404 = vrot.slane %v3402, 7
        %v3405 = vshll.u32 %v2522, 16
        %v3407 = vor.u32 %v3404, %v3405
        %v3408 = vsel %vm1738, %v3380, %v3407
        %v3410 = vshrl.u32 %v3030, 16
        %v3412 = vrot.slane %v3410, 7
        %v3413 = vshll.u32 %v3030, 16
        %v3415 = vor.u32 %v3412, %v3413
        %v3416 = vsel %vm1738, %v3388, %v3415
        %v3418 = vshrl.u32 %v3111, 16
        %v3420 = vrot.slane %v3418, 7
        %v3421 = vshll.u32 %v3111, 16
        %v3423 = vor.u32 %v3420, %v3421
        %v3424 = vsel %vm1738, %v3396, %v3423
        %v3426 = vshrl.u32 %v2523, 16
        %v3428 = vrot.slane %v3426, 7
        %v3429 = vshll.u32 %v2523, 16
        %v3431 = vor.u32 %v3428, %v3429
        %v3432 = vsel %vm1738, %v3404, %v3431
        %v3434 = vshrl.u32 %v3038, 16
        %v3436 = vrot.slane %v3434, 7
        %v3437 = vshll.u32 %v3038, 16
        %v3439 = vor.u32 %v3436, %v3437
        %v3440 = vsel %vm1738, %v3412, %v3439
        %v3442 = vshrl.u32 %v3113, 16
        %v3444 = vrot.slane %v3442, 7
        %v3445 = vshll.u32 %v3113, 16
        %v3447 = vor.u32 %v3444, %v3445
        %v3448 = vsel %vm1738, %v3420, %v3447
        %v3450 = vshrl.u32 %v2524, 16
        %v3452 = vrot.slane %v3450, 7
        %v3453 = vshll.u32 %v2524, 16
        %v3455 = vor.u32 %v3452, %v3453
        %v3456 = vsel %vm1738, %v3428, %v3455
        %v3458 = vshrl.u32 %v3046, 16
        %v3460 = vrot.slane %v3458, 7
        %v3461 = vshll.u32 %v3046, 16
        %v3463 = vor.u32 %v3460, %v3461
        %v3464 = vsel %vm1738, %v3436, %v3463
        %v3466 = vshrl.u32 %v3115, 16
        %v3468 = vrot.slane %v3466, 7
        %v3469 = vshll.u32 %v3115, 16
        %v3471 = vor.u32 %v3468, %v3469
        %v3472 = vsel %vm1738, %v3444, %v3471
        %v3474 = vshrl.u32 %v2525, 16
        %v3476 = vrot.slane %v3474, 7
        %v3477 = vshll.u32 %v2525, 16
        %v3479 = vor.u32 %v3476, %v3477
        %v3480 = vsel %vm1738, %v3452, %v3479
        %v3482 = vshrl.u32 %v3054, 16
        %v3484 = vrot.slane %v3482, 7
        %v3485 = vshll.u32 %v3054, 16
        %v3487 = vor.u32 %v3484, %v3485
        %v3488 = vsel %vm1738, %v3460, %v3487
        %v3490 = vshrl.u32 %v3117, 16
        %v3492 = vrot.slane %v3490, 7
        %v3493 = vshll.u32 %v3117, 16
        %v3495 = vor.u32 %v3492, %v3493
        %v3496 = vsel %vm1738, %v3468, %v3495
        %v3498 = vshrl.u32 %v2526, 16
        %v3500 = vrot.slane %v3498, 7
        %v3501 = vshll.u32 %v2526, 16
        %v3503 = vor.u32 %v3500, %v3501
        %v3504 = vsel %vm1738, %v3476, %v3503
        %v3506 = vshrl.u32 %v3062, 16
        %v3508 = vrot.slane %v3506, 7
        %v3509 = vshll.u32 %v3062, 16
        %v3511 = vor.u32 %v3508, %v3509
        %v3512 = vsel %vm1738, %v3484, %v3511
        %v3514 = vshrl.u32 %v3119, 16
        %v3516 = vrot.slane %v3514, 7
        %v3517 = vshll.u32 %v3119, 16
        %v3519 = vor.u32 %v3516, %v3517
        %v3520 = vsel %vm1738, %v3492, %v3519
        %v3522 = vshrl.u32 %v2527, 16
        %v3524 = vrot.slane %v3522, 7
        %v3525 = vshll.u32 %v2527, 16
        %v3527 = vor.u32 %v3524, %v3525
        %v3528 = vsel %vm1738, %v3500, %v3527
        %v3530 = vshrl.u32 %v3070, 16
        %v3532 = vrot.slane %v3530, 7
        %v3533 = vshll.u32 %v3070, 16
        %v3535 = vor.u32 %v3532, %v3533
        %v3536 = vsel %vm1738, %v3508, %v3535
        %v3538 = vshrl.u32 %v3121, 16
        %v3540 = vrot.slane %v3538, 7
        %v3541 = vshll.u32 %v3121, 16
        %v3543 = vor.u32 %v3540, %v3541
        %v3544 = vsel %vm1738, %v3516, %v3543
        %v3546 = vshrl.u32 %v2528, 16
        %v3548 = vrot.slane %v3546, 7
        %v3549 = vshll.u32 %v2528, 16
        %v3551 = vor.u32 %v3548, %v3549
        %v3552 = vsel %vm1738, %v3524, %v3551
        %v3554 = vshrl.u32 %v3073, 16
        %v3556 = vrot.slane %v3554, 7
        %v3557 = vshll.u32 %v3073, 16
        %v3559 = vor.u32 %v3556, %v3557
        %v3560 = vsel %vm1738, %v3532, %v3559
        %v3562 = vshrl.u32 %v3123, 16
        %v3564 = vrot.slane %v3562, 7
        %v3565 = vshll.u32 %v3123, 16
        %v3567 = vor.u32 %v3564, %v3565
        %v3568 = vsel %vm1738, %v3540, %v3567
        %v3665 = vunpack.c.l.b16 %v3125
        %v3666 = vunpack.c.l.b16 %v3126
        %v3667 = vunpack.c.l.b16 %v3127
        %v3668 = vunpack.c.l.b16 %v3128
        %v3669 = vunpack.c.l.b16 %v3129
        %v3670 = vunpack.c.l.b16 %v3130
        %v3671 = vunpack.c.l.b16 %v3131
        %v3672 = vunpack.c.l.b16 %v3132
        %v3673 = vunpack.c.l.b16 %v3133
        %v3674 = vunpack.c.l.b16 %v3134
        %v3675 = vunpack.c.l.b16 %v3135
        %v3676 = vunpack.c.l.b16 %v3136
        %v3677 = vunpack.c.l.b16 %v3137
        %v3678 = vunpack.c.l.b16 %v3138
        %v3679 = vunpack.c.l.b16 %v3139
        %v3680 = vunpack.c.l.b16 %v3140
        %v3681 = vunpack.c.l.b16 %v3141
        %v3682 = vunpack.c.l.b16 %v3142
        %v3683 = vunpack.c.l.b16 %v3143
        %v3684 = vunpack.c.l.b16 %v3144
        %v3685 = vunpack.c.l.b16 %v3145
        %v3686 = vunpack.c.l.b16 %v3146
        %v3687 = vunpack.c.l.b16 %v3147
        %v3688 = vunpack.c.l.b16 %v3148
        %v3689 = vunpack.c.l.b16 %v3149
        %v3690 = vunpack.c.l.b16 %v3150
        %v3691 = vunpack.c.l.b16 %v3151
        %v3692 = vunpack.c.l.b16 %v3152
        %v3693 = vunpack.c.l.b16 %v3153
        %v3694 = vunpack.c.l.b16 %v3154
        %v3695 = vunpack.c.l.b16 %v3155
        %v3696 = vunpack.c.l.b16 %v3156
        %v3697 = vunpack.c.l.b16 %v3157
        %v3698 = vunpack.c.l.b16 %v3158
        %v3699 = vunpack.c.l.b16 %v3159
        %v3700 = vunpack.c.l.b16 %v3160
        %v3701 = vunpack.c.l.b16 %v3161
        %v3702 = vunpack.c.l.b16 %v3162
        %v3703 = vunpack.c.l.b16 %v3163
        %v3704 = vunpack.c.l.b16 %v3164
        %v3705 = vunpack.c.l.b16 %v3165
        %v3706 = vunpack.c.l.b16 %v3166
        %v3707 = vunpack.c.l.b16 %v3167
        %v3708 = vunpack.c.l.b16 %v3168
        %v3709 = vunpack.c.l.b16 %v3169
        %v3710 = vunpack.c.l.b16 %v3170
        %v3711 = vunpack.c.l.b16 %v3171
        %v3712 = vunpack.c.l.b16 %v3172
        %v3713 = vpack.c.b16 %v3666, %v3665
        %v3714 = vpack.c.b16 %v3668, %v3667
        %v3715 = vpack.c.b16 %v3670, %v3669
        %v3716 = vpack.c.b16 %v3672, %v3671
        %v3717 = vpack.c.b16 %v3674, %v3673
        %v3718 = vpack.c.b16 %v3676, %v3675
        %v3719 = vpack.c.b16 %v3678, %v3677
        %v3720 = vpack.c.b16 %v3680, %v3679
        %v3721 = vpack.c.b16 %v3682, %v3681
        %v3722 = vpack.c.b16 %v3684, %v3683
        %v3723 = vpack.c.b16 %v3686, %v3685
        %v3724 = vpack.c.b16 %v3688, %v3687
        %v3725 = vpack.c.b16 %v3690, %v3689
        %v3726 = vpack.c.b16 %v3692, %v3691
        %v3727 = vpack.c.b16 %v3694, %v3693
        %v3728 = vpack.c.b16 %v3696, %v3695
        %v3729 = vpack.c.b16 %v3698, %v3697
        %v3730 = vpack.c.b16 %v3700, %v3699
        %v3731 = vpack.c.b16 %v3702, %v3701
        %v3732 = vpack.c.b16 %v3704, %v3703
        %v3733 = vpack.c.b16 %v3706, %v3705
        %v3734 = vpack.c.b16 %v3708, %v3707
        %v3735 = vpack.c.b16 %v3710, %v3709
        %v3736 = vpack.c.b16 %v3712, %v3711
        %3761 = vmatprep.subr.bf16.mxu0 0
        %3762 = vmatpush1.bf16.msra.mxu0 %v3713
        %3763 = vmatprep.subr.bf16.mxu0 0
        %3764 = vmatpush1.bf16.msra.mxu0 %v3714
        %3765 = vmatprep.subr.bf16.mxu0 0
        %3766 = vmatpush1.bf16.msra.mxu0 %v3715
        %3767 = vmatprep.subr.bf16.mxu0 0
        %3768 = vmatpush1.bf16.msra.mxu0 %v3716
        %3769 = vmatprep.subr.bf16.mxu0 0
        %3770 = vmatpush1.bf16.msra.mxu0 %v3717
        %3771 = vmatprep.subr.bf16.mxu0 0
        %3772 = vmatpush1.bf16.msra.mxu0 %v3718
        %3773 = vmatprep.subr.bf16.mxu0 0
        %3774 = vmatpush1.bf16.msra.mxu0 %v3719
        %3775 = vmatprep.subr.bf16.mxu0 0
        %3776 = vmatpush1.bf16.msra.mxu0 %v3720
        %3777 = vmatprep.subr.bf16.mxu0 0
        %3778 = vmatpush1.bf16.msra.mxu0 %v3721
        %3779 = vmatprep.subr.bf16.mxu0 0
        %3780 = vmatpush1.bf16.msra.mxu0 %v3722
        %3781 = vmatprep.subr.bf16.mxu0 0
        %3782 = vmatpush1.bf16.msra.mxu0 %v3723
        %3783 = vmatprep.subr.bf16.mxu0 0
        %3784 = vmatpush1.bf16.msra.mxu0 %v3724
        %3785 = vmatprep.subr.bf16.mxu0 0
        %3786 = vmatpush1.bf16.msra.mxu0 %v3725
        %3787 = vmatprep.subr.bf16.mxu0 0
        %3788 = vmatpush1.bf16.msra.mxu0 %v3726
        %3789 = vmatprep.subr.bf16.mxu0 0
        %3790 = vmatpush1.bf16.msra.mxu0 %v3727
        %3791 = vmatprep.subr.bf16.mxu0 0
        %3792 = vmatpush1.bf16.msra.mxu0 %v3728
        %3793 = vmatprep.mubr.bf16.mxu0 %v3196
        %3794 = vmatmul.mubr.bf16.gmra.mrb[0].mxu0 %v3184
        %v3795 = vpop.f32.mrb[0].mxu0
        %v3796 = vadd.f32 0.0, %v3795
        %v3797 = vpop.f32.mrb[0].mxu0
        %v3798 = vpop.f32.mrb[0].mxu0
        %v3799 = vadd.f32 0.0, %v3798
        %v3800 = vpop.f32.mrb[0].mxu0
        %3801 = vmatprep.mubr.bf16.mxu0 %v3224
        %3802 = vmatmul.mubr.bf16.gmra.mrb[0].mxu0 %v3216
        %v3803 = vpop.f32.mrb[0].mxu0
        %v3804 = vadd.f32 0.0, %v3803
        %v3805 = vpop.f32.mrb[0].mxu0
        %v3806 = vpop.f32.mrb[0].mxu0
        %v3807 = vadd.f32 0.0, %v3806
        %v3808 = vpop.f32.mrb[0].mxu0
        %3809 = vmatprep.mubr.bf16.mxu0 %v3248
        %3810 = vmatmul.mubr.bf16.gmra.mrb[0].mxu0 %v3240
        %v3811 = vpop.f32.mrb[0].mxu0
        %v3812 = vadd.f32 0.0, %v3811
        %v3813 = vpop.f32.mrb[0].mxu0
        %v3814 = vpop.f32.mrb[0].mxu0
        %v3815 = vadd.f32 0.0, %v3814
        %v3816 = vpop.f32.mrb[0].mxu0
        %3817 = vmatprep.mubr.bf16.mxu0 %v3272
        %3818 = vmatmul.mubr.bf16.gmra.mrb[0].mxu0 %v3264
        %v3819 = vpop.f32.mrb[0].mxu0
        %v3820 = vadd.f32 0.0, %v3819
        %v3821 = vpop.f32.mrb[0].mxu0
        %v3822 = vpop.f32.mrb[0].mxu0
        %v3823 = vadd.f32 0.0, %v3822
        %v3824 = vpop.f32.mrb[0].mxu0
        %3825 = vmatprep.mubr.bf16.mxu0 %v3296
        %3826 = vmatmul.mubr.bf16.gmra.mrb[0].mxu0 %v3288
        %v3827 = vpop.f32.mrb[0].mxu0
        %v3828 = vadd.f32 0.0, %v3827
        %v3829 = vpop.f32.mrb[0].mxu0
        %v3830 = vpop.f32.mrb[0].mxu0
        %v3831 = vadd.f32 0.0, %v3830
        %v3832 = vpop.f32.mrb[0].mxu0
        %3833 = vmatprep.mubr.bf16.mxu0 %v3320
        %3834 = vmatmul.mubr.bf16.gmra.mrb[0].mxu0 %v3312
        %v3835 = vpop.f32.mrb[0].mxu0
        %v3836 = vadd.f32 0.0, %v3835
        %v3837 = vpop.f32.mrb[0].mxu0
        %v3838 = vpop.f32.mrb[0].mxu0
        %v3839 = vadd.f32 0.0, %v3838
        %v3840 = vpop.f32.mrb[0].mxu0
        %3841 = vmatprep.mubr.bf16.mxu0 %v3344
        %3842 = vmatmul.mubr.bf16.gmra.mrb[0].mxu0 %v3336
        %v3843 = vpop.f32.mrb[0].mxu0
        %v3844 = vadd.f32 0.0, %v3843
        %v3845 = vpop.f32.mrb[0].mxu0
        %v3846 = vpop.f32.mrb[0].mxu0
        %v3847 = vadd.f32 0.0, %v3846
        %v3848 = vpop.f32.mrb[0].mxu0
        %3849 = vmatprep.mubr.bf16.mxu0 %v3368
        %3850 = vmatmul.mubr.bf16.gmra.mrb[0].mxu0 %v3360
        %v3851 = vpop.f32.mrb[0].mxu0
        %v3852 = vadd.f32 0.0, %v3851
        %v3853 = vpop.f32.mrb[0].mxu0
        %v3854 = vpop.f32.mrb[0].mxu0
        %v3855 = vadd.f32 0.0, %v3854
        %v3856 = vpop.f32.mrb[0].mxu0
        %3857 = vmatprep.mubr.bf16.mxu0 %v3392
        %3858 = vmatmul.mubr.bf16.gmra.mrb[0].mxu0 %v3384
        %v3859 = vpop.f32.mrb[0].mxu0
        %v3860 = vadd.f32 0.0, %v3859
        %v3861 = vpop.f32.mrb[0].mxu0
        %v3862 = vpop.f32.mrb[0].mxu0
        %v3863 = vadd.f32 0.0, %v3862
        %v3864 = vpop.f32.mrb[0].mxu0
        %3865 = vmatprep.mubr.bf16.mxu0 %v3416
        %3866 = vmatmul.mubr.bf16.gmra.mrb[0].mxu0 %v3408
        %v3867 = vpop.f32.mrb[0].mxu0
        %v3868 = vadd.f32 0.0, %v3867
        %v3869 = vpop.f32.mrb[0].mxu0
        %v3870 = vpop.f32.mrb[0].mxu0
        %v3871 = vadd.f32 0.0, %v3870
        %v3872 = vpop.f32.mrb[0].mxu0
        %3873 = vmatprep.mubr.bf16.mxu0 %v3440
        %3874 = vmatmul.mubr.bf16.gmra.mrb[0].mxu0 %v3432
        %v3875 = vpop.f32.mrb[0].mxu0
        %v3876 = vadd.f32 0.0, %v3875
        %v3877 = vpop.f32.mrb[0].mxu0
        %v3878 = vpop.f32.mrb[0].mxu0
        %v3879 = vadd.f32 0.0, %v3878
        %v3880 = vpop.f32.mrb[0].mxu0
        %3881 = vmatprep.mubr.bf16.mxu0 %v3464
        %3882 = vmatmul.mubr.bf16.gmra.mrb[0].mxu0 %v3456
        %v3883 = vpop.f32.mrb[0].mxu0
        %v3884 = vadd.f32 0.0, %v3883
        %v3885 = vpop.f32.mrb[0].mxu0
        %v3886 = vpop.f32.mrb[0].mxu0
        %v3887 = vadd.f32 0.0, %v3886
        %v3888 = vpop.f32.mrb[0].mxu0
        %3889 = vmatprep.mubr.bf16.mxu0 %v3488
        %3890 = vmatmul.mubr.bf16.gmra.mrb[0].mxu0 %v3480
        %v3891 = vpop.f32.mrb[0].mxu0
        %v3892 = vadd.f32 0.0, %v3891
        %v3893 = vpop.f32.mrb[0].mxu0
        %v3894 = vpop.f32.mrb[0].mxu0
        %v3895 = vadd.f32 0.0, %v3894
        %v3896 = vpop.f32.mrb[0].mxu0
        %3897 = vmatprep.mubr.bf16.mxu0 %v3512
        %3898 = vmatmul.mubr.bf16.gmra.mrb[0].mxu0 %v3504
        %v3899 = vpop.f32.mrb[0].mxu0
        %v3900 = vadd.f32 0.0, %v3899
        %v3901 = vpop.f32.mrb[0].mxu0
        %v3902 = vpop.f32.mrb[0].mxu0
        %v3903 = vadd.f32 0.0, %v3902
        %v3904 = vpop.f32.mrb[0].mxu0
        %3905 = vmatprep.mubr.bf16.mxu0 %v3536
        %3906 = vmatmul.mubr.bf16.gmra.mrb[0].mxu0 %v3528
        %v3907 = vpop.f32.mrb[0].mxu0
        %v3908 = vadd.f32 0.0, %v3907
        %v3909 = vpop.f32.mrb[0].mxu0
        %v3910 = vpop.f32.mrb[0].mxu0
        %v3911 = vadd.f32 0.0, %v3910
        %v3912 = vpop.f32.mrb[0].mxu0
        %3913 = vmatprep.mubr.bf16.mxu0 %v3560
        %3914 = vmatmul.mubr.bf16.gmra.mrb[0].mxu0 %v3552
        %v3915 = vpop.f32.mrb[0].mxu0
        %v3916 = vadd.f32 0.0, %v3915
        %v3917 = vpop.f32.mrb[0].mxu0
        %v3918 = vpop.f32.mrb[0].mxu0
        %v3919 = vadd.f32 0.0, %v3918
        %v3920 = vpop.f32.mrb[0].mxu0
        %3921 = vdwg.mxu0
        %3922 = vmatprep.subr.bf16.mxu0 0
        %3923 = vmatpush1.bf16.msra.mxu0 %v3729
        %3924 = vmatprep.subr.bf16.mxu0 0
        %3925 = vmatpush1.bf16.msra.mxu0 %v3730
        %3926 = vmatprep.subr.bf16.mxu0 0
        %3927 = vmatpush1.bf16.msra.mxu0 %v3731
        %3928 = vmatprep.subr.bf16.mxu0 0
        %3929 = vmatpush1.bf16.msra.mxu0 %v3732
        %3930 = vmatprep.subr.bf16.mxu0 0
        %3931 = vmatpush1.bf16.msra.mxu0 %v3733
        %3932 = vmatprep.subr.bf16.mxu0 0
        %3933 = vmatpush1.bf16.msra.mxu0 %v3734
        %3934 = vmatprep.subr.bf16.mxu0 0
        %3935 = vmatpush1.bf16.msra.mxu0 %v3735
        %3936 = vmatprep.subr.bf16.mxu0 0
        %3937 = vmatpush1.bf16.msra.mxu0 %v3736
        %3938 = vmatprep.subr.bf16.mxu0 0
        %3939 = vmatpush1.bf16.msra.mxu0 0
        %3940 = vmatprep.subr.bf16.mxu0 0
        %3941 = vmatpush1.bf16.msra.mxu0 0
        %3942 = vmatprep.subr.bf16.mxu0 0
        %3943 = vmatpush1.bf16.msra.mxu0 0
        %3944 = vmatprep.subr.bf16.mxu0 0
        %3945 = vmatpush1.bf16.msra.mxu0 0
        %3946 = vmatprep.subr.bf16.mxu0 0
        %3947 = vmatpush1.bf16.msra.mxu0 0
        %3948 = vmatprep.subr.bf16.mxu0 0
        %3949 = vmatpush1.bf16.msra.mxu0 0
        %3950 = vmatprep.subr.bf16.mxu0 0
        %3951 = vmatpush1.bf16.msra.mxu0 0
        %3952 = vmatprep.subr.bf16.mxu0 0
        %3953 = vmatpush1.bf16.msra.mxu0 0
        %3954 = vmatprep.mubr.bf16.mxu0 0
        %3955 = vmatmul.mubr.bf16.gmra.mrb[0].mxu0 %v3208
        %v3956 = vpop.f32.mrb[0].mxu0
        %v3957 = vadd.f32 %v3796, %v3956
        %v3958 = vpop.f32.mrb[0].mxu0
        %v3959 = vpop.f32.mrb[0].mxu0
        %v3960 = vadd.f32 %v3799, %v3959
        %v3961 = vpop.f32.mrb[0].mxu0
        %3962 = vmatprep.mubr.bf16.mxu0 0
        %3963 = vmatmul.mubr.bf16.gmra.mrb[0].mxu0 %v3232
        %v3964 = vpop.f32.mrb[0].mxu0
        %v3965 = vadd.f32 %v3804, %v3964
        %v3966 = vpop.f32.mrb[0].mxu0
        %v3967 = vpop.f32.mrb[0].mxu0
        %v3968 = vadd.f32 %v3807, %v3967
        %v3969 = vpop.f32.mrb[0].mxu0
        %3970 = vmatprep.mubr.bf16.mxu0 0
        %3971 = vmatmul.mubr.bf16.gmra.mrb[0].mxu0 %v3256
        %v3972 = vpop.f32.mrb[0].mxu0
        %v3973 = vadd.f32 %v3812, %v3972
        %v3974 = vpop.f32.mrb[0].mxu0
        %v3975 = vpop.f32.mrb[0].mxu0
        %v3976 = vadd.f32 %v3815, %v3975
        %v3977 = vpop.f32.mrb[0].mxu0
        %3978 = vmatprep.mubr.bf16.mxu0 0
        %3979 = vmatmul.mubr.bf16.gmra.mrb[0].mxu0 %v3280
        %v3980 = vpop.f32.mrb[0].mxu0
        %v3981 = vadd.f32 %v3820, %v3980
        %v3982 = vpop.f32.mrb[0].mxu0
        %v3983 = vpop.f32.mrb[0].mxu0
        %v3984 = vadd.f32 %v3823, %v3983
        %v3985 = vpop.f32.mrb[0].mxu0
        %3986 = vmatprep.mubr.bf16.mxu0 0
        %3987 = vmatmul.mubr.bf16.gmra.mrb[0].mxu0 %v3304
        %v3988 = vpop.f32.mrb[0].mxu0
        %v3989 = vadd.f32 %v3828, %v3988
        %v3990 = vpop.f32.mrb[0].mxu0
        %v3991 = vpop.f32.mrb[0].mxu0
        %v3992 = vadd.f32 %v3831, %v3991
        %v3993 = vpop.f32.mrb[0].mxu0
        %3994 = vmatprep.mubr.bf16.mxu0 0
        %3995 = vmatmul.mubr.bf16.gmra.mrb[0].mxu0 %v3328
        %v3996 = vpop.f32.mrb[0].mxu0
        %v3997 = vadd.f32 %v3836, %v3996
        %v3998 = vpop.f32.mrb[0].mxu0
        %v3999 = vpop.f32.mrb[0].mxu0
        %v4000 = vadd.f32 %v3839, %v3999
        %v4001 = vpop.f32.mrb[0].mxu0
        %4002 = vmatprep.mubr.bf16.mxu0 0
        %4003 = vmatmul.mubr.bf16.gmra.mrb[0].mxu0 %v3352
        %v4004 = vpop.f32.mrb[0].mxu0
        %v4005 = vadd.f32 %v3844, %v4004
        %v4006 = vpop.f32.mrb[0].mxu0
        %v4007 = vpop.f32.mrb[0].mxu0
        %v4008 = vadd.f32 %v3847, %v4007
        %v4009 = vpop.f32.mrb[0].mxu0
        %4010 = vmatprep.mubr.bf16.mxu0 0
        %4011 = vmatmul.mubr.bf16.gmra.mrb[0].mxu0 %v3376
        %v4012 = vpop.f32.mrb[0].mxu0
        %v4013 = vadd.f32 %v3852, %v4012
        %v4014 = vpop.f32.mrb[0].mxu0
        %v4015 = vpop.f32.mrb[0].mxu0
        %v4016 = vadd.f32 %v3855, %v4015
        %v4017 = vpop.f32.mrb[0].mxu0
        %4018 = vmatprep.mubr.bf16.mxu0 0
        %4019 = vmatmul.mubr.bf16.gmra.mrb[0].mxu0 %v3400
        %v4020 = vpop.f32.mrb[0].mxu0
        %v4021 = vadd.f32 %v3860, %v4020
        %v4022 = vpop.f32.mrb[0].mxu0
        %v4023 = vpop.f32.mrb[0].mxu0
        %v4024 = vadd.f32 %v3863, %v4023
        %v4025 = vpop.f32.mrb[0].mxu0
        %4026 = vmatprep.mubr.bf16.mxu0 0
        %4027 = vmatmul.mubr.bf16.gmra.mrb[0].mxu0 %v3424
        %v4028 = vpop.f32.mrb[0].mxu0
        %v4029 = vadd.f32 %v3868, %v4028
        %v4030 = vpop.f32.mrb[0].mxu0
        %v4031 = vpop.f32.mrb[0].mxu0
        %v4032 = vadd.f32 %v3871, %v4031
        %v4033 = vpop.f32.mrb[0].mxu0
        %4034 = vmatprep.mubr.bf16.mxu0 0
        %4035 = vmatmul.mubr.bf16.gmra.mrb[0].mxu0 %v3448
        %v4036 = vpop.f32.mrb[0].mxu0
        %v4037 = vadd.f32 %v3876, %v4036
        %v4038 = vpop.f32.mrb[0].mxu0
        %v4039 = vpop.f32.mrb[0].mxu0
        %v4040 = vadd.f32 %v3879, %v4039
        %v4041 = vpop.f32.mrb[0].mxu0
        %4042 = vmatprep.mubr.bf16.mxu0 0
        %4043 = vmatmul.mubr.bf16.gmra.mrb[0].mxu0 %v3472
        %v4044 = vpop.f32.mrb[0].mxu0
        %v4045 = vadd.f32 %v3884, %v4044
        %v4046 = vpop.f32.mrb[0].mxu0
        %v4047 = vpop.f32.mrb[0].mxu0
        %v4048 = vadd.f32 %v3887, %v4047
        %v4049 = vpop.f32.mrb[0].mxu0
        %4050 = vmatprep.mubr.bf16.mxu0 0
        %4051 = vmatmul.mubr.bf16.gmra.mrb[0].mxu0 %v3496
        %v4052 = vpop.f32.mrb[0].mxu0
        %v4053 = vadd.f32 %v3892, %v4052
        %v4054 = vpop.f32.mrb[0].mxu0
        %v4055 = vpop.f32.mrb[0].mxu0
        %v4056 = vadd.f32 %v3895, %v4055
        %v4057 = vpop.f32.mrb[0].mxu0
        %4058 = vmatprep.mubr.bf16.mxu0 0
        %4059 = vmatmul.mubr.bf16.gmra.mrb[0].mxu0 %v3520
        %v4060 = vpop.f32.mrb[0].mxu0
        %v4061 = vadd.f32 %v3900, %v4060
        %v4062 = vpop.f32.mrb[0].mxu0
        %v4063 = vpop.f32.mrb[0].mxu0
        %v4064 = vadd.f32 %v3903, %v4063
        %v4065 = vpop.f32.mrb[0].mxu0
        %4066 = vmatprep.mubr.bf16.mxu0 0
        %4067 = vmatmul.mubr.bf16.gmra.mrb[0].mxu0 %v3544
        %v4068 = vpop.f32.mrb[0].mxu0
        %v4069 = vadd.f32 %v3908, %v4068
        %v4070 = vpop.f32.mrb[0].mxu0
        %v4071 = vpop.f32.mrb[0].mxu0
        %v4072 = vadd.f32 %v3911, %v4071
        %v4073 = vpop.f32.mrb[0].mxu0
        %4074 = vmatprep.mubr.bf16.mxu0 0
        %4075 = vmatmul.mubr.bf16.gmra.mrb[0].mxu0 %v3568
        %v4076 = vpop.f32.mrb[0].mxu0
        %v4077 = vadd.f32 %v3916, %v4076
        %v4078 = vpop.f32.mrb[0].mxu0
        %v4079 = vpop.f32.mrb[0].mxu0
        %v4080 = vadd.f32 %v3919, %v4079
        %v4081 = vpop.f32.mrb[0].mxu0
        %4082 = vdwg.mxu0
        %v4084 = vshrl.u32 %v1192, 16
        %v4086 = vrot.slane %v4084, 7
        %v4088 = vshrl.u32 %v1193, 16
        %v4090 = vrot.slane %v4088, 7
        %v4091 = vshll.u32 %v1193, 16
        %v4093 = vor.u32 %v4090, %v4091
        %v4094 = vsel %vm1738, %v4086, %v4093
        %v4096 = vshrl.u32 %v1903, 16
        %v4098 = vrot.slane %v4096, 7
        %v4100 = vshrl.u32 %v1911, 16
        %v4102 = vrot.slane %v4100, 7
        %v4103 = vshll.u32 %v1911, 16
        %v4105 = vor.u32 %v4102, %v4103
        %v4106 = vsel %vm1738, %v4098, %v4105
        %v4108 = vshrl.u32 %v2045, 16
        %v4110 = vrot.slane %v4108, 7
        %v4112 = vshrl.u32 %v2047, 16
        %v4114 = vrot.slane %v4112, 7
        %v4115 = vshll.u32 %v2047, 16
        %v4117 = vor.u32 %v4114, %v4115
        %v4118 = vsel %vm1738, %v4110, %v4117
        %v4120 = vshrl.u32 %v1194, 16
        %v4122 = vrot.slane %v4120, 7
        %v4123 = vshll.u32 %v1194, 16
        %v4125 = vor.u32 %v4122, %v4123
        %v4126 = vsel %vm1738, %v4090, %v4125
        %v4128 = vshrl.u32 %v1919, 16
        %v4130 = vrot.slane %v4128, 7
        %v4131 = vshll.u32 %v1919, 16
        %v4133 = vor.u32 %v4130, %v4131
        %v4134 = vsel %vm1738, %v4102, %v4133
        %v4136 = vshrl.u32 %v2049, 16
        %v4138 = vrot.slane %v4136, 7
        %v4139 = vshll.u32 %v2049, 16
        %v4141 = vor.u32 %v4138, %v4139
        %v4142 = vsel %vm1738, %v4114, %v4141
        %v4144 = vshrl.u32 %v1195, 16
        %v4146 = vrot.slane %v4144, 7
        %v4147 = vshll.u32 %v1195, 16
        %v4149 = vor.u32 %v4146, %v4147
        %v4150 = vsel %vm1738, %v4122, %v4149
        %v4152 = vshrl.u32 %v1927, 16
        %v4154 = vrot.slane %v4152, 7
        %v4155 = vshll.u32 %v1927, 16
        %v4157 = vor.u32 %v4154, %v4155
        %v4158 = vsel %vm1738, %v4130, %v4157
        %v4160 = vshrl.u32 %v2051, 16
        %v4162 = vrot.slane %v4160, 7
        %v4163 = vshll.u32 %v2051, 16
        %v4165 = vor.u32 %v4162, %v4163
        %v4166 = vsel %vm1738, %v4138, %v4165
        %v4168 = vshrl.u32 %v1196, 16
        %v4170 = vrot.slane %v4168, 7
        %v4171 = vshll.u32 %v1196, 16
        %v4173 = vor.u32 %v4170, %v4171
        %v4174 = vsel %vm1738, %v4146, %v4173
        %v4176 = vshrl.u32 %v1935, 16
        %v4178 = vrot.slane %v4176, 7
        %v4179 = vshll.u32 %v1935, 16
        %v4181 = vor.u32 %v4178, %v4179
        %v4182 = vsel %vm1738, %v4154, %v4181
        %v4184 = vshrl.u32 %v2053, 16
        %v4186 = vrot.slane %v4184, 7
        %v4187 = vshll.u32 %v2053, 16
        %v4189 = vor.u32 %v4186, %v4187
        %v4190 = vsel %vm1738, %v4162, %v4189
        %v4192 = vshrl.u32 %v1197, 16
        %v4194 = vrot.slane %v4192, 7
        %v4195 = vshll.u32 %v1197, 16
        %v4197 = vor.u32 %v4194, %v4195
        %v4198 = vsel %vm1738, %v4170, %v4197
        %v4200 = vshrl.u32 %v1943, 16
        %v4202 = vrot.slane %v4200, 7
        %v4203 = vshll.u32 %v1943, 16
        %v4205 = vor.u32 %v4202, %v4203
        %v4206 = vsel %vm1738, %v4178, %v4205
        %v4208 = vshrl.u32 %v2055, 16
        %v4210 = vrot.slane %v4208, 7
        %v4211 = vshll.u32 %v2055, 16
        %v4213 = vor.u32 %v4210, %v4211
        %v4214 = vsel %vm1738, %v4186, %v4213
        %v4216 = vshrl.u32 %v1198, 16
        %v4218 = vrot.slane %v4216, 7
        %v4219 = vshll.u32 %v1198, 16
        %v4221 = vor.u32 %v4218, %v4219
        %v4222 = vsel %vm1738, %v4194, %v4221
        %v4224 = vshrl.u32 %v1951, 16
        %v4226 = vrot.slane %v4224, 7
        %v4227 = vshll.u32 %v1951, 16
        %v4229 = vor.u32 %v4226, %v4227
        %v4230 = vsel %vm1738, %v4202, %v4229
        %v4232 = vshrl.u32 %v2057, 16
        %v4234 = vrot.slane %v4232, 7
        %v4235 = vshll.u32 %v2057, 16
        %v4237 = vor.u32 %v4234, %v4235
        %v4238 = vsel %vm1738, %v4210, %v4237
        %v4240 = vshrl.u32 %v1199, 16
        %v4242 = vrot.slane %v4240, 7
        %v4243 = vshll.u32 %v1199, 16
        %v4245 = vor.u32 %v4242, %v4243
        %v4246 = vsel %vm1738, %v4218, %v4245
        %v4248 = vshrl.u32 %v1959, 16
        %v4250 = vrot.slane %v4248, 7
        %v4251 = vshll.u32 %v1959, 16
        %v4253 = vor.u32 %v4250, %v4251
        %v4254 = vsel %vm1738, %v4226, %v4253
        %v4256 = vshrl.u32 %v2059, 16
        %v4258 = vrot.slane %v4256, 7
        %v4259 = vshll.u32 %v2059, 16
        %v4261 = vor.u32 %v4258, %v4259
        %v4262 = vsel %vm1738, %v4234, %v4261
        %v4264 = vshrl.u32 %v1200, 16
        %v4266 = vrot.slane %v4264, 7
        %v4267 = vshll.u32 %v1200, 16
        %v4269 = vor.u32 %v4266, %v4267
        %v4270 = vsel %vm1738, %v4242, %v4269
        %v4272 = vshrl.u32 %v1967, 16
        %v4274 = vrot.slane %v4272, 7
        %v4275 = vshll.u32 %v1967, 16
        %v4277 = vor.u32 %v4274, %v4275
        %v4278 = vsel %vm1738, %v4250, %v4277
        %v4280 = vshrl.u32 %v2061, 16
        %v4282 = vrot.slane %v4280, 7
        %v4283 = vshll.u32 %v2061, 16
        %v4285 = vor.u32 %v4282, %v4283
        %v4286 = vsel %vm1738, %v4258, %v4285
        %v4288 = vshrl.u32 %v1201, 16
        %v4290 = vrot.slane %v4288, 7
        %v4291 = vshll.u32 %v1201, 16
        %v4293 = vor.u32 %v4290, %v4291
        %v4294 = vsel %vm1738, %v4266, %v4293
        %v4296 = vshrl.u32 %v1975, 16
        %v4298 = vrot.slane %v4296, 7
        %v4299 = vshll.u32 %v1975, 16
        %v4301 = vor.u32 %v4298, %v4299
        %v4302 = vsel %vm1738, %v4274, %v4301
        %v4304 = vshrl.u32 %v2063, 16
        %v4306 = vrot.slane %v4304, 7
        %v4307 = vshll.u32 %v2063, 16
        %v4309 = vor.u32 %v4306, %v4307
        %v4310 = vsel %vm1738, %v4282, %v4309
        %v4312 = vshrl.u32 %v1202, 16
        %v4314 = vrot.slane %v4312, 7
        %v4315 = vshll.u32 %v1202, 16
        %v4317 = vor.u32 %v4314, %v4315
        %v4318 = vsel %vm1738, %v4290, %v4317
        %v4320 = vshrl.u32 %v1983, 16
        %v4322 = vrot.slane %v4320, 7
        %v4323 = vshll.u32 %v1983, 16
        %v4325 = vor.u32 %v4322, %v4323
        %v4326 = vsel %vm1738, %v4298, %v4325
        %v4328 = vshrl.u32 %v2065, 16
        %v4330 = vrot.slane %v4328, 7
        %v4331 = vshll.u32 %v2065, 16
        %v4333 = vor.u32 %v4330, %v4331
        %v4334 = vsel %vm1738, %v4306, %v4333
        %v4336 = vshrl.u32 %v1203, 16
        %v4338 = vrot.slane %v4336, 7
        %v4339 = vshll.u32 %v1203, 16
        %v4341 = vor.u32 %v4338, %v4339
        %v4342 = vsel %vm1738, %v4314, %v4341
        %v4344 = vshrl.u32 %v1991, 16
        %v4346 = vrot.slane %v4344, 7
        %v4347 = vshll.u32 %v1991, 16
        %v4349 = vor.u32 %v4346, %v4347
        %v4350 = vsel %vm1738, %v4322, %v4349
        %v4352 = vshrl.u32 %v2067, 16
        %v4354 = vrot.slane %v4352, 7
        %v4355 = vshll.u32 %v2067, 16
        %v4357 = vor.u32 %v4354, %v4355
        %v4358 = vsel %vm1738, %v4330, %v4357
        %v4360 = vshrl.u32 %v1204, 16
        %v4362 = vrot.slane %v4360, 7
        %v4363 = vshll.u32 %v1204, 16
        %v4365 = vor.u32 %v4362, %v4363
        %v4366 = vsel %vm1738, %v4338, %v4365
        %v4368 = vshrl.u32 %v1999, 16
        %v4370 = vrot.slane %v4368, 7
        %v4371 = vshll.u32 %v1999, 16
        %v4373 = vor.u32 %v4370, %v4371
        %v4374 = vsel %vm1738, %v4346, %v4373
        %v4376 = vshrl.u32 %v2069, 16
        %v4378 = vrot.slane %v4376, 7
        %v4379 = vshll.u32 %v2069, 16
        %v4381 = vor.u32 %v4378, %v4379
        %v4382 = vsel %vm1738, %v4354, %v4381
        %v4384 = vshrl.u32 %v1205, 16
        %v4386 = vrot.slane %v4384, 7
        %v4387 = vshll.u32 %v1205, 16
        %v4389 = vor.u32 %v4386, %v4387
        %v4390 = vsel %vm1738, %v4362, %v4389
        %v4392 = vshrl.u32 %v2007, 16
        %v4394 = vrot.slane %v4392, 7
        %v4395 = vshll.u32 %v2007, 16
        %v4397 = vor.u32 %v4394, %v4395
        %v4398 = vsel %vm1738, %v4370, %v4397
        %v4400 = vshrl.u32 %v2071, 16
        %v4402 = vrot.slane %v4400, 7
        %v4403 = vshll.u32 %v2071, 16
        %v4405 = vor.u32 %v4402, %v4403
        %v4406 = vsel %vm1738, %v4378, %v4405
        %v4408 = vshrl.u32 %v1206, 16
        %v4410 = vrot.slane %v4408, 7
        %v4411 = vshll.u32 %v1206, 16
        %v4413 = vor.u32 %v4410, %v4411
        %v4414 = vsel %vm1738, %v4386, %v4413
        %v4416 = vshrl.u32 %v2015, 16
        %v4418 = vrot.slane %v4416, 7
        %v4419 = vshll.u32 %v2015, 16
        %v4421 = vor.u32 %v4418, %v4419
        %v4422 = vsel %vm1738, %v4394, %v4421
        %v4424 = vshrl.u32 %v2073, 16
        %v4426 = vrot.slane %v4424, 7
        %v4427 = vshll.u32 %v2073, 16
        %v4429 = vor.u32 %v4426, %v4427
        %v4430 = vsel %vm1738, %v4402, %v4429
        %v4432 = vshrl.u32 %v1207, 16
        %v4434 = vrot.slane %v4432, 7
        %v4435 = vshll.u32 %v1207, 16
        %v4437 = vor.u32 %v4434, %v4435
        %v4438 = vsel %vm1738, %v4410, %v4437
        %v4440 = vshrl.u32 %v2023, 16
        %v4442 = vrot.slane %v4440, 7
        %v4443 = vshll.u32 %v2023, 16
        %v4445 = vor.u32 %v4442, %v4443
        %v4446 = vsel %vm1738, %v4418, %v4445
        %v4448 = vshrl.u32 %v2075, 16
        %v4450 = vrot.slane %v4448, 7
        %v4451 = vshll.u32 %v2075, 16
        %v4453 = vor.u32 %v4450, %v4451
        %v4454 = vsel %vm1738, %v4426, %v4453
        %v4456 = vshrl.u32 %v1208, 16
        %v4458 = vrot.slane %v4456, 7
        %v4459 = vshll.u32 %v1208, 16
        %v4461 = vor.u32 %v4458, %v4459
        %v4462 = vsel %vm1738, %v4434, %v4461
        %v4464 = vshrl.u32 %v2026, 16
        %v4466 = vrot.slane %v4464, 7
        %v4467 = vshll.u32 %v2026, 16
        %v4469 = vor.u32 %v4466, %v4467
        %v4470 = vsel %vm1738, %v4442, %v4469
        %v4472 = vshrl.u32 %v2077, 16
        %v4474 = vrot.slane %v4472, 7
        %v4475 = vshll.u32 %v2077, 16
        %v4477 = vor.u32 %v4474, %v4475
        %v4478 = vsel %vm1738, %v4450, %v4477
        %v4575 = vunpack.c.l.b16 %v2078
        %v4576 = vunpack.c.l.b16 %v2079
        %v4577 = vunpack.c.l.b16 %v2080
        %v4578 = vunpack.c.l.b16 %v2081
        %v4579 = vunpack.c.l.b16 %v2082
        %v4580 = vunpack.c.l.b16 %v2083
        %v4581 = vunpack.c.l.b16 %v2084
        %v4582 = vunpack.c.l.b16 %v2085
        %v4583 = vunpack.c.l.b16 %v2086
        %v4584 = vunpack.c.l.b16 %v2087
        %v4585 = vunpack.c.l.b16 %v2088
        %v4586 = vunpack.c.l.b16 %v2089
        %v4587 = vunpack.c.l.b16 %v2090
        %v4588 = vunpack.c.l.b16 %v2091
        %v4589 = vunpack.c.l.b16 %v2092
        %v4590 = vunpack.c.l.b16 %v2093
        %v4591 = vunpack.c.l.b16 %v2094
        %v4592 = vunpack.c.l.b16 %v2095
        %v4593 = vunpack.c.l.b16 %v2096
        %v4594 = vunpack.c.l.b16 %v2097
        %v4595 = vunpack.c.l.b16 %v2098
        %v4596 = vunpack.c.l.b16 %v2099
        %v4597 = vunpack.c.l.b16 %v2100
        %v4598 = vunpack.c.l.b16 %v2101
        %v4599 = vunpack.c.l.b16 %v2102
        %v4600 = vunpack.c.l.b16 %v2103
        %v4601 = vunpack.c.l.b16 %v2104
        %v4602 = vunpack.c.l.b16 %v2105
        %v4603 = vunpack.c.l.b16 %v2106
        %v4604 = vunpack.c.l.b16 %v2107
        %v4605 = vunpack.c.l.b16 %v2108
        %v4606 = vunpack.c.l.b16 %v2109
        %v4607 = vunpack.c.l.b16 %v2110
        %v4608 = vunpack.c.l.b16 %v2111
        %v4609 = vunpack.c.l.b16 %v2112
        %v4610 = vunpack.c.l.b16 %v2113
        %v4611 = vunpack.c.l.b16 %v2114
        %v4612 = vunpack.c.l.b16 %v2115
        %v4613 = vunpack.c.l.b16 %v2116
        %v4614 = vunpack.c.l.b16 %v2117
        %v4615 = vunpack.c.l.b16 %v2118
        %v4616 = vunpack.c.l.b16 %v2119
        %v4617 = vunpack.c.l.b16 %v2120
        %v4618 = vunpack.c.l.b16 %v2121
        %v4619 = vunpack.c.l.b16 %v2122
        %v4620 = vunpack.c.l.b16 %v2123
        %v4621 = vunpack.c.l.b16 %v2124
        %v4622 = vunpack.c.l.b16 %v2125
        %v4623 = vpack.c.b16 %v4576, %v4575
        %v4624 = vpack.c.b16 %v4578, %v4577
        %v4625 = vpack.c.b16 %v4580, %v4579
        %v4626 = vpack.c.b16 %v4582, %v4581
        %v4627 = vpack.c.b16 %v4584, %v4583
        %v4628 = vpack.c.b16 %v4586, %v4585
        %v4629 = vpack.c.b16 %v4588, %v4587
        %v4630 = vpack.c.b16 %v4590, %v4589
        %v4631 = vpack.c.b16 %v4592, %v4591
        %v4632 = vpack.c.b16 %v4594, %v4593
        %v4633 = vpack.c.b16 %v4596, %v4595
        %v4634 = vpack.c.b16 %v4598, %v4597
        %v4635 = vpack.c.b16 %v4600, %v4599
        %v4636 = vpack.c.b16 %v4602, %v4601
        %v4637 = vpack.c.b16 %v4604, %v4603
        %v4638 = vpack.c.b16 %v4606, %v4605
        %v4639 = vpack.c.b16 %v4608, %v4607
        %v4640 = vpack.c.b16 %v4610, %v4609
        %v4641 = vpack.c.b16 %v4612, %v4611
        %v4642 = vpack.c.b16 %v4614, %v4613
        %v4643 = vpack.c.b16 %v4616, %v4615
        %v4644 = vpack.c.b16 %v4618, %v4617
        %v4645 = vpack.c.b16 %v4620, %v4619
        %v4646 = vpack.c.b16 %v4622, %v4621
        %4671 = vmatprep.subr.bf16.mxu0 0
        %4672 = vmatpush1.bf16.msra.mxu0 %v4623
        %4673 = vmatprep.subr.bf16.mxu0 0
        %4674 = vmatpush1.bf16.msra.mxu0 %v4624
        %4675 = vmatprep.subr.bf16.mxu0 0
        %4676 = vmatpush1.bf16.msra.mxu0 %v4625
        %4677 = vmatprep.subr.bf16.mxu0 0
        %4678 = vmatpush1.bf16.msra.mxu0 %v4626
        %4679 = vmatprep.subr.bf16.mxu0 0
        %4680 = vmatpush1.bf16.msra.mxu0 %v4627
        %4681 = vmatprep.subr.bf16.mxu0 0
        %4682 = vmatpush1.bf16.msra.mxu0 %v4628
        %4683 = vmatprep.subr.bf16.mxu0 0
        %4684 = vmatpush1.bf16.msra.mxu0 %v4629
        %4685 = vmatprep.subr.bf16.mxu0 0
        %4686 = vmatpush1.bf16.msra.mxu0 %v4630
        %4687 = vmatprep.subr.bf16.mxu0 0
        %4688 = vmatpush1.bf16.msra.mxu0 %v4631
        %4689 = vmatprep.subr.bf16.mxu0 0
        %4690 = vmatpush1.bf16.msra.mxu0 %v4632
        %4691 = vmatprep.subr.bf16.mxu0 0
        %4692 = vmatpush1.bf16.msra.mxu0 %v4633
        %4693 = vmatprep.subr.bf16.mxu0 0
        %4694 = vmatpush1.bf16.msra.mxu0 %v4634
        %4695 = vmatprep.subr.bf16.mxu0 0
        %4696 = vmatpush1.bf16.msra.mxu0 %v4635
        %4697 = vmatprep.subr.bf16.mxu0 0
        %4698 = vmatpush1.bf16.msra.mxu0 %v4636
        %4699 = vmatprep.subr.bf16.mxu0 0
        %4700 = vmatpush1.bf16.msra.mxu0 %v4637
        %4701 = vmatprep.subr.bf16.mxu0 0
        %4702 = vmatpush1.bf16.msra.mxu0 %v4638
        %4703 = vmatprep.mubr.bf16.mxu0 %v4106
        %4704 = vmatmul.mubr.bf16.gmra.mrb[0].mxu0 %v4094
        %v4705 = vpop.f32.mrb[0].mxu0
        %v4706 = vadd.f32 %v3957, %v4705
        %v4707 = vpop.f32.mrb[0].mxu0
        %v4708 = vpop.f32.mrb[0].mxu0
        %v4709 = vadd.f32 %v3960, %v4708
        %v4710 = vpop.f32.mrb[0].mxu0
        %4711 = vmatprep.mubr.bf16.mxu0 %v4134
        %4712 = vmatmul.mubr.bf16.gmra.mrb[0].mxu0 %v4126
        %v4713 = vpop.f32.mrb[0].mxu0
        %v4714 = vadd.f32 %v3965, %v4713
        %v4715 = vpop.f32.mrb[0].mxu0
        %v4716 = vpop.f32.mrb[0].mxu0
        %v4717 = vadd.f32 %v3968, %v4716
        %v4718 = vpop.f32.mrb[0].mxu0
        %4719 = vmatprep.mubr.bf16.mxu0 %v4158
        %4720 = vmatmul.mubr.bf16.gmra.mrb[0].mxu0 %v4150
        %v4721 = vpop.f32.mrb[0].mxu0
        %v4722 = vadd.f32 %v3973, %v4721
        %v4723 = vpop.f32.mrb[0].mxu0
        %v4724 = vpop.f32.mrb[0].mxu0
        %v4725 = vadd.f32 %v3976, %v4724
        %v4726 = vpop.f32.mrb[0].mxu0
        %4727 = vmatprep.mubr.bf16.mxu0 %v4182
        %4728 = vmatmul.mubr.bf16.gmra.mrb[0].mxu0 %v4174
        %v4729 = vpop.f32.mrb[0].mxu0
        %v4730 = vadd.f32 %v3981, %v4729
        %v4731 = vpop.f32.mrb[0].mxu0
        %v4732 = vpop.f32.mrb[0].mxu0
        %v4733 = vadd.f32 %v3984, %v4732
        %v4734 = vpop.f32.mrb[0].mxu0
        %4735 = vmatprep.mubr.bf16.mxu0 %v4206
        %4736 = vmatmul.mubr.bf16.gmra.mrb[0].mxu0 %v4198
        %v4737 = vpop.f32.mrb[0].mxu0
        %v4738 = vadd.f32 %v3989, %v4737
        %v4739 = vpop.f32.mrb[0].mxu0
        %v4740 = vpop.f32.mrb[0].mxu0
        %v4741 = vadd.f32 %v3992, %v4740
        %v4742 = vpop.f32.mrb[0].mxu0
        %4743 = vmatprep.mubr.bf16.mxu0 %v4230
        %4744 = vmatmul.mubr.bf16.gmra.mrb[0].mxu0 %v4222
        %v4745 = vpop.f32.mrb[0].mxu0
        %v4746 = vadd.f32 %v3997, %v4745
        %v4747 = vpop.f32.mrb[0].mxu0
        %v4748 = vpop.f32.mrb[0].mxu0
        %v4749 = vadd.f32 %v4000, %v4748
        %v4750 = vpop.f32.mrb[0].mxu0
        %4751 = vmatprep.mubr.bf16.mxu0 %v4254
        %4752 = vmatmul.mubr.bf16.gmra.mrb[0].mxu0 %v4246
        %v4753 = vpop.f32.mrb[0].mxu0
        %v4754 = vadd.f32 %v4005, %v4753
        %v4755 = vpop.f32.mrb[0].mxu0
        %v4756 = vpop.f32.mrb[0].mxu0
        %v4757 = vadd.f32 %v4008, %v4756
        %v4758 = vpop.f32.mrb[0].mxu0
        %4759 = vmatprep.mubr.bf16.mxu0 %v4278
        %4760 = vmatmul.mubr.bf16.gmra.mrb[0].mxu0 %v4270
        %v4761 = vpop.f32.mrb[0].mxu0
        %v4762 = vadd.f32 %v4013, %v4761
        %v4763 = vpop.f32.mrb[0].mxu0
        %v4764 = vpop.f32.mrb[0].mxu0
        %v4765 = vadd.f32 %v4016, %v4764
        %v4766 = vpop.f32.mrb[0].mxu0
        %4767 = vmatprep.mubr.bf16.mxu0 %v4302
        %4768 = vmatmul.mubr.bf16.gmra.mrb[0].mxu0 %v4294
        %v4769 = vpop.f32.mrb[0].mxu0
        %v4770 = vadd.f32 %v4021, %v4769
        %v4771 = vpop.f32.mrb[0].mxu0
        %v4772 = vpop.f32.mrb[0].mxu0
        %v4773 = vadd.f32 %v4024, %v4772
        %v4774 = vpop.f32.mrb[0].mxu0
        %4775 = vmatprep.mubr.bf16.mxu0 %v4326
        %4776 = vmatmul.mubr.bf16.gmra.mrb[0].mxu0 %v4318
        %v4777 = vpop.f32.mrb[0].mxu0
        %v4778 = vadd.f32 %v4029, %v4777
        %v4779 = vpop.f32.mrb[0].mxu0
        %v4780 = vpop.f32.mrb[0].mxu0
        %v4781 = vadd.f32 %v4032, %v4780
        %v4782 = vpop.f32.mrb[0].mxu0
        %4783 = vmatprep.mubr.bf16.mxu0 %v4350
        %4784 = vmatmul.mubr.bf16.gmra.mrb[0].mxu0 %v4342
        %v4785 = vpop.f32.mrb[0].mxu0
        %v4786 = vadd.f32 %v4037, %v4785
        %v4787 = vpop.f32.mrb[0].mxu0
        %v4788 = vpop.f32.mrb[0].mxu0
        %v4789 = vadd.f32 %v4040, %v4788
        %v4790 = vpop.f32.mrb[0].mxu0
        %4791 = vmatprep.mubr.bf16.mxu0 %v4374
        %4792 = vmatmul.mubr.bf16.gmra.mrb[0].mxu0 %v4366
        %v4793 = vpop.f32.mrb[0].mxu0
        %v4794 = vadd.f32 %v4045, %v4793
        %v4795 = vpop.f32.mrb[0].mxu0
        %v4796 = vpop.f32.mrb[0].mxu0
        %v4797 = vadd.f32 %v4048, %v4796
        %v4798 = vpop.f32.mrb[0].mxu0
        %4799 = vmatprep.mubr.bf16.mxu0 %v4398
        %4800 = vmatmul.mubr.bf16.gmra.mrb[0].mxu0 %v4390
        %v4801 = vpop.f32.mrb[0].mxu0
        %v4802 = vadd.f32 %v4053, %v4801
        %v4803 = vpop.f32.mrb[0].mxu0
        %v4804 = vpop.f32.mrb[0].mxu0
        %v4805 = vadd.f32 %v4056, %v4804
        %v4806 = vpop.f32.mrb[0].mxu0
        %4807 = vmatprep.mubr.bf16.mxu0 %v4422
        %4808 = vmatmul.mubr.bf16.gmra.mrb[0].mxu0 %v4414
        %v4809 = vpop.f32.mrb[0].mxu0
        %v4810 = vadd.f32 %v4061, %v4809
        %v4811 = vpop.f32.mrb[0].mxu0
        %v4812 = vpop.f32.mrb[0].mxu0
        %v4813 = vadd.f32 %v4064, %v4812
        %v4814 = vpop.f32.mrb[0].mxu0
        %4815 = vmatprep.mubr.bf16.mxu0 %v4446
        %4816 = vmatmul.mubr.bf16.gmra.mrb[0].mxu0 %v4438
        %v4817 = vpop.f32.mrb[0].mxu0
        %v4818 = vadd.f32 %v4069, %v4817
        %v4819 = vpop.f32.mrb[0].mxu0
        %v4820 = vpop.f32.mrb[0].mxu0
        %v4821 = vadd.f32 %v4072, %v4820
        %v4822 = vpop.f32.mrb[0].mxu0
        %4823 = vmatprep.mubr.bf16.mxu0 %v4470
        %4824 = vmatmul.mubr.bf16.gmra.mrb[0].mxu0 %v4462
        %v4825 = vpop.f32.mrb[0].mxu0
        %v4826 = vadd.f32 %v4077, %v4825
        %v4827 = vpop.f32.mrb[0].mxu0
        %v4828 = vpop.f32.mrb[0].mxu0
        %v4829 = vadd.f32 %v4080, %v4828
        %v4830 = vpop.f32.mrb[0].mxu0
        %4831 = vdwg.mxu0
        %4832 = vmatprep.subr.bf16.mxu0 0
        %4833 = vmatpush1.bf16.msra.mxu0 %v4639
        %4834 = vmatprep.subr.bf16.mxu0 0
        %4835 = vmatpush1.bf16.msra.mxu0 %v4640
        %4836 = vmatprep.subr.bf16.mxu0 0
        %4837 = vmatpush1.bf16.msra.mxu0 %v4641
        %4838 = vmatprep.subr.bf16.mxu0 0
        %4839 = vmatpush1.bf16.msra.mxu0 %v4642
        %4840 = vmatprep.subr.bf16.mxu0 0
        %4841 = vmatpush1.bf16.msra.mxu0 %v4643
        %4842 = vmatprep.subr.bf16.mxu0 0
        %4843 = vmatpush1.bf16.msra.mxu0 %v4644
        %4844 = vmatprep.subr.bf16.mxu0 0
        %4845 = vmatpush1.bf16.msra.mxu0 %v4645
        %4846 = vmatprep.subr.bf16.mxu0 0
        %4847 = vmatpush1.bf16.msra.mxu0 %v4646
        %4848 = vmatprep.subr.bf16.mxu0 0
        %4849 = vmatpush1.bf16.msra.mxu0 0
        %4850 = vmatprep.subr.bf16.mxu0 0
        %4851 = vmatpush1.bf16.msra.mxu0 0
        %4852 = vmatprep.subr.bf16.mxu0 0
        %4853 = vmatpush1.bf16.msra.mxu0 0
        %4854 = vmatprep.subr.bf16.mxu0 0
        %4855 = vmatpush1.bf16.msra.mxu0 0
        %4856 = vmatprep.subr.bf16.mxu0 0
        %4857 = vmatpush1.bf16.msra.mxu0 0
        %4858 = vmatprep.subr.bf16.mxu0 0
        %4859 = vmatpush1.bf16.msra.mxu0 0
        %4860 = vmatprep.subr.bf16.mxu0 0
        %4861 = vmatpush1.bf16.msra.mxu0 0
        %4862 = vmatprep.subr.bf16.mxu0 0
        %4863 = vmatpush1.bf16.msra.mxu0 0
        %4864 = vmatprep.mubr.bf16.mxu0 0
        %4865 = vmatmul.mubr.bf16.gmra.mrb[0].mxu0 %v4118
        %v4866 = vpop.f32.mrb[0].mxu0
        %v4867 = vadd.f32 %v4706, %v4866
        %v4868 = vpop.f32.mrb[0].mxu0
        %v4869 = vpop.f32.mrb[0].mxu0
        %v4870 = vadd.f32 %v4709, %v4869
        %v4871 = vpop.f32.mrb[0].mxu0
        %4872 = vmatprep.mubr.bf16.mxu0 0
        %4873 = vmatmul.mubr.bf16.gmra.mrb[0].mxu0 %v4142
        %v4874 = vpop.f32.mrb[0].mxu0
        %v4875 = vadd.f32 %v4714, %v4874
        %v4876 = vpop.f32.mrb[0].mxu0
        %v4877 = vpop.f32.mrb[0].mxu0
        %v4878 = vadd.f32 %v4717, %v4877
        %v4879 = vpop.f32.mrb[0].mxu0
        %4880 = vmatprep.mubr.bf16.mxu0 0
        %4881 = vmatmul.mubr.bf16.gmra.mrb[0].mxu0 %v4166
        %v4882 = vpop.f32.mrb[0].mxu0
        %v4883 = vadd.f32 %v4722, %v4882
        %v4884 = vpop.f32.mrb[0].mxu0
        %v4885 = vpop.f32.mrb[0].mxu0
        %v4886 = vadd.f32 %v4725, %v4885
        %v4887 = vpop.f32.mrb[0].mxu0
        %4888 = vmatprep.mubr.bf16.mxu0 0
        %4889 = vmatmul.mubr.bf16.gmra.mrb[0].mxu0 %v4190
        %v4890 = vpop.f32.mrb[0].mxu0
        %v4891 = vadd.f32 %v4730, %v4890
        %v4892 = vpop.f32.mrb[0].mxu0
        %v4893 = vpop.f32.mrb[0].mxu0
        %v4894 = vadd.f32 %v4733, %v4893
        %v4895 = vpop.f32.mrb[0].mxu0
        %4896 = vmatprep.mubr.bf16.mxu0 0
        %4897 = vmatmul.mubr.bf16.gmra.mrb[0].mxu0 %v4214
        %v4898 = vpop.f32.mrb[0].mxu0
        %v4899 = vadd.f32 %v4738, %v4898
        %v4900 = vpop.f32.mrb[0].mxu0
        %v4901 = vpop.f32.mrb[0].mxu0
        %v4902 = vadd.f32 %v4741, %v4901
        %v4903 = vpop.f32.mrb[0].mxu0
        %4904 = vmatprep.mubr.bf16.mxu0 0
        %4905 = vmatmul.mubr.bf16.gmra.mrb[0].mxu0 %v4238
        %v4906 = vpop.f32.mrb[0].mxu0
        %v4907 = vadd.f32 %v4746, %v4906
        %v4908 = vpop.f32.mrb[0].mxu0
        %v4909 = vpop.f32.mrb[0].mxu0
        %v4910 = vadd.f32 %v4749, %v4909
        %v4911 = vpop.f32.mrb[0].mxu0
        %4912 = vmatprep.mubr.bf16.mxu0 0
        %4913 = vmatmul.mubr.bf16.gmra.mrb[0].mxu0 %v4262
        %v4914 = vpop.f32.mrb[0].mxu0
        %v4915 = vadd.f32 %v4754, %v4914
        %v4916 = vpop.f32.mrb[0].mxu0
        %v4917 = vpop.f32.mrb[0].mxu0
        %v4918 = vadd.f32 %v4757, %v4917
        %v4919 = vpop.f32.mrb[0].mxu0
        %4920 = vmatprep.mubr.bf16.mxu0 0
        %4921 = vmatmul.mubr.bf16.gmra.mrb[0].mxu0 %v4286
        %v4922 = vpop.f32.mrb[0].mxu0
        %v4923 = vadd.f32 %v4762, %v4922
        %v4924 = vpop.f32.mrb[0].mxu0
        %v4925 = vpop.f32.mrb[0].mxu0
        %v4926 = vadd.f32 %v4765, %v4925
        %v4927 = vpop.f32.mrb[0].mxu0
        %4928 = vmatprep.mubr.bf16.mxu0 0
        %4929 = vmatmul.mubr.bf16.gmra.mrb[0].mxu0 %v4310
        %v4930 = vpop.f32.mrb[0].mxu0
        %v4931 = vadd.f32 %v4770, %v4930
        %v4932 = vpop.f32.mrb[0].mxu0
        %v4933 = vpop.f32.mrb[0].mxu0
        %v4934 = vadd.f32 %v4773, %v4933
        %v4935 = vpop.f32.mrb[0].mxu0
        %4936 = vmatprep.mubr.bf16.mxu0 0
        %4937 = vmatmul.mubr.bf16.gmra.mrb[0].mxu0 %v4334
        %v4938 = vpop.f32.mrb[0].mxu0
        %v4939 = vadd.f32 %v4778, %v4938
        %v4940 = vpop.f32.mrb[0].mxu0
        %v4941 = vpop.f32.mrb[0].mxu0
        %v4942 = vadd.f32 %v4781, %v4941
        %v4943 = vpop.f32.mrb[0].mxu0
        %4944 = vmatprep.mubr.bf16.mxu0 0
        %4945 = vmatmul.mubr.bf16.gmra.mrb[0].mxu0 %v4358
        %v4946 = vpop.f32.mrb[0].mxu0
        %v4947 = vadd.f32 %v4786, %v4946
        %v4948 = vpop.f32.mrb[0].mxu0
        %v4949 = vpop.f32.mrb[0].mxu0
        %v4950 = vadd.f32 %v4789, %v4949
        %v4951 = vpop.f32.mrb[0].mxu0
        %4952 = vmatprep.mubr.bf16.mxu0 0
        %4953 = vmatmul.mubr.bf16.gmra.mrb[0].mxu0 %v4382
        %v4954 = vpop.f32.mrb[0].mxu0
        %v4955 = vadd.f32 %v4794, %v4954
        %v4956 = vpop.f32.mrb[0].mxu0
        %v4957 = vpop.f32.mrb[0].mxu0
        %v4958 = vadd.f32 %v4797, %v4957
        %v4959 = vpop.f32.mrb[0].mxu0
        %4960 = vmatprep.mubr.bf16.mxu0 0
        %4961 = vmatmul.mubr.bf16.gmra.mrb[0].mxu0 %v4406
        %v4962 = vpop.f32.mrb[0].mxu0
        %v4963 = vadd.f32 %v4802, %v4962
        %v4964 = vpop.f32.mrb[0].mxu0
        %v4965 = vpop.f32.mrb[0].mxu0
        %v4966 = vadd.f32 %v4805, %v4965
        %v4967 = vpop.f32.mrb[0].mxu0
        %4968 = vmatprep.mubr.bf16.mxu0 0
        %4969 = vmatmul.mubr.bf16.gmra.mrb[0].mxu0 %v4430
        %v4970 = vpop.f32.mrb[0].mxu0
        %v4971 = vadd.f32 %v4810, %v4970
        %v4972 = vpop.f32.mrb[0].mxu0
        %v4973 = vpop.f32.mrb[0].mxu0
        %v4974 = vadd.f32 %v4813, %v4973
        %v4975 = vpop.f32.mrb[0].mxu0
        %4976 = vmatprep.mubr.bf16.mxu0 0
        %4977 = vmatmul.mubr.bf16.gmra.mrb[0].mxu0 %v4454
        %v4978 = vpop.f32.mrb[0].mxu0
        %v4979 = vadd.f32 %v4818, %v4978
        %v4980 = vpop.f32.mrb[0].mxu0
        %v4981 = vpop.f32.mrb[0].mxu0
        %v4982 = vadd.f32 %v4821, %v4981
        %v4983 = vpop.f32.mrb[0].mxu0
        %4984 = vmatprep.mubr.bf16.mxu0 0
        %4985 = vmatmul.mubr.bf16.gmra.mrb[0].mxu0 %v4478
        %v4986 = vpop.f32.mrb[0].mxu0
        %v4987 = vadd.f32 %v4826, %v4986
        %v4988 = vpop.f32.mrb[0].mxu0
        %v4989 = vpop.f32.mrb[0].mxu0
        %v4990 = vadd.f32 %v4829, %v4989
        %v4991 = vpop.f32.mrb[0].mxu0
        %4992 = vdwg.mxu0
        %v4993 = vld [vmem:[#allocation2 + $0x10] sm:$0x80]
        %v4994 = vld [vmem:[#allocation2 + $0x90] sm:$0xff]
        %4995 = vset.pattern.permute.xlu0 6
        %4996 = vperm.xlu0 %4995, %v775
        %v4997 = vpop.permute.xlu0 %4996
        %4998 = vset.pattern.permute.xlu0 6
        %4999 = vperm.xlu0 %4998, %v776
        %v5000 = vpop.permute.xlu0 %4999
        %5001 = vset.pattern.permute.xlu0 6
        %5002 = vperm.xlu0 %5001, %v777
        %v5003 = vpop.permute.xlu0 %5002
        %5004 = vset.pattern.permute.xlu0 6
        %5005 = vperm.xlu0 %5004, %v778
        %v5006 = vpop.permute.xlu0 %5005
        %5007 = vset.pattern.permute.xlu0 6
        %5008 = vperm.xlu0 %5007, %v779
        %v5009 = vpop.permute.xlu0 %5008
        %5010 = vset.pattern.permute.xlu0 6
        %5011 = vperm.xlu0 %5010, %v780
        %v5012 = vpop.permute.xlu0 %5011
        %5013 = vset.pattern.permute.xlu0 6
        %5014 = vperm.xlu0 %5013, %v781
        %v5015 = vpop.permute.xlu0 %5014
        %5016 = vset.pattern.permute.xlu0 6
        %5017 = vperm.xlu0 %5016, %v782
        %v5018 = vpop.permute.xlu0 %5017
        %5019 = vset.pattern.permute.xlu0 6
        %5020 = vperm.xlu0 %5019, %v783
        %v5021 = vpop.permute.xlu0 %5020
        %5022 = vset.pattern.permute.xlu0 6
        %5023 = vperm.xlu0 %5022, %v784
        %v5024 = vpop.permute.xlu0 %5023
        %5025 = vset.pattern.permute.xlu0 6
        %5026 = vperm.xlu0 %5025, %v785
        %v5027 = vpop.permute.xlu0 %5026
        %5028 = vset.pattern.permute.xlu0 6
        %5029 = vperm.xlu0 %5028, %v786
        %v5030 = vpop.permute.xlu0 %5029
        %5031 = vset.pattern.permute.xlu0 6
        %5032 = vperm.xlu0 %5031, %v787
        %v5033 = vpop.permute.xlu0 %5032
        %5034 = vset.pattern.permute.xlu0 6
        %5035 = vperm.xlu0 %5034, %v788
        %v5036 = vpop.permute.xlu0 %5035
        %5037 = vset.pattern.permute.xlu0 6
        %5038 = vperm.xlu0 %5037, %v789
        %v5039 = vpop.permute.xlu0 %5038
        %5040 = vset.pattern.permute.xlu0 6
        %5041 = vperm.xlu0 %5040, %v790
        %v5042 = vpop.permute.xlu0 %5041
        %5043 = vset.pattern.permute.xlu0 6
        %5044 = vperm.xlu0 %5043, %v791
        %v5045 = vpop.permute.xlu0 %5044
        %5046 = vset.pattern.permute.xlu0 6
        %5047 = vperm.xlu0 %5046, %v792
        %v5048 = vpop.permute.xlu0 %5047
        %5049 = vset.pattern.permute.xlu0 6
        %5050 = vperm.xlu0 %5049, %v793
        %v5051 = vpop.permute.xlu0 %5050
        %5052 = vset.pattern.permute.xlu0 6
        %5053 = vperm.xlu0 %5052, %v794
        %v5054 = vpop.permute.xlu0 %5053
        %5055 = vset.pattern.permute.xlu0 6
        %5056 = vperm.xlu0 %5055, %v795
        %v5057 = vpop.permute.xlu0 %5056
        %5058 = vset.pattern.permute.xlu0 6
        %5059 = vperm.xlu0 %5058, %v796
        %v5060 = vpop.permute.xlu0 %5059
        %5061 = vset.pattern.permute.xlu0 6
        %5062 = vperm.xlu0 %5061, %v797
        %v5063 = vpop.permute.xlu0 %5062
        %5064 = vset.pattern.permute.xlu0 6
        %5065 = vperm.xlu0 %5064, %v798
        %v5066 = vpop.permute.xlu0 %5065
        %5067 = vset.pattern.permute.xlu0 6
        %5068 = vperm.xlu0 %5067, %v799
        %v5069 = vpop.permute.xlu0 %5068
        %5070 = vset.pattern.permute.xlu0 6
        %5071 = vperm.xlu0 %5070, %v800
        %v5072 = vpop.permute.xlu0 %5071
        %5073 = vset.pattern.permute.xlu0 6
        %5074 = vperm.xlu0 %5073, %v801
        %v5075 = vpop.permute.xlu0 %5074
        %5076 = vset.pattern.permute.xlu0 6
        %5077 = vperm.xlu0 %5076, %v802
        %v5078 = vpop.permute.xlu0 %5077
        %5079 = vset.pattern.permute.xlu0 6
        %5080 = vperm.xlu0 %5079, %v803
        %v5081 = vpop.permute.xlu0 %5080
        %5082 = vset.pattern.permute.xlu0 6
        %5083 = vperm.xlu0 %5082, %v804
        %v5084 = vpop.permute.xlu0 %5083
        %5085 = vset.pattern.permute.xlu0 6
        %5086 = vperm.xlu0 %5085, %v805
        %v5087 = vpop.permute.xlu0 %5086
        %5088 = vset.pattern.permute.xlu0 6
        %5089 = vperm.xlu0 %5088, %v806
        %v5090 = vpop.permute.xlu0 %5089
        %vm5091 = vcmp.eq.s32.totalorder %v4997, 1
        %vm5092 = vcmp.eq.s32.totalorder %v5000, 1
        %vm5093 = vcmp.eq.s32.totalorder %v5003, 1
        %vm5094 = vcmp.eq.s32.totalorder %v5006, 1
        %vm5095 = vcmp.eq.s32.totalorder %v5009, 1
        %vm5096 = vcmp.eq.s32.totalorder %v5012, 1
        %vm5097 = vcmp.eq.s32.totalorder %v5015, 1
        %vm5098 = vcmp.eq.s32.totalorder %v5018, 1
        %vm5099 = vcmp.eq.s32.totalorder %v5021, 1
        %vm5100 = vcmp.eq.s32.totalorder %v5024, 1
        %vm5101 = vcmp.eq.s32.totalorder %v5027, 1
        %vm5102 = vcmp.eq.s32.totalorder %v5030, 1
        %vm5103 = vcmp.eq.s32.totalorder %v5033, 1
        %vm5104 = vcmp.eq.s32.totalorder %v5036, 1
        %vm5105 = vcmp.eq.s32.totalorder %v5039, 1
        %vm5106 = vcmp.eq.s32.totalorder %v5042, 1
        %vm5107 = vcmp.eq.s32.totalorder %v5045, 1
        %vm5108 = vcmp.eq.s32.totalorder %v5048, 1
        %vm5109 = vcmp.eq.s32.totalorder %v5051, 1
        %vm5110 = vcmp.eq.s32.totalorder %v5054, 1
        %vm5111 = vcmp.eq.s32.totalorder %v5057, 1
        %vm5112 = vcmp.eq.s32.totalorder %v5060, 1
        %vm5113 = vcmp.eq.s32.totalorder %v5063, 1
        %vm5114 = vcmp.eq.s32.totalorder %v5066, 1
        %vm5115 = vcmp.eq.s32.totalorder %v5069, 1
        %vm5116 = vcmp.eq.s32.totalorder %v5072, 1
        %vm5117 = vcmp.eq.s32.totalorder %v5075, 1
        %vm5118 = vcmp.eq.s32.totalorder %v5078, 1
        %vm5119 = vcmp.eq.s32.totalorder %v5081, 1
        %vm5120 = vcmp.eq.s32.totalorder %v5084, 1
        %vm5121 = vcmp.eq.s32.totalorder %v5087, 1
        %vm5122 = vcmp.eq.s32.totalorder %v5090, 1
        %vm5123 = vmpackc.low %vm5091, %vm5091
        %vm5124 = vmpackc.low %vm5092, %vm5092
        %vm5125 = vmpackc.low %vm5093, %vm5093
        %vm5126 = vmpackc.low %vm5094, %vm5094
        %vm5127 = vmpackc.low %vm5095, %vm5095
        %vm5128 = vmpackc.low %vm5096, %vm5096
        %vm5129 = vmpackc.low %vm5097, %vm5097
        %vm5130 = vmpackc.low %vm5098, %vm5098
        %vm5131 = vmpackc.low %vm5099, %vm5099
        %vm5132 = vmpackc.low %vm5100, %vm5100
        %vm5133 = vmpackc.low %vm5101, %vm5101
        %vm5134 = vmpackc.low %vm5102, %vm5102
        %vm5135 = vmpackc.low %vm5103, %vm5103
        %vm5136 = vmpackc.low %vm5104, %vm5104
        %vm5137 = vmpackc.low %vm5105, %vm5105
        %vm5138 = vmpackc.low %vm5106, %vm5106
        %vm5139 = vmpackc.low %vm5107, %vm5107
        %vm5140 = vmpackc.low %vm5108, %vm5108
        %vm5141 = vmpackc.low %vm5109, %vm5109
        %vm5142 = vmpackc.low %vm5110, %vm5110
        %vm5143 = vmpackc.low %vm5111, %vm5111
        %vm5144 = vmpackc.low %vm5112, %vm5112
        %vm5145 = vmpackc.low %vm5113, %vm5113
        %vm5146 = vmpackc.low %vm5114, %vm5114
        %vm5147 = vmpackc.low %vm5115, %vm5115
        %vm5148 = vmpackc.low %vm5116, %vm5116
        %vm5149 = vmpackc.low %vm5117, %vm5117
        %vm5150 = vmpackc.low %vm5118, %vm5118
        %vm5151 = vmpackc.low %vm5119, %vm5119
        %vm5152 = vmpackc.low %vm5120, %vm5120
        %vm5153 = vmpackc.low %vm5121, %vm5121
        %vm5154 = vmpackc.low %vm5122, %vm5122
        %v5155 = vsel %vm5123, 65537, 0
        %v5156 = vsel %vm5124, 65537, 0
        %v5157 = vsel %vm5125, 65537, 0
        %v5158 = vsel %vm5126, 65537, 0
        %v5159 = vsel %vm5127, 65537, 0
        %v5160 = vsel %vm5128, 65537, 0
        %v5161 = vsel %vm5129, 65537, 0
        %v5162 = vsel %vm5130, 65537, 0
        %v5163 = vsel %vm5131, 65537, 0
        %v5164 = vsel %vm5132, 65537, 0
        %v5165 = vsel %vm5133, 65537, 0
        %v5166 = vsel %vm5134, 65537, 0
        %v5167 = vsel %vm5135, 65537, 0
        %v5168 = vsel %vm5136, 65537, 0
        %v5169 = vsel %vm5137, 65537, 0
        %v5170 = vsel %vm5138, 65537, 0
        %v5171 = vsel %vm5139, 65537, 0
        %v5172 = vsel %vm5140, 65537, 0
        %v5173 = vsel %vm5141, 65537, 0
        %v5174 = vsel %vm5142, 65537, 0
        %v5175 = vsel %vm5143, 65537, 0
        %v5176 = vsel %vm5144, 65537, 0
        %v5177 = vsel %vm5145, 65537, 0
        %v5178 = vsel %vm5146, 65537, 0
        %v5179 = vsel %vm5147, 65537, 0
        %v5180 = vsel %vm5148, 65537, 0
        %v5181 = vsel %vm5149, 65537, 0
        %v5182 = vsel %vm5150, 65537, 0
        %v5183 = vsel %vm5151, 65537, 0
        %v5184 = vsel %vm5152, 65537, 0
        %v5185 = vsel %vm5153, 65537, 0
        %v5186 = vsel %vm5154, 65537, 0
        %v5187 = vunpack.c.l.b16 %v5155
        %v5188 = vunpack.c.l.b16 %v5156
        %v5189 = vunpack.c.l.b16 %v5157
        %v5190 = vunpack.c.l.b16 %v5158
        %v5191 = vunpack.c.l.b16 %v5159
        %v5192 = vunpack.c.l.b16 %v5160
        %v5193 = vunpack.c.l.b16 %v5161
        %v5194 = vunpack.c.l.b16 %v5162
        %v5195 = vunpack.c.l.b16 %v5163
        %v5196 = vunpack.c.l.b16 %v5164
        %v5197 = vunpack.c.l.b16 %v5165
        %v5198 = vunpack.c.l.b16 %v5166
        %v5199 = vunpack.c.l.b16 %v5167
        %v5200 = vunpack.c.l.b16 %v5168
        %v5201 = vunpack.c.l.b16 %v5169
        %v5202 = vunpack.c.l.b16 %v5170
        %v5203 = vunpack.c.l.b16 %v5171
        %v5204 = vunpack.c.l.b16 %v5172
        %v5205 = vunpack.c.l.b16 %v5173
        %v5206 = vunpack.c.l.b16 %v5174
        %v5207 = vunpack.c.l.b16 %v5175
        %v5208 = vunpack.c.l.b16 %v5176
        %v5209 = vunpack.c.l.b16 %v5177
        %v5210 = vunpack.c.l.b16 %v5178
        %v5211 = vunpack.c.l.b16 %v5179
        %v5212 = vunpack.c.l.b16 %v5180
        %v5213 = vunpack.c.l.b16 %v5181
        %v5214 = vunpack.c.l.b16 %v5182
        %v5215 = vunpack.c.l.b16 %v5183
        %v5216 = vunpack.c.l.b16 %v5184
        %v5217 = vunpack.c.l.b16 %v5185
        %v5218 = vunpack.c.l.b16 %v5186
        %v5219 = vpack.c.b16 %v5188, %v5187
        %v5220 = vpack.c.b16 %v5190, %v5189
        %v5221 = vpack.c.b16 %v5192, %v5191
        %v5222 = vpack.c.b16 %v5194, %v5193
        %v5223 = vpack.c.b16 %v5196, %v5195
        %v5224 = vpack.c.b16 %v5198, %v5197
        %v5225 = vpack.c.b16 %v5200, %v5199
        %v5226 = vpack.c.b16 %v5202, %v5201
        %v5227 = vpack.c.b16 %v5204, %v5203
        %v5228 = vpack.c.b16 %v5206, %v5205
        %v5229 = vpack.c.b16 %v5208, %v5207
        %v5230 = vpack.c.b16 %v5210, %v5209
        %v5231 = vpack.c.b16 %v5212, %v5211
        %v5232 = vpack.c.b16 %v5214, %v5213
        %v5233 = vpack.c.b16 %v5216, %v5215
        %v5234 = vpack.c.b16 %v5218, %v5217
        %v5236 = vshll.u32 %v5219, 16
        %v5238 = vrot.slane %v5236, 1
        %v5239 = vshrl.u32 %v5219, 16
        %v5241 = vor.u32 %v5239, %v5238
        %v5243 = vshll.u32 %v5220, 16
        %v5245 = vrot.slane %v5243, 1
        %v5246 = vsel %vm1047, %v5241, %v5245
        %v5247 = vshrl.u32 %v5220, 16
        %v5249 = vor.u32 %v5247, %v5245
        %v5251 = vshll.u32 %v5221, 16
        %v5253 = vrot.slane %v5251, 1
        %v5254 = vsel %vm1047, %v5249, %v5253
        %v5255 = vshrl.u32 %v5221, 16
        %v5257 = vor.u32 %v5255, %v5253
        %v5259 = vshll.u32 %v5222, 16
        %v5261 = vrot.slane %v5259, 1
        %v5262 = vsel %vm1047, %v5257, %v5261
        %v5263 = vshrl.u32 %v5222, 16
        %v5265 = vor.u32 %v5263, %v5261
        %v5267 = vshll.u32 %v5223, 16
        %v5269 = vrot.slane %v5267, 1
        %v5270 = vsel %vm1047, %v5265, %v5269
        %v5271 = vshrl.u32 %v5223, 16
        %v5273 = vor.u32 %v5271, %v5269
        %v5275 = vshll.u32 %v5224, 16
        %v5277 = vrot.slane %v5275, 1
        %v5278 = vsel %vm1047, %v5273, %v5277
        %v5279 = vshrl.u32 %v5224, 16
        %v5281 = vor.u32 %v5279, %v5277
        %v5283 = vshll.u32 %v5225, 16
        %v5285 = vrot.slane %v5283, 1
        %v5286 = vsel %vm1047, %v5281, %v5285
        %v5287 = vshrl.u32 %v5225, 16
        %v5289 = vor.u32 %v5287, %v5285
        %v5291 = vshll.u32 %v5226, 16
        %v5293 = vrot.slane %v5291, 1
        %v5294 = vsel %vm1047, %v5289, %v5293
        %v5295 = vshrl.u32 %v5226, 16
        %v5297 = vor.u32 %v5295, %v5293
        %v5299 = vshll.u32 %v5227, 16
        %v5301 = vrot.slane %v5299, 1
        %v5302 = vsel %vm1047, %v5297, %v5301
        %v5303 = vshrl.u32 %v5227, 16
        %v5305 = vor.u32 %v5303, %v5301
        %v5307 = vshll.u32 %v5228, 16
        %v5309 = vrot.slane %v5307, 1
        %v5310 = vsel %vm1047, %v5305, %v5309
        %v5311 = vshrl.u32 %v5228, 16
        %v5313 = vor.u32 %v5311, %v5309
        %v5315 = vshll.u32 %v5229, 16
        %v5317 = vrot.slane %v5315, 1
        %v5318 = vsel %vm1047, %v5313, %v5317
        %v5319 = vshrl.u32 %v5229, 16
        %v5321 = vor.u32 %v5319, %v5317
        %v5323 = vshll.u32 %v5230, 16
        %v5325 = vrot.slane %v5323, 1
        %v5326 = vsel %vm1047, %v5321, %v5325
        %v5327 = vshrl.u32 %v5230, 16
        %v5329 = vor.u32 %v5327, %v5325
        %v5331 = vshll.u32 %v5231, 16
        %v5333 = vrot.slane %v5331, 1
        %v5334 = vsel %vm1047, %v5329, %v5333
        %v5335 = vshrl.u32 %v5231, 16
        %v5337 = vor.u32 %v5335, %v5333
        %v5339 = vshll.u32 %v5232, 16
        %v5341 = vrot.slane %v5339, 1
        %v5342 = vsel %vm1047, %v5337, %v5341
        %v5343 = vshrl.u32 %v5232, 16
        %v5345 = vor.u32 %v5343, %v5341
        %v5347 = vshll.u32 %v5233, 16
        %v5349 = vrot.slane %v5347, 1
        %v5350 = vsel %vm1047, %v5345, %v5349
        %v5351 = vshrl.u32 %v5233, 16
        %v5353 = vor.u32 %v5351, %v5349
        %v5355 = vshll.u32 %v5234, 16
        %v5357 = vrot.slane %v5355, 1
        %v5358 = vsel %vm1047, %v5353, %v5357
        %v5359 = vshrl.u32 %v5234, 16
        %v5361 = vor.u32 %v5359, %v5357
        %vm5362 = vcmp.ne.s16.totalorder %v5238, 0
        %vm5363 = vcmp.ne.s16.totalorder %v5246, 0
        %vm5364 = vcmp.ne.s16.totalorder %v5254, 0
        %vm5365 = vcmp.ne.s16.totalorder %v5262, 0
        %vm5366 = vcmp.ne.s16.totalorder %v5270, 0
        %vm5367 = vcmp.ne.s16.totalorder %v5278, 0
        %vm5368 = vcmp.ne.s16.totalorder %v5286, 0
        %vm5369 = vcmp.ne.s16.totalorder %v5294, 0
        %vm5370 = vcmp.ne.s16.totalorder %v5302, 0
        %vm5371 = vcmp.ne.s16.totalorder %v5310, 0
        %vm5372 = vcmp.ne.s16.totalorder %v5318, 0
        %vm5373 = vcmp.ne.s16.totalorder %v5326, 0
        %vm5374 = vcmp.ne.s16.totalorder %v5334, 0
        %vm5375 = vcmp.ne.s16.totalorder %v5342, 0
        %vm5376 = vcmp.ne.s16.totalorder %v5350, 0
        %vm5377 = vcmp.ne.s16.totalorder %v5358, 0
        %vm5378 = vcmp.ne.s16.totalorder %v5361, 0
        %v5379 = vsel %vm5362, %v4993, 0
        %v5380 = vsel %vm5363, %v2530, 0
        %v5381 = vsel %vm5364, %v2531, 0
        %v5382 = vsel %vm5365, %v2532, 0
        %v5383 = vsel %vm5366, %v2533, 0
        %v5384 = vsel %vm5367, %v2534, 0
        %v5385 = vsel %vm5368, %v2535, 0
        %v5386 = vsel %vm5369, %v2536, 0
        %v5387 = vsel %vm5370, %v2537, 0
        %v5388 = vsel %vm5371, %v2538, 0
        %v5389 = vsel %vm5372, %v2539, 0
        %v5390 = vsel %vm5373, %v2540, 0
        %v5391 = vsel %vm5374, %v2541, 0
        %v5392 = vsel %vm5375, %v2542, 0
        %v5393 = vsel %vm5376, %v2543, 0
        %v5394 = vsel %vm5377, %v2544, 0
        %v5395 = vsel %vm5378, %v4994, 0
        %5396 = vset.pattern.permute.xlu0 7
        %5397 = vperm.xlu0 %5396, %v775
        %v5398 = vpop.permute.xlu0 %5397
        %5399 = vset.pattern.permute.xlu0 7
        %5400 = vperm.xlu0 %5399, %v776
        %v5401 = vpop.permute.xlu0 %5400
        %5402 = vset.pattern.permute.xlu0 7
        %5403 = vperm.xlu0 %5402, %v777
        %v5404 = vpop.permute.xlu0 %5403
        %5405 = vset.pattern.permute.xlu0 7
        %5406 = vperm.xlu0 %5405, %v778
        %v5407 = vpop.permute.xlu0 %5406
        %5408 = vset.pattern.permute.xlu0 7
        %5409 = vperm.xlu0 %5408, %v779
        %v5410 = vpop.permute.xlu0 %5409
        %5411 = vset.pattern.permute.xlu0 7
        %5412 = vperm.xlu0 %5411, %v780
        %v5413 = vpop.permute.xlu0 %5412
        %5414 = vset.pattern.permute.xlu0 7
        %5415 = vperm.xlu0 %5414, %v781
        %v5416 = vpop.permute.xlu0 %5415
        %5417 = vset.pattern.permute.xlu0 7
        %5418 = vperm.xlu0 %5417, %v782
        %v5419 = vpop.permute.xlu0 %5418
        %5420 = vset.pattern.permute.xlu0 7
        %5421 = vperm.xlu0 %5420, %v783
        %v5422 = vpop.permute.xlu0 %5421
        %5423 = vset.pattern.permute.xlu0 7
        %5424 = vperm.xlu0 %5423, %v784
        %v5425 = vpop.permute.xlu0 %5424
        %5426 = vset.pattern.permute.xlu0 7
        %5427 = vperm.xlu0 %5426, %v785
        %v5428 = vpop.permute.xlu0 %5427
        %5429 = vset.pattern.permute.xlu0 7
        %5430 = vperm.xlu0 %5429, %v786
        %v5431 = vpop.permute.xlu0 %5430
        %5432 = vset.pattern.permute.xlu0 7
        %5433 = vperm.xlu0 %5432, %v787
        %v5434 = vpop.permute.xlu0 %5433
        %5435 = vset.pattern.permute.xlu0 7
        %5436 = vperm.xlu0 %5435, %v788
        %v5437 = vpop.permute.xlu0 %5436
        %5438 = vset.pattern.permute.xlu0 7
        %5439 = vperm.xlu0 %5438, %v789
        %v5440 = vpop.permute.xlu0 %5439
        %5441 = vset.pattern.permute.xlu0 7
        %5442 = vperm.xlu0 %5441, %v790
        %v5443 = vpop.permute.xlu0 %5442
        %5444 = vset.pattern.permute.xlu0 7
        %5445 = vperm.xlu0 %5444, %v791
        %v5446 = vpop.permute.xlu0 %5445
        %5447 = vset.pattern.permute.xlu0 7
        %5448 = vperm.xlu0 %5447, %v792
        %v5449 = vpop.permute.xlu0 %5448
        %5450 = vset.pattern.permute.xlu0 7
        %5451 = vperm.xlu0 %5450, %v793
        %v5452 = vpop.permute.xlu0 %5451
        %5453 = vset.pattern.permute.xlu0 7
        %5454 = vperm.xlu0 %5453, %v794
        %v5455 = vpop.permute.xlu0 %5454
        %5456 = vset.pattern.permute.xlu0 7
        %5457 = vperm.xlu0 %5456, %v795
        %v5458 = vpop.permute.xlu0 %5457
        %5459 = vset.pattern.permute.xlu0 7
        %5460 = vperm.xlu0 %5459, %v796
        %v5461 = vpop.permute.xlu0 %5460
        %5462 = vset.pattern.permute.xlu0 7
        %5463 = vperm.xlu0 %5462, %v797
        %v5464 = vpop.permute.xlu0 %5463
        %5465 = vset.pattern.permute.xlu0 7
        %5466 = vperm.xlu0 %5465, %v798
        %v5467 = vpop.permute.xlu0 %5466
        %5468 = vset.pattern.permute.xlu0 7
        %5469 = vperm.xlu0 %5468, %v799
        %v5470 = vpop.permute.xlu0 %5469
        %5471 = vset.pattern.permute.xlu0 7
        %5472 = vperm.xlu0 %5471, %v800
        %v5473 = vpop.permute.xlu0 %5472
        %5474 = vset.pattern.permute.xlu0 7
        %5475 = vperm.xlu0 %5474, %v801
        %v5476 = vpop.permute.xlu0 %5475
        %5477 = vset.pattern.permute.xlu0 7
        %5478 = vperm.xlu0 %5477, %v802
        %v5479 = vpop.permute.xlu0 %5478
        %5480 = vset.pattern.permute.xlu0 7
        %5481 = vperm.xlu0 %5480, %v803
        %v5482 = vpop.permute.xlu0 %5481
        %5483 = vset.pattern.permute.xlu0 7
        %5484 = vperm.xlu0 %5483, %v804
        %v5485 = vpop.permute.xlu0 %5484
        %5486 = vset.pattern.permute.xlu0 7
        %5487 = vperm.xlu0 %5486, %v805
        %v5488 = vpop.permute.xlu0 %5487
        %5489 = vset.pattern.permute.xlu0 7
        %5490 = vperm.xlu0 %5489, %v806
        %v5491 = vpop.permute.xlu0 %5490
        %vm5492 = vcmp.eq.s32.totalorder %v5398, 1
        %vm5493 = vcmp.eq.s32.totalorder %v5401, 1
        %vm5494 = vcmp.eq.s32.totalorder %v5404, 1
        %vm5495 = vcmp.eq.s32.totalorder %v5407, 1
        %vm5496 = vcmp.eq.s32.totalorder %v5410, 1
        %vm5497 = vcmp.eq.s32.totalorder %v5413, 1
        %vm5498 = vcmp.eq.s32.totalorder %v5416, 1
        %vm5499 = vcmp.eq.s32.totalorder %v5419, 1
        %vm5500 = vcmp.eq.s32.totalorder %v5422, 1
        %vm5501 = vcmp.eq.s32.totalorder %v5425, 1
        %vm5502 = vcmp.eq.s32.totalorder %v5428, 1
        %vm5503 = vcmp.eq.s32.totalorder %v5431, 1
        %vm5504 = vcmp.eq.s32.totalorder %v5434, 1
        %vm5505 = vcmp.eq.s32.totalorder %v5437, 1
        %vm5506 = vcmp.eq.s32.totalorder %v5440, 1
        %vm5507 = vcmp.eq.s32.totalorder %v5443, 1
        %vm5508 = vcmp.eq.s32.totalorder %v5446, 1
        %vm5509 = vcmp.eq.s32.totalorder %v5449, 1
        %vm5510 = vcmp.eq.s32.totalorder %v5452, 1
        %vm5511 = vcmp.eq.s32.totalorder %v5455, 1
        %vm5512 = vcmp.eq.s32.totalorder %v5458, 1
        %vm5513 = vcmp.eq.s32.totalorder %v5461, 1
        %vm5514 = vcmp.eq.s32.totalorder %v5464, 1
        %vm5515 = vcmp.eq.s32.totalorder %v5467, 1
        %vm5516 = vcmp.eq.s32.totalorder %v5470, 1
        %vm5517 = vcmp.eq.s32.totalorder %v5473, 1
        %vm5518 = vcmp.eq.s32.totalorder %v5476, 1
        %vm5519 = vcmp.eq.s32.totalorder %v5479, 1
        %vm5520 = vcmp.eq.s32.totalorder %v5482, 1
        %vm5521 = vcmp.eq.s32.totalorder %v5485, 1
        %vm5522 = vcmp.eq.s32.totalorder %v5488, 1
        %vm5523 = vcmp.eq.s32.totalorder %v5491, 1
        %vm5524 = vmpackc.low %vm5492, %vm5492
        %vm5525 = vmpackc.low %vm5493, %vm5493
        %vm5526 = vmpackc.low %vm5494, %vm5494
        %vm5527 = vmpackc.low %vm5495, %vm5495
        %vm5528 = vmpackc.low %vm5496, %vm5496
        %vm5529 = vmpackc.low %vm5497, %vm5497
        %vm5530 = vmpackc.low %vm5498, %vm5498
        %vm5531 = vmpackc.low %vm5499, %vm5499
        %vm5532 = vmpackc.low %vm5500, %vm5500
        %vm5533 = vmpackc.low %vm5501, %vm5501
        %vm5534 = vmpackc.low %vm5502, %vm5502
        %vm5535 = vmpackc.low %vm5503, %vm5503
        %vm5536 = vmpackc.low %vm5504, %vm5504
        %vm5537 = vmpackc.low %vm5505, %vm5505
        %vm5538 = vmpackc.low %vm5506, %vm5506
        %vm5539 = vmpackc.low %vm5507, %vm5507
        %vm5540 = vmpackc.low %vm5508, %vm5508
        %vm5541 = vmpackc.low %vm5509, %vm5509
        %vm5542 = vmpackc.low %vm5510, %vm5510
        %vm5543 = vmpackc.low %vm5511, %vm5511
        %vm5544 = vmpackc.low %vm5512, %vm5512
        %vm5545 = vmpackc.low %vm5513, %vm5513
        %vm5546 = vmpackc.low %vm5514, %vm5514
        %vm5547 = vmpackc.low %vm5515, %vm5515
        %vm5548 = vmpackc.low %vm5516, %vm5516
        %vm5549 = vmpackc.low %vm5517, %vm5517
        %vm5550 = vmpackc.low %vm5518, %vm5518
        %vm5551 = vmpackc.low %vm5519, %vm5519
        %vm5552 = vmpackc.low %vm5520, %vm5520
        %vm5553 = vmpackc.low %vm5521, %vm5521
        %vm5554 = vmpackc.low %vm5522, %vm5522
        %vm5555 = vmpackc.low %vm5523, %vm5523
        %v5556 = vsel %vm5524, 65537, 0
        %v5557 = vsel %vm5525, 65537, 0
        %v5558 = vsel %vm5526, 65537, 0
        %v5559 = vsel %vm5527, 65537, 0
        %v5560 = vsel %vm5528, 65537, 0
        %v5561 = vsel %vm5529, 65537, 0
        %v5562 = vsel %vm5530, 65537, 0
        %v5563 = vsel %vm5531, 65537, 0
        %v5564 = vsel %vm5532, 65537, 0
        %v5565 = vsel %vm5533, 65537, 0
        %v5566 = vsel %vm5534, 65537, 0
        %v5567 = vsel %vm5535, 65537, 0
        %v5568 = vsel %vm5536, 65537, 0
        %v5569 = vsel %vm5537, 65537, 0
        %v5570 = vsel %vm5538, 65537, 0
        %v5571 = vsel %vm5539, 65537, 0
        %v5572 = vsel %vm5540, 65537, 0
        %v5573 = vsel %vm5541, 65537, 0
        %v5574 = vsel %vm5542, 65537, 0
        %v5575 = vsel %vm5543, 65537, 0
        %v5576 = vsel %vm5544, 65537, 0
        %v5577 = vsel %vm5545, 65537, 0
        %v5578 = vsel %vm5546, 65537, 0
        %v5579 = vsel %vm5547, 65537, 0
        %v5580 = vsel %vm5548, 65537, 0
        %v5581 = vsel %vm5549, 65537, 0
        %v5582 = vsel %vm5550, 65537, 0
        %v5583 = vsel %vm5551, 65537, 0
        %v5584 = vsel %vm5552, 65537, 0
        %v5585 = vsel %vm5553, 65537, 0
        %v5586 = vsel %vm5554, 65537, 0
        %v5587 = vsel %vm5555, 65537, 0
        %v5588 = vunpack.c.l.b16 %v5556
        %v5589 = vunpack.c.l.b16 %v5557
        %v5590 = vunpack.c.l.b16 %v5558
        %v5591 = vunpack.c.l.b16 %v5559
        %v5592 = vunpack.c.l.b16 %v5560
        %v5593 = vunpack.c.l.b16 %v5561
        %v5594 = vunpack.c.l.b16 %v5562
        %v5595 = vunpack.c.l.b16 %v5563
        %v5596 = vunpack.c.l.b16 %v5564
        %v5597 = vunpack.c.l.b16 %v5565
        %v5598 = vunpack.c.l.b16 %v5566
        %v5599 = vunpack.c.l.b16 %v5567
        %v5600 = vunpack.c.l.b16 %v5568
        %v5601 = vunpack.c.l.b16 %v5569
        %v5602 = vunpack.c.l.b16 %v5570
        %v5603 = vunpack.c.l.b16 %v5571
        %v5604 = vunpack.c.l.b16 %v5572
        %v5605 = vunpack.c.l.b16 %v5573
        %v5606 = vunpack.c.l.b16 %v5574
        %v5607 = vunpack.c.l.b16 %v5575
        %v5608 = vunpack.c.l.b16 %v5576
        %v5609 = vunpack.c.l.b16 %v5577
        %v5610 = vunpack.c.l.b16 %v5578
        %v5611 = vunpack.c.l.b16 %v5579
        %v5612 = vunpack.c.l.b16 %v5580
        %v5613 = vunpack.c.l.b16 %v5581
        %v5614 = vunpack.c.l.b16 %v5582
        %v5615 = vunpack.c.l.b16 %v5583
        %v5616 = vunpack.c.l.b16 %v5584
        %v5617 = vunpack.c.l.b16 %v5585
        %v5618 = vunpack.c.l.b16 %v5586
        %v5619 = vunpack.c.l.b16 %v5587
        %v5620 = vpack.c.b16 %v5589, %v5588
        %v5621 = vpack.c.b16 %v5591, %v5590
        %v5622 = vpack.c.b16 %v5593, %v5592
        %v5623 = vpack.c.b16 %v5595, %v5594
        %v5624 = vpack.c.b16 %v5597, %v5596
        %v5625 = vpack.c.b16 %v5599, %v5598
        %v5626 = vpack.c.b16 %v5601, %v5600
        %v5627 = vpack.c.b16 %v5603, %v5602
        %v5628 = vpack.c.b16 %v5605, %v5604
        %v5629 = vpack.c.b16 %v5607, %v5606
        %v5630 = vpack.c.b16 %v5609, %v5608
        %v5631 = vpack.c.b16 %v5611, %v5610
        %v5632 = vpack.c.b16 %v5613, %v5612
        %v5633 = vpack.c.b16 %v5615, %v5614
        %v5634 = vpack.c.b16 %v5617, %v5616
        %v5635 = vpack.c.b16 %v5619, %v5618
        %vm5636 = vcmp.ne.s16.totalorder %v5620, 0
        %vm5637 = vcmp.ne.s16.totalorder %v5621, 0
        %vm5638 = vcmp.ne.s16.totalorder %v5622, 0
        %vm5639 = vcmp.ne.s16.totalorder %v5623, 0
        %vm5640 = vcmp.ne.s16.totalorder %v5624, 0
        %vm5641 = vcmp.ne.s16.totalorder %v5625, 0
        %vm5642 = vcmp.ne.s16.totalorder %v5626, 0
        %vm5643 = vcmp.ne.s16.totalorder %v5627, 0
        %vm5644 = vcmp.ne.s16.totalorder %v5628, 0
        %vm5645 = vcmp.ne.s16.totalorder %v5629, 0
        %vm5646 = vcmp.ne.s16.totalorder %v5630, 0
        %vm5647 = vcmp.ne.s16.totalorder %v5631, 0
        %vm5648 = vcmp.ne.s16.totalorder %v5632, 0
        %vm5649 = vcmp.ne.s16.totalorder %v5633, 0
        %vm5650 = vcmp.ne.s16.totalorder %v5634, 0
        %vm5651 = vcmp.ne.s16.totalorder %v5635, 0
        %v5652 = vsel %vm5636, %v2530, 0
        %v5653 = vsel %vm5637, %v2531, 0
        %v5654 = vsel %vm5638, %v2532, 0
        %v5655 = vsel %vm5639, %v2533, 0
        %v5656 = vsel %vm5640, %v2534, 0
        %v5657 = vsel %vm5641, %v2535, 0
        %v5658 = vsel %vm5642, %v2536, 0
        %v5659 = vsel %vm5643, %v2537, 0
        %v5660 = vsel %vm5644, %v2538, 0
        %v5661 = vsel %vm5645, %v2539, 0
        %v5662 = vsel %vm5646, %v2540, 0
        %v5663 = vsel %vm5647, %v2541, 0
        %v5664 = vsel %vm5648, %v2542, 0
        %v5665 = vsel %vm5649, %v2543, 0
        %v5666 = vsel %vm5650, %v2544, 0
        %v5667 = vsel %vm5651, %v4994, 0
        %v5668 = vld [vmem:[#allocation2 + $0x18] sm:$0xff]
        %v5669 = vld [vmem:[#allocation2 + $0x20] sm:$0xff]
        %v5670 = vld [vmem:[#allocation2 + $0x28] sm:$0xff]
        %v5671 = vld [vmem:[#allocation2 + $0x30] sm:$0xff]
        %v5672 = vld [vmem:[#allocation2 + $0x38] sm:$0xff]
        %v5673 = vld [vmem:[#allocation2 + $0x40] sm:$0xff]
        %v5674 = vld [vmem:[#allocation2 + $0x48] sm:$0xff]
        %v5675 = vld [vmem:[#allocation2 + $0x50] sm:$0xff]
        %v5676 = vld [vmem:[#allocation2 + $0x58] sm:$0xff]
        %v5677 = vld [vmem:[#allocation2 + $0x60] sm:$0xff]
        %v5678 = vld [vmem:[#allocation2 + $0x68] sm:$0xff]
        %v5679 = vld [vmem:[#allocation2 + $0x70] sm:$0xff]
        %v5680 = vld [vmem:[#allocation2 + $0x78] sm:$0xff]
        %v5681 = vld [vmem:[#allocation2 + $0x80] sm:$0xff]
        %v5682 = vld [vmem:[#allocation2 + $0x88] sm:$0xff]
        %v5683 = vld [vmem:[#allocation2 + $0x90] sm:$0xff]
        %v5684 = vld [vmem:[#allocation2 + $0x98] sm:$0x1]
        %5685 = vset.pattern.permute.xlu0 8
        %5686 = vperm.xlu0 %5685, %v775
        %v5687 = vpop.permute.xlu0 %5686
        %5688 = vset.pattern.permute.xlu0 8
        %5689 = vperm.xlu0 %5688, %v776
        %v5690 = vpop.permute.xlu0 %5689
        %5691 = vset.pattern.permute.xlu0 8
        %5692 = vperm.xlu0 %5691, %v777
        %v5693 = vpop.permute.xlu0 %5692
        %5694 = vset.pattern.permute.xlu0 8
        %5695 = vperm.xlu0 %5694, %v778
        %v5696 = vpop.permute.xlu0 %5695
        %5697 = vset.pattern.permute.xlu0 8
        %5698 = vperm.xlu0 %5697, %v779
        %v5699 = vpop.permute.xlu0 %5698
        %5700 = vset.pattern.permute.xlu0 8
        %5701 = vperm.xlu0 %5700, %v780
        %v5702 = vpop.permute.xlu0 %5701
        %5703 = vset.pattern.permute.xlu0 8
        %5704 = vperm.xlu0 %5703, %v781
        %v5705 = vpop.permute.xlu0 %5704
        %5706 = vset.pattern.permute.xlu0 8
        %5707 = vperm.xlu0 %5706, %v782
        %v5708 = vpop.permute.xlu0 %5707
        %5709 = vset.pattern.permute.xlu0 8
        %5710 = vperm.xlu0 %5709, %v783
        %v5711 = vpop.permute.xlu0 %5710
        %5712 = vset.pattern.permute.xlu0 8
        %5713 = vperm.xlu0 %5712, %v784
        %v5714 = vpop.permute.xlu0 %5713
        %5715 = vset.pattern.permute.xlu0 8
        %5716 = vperm.xlu0 %5715, %v785
        %v5717 = vpop.permute.xlu0 %5716
        %5718 = vset.pattern.permute.xlu0 8
        %5719 = vperm.xlu0 %5718, %v786
        %v5720 = vpop.permute.xlu0 %5719
        %5721 = vset.pattern.permute.xlu0 8
        %5722 = vperm.xlu0 %5721, %v787
        %v5723 = vpop.permute.xlu0 %5722
        %5724 = vset.pattern.permute.xlu0 8
        %5725 = vperm.xlu0 %5724, %v788
        %v5726 = vpop.permute.xlu0 %5725
        %5727 = vset.pattern.permute.xlu0 8
        %5728 = vperm.xlu0 %5727, %v789
        %v5729 = vpop.permute.xlu0 %5728
        %5730 = vset.pattern.permute.xlu0 8
        %5731 = vperm.xlu0 %5730, %v790
        %v5732 = vpop.permute.xlu0 %5731
        %5733 = vset.pattern.permute.xlu0 8
        %5734 = vperm.xlu0 %5733, %v791
        %v5735 = vpop.permute.xlu0 %5734
        %5736 = vset.pattern.permute.xlu0 8
        %5737 = vperm.xlu0 %5736, %v792
        %v5738 = vpop.permute.xlu0 %5737
        %5739 = vset.pattern.permute.xlu0 8
        %5740 = vperm.xlu0 %5739, %v793
        %v5741 = vpop.permute.xlu0 %5740
        %5742 = vset.pattern.permute.xlu0 8
        %5743 = vperm.xlu0 %5742, %v794
        %v5744 = vpop.permute.xlu0 %5743
        %5745 = vset.pattern.permute.xlu0 8
        %5746 = vperm.xlu0 %5745, %v795
        %v5747 = vpop.permute.xlu0 %5746
        %5748 = vset.pattern.permute.xlu0 8
        %5749 = vperm.xlu0 %5748, %v796
        %v5750 = vpop.permute.xlu0 %5749
        %5751 = vset.pattern.permute.xlu0 8
        %5752 = vperm.xlu0 %5751, %v797
        %v5753 = vpop.permute.xlu0 %5752
        %5754 = vset.pattern.permute.xlu0 8
        %5755 = vperm.xlu0 %5754, %v798
        %v5756 = vpop.permute.xlu0 %5755
        %5757 = vset.pattern.permute.xlu0 8
        %5758 = vperm.xlu0 %5757, %v799
        %v5759 = vpop.permute.xlu0 %5758
        %5760 = vset.pattern.permute.xlu0 8
        %5761 = vperm.xlu0 %5760, %v800
        %v5762 = vpop.permute.xlu0 %5761
        %5763 = vset.pattern.permute.xlu0 8
        %5764 = vperm.xlu0 %5763, %v801
        %v5765 = vpop.permute.xlu0 %5764
        %5766 = vset.pattern.permute.xlu0 8
        %5767 = vperm.xlu0 %5766, %v802
        %v5768 = vpop.permute.xlu0 %5767
        %5769 = vset.pattern.permute.xlu0 8
        %5770 = vperm.xlu0 %5769, %v803
        %v5771 = vpop.permute.xlu0 %5770
        %5772 = vset.pattern.permute.xlu0 8
        %5773 = vperm.xlu0 %5772, %v804
        %v5774 = vpop.permute.xlu0 %5773
        %5775 = vset.pattern.permute.xlu0 8
        %5776 = vperm.xlu0 %5775, %v805
        %v5777 = vpop.permute.xlu0 %5776
        %5778 = vset.pattern.permute.xlu0 8
        %5779 = vperm.xlu0 %5778, %v806
        %v5780 = vpop.permute.xlu0 %5779
        %vm5781 = vcmp.eq.s32.totalorder %v5687, 1
        %vm5782 = vcmp.eq.s32.totalorder %v5690, 1
        %vm5783 = vcmp.eq.s32.totalorder %v5693, 1
        %vm5784 = vcmp.eq.s32.totalorder %v5696, 1
        %vm5785 = vcmp.eq.s32.totalorder %v5699, 1
        %vm5786 = vcmp.eq.s32.totalorder %v5702, 1
        %vm5787 = vcmp.eq.s32.totalorder %v5705, 1
        %vm5788 = vcmp.eq.s32.totalorder %v5708, 1
        %vm5789 = vcmp.eq.s32.totalorder %v5711, 1
        %vm5790 = vcmp.eq.s32.totalorder %v5714, 1
        %vm5791 = vcmp.eq.s32.totalorder %v5717, 1
        %vm5792 = vcmp.eq.s32.totalorder %v5720, 1
        %vm5793 = vcmp.eq.s32.totalorder %v5723, 1
        %vm5794 = vcmp.eq.s32.totalorder %v5726, 1
        %vm5795 = vcmp.eq.s32.totalorder %v5729, 1
        %vm5796 = vcmp.eq.s32.totalorder %v5732, 1
        %vm5797 = vcmp.eq.s32.totalorder %v5735, 1
        %vm5798 = vcmp.eq.s32.totalorder %v5738, 1
        %vm5799 = vcmp.eq.s32.totalorder %v5741, 1
        %vm5800 = vcmp.eq.s32.totalorder %v5744, 1
        %vm5801 = vcmp.eq.s32.totalorder %v5747, 1
        %vm5802 = vcmp.eq.s32.totalorder %v5750, 1
        %vm5803 = vcmp.eq.s32.totalorder %v5753, 1
        %vm5804 = vcmp.eq.s32.totalorder %v5756, 1
        %vm5805 = vcmp.eq.s32.totalorder %v5759, 1
        %vm5806 = vcmp.eq.s32.totalorder %v5762, 1
        %vm5807 = vcmp.eq.s32.totalorder %v5765, 1
        %vm5808 = vcmp.eq.s32.totalorder %v5768, 1
        %vm5809 = vcmp.eq.s32.totalorder %v5771, 1
        %vm5810 = vcmp.eq.s32.totalorder %v5774, 1
        %vm5811 = vcmp.eq.s32.totalorder %v5777, 1
        %vm5812 = vcmp.eq.s32.totalorder %v5780, 1
        %vm5813 = vmpackc.low %vm5781, %vm5781
        %vm5814 = vmpackc.low %vm5782, %vm5782
        %vm5815 = vmpackc.low %vm5783, %vm5783
        %vm5816 = vmpackc.low %vm5784, %vm5784
        %vm5817 = vmpackc.low %vm5785, %vm5785
        %vm5818 = vmpackc.low %vm5786, %vm5786
        %vm5819 = vmpackc.low %vm5787, %vm5787
        %vm5820 = vmpackc.low %vm5788, %vm5788
        %vm5821 = vmpackc.low %vm5789, %vm5789
        %vm5822 = vmpackc.low %vm5790, %vm5790
        %vm5823 = vmpackc.low %vm5791, %vm5791
        %vm5824 = vmpackc.low %vm5792, %vm5792
        %vm5825 = vmpackc.low %vm5793, %vm5793
        %vm5826 = vmpackc.low %vm5794, %vm5794
        %vm5827 = vmpackc.low %vm5795, %vm5795
        %vm5828 = vmpackc.low %vm5796, %vm5796
        %vm5829 = vmpackc.low %vm5797, %vm5797
        %vm5830 = vmpackc.low %vm5798, %vm5798
        %vm5831 = vmpackc.low %vm5799, %vm5799
        %vm5832 = vmpackc.low %vm5800, %vm5800
        %vm5833 = vmpackc.low %vm5801, %vm5801
        %vm5834 = vmpackc.low %vm5802, %vm5802
        %vm5835 = vmpackc.low %vm5803, %vm5803
        %vm5836 = vmpackc.low %vm5804, %vm5804
        %vm5837 = vmpackc.low %vm5805, %vm5805
        %vm5838 = vmpackc.low %vm5806, %vm5806
        %vm5839 = vmpackc.low %vm5807, %vm5807
        %vm5840 = vmpackc.low %vm5808, %vm5808
        %vm5841 = vmpackc.low %vm5809, %vm5809
        %vm5842 = vmpackc.low %vm5810, %vm5810
        %vm5843 = vmpackc.low %vm5811, %vm5811
        %vm5844 = vmpackc.low %vm5812, %vm5812
        %v5845 = vsel %vm5813, 65537, 0
        %v5846 = vsel %vm5814, 65537, 0
        %v5847 = vsel %vm5815, 65537, 0
        %v5848 = vsel %vm5816, 65537, 0
        %v5849 = vsel %vm5817, 65537, 0
        %v5850 = vsel %vm5818, 65537, 0
        %v5851 = vsel %vm5819, 65537, 0
        %v5852 = vsel %vm5820, 65537, 0
        %v5853 = vsel %vm5821, 65537, 0
        %v5854 = vsel %vm5822, 65537, 0
        %v5855 = vsel %vm5823, 65537, 0
        %v5856 = vsel %vm5824, 65537, 0
        %v5857 = vsel %vm5825, 65537, 0
        %v5858 = vsel %vm5826, 65537, 0
        %v5859 = vsel %vm5827, 65537, 0
        %v5860 = vsel %vm5828, 65537, 0
        %v5861 = vsel %vm5829, 65537, 0
        %v5862 = vsel %vm5830, 65537, 0
        %v5863 = vsel %vm5831, 65537, 0
        %v5864 = vsel %vm5832, 65537, 0
        %v5865 = vsel %vm5833, 65537, 0
        %v5866 = vsel %vm5834, 65537, 0
        %v5867 = vsel %vm5835, 65537, 0
        %v5868 = vsel %vm5836, 65537, 0
        %v5869 = vsel %vm5837, 65537, 0
        %v5870 = vsel %vm5838, 65537, 0
        %v5871 = vsel %vm5839, 65537, 0
        %v5872 = vsel %vm5840, 65537, 0
        %v5873 = vsel %vm5841, 65537, 0
        %v5874 = vsel %vm5842, 65537, 0
        %v5875 = vsel %vm5843, 65537, 0
        %v5876 = vsel %vm5844, 65537, 0
        %v5877 = vunpack.c.l.b16 %v5845
        %v5878 = vunpack.c.l.b16 %v5846
        %v5879 = vunpack.c.l.b16 %v5847
        %v5880 = vunpack.c.l.b16 %v5848
        %v5881 = vunpack.c.l.b16 %v5849
        %v5882 = vunpack.c.l.b16 %v5850
        %v5883 = vunpack.c.l.b16 %v5851
        %v5884 = vunpack.c.l.b16 %v5852
        %v5885 = vunpack.c.l.b16 %v5853
        %v5886 = vunpack.c.l.b16 %v5854
        %v5887 = vunpack.c.l.b16 %v5855
        %v5888 = vunpack.c.l.b16 %v5856
        %v5889 = vunpack.c.l.b16 %v5857
        %v5890 = vunpack.c.l.b16 %v5858
        %v5891 = vunpack.c.l.b16 %v5859
        %v5892 = vunpack.c.l.b16 %v5860
        %v5893 = vunpack.c.l.b16 %v5861
        %v5894 = vunpack.c.l.b16 %v5862
        %v5895 = vunpack.c.l.b16 %v5863
        %v5896 = vunpack.c.l.b16 %v5864
        %v5897 = vunpack.c.l.b16 %v5865
        %v5898 = vunpack.c.l.b16 %v5866
        %v5899 = vunpack.c.l.b16 %v5867
        %v5900 = vunpack.c.l.b16 %v5868
        %v5901 = vunpack.c.l.b16 %v5869
        %v5902 = vunpack.c.l.b16 %v5870
        %v5903 = vunpack.c.l.b16 %v5871
        %v5904 = vunpack.c.l.b16 %v5872
        %v5905 = vunpack.c.l.b16 %v5873
        %v5906 = vunpack.c.l.b16 %v5874
        %v5907 = vunpack.c.l.b16 %v5875
        %v5908 = vunpack.c.l.b16 %v5876
        %v5909 = vpack.c.b16 %v5878, %v5877
        %v5910 = vpack.c.b16 %v5880, %v5879
        %v5911 = vpack.c.b16 %v5882, %v5881
        %v5912 = vpack.c.b16 %v5884, %v5883
        %v5913 = vpack.c.b16 %v5886, %v5885
        %v5914 = vpack.c.b16 %v5888, %v5887
        %v5915 = vpack.c.b16 %v5890, %v5889
        %v5916 = vpack.c.b16 %v5892, %v5891
        %v5917 = vpack.c.b16 %v5894, %v5893
        %v5918 = vpack.c.b16 %v5896, %v5895
        %v5919 = vpack.c.b16 %v5898, %v5897
        %v5920 = vpack.c.b16 %v5900, %v5899
        %v5921 = vpack.c.b16 %v5902, %v5901
        %v5922 = vpack.c.b16 %v5904, %v5903
        %v5923 = vpack.c.b16 %v5906, %v5905
        %v5924 = vpack.c.b16 %v5908, %v5907
        %v5926 = vshrl.u32 %v5909, 16
        %v5928 = vrot.slane %v5926, 7
        %v5929 = vshll.u32 %v5909, 16
        %v5931 = vor.u32 %v5928, %v5929
        %v5933 = vshrl.u32 %v5910, 16
        %v5935 = vrot.slane %v5933, 7
        %v5936 = vshll.u32 %v5910, 16
        %v5938 = vor.u32 %v5935, %v5936
        %v5939 = vsel %vm1738, %v5928, %v5938
        %v5941 = vshrl.u32 %v5911, 16
        %v5943 = vrot.slane %v5941, 7
        %v5944 = vshll.u32 %v5911, 16
        %v5946 = vor.u32 %v5943, %v5944
        %v5947 = vsel %vm1738, %v5935, %v5946
        %v5949 = vshrl.u32 %v5912, 16
        %v5951 = vrot.slane %v5949, 7
        %v5952 = vshll.u32 %v5912, 16
        %v5954 = vor.u32 %v5951, %v5952
        %v5955 = vsel %vm1738, %v5943, %v5954
        %v5957 = vshrl.u32 %v5913, 16
        %v5959 = vrot.slane %v5957, 7
        %v5960 = vshll.u32 %v5913, 16
        %v5962 = vor.u32 %v5959, %v5960
        %v5963 = vsel %vm1738, %v5951, %v5962
        %v5965 = vshrl.u32 %v5914, 16
        %v5967 = vrot.slane %v5965, 7
        %v5968 = vshll.u32 %v5914, 16
        %v5970 = vor.u32 %v5967, %v5968
        %v5971 = vsel %vm1738, %v5959, %v5970
        %v5973 = vshrl.u32 %v5915, 16
        %v5975 = vrot.slane %v5973, 7
        %v5976 = vshll.u32 %v5915, 16
        %v5978 = vor.u32 %v5975, %v5976
        %v5979 = vsel %vm1738, %v5967, %v5978
        %v5981 = vshrl.u32 %v5916, 16
        %v5983 = vrot.slane %v5981, 7
        %v5984 = vshll.u32 %v5916, 16
        %v5986 = vor.u32 %v5983, %v5984
        %v5987 = vsel %vm1738, %v5975, %v5986
        %v5989 = vshrl.u32 %v5917, 16
        %v5991 = vrot.slane %v5989, 7
        %v5992 = vshll.u32 %v5917, 16
        %v5994 = vor.u32 %v5991, %v5992
        %v5995 = vsel %vm1738, %v5983, %v5994
        %v5997 = vshrl.u32 %v5918, 16
        %v5999 = vrot.slane %v5997, 7
        %v6000 = vshll.u32 %v5918, 16
        %v6002 = vor.u32 %v5999, %v6000
        %v6003 = vsel %vm1738, %v5991, %v6002
        %v6005 = vshrl.u32 %v5919, 16
        %v6007 = vrot.slane %v6005, 7
        %v6008 = vshll.u32 %v5919, 16
        %v6010 = vor.u32 %v6007, %v6008
        %v6011 = vsel %vm1738, %v5999, %v6010
        %v6013 = vshrl.u32 %v5920, 16
        %v6015 = vrot.slane %v6013, 7
        %v6016 = vshll.u32 %v5920, 16
        %v6018 = vor.u32 %v6015, %v6016
        %v6019 = vsel %vm1738, %v6007, %v6018
        %v6021 = vshrl.u32 %v5921, 16
        %v6023 = vrot.slane %v6021, 7
        %v6024 = vshll.u32 %v5921, 16
        %v6026 = vor.u32 %v6023, %v6024
        %v6027 = vsel %vm1738, %v6015, %v6026
        %v6029 = vshrl.u32 %v5922, 16
        %v6031 = vrot.slane %v6029, 7
        %v6032 = vshll.u32 %v5922, 16
        %v6034 = vor.u32 %v6031, %v6032
        %v6035 = vsel %vm1738, %v6023, %v6034
        %v6037 = vshrl.u32 %v5923, 16
        %v6039 = vrot.slane %v6037, 7
        %v6040 = vshll.u32 %v5923, 16
        %v6042 = vor.u32 %v6039, %v6040
        %v6043 = vsel %vm1738, %v6031, %v6042
        %v6045 = vshrl.u32 %v5924, 16
        %v6047 = vrot.slane %v6045, 7
        %v6048 = vshll.u32 %v5924, 16
        %v6050 = vor.u32 %v6047, %v6048
        %v6051 = vsel %vm1738, %v6039, %v6050
        %vm6052 = vcmp.ne.s16.totalorder %v5931, 0
        %vm6053 = vcmp.ne.s16.totalorder %v5939, 0
        %vm6054 = vcmp.ne.s16.totalorder %v5947, 0
        %vm6055 = vcmp.ne.s16.totalorder %v5955, 0
        %vm6056 = vcmp.ne.s16.totalorder %v5963, 0
        %vm6057 = vcmp.ne.s16.totalorder %v5971, 0
        %vm6058 = vcmp.ne.s16.totalorder %v5979, 0
        %vm6059 = vcmp.ne.s16.totalorder %v5987, 0
        %vm6060 = vcmp.ne.s16.totalorder %v5995, 0
        %vm6061 = vcmp.ne.s16.totalorder %v6003, 0
        %vm6062 = vcmp.ne.s16.totalorder %v6011, 0
        %vm6063 = vcmp.ne.s16.totalorder %v6019, 0
        %vm6064 = vcmp.ne.s16.totalorder %v6027, 0
        %vm6065 = vcmp.ne.s16.totalorder %v6035, 0
        %vm6066 = vcmp.ne.s16.totalorder %v6043, 0
        %vm6067 = vcmp.ne.s16.totalorder %v6051, 0
        %vm6068 = vcmp.ne.s16.totalorder %v6047, 0
        %v6069 = vsel %vm6052, %v5668, 0
        %v6070 = vsel %vm6053, %v5669, 0
        %v6071 = vsel %vm6054, %v5670, 0
        %v6072 = vsel %vm6055, %v5671, 0
        %v6073 = vsel %vm6056, %v5672, 0
        %v6074 = vsel %vm6057, %v5673, 0
        %v6075 = vsel %vm6058, %v5674, 0
        %v6076 = vsel %vm6059, %v5675, 0
        %v6077 = vsel %vm6060, %v5676, 0
        %v6078 = vsel %vm6061, %v5677, 0
        %v6079 = vsel %vm6062, %v5678, 0
        %v6080 = vsel %vm6063, %v5679, 0
        %v6081 = vsel %vm6064, %v5680, 0
        %v6082 = vsel %vm6065, %v5681, 0
        %v6083 = vsel %vm6066, %v5682, 0
        %v6084 = vsel %vm6067, %v5683, 0
        %v6085 = vsel %vm6068, %v5684, 0
        %v6087 = vshll.u32 %v5652, 16
        %v6089 = vrot.slane %v6087, 1
        %v6090 = vshrl.u32 %v5652, 16
        %v6092 = vor.u32 %v6090, %v6089
        %v6094 = vshll.u32 %v5653, 16
        %v6096 = vrot.slane %v6094, 1
        %v6097 = vsel %vm1047, %v6092, %v6096
        %v6098 = vshrl.u32 %v5653, 16
        %v6100 = vor.u32 %v6098, %v6096
        %v6102 = vshll.u32 %v5654, 16
        %v6104 = vrot.slane %v6102, 1
        %v6105 = vsel %vm1047, %v6100, %v6104
        %v6106 = vshrl.u32 %v5654, 16
        %v6108 = vor.u32 %v6106, %v6104
        %v6110 = vshll.u32 %v5655, 16
        %v6112 = vrot.slane %v6110, 1
        %v6113 = vsel %vm1047, %v6108, %v6112
        %v6114 = vshrl.u32 %v5655, 16
        %v6116 = vor.u32 %v6114, %v6112
        %v6118 = vshll.u32 %v5656, 16
        %v6120 = vrot.slane %v6118, 1
        %v6121 = vsel %vm1047, %v6116, %v6120
        %v6122 = vshrl.u32 %v5656, 16
        %v6124 = vor.u32 %v6122, %v6120
        %v6126 = vshll.u32 %v5657, 16
        %v6128 = vrot.slane %v6126, 1
        %v6129 = vsel %vm1047, %v6124, %v6128
        %v6130 = vshrl.u32 %v5657, 16
        %v6132 = vor.u32 %v6130, %v6128
        %v6134 = vshll.u32 %v5658, 16
        %v6136 = vrot.slane %v6134, 1
        %v6137 = vsel %vm1047, %v6132, %v6136
        %v6138 = vshrl.u32 %v5658, 16
        %v6140 = vor.u32 %v6138, %v6136
        %v6142 = vshll.u32 %v5659, 16
        %v6144 = vrot.slane %v6142, 1
        %v6145 = vsel %vm1047, %v6140, %v6144
        %v6146 = vshrl.u32 %v5659, 16
        %v6148 = vor.u32 %v6146, %v6144
        %v6150 = vshll.u32 %v5660, 16
        %v6152 = vrot.slane %v6150, 1
        %v6153 = vsel %vm1047, %v6148, %v6152
        %v6154 = vshrl.u32 %v5660, 16
        %v6156 = vor.u32 %v6154, %v6152
        %v6158 = vshll.u32 %v5661, 16
        %v6160 = vrot.slane %v6158, 1
        %v6161 = vsel %vm1047, %v6156, %v6160
        %v6162 = vshrl.u32 %v5661, 16
        %v6164 = vor.u32 %v6162, %v6160
        %v6166 = vshll.u32 %v5662, 16
        %v6168 = vrot.slane %v6166, 1
        %v6169 = vsel %vm1047, %v6164, %v6168
        %v6170 = vshrl.u32 %v5662, 16
        %v6172 = vor.u32 %v6170, %v6168
        %v6174 = vshll.u32 %v5663, 16
        %v6176 = vrot.slane %v6174, 1
        %v6177 = vsel %vm1047, %v6172, %v6176
        %v6178 = vshrl.u32 %v5663, 16
        %v6180 = vor.u32 %v6178, %v6176
        %v6182 = vshll.u32 %v5664, 16
        %v6184 = vrot.slane %v6182, 1
        %v6185 = vsel %vm1047, %v6180, %v6184
        %v6186 = vshrl.u32 %v5664, 16
        %v6188 = vor.u32 %v6186, %v6184
        %v6190 = vshll.u32 %v5665, 16
        %v6192 = vrot.slane %v6190, 1
        %v6193 = vsel %vm1047, %v6188, %v6192
        %v6194 = vshrl.u32 %v5665, 16
        %v6196 = vor.u32 %v6194, %v6192
        %v6198 = vshll.u32 %v5666, 16
        %v6200 = vrot.slane %v6198, 1
        %v6201 = vsel %vm1047, %v6196, %v6200
        %v6202 = vshrl.u32 %v5666, 16
        %v6204 = vor.u32 %v6202, %v6200
        %v6206 = vshll.u32 %v5667, 16
        %v6208 = vrot.slane %v6206, 1
        %v6209 = vsel %vm1047, %v6204, %v6208
        %v6210 = vshrl.u32 %v5667, 16
        %v6212 = vor.u32 %v6210, %v6208
        %v6230 = vrot.slane %v6069, 1
        %v6231 = vrot.slane %v6070, 1
        %v6232 = vsel %vm2044, %v6230, %v6231
        %v6233 = vrot.slane %v6071, 1
        %v6234 = vsel %vm2044, %v6231, %v6233
        %v6235 = vrot.slane %v6072, 1
        %v6236 = vsel %vm2044, %v6233, %v6235
        %v6237 = vrot.slane %v6073, 1
        %v6238 = vsel %vm2044, %v6235, %v6237
        %v6239 = vrot.slane %v6074, 1
        %v6240 = vsel %vm2044, %v6237, %v6239
        %v6241 = vrot.slane %v6075, 1
        %v6242 = vsel %vm2044, %v6239, %v6241
        %v6243 = vrot.slane %v6076, 1
        %v6244 = vsel %vm2044, %v6241, %v6243
        %v6245 = vrot.slane %v6077, 1
        %v6246 = vsel %vm2044, %v6243, %v6245
        %v6247 = vrot.slane %v6078, 1
        %v6248 = vsel %vm2044, %v6245, %v6247
        %v6249 = vrot.slane %v6079, 1
        %v6250 = vsel %vm2044, %v6247, %v6249
        %v6251 = vrot.slane %v6080, 1
        %v6252 = vsel %vm2044, %v6249, %v6251
        %v6253 = vrot.slane %v6081, 1
        %v6254 = vsel %vm2044, %v6251, %v6253
        %v6255 = vrot.slane %v6082, 1
        %v6256 = vsel %vm2044, %v6253, %v6255
        %v6257 = vrot.slane %v6083, 1
        %v6258 = vsel %vm2044, %v6255, %v6257
        %v6259 = vrot.slane %v6084, 1
        %v6260 = vsel %vm2044, %v6257, %v6259
        %v6261 = vrot.slane %v6085, 1
        %v6262 = vsel %vm2044, %v6259, %v6261
        %s6263 = scalar_lea.vmem [#allocation6], 384
        %v6264 = vld [vmem:[%s6263] sm:$0xf]
        %v6265 = vld [vmem:[%s6263 + $0x4] sm:$0xf]
        %v6266 = vld [vmem:[%s6263 + $0x8] sm:$0xf]
        %v6267 = vld [vmem:[%s6263 + $0xc] sm:$0xf]
        %v6268 = vld [vmem:[%s6263 + $0x10] sm:$0xf]
        %v6269 = vld [vmem:[%s6263 + $0x14] sm:$0xf]
        %v6270 = vld [vmem:[%s6263 + $0x18] sm:$0xf]
        %v6271 = vld [vmem:[%s6263 + $0x1c] sm:$0xf]
        %v6272 = vld [vmem:[%s6263 + $0x20] sm:$0xf]
        %v6273 = vld [vmem:[%s6263 + $0x24] sm:$0xf]
        %v6274 = vld [vmem:[%s6263 + $0x28] sm:$0xf]
        %v6275 = vld [vmem:[%s6263 + $0x2c] sm:$0xf]
        %v6276 = vld [vmem:[%s6263 + $0x30] sm:$0xf]
        %v6277 = vld [vmem:[%s6263 + $0x34] sm:$0xf]
        %v6278 = vld [vmem:[%s6263 + $0x38] sm:$0xf]
        %v6279 = vld [vmem:[%s6263 + $0x3c] sm:$0xf]
        %v6280 = vld [vmem:[%s6263 + $0x40] sm:$0xf]
        %v6281 = vld [vmem:[%s6263 + $0x44] sm:$0xf]
        %v6282 = vld [vmem:[%s6263 + $0x48] sm:$0xf]
        %v6283 = vld [vmem:[%s6263 + $0x4c] sm:$0xf]
        %v6284 = vld [vmem:[%s6263 + $0x50] sm:$0xf]
        %v6285 = vld [vmem:[%s6263 + $0x54] sm:$0xf]
        %v6286 = vld [vmem:[%s6263 + $0x58] sm:$0xf]
        %v6287 = vld [vmem:[%s6263 + $0x5c] sm:$0xf]
        %v6288 = vld [vmem:[%s6263 + $0x60] sm:$0xf]
        %v6289 = vld [vmem:[%s6263 + $0x64] sm:$0xf]
        %v6290 = vld [vmem:[%s6263 + $0x68] sm:$0xf]
        %v6291 = vld [vmem:[%s6263 + $0x6c] sm:$0xf]
        %v6292 = vld [vmem:[%s6263 + $0x70] sm:$0xf]
        %v6293 = vld [vmem:[%s6263 + $0x74] sm:$0xf]
        %v6294 = vld [vmem:[%s6263 + $0x78] sm:$0xf]
        %v6295 = vld [vmem:[%s6263 + $0x7c] sm:$0xf]
        %v6296 = vld [vmem:[%s6263 + $0x80] sm:$0xf]
        %v6297 = vld [vmem:[%s6263 + $0x84] sm:$0xf]
        %v6298 = vld [vmem:[%s6263 + $0x88] sm:$0xf]
        %v6299 = vld [vmem:[%s6263 + $0x8c] sm:$0xf]
        %v6300 = vld [vmem:[%s6263 + $0x90] sm:$0xf]
        %v6301 = vld [vmem:[%s6263 + $0x94] sm:$0xf]
        %v6302 = vld [vmem:[%s6263 + $0x98] sm:$0xf]
        %v6303 = vld [vmem:[%s6263 + $0x9c] sm:$0xf]
        %v6304 = vld [vmem:[%s6263 + $0xa0] sm:$0xf]
        %v6305 = vld [vmem:[%s6263 + $0xa4] sm:$0xf]
        %v6306 = vld [vmem:[%s6263 + $0xa8] sm:$0xf]
        %v6307 = vld [vmem:[%s6263 + $0xac] sm:$0xf]
        %v6308 = vld [vmem:[%s6263 + $0xb0] sm:$0xf]
        %v6309 = vld [vmem:[%s6263 + $0xb4] sm:$0xf]
        %v6310 = vld [vmem:[%s6263 + $0xb8] sm:$0xf]
        %v6311 = vld [vmem:[%s6263 + $0xbc] sm:$0xf]
        %v6313 = vshrl.u32 %v5379, 16
        %v6315 = vrot.slane %v6313, 7
        %v6317 = vshrl.u32 %v5380, 16
        %v6319 = vrot.slane %v6317, 7
        %v6320 = vshll.u32 %v5380, 16
        %v6322 = vor.u32 %v6319, %v6320
        %v6323 = vsel %vm1738, %v6315, %v6322
        %v6325 = vshrl.u32 %v6089, 16
        %v6327 = vrot.slane %v6325, 7
        %v6329 = vshrl.u32 %v6097, 16
        %v6331 = vrot.slane %v6329, 7
        %v6332 = vshll.u32 %v6097, 16
        %v6334 = vor.u32 %v6331, %v6332
        %v6335 = vsel %vm1738, %v6327, %v6334
        %v6337 = vshrl.u32 %v6230, 16
        %v6339 = vrot.slane %v6337, 7
        %v6341 = vshrl.u32 %v6232, 16
        %v6343 = vrot.slane %v6341, 7
        %v6344 = vshll.u32 %v6232, 16
        %v6346 = vor.u32 %v6343, %v6344
        %v6347 = vsel %vm1738, %v6339, %v6346
        %v6349 = vshrl.u32 %v5381, 16
        %v6351 = vrot.slane %v6349, 7
        %v6352 = vshll.u32 %v5381, 16
        %v6354 = vor.u32 %v6351, %v6352
        %v6355 = vsel %vm1738, %v6319, %v6354
        %v6357 = vshrl.u32 %v6105, 16
        %v6359 = vrot.slane %v6357, 7
        %v6360 = vshll.u32 %v6105, 16
        %v6362 = vor.u32 %v6359, %v6360
        %v6363 = vsel %vm1738, %v6331, %v6362
        %v6365 = vshrl.u32 %v6234, 16
        %v6367 = vrot.slane %v6365, 7
        %v6368 = vshll.u32 %v6234, 16
        %v6370 = vor.u32 %v6367, %v6368
        %v6371 = vsel %vm1738, %v6343, %v6370
        %v6373 = vshrl.u32 %v5382, 16
        %v6375 = vrot.slane %v6373, 7
        %v6376 = vshll.u32 %v5382, 16
        %v6378 = vor.u32 %v6375, %v6376
        %v6379 = vsel %vm1738, %v6351, %v6378
        %v6381 = vshrl.u32 %v6113, 16
        %v6383 = vrot.slane %v6381, 7
        %v6384 = vshll.u32 %v6113, 16
        %v6386 = vor.u32 %v6383, %v6384
        %v6387 = vsel %vm1738, %v6359, %v6386
        %v6389 = vshrl.u32 %v6236, 16
        %v6391 = vrot.slane %v6389, 7
        %v6392 = vshll.u32 %v6236, 16
        %v6394 = vor.u32 %v6391, %v6392
        %v6395 = vsel %vm1738, %v6367, %v6394
        %v6397 = vshrl.u32 %v5383, 16
        %v6399 = vrot.slane %v6397, 7
        %v6400 = vshll.u32 %v5383, 16
        %v6402 = vor.u32 %v6399, %v6400
        %v6403 = vsel %vm1738, %v6375, %v6402
        %v6405 = vshrl.u32 %v6121, 16
        %v6407 = vrot.slane %v6405, 7
        %v6408 = vshll.u32 %v6121, 16
        %v6410 = vor.u32 %v6407, %v6408
        %v6411 = vsel %vm1738, %v6383, %v6410
        %v6413 = vshrl.u32 %v6238, 16
        %v6415 = vrot.slane %v6413, 7
        %v6416 = vshll.u32 %v6238, 16
        %v6418 = vor.u32 %v6415, %v6416
        %v6419 = vsel %vm1738, %v6391, %v6418
        %v6421 = vshrl.u32 %v5384, 16
        %v6423 = vrot.slane %v6421, 7
        %v6424 = vshll.u32 %v5384, 16
        %v6426 = vor.u32 %v6423, %v6424
        %v6427 = vsel %vm1738, %v6399, %v6426
        %v6429 = vshrl.u32 %v6129, 16
        %v6431 = vrot.slane %v6429, 7
        %v6432 = vshll.u32 %v6129, 16
        %v6434 = vor.u32 %v6431, %v6432
        %v6435 = vsel %vm1738, %v6407, %v6434
        %v6437 = vshrl.u32 %v6240, 16
        %v6439 = vrot.slane %v6437, 7
        %v6440 = vshll.u32 %v6240, 16
        %v6442 = vor.u32 %v6439, %v6440
        %v6443 = vsel %vm1738, %v6415, %v6442
        %v6445 = vshrl.u32 %v5385, 16
        %v6447 = vrot.slane %v6445, 7
        %v6448 = vshll.u32 %v5385, 16
        %v6450 = vor.u32 %v6447, %v6448
        %v6451 = vsel %vm1738, %v6423, %v6450
        %v6453 = vshrl.u32 %v6137, 16
        %v6455 = vrot.slane %v6453, 7
        %v6456 = vshll.u32 %v6137, 16
        %v6458 = vor.u32 %v6455, %v6456
        %v6459 = vsel %vm1738, %v6431, %v6458
        %v6461 = vshrl.u32 %v6242, 16
        %v6463 = vrot.slane %v6461, 7
        %v6464 = vshll.u32 %v6242, 16
        %v6466 = vor.u32 %v6463, %v6464
        %v6467 = vsel %vm1738, %v6439, %v6466
        %v6469 = vshrl.u32 %v5386, 16
        %v6471 = vrot.slane %v6469, 7
        %v6472 = vshll.u32 %v5386, 16
        %v6474 = vor.u32 %v6471, %v6472
        %v6475 = vsel %vm1738, %v6447, %v6474
        %v6477 = vshrl.u32 %v6145, 16
        %v6479 = vrot.slane %v6477, 7
        %v6480 = vshll.u32 %v6145, 16
        %v6482 = vor.u32 %v6479, %v6480
        %v6483 = vsel %vm1738, %v6455, %v6482
        %v6485 = vshrl.u32 %v6244, 16
        %v6487 = vrot.slane %v6485, 7
        %v6488 = vshll.u32 %v6244, 16
        %v6490 = vor.u32 %v6487, %v6488
        %v6491 = vsel %vm1738, %v6463, %v6490
        %v6493 = vshrl.u32 %v5387, 16
        %v6495 = vrot.slane %v6493, 7
        %v6496 = vshll.u32 %v5387, 16
        %v6498 = vor.u32 %v6495, %v6496
        %v6499 = vsel %vm1738, %v6471, %v6498
        %v6501 = vshrl.u32 %v6153, 16
        %v6503 = vrot.slane %v6501, 7
        %v6504 = vshll.u32 %v6153, 16
        %v6506 = vor.u32 %v6503, %v6504
        %v6507 = vsel %vm1738, %v6479, %v6506
        %v6509 = vshrl.u32 %v6246, 16
        %v6511 = vrot.slane %v6509, 7
        %v6512 = vshll.u32 %v6246, 16
        %v6514 = vor.u32 %v6511, %v6512
        %v6515 = vsel %vm1738, %v6487, %v6514
        %v6517 = vshrl.u32 %v5388, 16
        %v6519 = vrot.slane %v6517, 7
        %v6520 = vshll.u32 %v5388, 16
        %v6522 = vor.u32 %v6519, %v6520
        %v6523 = vsel %vm1738, %v6495, %v6522
        %v6525 = vshrl.u32 %v6161, 16
        %v6527 = vrot.slane %v6525, 7
        %v6528 = vshll.u32 %v6161, 16
        %v6530 = vor.u32 %v6527, %v6528
        %v6531 = vsel %vm1738, %v6503, %v6530
        %v6533 = vshrl.u32 %v6248, 16
        %v6535 = vrot.slane %v6533, 7
        %v6536 = vshll.u32 %v6248, 16
        %v6538 = vor.u32 %v6535, %v6536
        %v6539 = vsel %vm1738, %v6511, %v6538
        %v6541 = vshrl.u32 %v5389, 16
        %v6543 = vrot.slane %v6541, 7
        %v6544 = vshll.u32 %v5389, 16
        %v6546 = vor.u32 %v6543, %v6544
        %v6547 = vsel %vm1738, %v6519, %v6546
        %v6549 = vshrl.u32 %v6169, 16
        %v6551 = vrot.slane %v6549, 7
        %v6552 = vshll.u32 %v6169, 16
        %v6554 = vor.u32 %v6551, %v6552
        %v6555 = vsel %vm1738, %v6527, %v6554
        %v6557 = vshrl.u32 %v6250, 16
        %v6559 = vrot.slane %v6557, 7
        %v6560 = vshll.u32 %v6250, 16
        %v6562 = vor.u32 %v6559, %v6560
        %v6563 = vsel %vm1738, %v6535, %v6562
        %v6565 = vshrl.u32 %v5390, 16
        %v6567 = vrot.slane %v6565, 7
        %v6568 = vshll.u32 %v5390, 16
        %v6570 = vor.u32 %v6567, %v6568
        %v6571 = vsel %vm1738, %v6543, %v6570
        %v6573 = vshrl.u32 %v6177, 16
        %v6575 = vrot.slane %v6573, 7
        %v6576 = vshll.u32 %v6177, 16
        %v6578 = vor.u32 %v6575, %v6576
        %v6579 = vsel %vm1738, %v6551, %v6578
        %v6581 = vshrl.u32 %v6252, 16
        %v6583 = vrot.slane %v6581, 7
        %v6584 = vshll.u32 %v6252, 16
        %v6586 = vor.u32 %v6583, %v6584
        %v6587 = vsel %vm1738, %v6559, %v6586
        %v6589 = vshrl.u32 %v5391, 16
        %v6591 = vrot.slane %v6589, 7
        %v6592 = vshll.u32 %v5391, 16
        %v6594 = vor.u32 %v6591, %v6592
        %v6595 = vsel %vm1738, %v6567, %v6594
        %v6597 = vshrl.u32 %v6185, 16
        %v6599 = vrot.slane %v6597, 7
        %v6600 = vshll.u32 %v6185, 16
        %v6602 = vor.u32 %v6599, %v6600
        %v6603 = vsel %vm1738, %v6575, %v6602
        %v6605 = vshrl.u32 %v6254, 16
        %v6607 = vrot.slane %v6605, 7
        %v6608 = vshll.u32 %v6254, 16
        %v6610 = vor.u32 %v6607, %v6608
        %v6611 = vsel %vm1738, %v6583, %v6610
        %v6613 = vshrl.u32 %v5392, 16
        %v6615 = vrot.slane %v6613, 7
        %v6616 = vshll.u32 %v5392, 16
        %v6618 = vor.u32 %v6615, %v6616
        %v6619 = vsel %vm1738, %v6591, %v6618
        %v6621 = vshrl.u32 %v6193, 16
        %v6623 = vrot.slane %v6621, 7
        %v6624 = vshll.u32 %v6193, 16
        %v6626 = vor.u32 %v6623, %v6624
        %v6627 = vsel %vm1738, %v6599, %v6626
        %v6629 = vshrl.u32 %v6256, 16
        %v6631 = vrot.slane %v6629, 7
        %v6632 = vshll.u32 %v6256, 16
        %v6634 = vor.u32 %v6631, %v6632
        %v6635 = vsel %vm1738, %v6607, %v6634
        %v6637 = vshrl.u32 %v5393, 16
        %v6639 = vrot.slane %v6637, 7
        %v6640 = vshll.u32 %v5393, 16
        %v6642 = vor.u32 %v6639, %v6640
        %v6643 = vsel %vm1738, %v6615, %v6642
        %v6645 = vshrl.u32 %v6201, 16
        %v6647 = vrot.slane %v6645, 7
        %v6648 = vshll.u32 %v6201, 16
        %v6650 = vor.u32 %v6647, %v6648
        %v6651 = vsel %vm1738, %v6623, %v6650
        %v6653 = vshrl.u32 %v6258, 16
        %v6655 = vrot.slane %v6653, 7
        %v6656 = vshll.u32 %v6258, 16
        %v6658 = vor.u32 %v6655, %v6656
        %v6659 = vsel %vm1738, %v6631, %v6658
        %v6661 = vshrl.u32 %v5394, 16
        %v6663 = vrot.slane %v6661, 7
        %v6664 = vshll.u32 %v5394, 16
        %v6666 = vor.u32 %v6663, %v6664
        %v6667 = vsel %vm1738, %v6639, %v6666
        %v6669 = vshrl.u32 %v6209, 16
        %v6671 = vrot.slane %v6669, 7
        %v6672 = vshll.u32 %v6209, 16
        %v6674 = vor.u32 %v6671, %v6672
        %v6675 = vsel %vm1738, %v6647, %v6674
        %v6677 = vshrl.u32 %v6260, 16
        %v6679 = vrot.slane %v6677, 7
        %v6680 = vshll.u32 %v6260, 16
        %v6682 = vor.u32 %v6679, %v6680
        %v6683 = vsel %vm1738, %v6655, %v6682
        %v6685 = vshrl.u32 %v5395, 16
        %v6687 = vrot.slane %v6685, 7
        %v6688 = vshll.u32 %v5395, 16
        %v6690 = vor.u32 %v6687, %v6688
        %v6691 = vsel %vm1738, %v6663, %v6690
        %v6693 = vshrl.u32 %v6212, 16
        %v6695 = vrot.slane %v6693, 7
        %v6696 = vshll.u32 %v6212, 16
        %v6698 = vor.u32 %v6695, %v6696
        %v6699 = vsel %vm1738, %v6671, %v6698
        %v6701 = vshrl.u32 %v6262, 16
        %v6703 = vrot.slane %v6701, 7
        %v6704 = vshll.u32 %v6262, 16
        %v6706 = vor.u32 %v6703, %v6704
        %v6707 = vsel %vm1738, %v6679, %v6706
        %v6804 = vunpack.c.l.b16 %v6264
        %v6805 = vunpack.c.l.b16 %v6265
        %v6806 = vunpack.c.l.b16 %v6266
        %v6807 = vunpack.c.l.b16 %v6267
        %v6808 = vunpack.c.l.b16 %v6268
        %v6809 = vunpack.c.l.b16 %v6269
        %v6810 = vunpack.c.l.b16 %v6270
        %v6811 = vunpack.c.l.b16 %v6271
        %v6812 = vunpack.c.l.b16 %v6272
        %v6813 = vunpack.c.l.b16 %v6273
        %v6814 = vunpack.c.l.b16 %v6274
        %v6815 = vunpack.c.l.b16 %v6275
        %v6816 = vunpack.c.l.b16 %v6276
        %v6817 = vunpack.c.l.b16 %v6277
        %v6818 = vunpack.c.l.b16 %v6278
        %v6819 = vunpack.c.l.b16 %v6279
        %v6820 = vunpack.c.l.b16 %v6280
        %v6821 = vunpack.c.l.b16 %v6281
        %v6822 = vunpack.c.l.b16 %v6282
        %v6823 = vunpack.c.l.b16 %v6283
        %v6824 = vunpack.c.l.b16 %v6284
        %v6825 = vunpack.c.l.b16 %v6285
        %v6826 = vunpack.c.l.b16 %v6286
        %v6827 = vunpack.c.l.b16 %v6287
        %v6828 = vunpack.c.l.b16 %v6288
        %v6829 = vunpack.c.l.b16 %v6289
        %v6830 = vunpack.c.l.b16 %v6290
        %v6831 = vunpack.c.l.b16 %v6291
        %v6832 = vunpack.c.l.b16 %v6292
        %v6833 = vunpack.c.l.b16 %v6293
        %v6834 = vunpack.c.l.b16 %v6294
        %v6835 = vunpack.c.l.b16 %v6295
        %v6836 = vunpack.c.l.b16 %v6296
        %v6837 = vunpack.c.l.b16 %v6297
        %v6838 = vunpack.c.l.b16 %v6298
        %v6839 = vunpack.c.l.b16 %v6299
        %v6840 = vunpack.c.l.b16 %v6300
        %v6841 = vunpack.c.l.b16 %v6301
        %v6842 = vunpack.c.l.b16 %v6302
        %v6843 = vunpack.c.l.b16 %v6303
        %v6844 = vunpack.c.l.b16 %v6304
        %v6845 = vunpack.c.l.b16 %v6305
        %v6846 = vunpack.c.l.b16 %v6306
        %v6847 = vunpack.c.l.b16 %v6307
        %v6848 = vunpack.c.l.b16 %v6308
        %v6849 = vunpack.c.l.b16 %v6309
        %v6850 = vunpack.c.l.b16 %v6310
        %v6851 = vunpack.c.l.b16 %v6311
        %v6852 = vpack.c.b16 %v6805, %v6804
        %v6853 = vpack.c.b16 %v6807, %v6806
        %v6854 = vpack.c.b16 %v6809, %v6808
        %v6855 = vpack.c.b16 %v6811, %v6810
        %v6856 = vpack.c.b16 %v6813, %v6812
        %v6857 = vpack.c.b16 %v6815, %v6814
        %v6858 = vpack.c.b16 %v6817, %v6816
        %v6859 = vpack.c.b16 %v6819, %v6818
        %v6860 = vpack.c.b16 %v6821, %v6820
        %v6861 = vpack.c.b16 %v6823, %v6822
        %v6862 = vpack.c.b16 %v6825, %v6824
        %v6863 = vpack.c.b16 %v6827, %v6826
        %v6864 = vpack.c.b16 %v6829, %v6828
        %v6865 = vpack.c.b16 %v6831, %v6830
        %v6866 = vpack.c.b16 %v6833, %v6832
        %v6867 = vpack.c.b16 %v6835, %v6834
        %v6868 = vpack.c.b16 %v6837, %v6836
        %v6869 = vpack.c.b16 %v6839, %v6838
        %v6870 = vpack.c.b16 %v6841, %v6840
        %v6871 = vpack.c.b16 %v6843, %v6842
        %v6872 = vpack.c.b16 %v6845, %v6844
        %v6873 = vpack.c.b16 %v6847, %v6846
        %v6874 = vpack.c.b16 %v6849, %v6848
        %v6875 = vpack.c.b16 %v6851, %v6850
        %6900 = vmatprep.subr.bf16.mxu0 0
        %6901 = vmatpush1.bf16.msra.mxu0 %v6852
        %6902 = vmatprep.subr.bf16.mxu0 0
        %6903 = vmatpush1.bf16.msra.mxu0 %v6853
        %6904 = vmatprep.subr.bf16.mxu0 0
        %6905 = vmatpush1.bf16.msra.mxu0 %v6854
        %6906 = vmatprep.subr.bf16.mxu0 0
        %6907 = vmatpush1.bf16.msra.mxu0 %v6855
        %6908 = vmatprep.subr.bf16.mxu0 0
        %6909 = vmatpush1.bf16.msra.mxu0 %v6856
        %6910 = vmatprep.subr.bf16.mxu0 0
        %6911 = vmatpush1.bf16.msra.mxu0 %v6857
        %6912 = vmatprep.subr.bf16.mxu0 0
        %6913 = vmatpush1.bf16.msra.mxu0 %v6858
        %6914 = vmatprep.subr.bf16.mxu0 0
        %6915 = vmatpush1.bf16.msra.mxu0 %v6859
        %6916 = vmatprep.subr.bf16.mxu0 0
        %6917 = vmatpush1.bf16.msra.mxu0 %v6860
        %6918 = vmatprep.subr.bf16.mxu0 0
        %6919 = vmatpush1.bf16.msra.mxu0 %v6861
        %6920 = vmatprep.subr.bf16.mxu0 0
        %6921 = vmatpush1.bf16.msra.mxu0 %v6862
        %6922 = vmatprep.subr.bf16.mxu0 0
        %6923 = vmatpush1.bf16.msra.mxu0 %v6863
        %6924 = vmatprep.subr.bf16.mxu0 0
        %6925 = vmatpush1.bf16.msra.mxu0 %v6864
        %6926 = vmatprep.subr.bf16.mxu0 0
        %6927 = vmatpush1.bf16.msra.mxu0 %v6865
        %6928 = vmatprep.subr.bf16.mxu0 0
        %6929 = vmatpush1.bf16.msra.mxu0 %v6866
        %6930 = vmatprep.subr.bf16.mxu0 0
        %6931 = vmatpush1.bf16.msra.mxu0 %v6867
        %6932 = vmatprep.mubr.bf16.mxu0 %v6335
        %6933 = vmatmul.mubr.bf16.gmra.mrb[0].mxu0 %v6323
        %v6934 = vpop.f32.mrb[0].mxu0
        %v6935 = vadd.f32 0.0, %v6934
        %v6936 = vpop.f32.mrb[0].mxu0
        %v6937 = vpop.f32.mrb[0].mxu0
        %v6938 = vadd.f32 0.0, %v6937
        %v6939 = vpop.f32.mrb[0].mxu0
        %6940 = vmatprep.mubr.bf16.mxu0 %v6363
        %6941 = vmatmul.mubr.bf16.gmra.mrb[0].mxu0 %v6355
        %v6942 = vpop.f32.mrb[0].mxu0
        %v6943 = vadd.f32 0.0, %v6942
        %v6944 = vpop.f32.mrb[0].mxu0
        %v6945 = vpop.f32.mrb[0].mxu0
        %v6946 = vadd.f32 0.0, %v6945
        %v6947 = vpop.f32.mrb[0].mxu0
        %6948 = vmatprep.mubr.bf16.mxu0 %v6387
        %6949 = vmatmul.mubr.bf16.gmra.mrb[0].mxu0 %v6379
        %v6950 = vpop.f32.mrb[0].mxu0
        %v6951 = vadd.f32 0.0, %v6950
        %v6952 = vpop.f32.mrb[0].mxu0
        %v6953 = vpop.f32.mrb[0].mxu0
        %v6954 = vadd.f32 0.0, %v6953
        %v6955 = vpop.f32.mrb[0].mxu0
        %6956 = vmatprep.mubr.bf16.mxu0 %v6411
        %6957 = vmatmul.mubr.bf16.gmra.mrb[0].mxu0 %v6403
        %v6958 = vpop.f32.mrb[0].mxu0
        %v6959 = vadd.f32 0.0, %v6958
        %v6960 = vpop.f32.mrb[0].mxu0
        %v6961 = vpop.f32.mrb[0].mxu0
        %v6962 = vadd.f32 0.0, %v6961
        %v6963 = vpop.f32.mrb[0].mxu0
        %6964 = vmatprep.mubr.bf16.mxu0 %v6435
        %6965 = vmatmul.mubr.bf16.gmra.mrb[0].mxu0 %v6427
        %v6966 = vpop.f32.mrb[0].mxu0
        %v6967 = vadd.f32 0.0, %v6966
        %v6968 = vpop.f32.mrb[0].mxu0
        %v6969 = vpop.f32.mrb[0].mxu0
        %v6970 = vadd.f32 0.0, %v6969
        %v6971 = vpop.f32.mrb[0].mxu0
        %6972 = vmatprep.mubr.bf16.mxu0 %v6459
        %6973 = vmatmul.mubr.bf16.gmra.mrb[0].mxu0 %v6451
        %v6974 = vpop.f32.mrb[0].mxu0
        %v6975 = vadd.f32 0.0, %v6974
        %v6976 = vpop.f32.mrb[0].mxu0
        %v6977 = vpop.f32.mrb[0].mxu0
        %v6978 = vadd.f32 0.0, %v6977
        %v6979 = vpop.f32.mrb[0].mxu0
        %6980 = vmatprep.mubr.bf16.mxu0 %v6483
        %6981 = vmatmul.mubr.bf16.gmra.mrb[0].mxu0 %v6475
        %v6982 = vpop.f32.mrb[0].mxu0
        %v6983 = vadd.f32 0.0, %v6982
        %v6984 = vpop.f32.mrb[0].mxu0
        %v6985 = vpop.f32.mrb[0].mxu0
        %v6986 = vadd.f32 0.0, %v6985
        %v6987 = vpop.f32.mrb[0].mxu0
        %6988 = vmatprep.mubr.bf16.mxu0 %v6507
        %6989 = vmatmul.mubr.bf16.gmra.mrb[0].mxu0 %v6499
        %v6990 = vpop.f32.mrb[0].mxu0
        %v6991 = vadd.f32 0.0, %v6990
        %v6992 = vpop.f32.mrb[0].mxu0
        %v6993 = vpop.f32.mrb[0].mxu0
        %v6994 = vadd.f32 0.0, %v6993
        %v6995 = vpop.f32.mrb[0].mxu0
        %6996 = vmatprep.mubr.bf16.mxu0 %v6531
        %6997 = vmatmul.mubr.bf16.gmra.mrb[0].mxu0 %v6523
        %v6998 = vpop.f32.mrb[0].mxu0
        %v6999 = vadd.f32 0.0, %v6998
        %v7000 = vpop.f32.mrb[0].mxu0
        %v7001 = vpop.f32.mrb[0].mxu0
        %v7002 = vadd.f32 0.0, %v7001
        %v7003 = vpop.f32.mrb[0].mxu0
        %7004 = vmatprep.mubr.bf16.mxu0 %v6555
        %7005 = vmatmul.mubr.bf16.gmra.mrb[0].mxu0 %v6547
        %v7006 = vpop.f32.mrb[0].mxu0
        %v7007 = vadd.f32 0.0, %v7006
        %v7008 = vpop.f32.mrb[0].mxu0
        %v7009 = vpop.f32.mrb[0].mxu0
        %v7010 = vadd.f32 0.0, %v7009
        %v7011 = vpop.f32.mrb[0].mxu0
        %7012 = vmatprep.mubr.bf16.mxu0 %v6579
        %7013 = vmatmul.mubr.bf16.gmra.mrb[0].mxu0 %v6571
        %v7014 = vpop.f32.mrb[0].mxu0
        %v7015 = vadd.f32 0.0, %v7014
        %v7016 = vpop.f32.mrb[0].mxu0
        %v7017 = vpop.f32.mrb[0].mxu0
        %v7018 = vadd.f32 0.0, %v7017
        %v7019 = vpop.f32.mrb[0].mxu0
        %7020 = vmatprep.mubr.bf16.mxu0 %v6603
        %7021 = vmatmul.mubr.bf16.gmra.mrb[0].mxu0 %v6595
        %v7022 = vpop.f32.mrb[0].mxu0
        %v7023 = vadd.f32 0.0, %v7022
        %v7024 = vpop.f32.mrb[0].mxu0
        %v7025 = vpop.f32.mrb[0].mxu0
        %v7026 = vadd.f32 0.0, %v7025
        %v7027 = vpop.f32.mrb[0].mxu0
        %7028 = vmatprep.mubr.bf16.mxu0 %v6627
        %7029 = vmatmul.mubr.bf16.gmra.mrb[0].mxu0 %v6619
        %v7030 = vpop.f32.mrb[0].mxu0
        %v7031 = vadd.f32 0.0, %v7030
        %v7032 = vpop.f32.mrb[0].mxu0
        %v7033 = vpop.f32.mrb[0].mxu0
        %v7034 = vadd.f32 0.0, %v7033
        %v7035 = vpop.f32.mrb[0].mxu0
        %7036 = vmatprep.mubr.bf16.mxu0 %v6651
        %7037 = vmatmul.mubr.bf16.gmra.mrb[0].mxu0 %v6643
        %v7038 = vpop.f32.mrb[0].mxu0
        %v7039 = vadd.f32 0.0, %v7038
        %v7040 = vpop.f32.mrb[0].mxu0
        %v7041 = vpop.f32.mrb[0].mxu0
        %v7042 = vadd.f32 0.0, %v7041
        %v7043 = vpop.f32.mrb[0].mxu0
        %7044 = vmatprep.mubr.bf16.mxu0 %v6675
        %7045 = vmatmul.mubr.bf16.gmra.mrb[0].mxu0 %v6667
        %v7046 = vpop.f32.mrb[0].mxu0
        %v7047 = vadd.f32 0.0, %v7046
        %v7048 = vpop.f32.mrb[0].mxu0
        %v7049 = vpop.f32.mrb[0].mxu0
        %v7050 = vadd.f32 0.0, %v7049
        %v7051 = vpop.f32.mrb[0].mxu0
        %7052 = vmatprep.mubr.bf16.mxu0 %v6699
        %7053 = vmatmul.mubr.bf16.gmra.mrb[0].mxu0 %v6691
        %v7054 = vpop.f32.mrb[0].mxu0
        %v7055 = vadd.f32 0.0, %v7054
        %v7056 = vpop.f32.mrb[0].mxu0
        %v7057 = vpop.f32.mrb[0].mxu0
        %v7058 = vadd.f32 0.0, %v7057
        %v7059 = vpop.f32.mrb[0].mxu0
        %7060 = vdwg.mxu0
        %7061 = vmatprep.subr.bf16.mxu0 0
        %7062 = vmatpush1.bf16.msra.mxu0 %v6868
        %7063 = vmatprep.subr.bf16.mxu0 0
        %7064 = vmatpush1.bf16.msra.mxu0 %v6869
        %7065 = vmatprep.subr.bf16.mxu0 0
        %7066 = vmatpush1.bf16.msra.mxu0 %v6870
        %7067 = vmatprep.subr.bf16.mxu0 0
        %7068 = vmatpush1.bf16.msra.mxu0 %v6871
        %7069 = vmatprep.subr.bf16.mxu0 0
        %7070 = vmatpush1.bf16.msra.mxu0 %v6872
        %7071 = vmatprep.subr.bf16.mxu0 0
        %7072 = vmatpush1.bf16.msra.mxu0 %v6873
        %7073 = vmatprep.subr.bf16.mxu0 0
        %7074 = vmatpush1.bf16.msra.mxu0 %v6874
        %7075 = vmatprep.subr.bf16.mxu0 0
        %7076 = vmatpush1.bf16.msra.mxu0 %v6875
        %7077 = vmatprep.subr.bf16.mxu0 0
        %7078 = vmatpush1.bf16.msra.mxu0 0
        %7079 = vmatprep.subr.bf16.mxu0 0
        %7080 = vmatpush1.bf16.msra.mxu0 0
        %7081 = vmatprep.subr.bf16.mxu0 0
        %7082 = vmatpush1.bf16.msra.mxu0 0
        %7083 = vmatprep.subr.bf16.mxu0 0
        %7084 = vmatpush1.bf16.msra.mxu0 0
        %7085 = vmatprep.subr.bf16.mxu0 0
        %7086 = vmatpush1.bf16.msra.mxu0 0
        %7087 = vmatprep.subr.bf16.mxu0 0
        %7088 = vmatpush1.bf16.msra.mxu0 0
        %7089 = vmatprep.subr.bf16.mxu0 0
        %7090 = vmatpush1.bf16.msra.mxu0 0
        %7091 = vmatprep.subr.bf16.mxu0 0
        %7092 = vmatpush1.bf16.msra.mxu0 0
        %7093 = vmatprep.mubr.bf16.mxu0 0
        %7094 = vmatmul.mubr.bf16.gmra.mrb[0].mxu0 %v6347
        %v7095 = vpop.f32.mrb[0].mxu0
        %v7096 = vadd.f32 %v6935, %v7095
        %v7097 = vpop.f32.mrb[0].mxu0
        %v7098 = vpop.f32.mrb[0].mxu0
        %v7099 = vadd.f32 %v6938, %v7098
        %v7100 = vpop.f32.mrb[0].mxu0
        %7101 = vmatprep.mubr.bf16.mxu0 0
        %7102 = vmatmul.mubr.bf16.gmra.mrb[0].mxu0 %v6371
        %v7103 = vpop.f32.mrb[0].mxu0
        %v7104 = vadd.f32 %v6943, %v7103
        %v7105 = vpop.f32.mrb[0].mxu0
        %v7106 = vpop.f32.mrb[0].mxu0
        %v7107 = vadd.f32 %v6946, %v7106
        %v7108 = vpop.f32.mrb[0].mxu0
        %7109 = vmatprep.mubr.bf16.mxu0 0
        %7110 = vmatmul.mubr.bf16.gmra.mrb[0].mxu0 %v6395
        %v7111 = vpop.f32.mrb[0].mxu0
        %v7112 = vadd.f32 %v6951, %v7111
        %v7113 = vpop.f32.mrb[0].mxu0
        %v7114 = vpop.f32.mrb[0].mxu0
        %v7115 = vadd.f32 %v6954, %v7114
        %v7116 = vpop.f32.mrb[0].mxu0
        %7117 = vmatprep.mubr.bf16.mxu0 0
        %7118 = vmatmul.mubr.bf16.gmra.mrb[0].mxu0 %v6419
        %v7119 = vpop.f32.mrb[0].mxu0
        %v7120 = vadd.f32 %v6959, %v7119
        %v7121 = vpop.f32.mrb[0].mxu0
        %v7122 = vpop.f32.mrb[0].mxu0
        %v7123 = vadd.f32 %v6962, %v7122
        %v7124 = vpop.f32.mrb[0].mxu0
        %7125 = vmatprep.mubr.bf16.mxu0 0
        %7126 = vmatmul.mubr.bf16.gmra.mrb[0].mxu0 %v6443
        %v7127 = vpop.f32.mrb[0].mxu0
        %v7128 = vadd.f32 %v6967, %v7127
        %v7129 = vpop.f32.mrb[0].mxu0
        %v7130 = vpop.f32.mrb[0].mxu0
        %v7131 = vadd.f32 %v6970, %v7130
        %v7132 = vpop.f32.mrb[0].mxu0
        %7133 = vmatprep.mubr.bf16.mxu0 0
        %7134 = vmatmul.mubr.bf16.gmra.mrb[0].mxu0 %v6467
        %v7135 = vpop.f32.mrb[0].mxu0
        %v7136 = vadd.f32 %v6975, %v7135
        %v7137 = vpop.f32.mrb[0].mxu0
        %v7138 = vpop.f32.mrb[0].mxu0
        %v7139 = vadd.f32 %v6978, %v7138
        %v7140 = vpop.f32.mrb[0].mxu0
        %7141 = vmatprep.mubr.bf16.mxu0 0
        %7142 = vmatmul.mubr.bf16.gmra.mrb[0].mxu0 %v6491
        %v7143 = vpop.f32.mrb[0].mxu0
        %v7144 = vadd.f32 %v6983, %v7143
        %v7145 = vpop.f32.mrb[0].mxu0
        %v7146 = vpop.f32.mrb[0].mxu0
        %v7147 = vadd.f32 %v6986, %v7146
        %v7148 = vpop.f32.mrb[0].mxu0
        %7149 = vmatprep.mubr.bf16.mxu0 0
        %7150 = vmatmul.mubr.bf16.gmra.mrb[0].mxu0 %v6515
        %v7151 = vpop.f32.mrb[0].mxu0
        %v7152 = vadd.f32 %v6991, %v7151
        %v7153 = vpop.f32.mrb[0].mxu0
        %v7154 = vpop.f32.mrb[0].mxu0
        %v7155 = vadd.f32 %v6994, %v7154
        %v7156 = vpop.f32.mrb[0].mxu0
        %7157 = vmatprep.mubr.bf16.mxu0 0
        %7158 = vmatmul.mubr.bf16.gmra.mrb[0].mxu0 %v6539
        %v7159 = vpop.f32.mrb[0].mxu0
        %v7160 = vadd.f32 %v6999, %v7159
        %v7161 = vpop.f32.mrb[0].mxu0
        %v7162 = vpop.f32.mrb[0].mxu0
        %v7163 = vadd.f32 %v7002, %v7162
        %v7164 = vpop.f32.mrb[0].mxu0
        %7165 = vmatprep.mubr.bf16.mxu0 0
        %7166 = vmatmul.mubr.bf16.gmra.mrb[0].mxu0 %v6563
        %v7167 = vpop.f32.mrb[0].mxu0
        %v7168 = vadd.f32 %v7007, %v7167
        %v7169 = vpop.f32.mrb[0].mxu0
        %v7170 = vpop.f32.mrb[0].mxu0
        %v7171 = vadd.f32 %v7010, %v7170
        %v7172 = vpop.f32.mrb[0].mxu0
        %7173 = vmatprep.mubr.bf16.mxu0 0
        %7174 = vmatmul.mubr.bf16.gmra.mrb[0].mxu0 %v6587
        %v7175 = vpop.f32.mrb[0].mxu0
        %v7176 = vadd.f32 %v7015, %v7175
        %v7177 = vpop.f32.mrb[0].mxu0
        %v7178 = vpop.f32.mrb[0].mxu0
        %v7179 = vadd.f32 %v7018, %v7178
        %v7180 = vpop.f32.mrb[0].mxu0
        %7181 = vmatprep.mubr.bf16.mxu0 0
        %7182 = vmatmul.mubr.bf16.gmra.mrb[0].mxu0 %v6611
        %v7183 = vpop.f32.mrb[0].mxu0
        %v7184 = vadd.f32 %v7023, %v7183
        %v7185 = vpop.f32.mrb[0].mxu0
        %v7186 = vpop.f32.mrb[0].mxu0
        %v7187 = vadd.f32 %v7026, %v7186
        %v7188 = vpop.f32.mrb[0].mxu0
        %7189 = vmatprep.mubr.bf16.mxu0 0
        %7190 = vmatmul.mubr.bf16.gmra.mrb[0].mxu0 %v6635
        %v7191 = vpop.f32.mrb[0].mxu0
        %v7192 = vadd.f32 %v7031, %v7191
        %v7193 = vpop.f32.mrb[0].mxu0
        %v7194 = vpop.f32.mrb[0].mxu0
        %v7195 = vadd.f32 %v7034, %v7194
        %v7196 = vpop.f32.mrb[0].mxu0
        %7197 = vmatprep.mubr.bf16.mxu0 0
        %7198 = vmatmul.mubr.bf16.gmra.mrb[0].mxu0 %v6659
        %v7199 = vpop.f32.mrb[0].mxu0
        %v7200 = vadd.f32 %v7039, %v7199
        %v7201 = vpop.f32.mrb[0].mxu0
        %v7202 = vpop.f32.mrb[0].mxu0
        %v7203 = vadd.f32 %v7042, %v7202
        %v7204 = vpop.f32.mrb[0].mxu0
        %7205 = vmatprep.mubr.bf16.mxu0 0
        %7206 = vmatmul.mubr.bf16.gmra.mrb[0].mxu0 %v6683
        %v7207 = vpop.f32.mrb[0].mxu0
        %v7208 = vadd.f32 %v7047, %v7207
        %v7209 = vpop.f32.mrb[0].mxu0
        %v7210 = vpop.f32.mrb[0].mxu0
        %v7211 = vadd.f32 %v7050, %v7210
        %v7212 = vpop.f32.mrb[0].mxu0
        %7213 = vmatprep.mubr.bf16.mxu0 0
        %7214 = vmatmul.mubr.bf16.gmra.mrb[0].mxu0 %v6707
        %v7215 = vpop.f32.mrb[0].mxu0
        %v7216 = vadd.f32 %v7055, %v7215
        %v7217 = vpop.f32.mrb[0].mxu0
        %v7218 = vpop.f32.mrb[0].mxu0
        %v7219 = vadd.f32 %v7058, %v7218
        %v7220 = vpop.f32.mrb[0].mxu0
        %7221 = vdwg.mxu0
        %v7222 = vadd.f32 %v4867, %v7096
        %v7223 = vadd.f32 %v4870, %v7099
        %v7224 = vadd.f32 %v4875, %v7104
        %v7225 = vadd.f32 %v4878, %v7107
        %v7226 = vadd.f32 %v4883, %v7112
        %v7227 = vadd.f32 %v4886, %v7115
        %v7228 = vadd.f32 %v4891, %v7120
        %v7229 = vadd.f32 %v4894, %v7123
        %v7230 = vadd.f32 %v4899, %v7128
        %v7231 = vadd.f32 %v4902, %v7131
        %v7232 = vadd.f32 %v4907, %v7136
        %v7233 = vadd.f32 %v4910, %v7139
        %v7234 = vadd.f32 %v4915, %v7144
        %v7235 = vadd.f32 %v4918, %v7147
        %v7236 = vadd.f32 %v4923, %v7152
        %v7237 = vadd.f32 %v4926, %v7155
        %v7238 = vadd.f32 %v4931, %v7160
        %v7239 = vadd.f32 %v4934, %v7163
        %v7240 = vadd.f32 %v4939, %v7168
        %v7241 = vadd.f32 %v4942, %v7171
        %v7242 = vadd.f32 %v4947, %v7176
        %v7243 = vadd.f32 %v4950, %v7179
        %v7244 = vadd.f32 %v4955, %v7184
        %v7245 = vadd.f32 %v4958, %v7187
        %v7246 = vadd.f32 %v4963, %v7192
        %v7247 = vadd.f32 %v4966, %v7195
        %v7248 = vadd.f32 %v4971, %v7200
        %v7249 = vadd.f32 %v4974, %v7203
        %v7250 = vadd.f32 %v4979, %v7208
        %v7251 = vadd.f32 %v4982, %v7211
        %v7252 = vadd.f32 %v4987, %v7216
        %v7253 = vadd.f32 %v4990, %v7219
        %v7254 = vld [vmem:[%s4] sm:$0x1]
        %v7256 = vlaneseq
        %v7257 = vshrl.u32 %v7256, 7
        %v7258 = vsub.s32 0, %v7257
        %v7259 = vrot.slane %v7254, %v7258
        %v7261 = vadd.f32 %v7222, %v7259
        %v7262 = vadd.f32 %v7223, %v7259
        %v7263 = vadd.f32 %v7224, %v7259
        %v7264 = vadd.f32 %v7225, %v7259
        %v7265 = vadd.f32 %v7226, %v7259
        %v7266 = vadd.f32 %v7227, %v7259
        %v7267 = vadd.f32 %v7228, %v7259
        %v7268 = vadd.f32 %v7229, %v7259
        %v7269 = vadd.f32 %v7230, %v7259
        %v7270 = vadd.f32 %v7231, %v7259
        %v7271 = vadd.f32 %v7232, %v7259
        %v7272 = vadd.f32 %v7233, %v7259
        %v7273 = vadd.f32 %v7234, %v7259
        %v7274 = vadd.f32 %v7235, %v7259
        %v7275 = vadd.f32 %v7236, %v7259
        %v7276 = vadd.f32 %v7237, %v7259
        %v7277 = vadd.f32 %v7238, %v7259
        %v7278 = vadd.f32 %v7239, %v7259
        %v7279 = vadd.f32 %v7240, %v7259
        %v7280 = vadd.f32 %v7241, %v7259
        %v7281 = vadd.f32 %v7242, %v7259
        %v7282 = vadd.f32 %v7243, %v7259
        %v7283 = vadd.f32 %v7244, %v7259
        %v7284 = vadd.f32 %v7245, %v7259
        %v7285 = vadd.f32 %v7246, %v7259
        %v7286 = vadd.f32 %v7247, %v7259
        %v7287 = vadd.f32 %v7248, %v7259
        %v7288 = vadd.f32 %v7249, %v7259
        %v7289 = vadd.f32 %v7250, %v7259
        %v7290 = vadd.f32 %v7251, %v7259
        %v7291 = vadd.f32 %v7252, %v7259
        %v7292 = vadd.f32 %v7253, %v7259
        %v7293 = vmax.f32 %v7261, 0.0
        %v7294 = vmax.f32 %v7262, 0.0
        %v7295 = vmax.f32 %v7263, 0.0
        %v7296 = vmax.f32 %v7264, 0.0
        %v7297 = vmax.f32 %v7265, 0.0
        %v7298 = vmax.f32 %v7266, 0.0
        %v7299 = vmax.f32 %v7267, 0.0
        %v7300 = vmax.f32 %v7268, 0.0
        %v7301 = vmax.f32 %v7269, 0.0
        %v7302 = vmax.f32 %v7270, 0.0
        %v7303 = vmax.f32 %v7271, 0.0
        %v7304 = vmax.f32 %v7272, 0.0
        %v7305 = vmax.f32 %v7273, 0.0
        %v7306 = vmax.f32 %v7274, 0.0
        %v7307 = vmax.f32 %v7275, 0.0
        %v7308 = vmax.f32 %v7276, 0.0
        %v7309 = vmax.f32 %v7277, 0.0
        %v7310 = vmax.f32 %v7278, 0.0
        %v7311 = vmax.f32 %v7279, 0.0
        %v7312 = vmax.f32 %v7280, 0.0
        %v7313 = vmax.f32 %v7281, 0.0
        %v7314 = vmax.f32 %v7282, 0.0
        %v7315 = vmax.f32 %v7283, 0.0
        %v7316 = vmax.f32 %v7284, 0.0
        %v7317 = vmax.f32 %v7285, 0.0
        %v7318 = vmax.f32 %v7286, 0.0
        %v7319 = vmax.f32 %v7287, 0.0
        %v7320 = vmax.f32 %v7288, 0.0
        %v7321 = vmax.f32 %v7289, 0.0
        %v7322 = vmax.f32 %v7290, 0.0
        %v7323 = vmax.f32 %v7291, 0.0
        %v7324 = vmax.f32 %v7292, 0.0
        %v7325 = vpack.c.bf16 %v7294, %v7293
        %v7326 = vpack.c.bf16 %v7296, %v7295
        %v7327 = vpack.c.bf16 %v7298, %v7297
        %v7328 = vpack.c.bf16 %v7300, %v7299
        %v7329 = vpack.c.bf16 %v7302, %v7301
        %v7330 = vpack.c.bf16 %v7304, %v7303
        %v7331 = vpack.c.bf16 %v7306, %v7305
        %v7332 = vpack.c.bf16 %v7308, %v7307
        %v7333 = vpack.c.bf16 %v7310, %v7309
        %v7334 = vpack.c.bf16 %v7312, %v7311
        %v7335 = vpack.c.bf16 %v7314, %v7313
        %v7336 = vpack.c.bf16 %v7316, %v7315
        %v7337 = vpack.c.bf16 %v7318, %v7317
        %v7338 = vpack.c.bf16 %v7320, %v7319
        %v7339 = vpack.c.bf16 %v7322, %v7321
        %v7340 = vpack.c.bf16 %v7324, %v7323
        %v7341 = vld [vmem:[%s7] sm:$0xf]
        %v7342 = vld [vmem:[%s7 + $0x4] sm:$0xf]
        %v7343 = vld [vmem:[%s7 + $0x8] sm:$0xf]
        %v7344 = vld [vmem:[%s7 + $0xc] sm:$0xf]
        %v7345 = vld [vmem:[%s7 + $0x10] sm:$0xf]
        %v7346 = vld [vmem:[%s7 + $0x14] sm:$0xf]
        %v7347 = vld [vmem:[%s7 + $0x18] sm:$0xf]
        %v7348 = vld [vmem:[%s7 + $0x1c] sm:$0xf]
        %v7349 = vld [vmem:[%s7 + $0x20] sm:$0xf]
        %v7350 = vld [vmem:[%s7 + $0x24] sm:$0xf]
        %v7351 = vld [vmem:[%s7 + $0x28] sm:$0xf]
        %v7352 = vld [vmem:[%s7 + $0x2c] sm:$0xf]
        %v7353 = vld [vmem:[%s7 + $0x30] sm:$0xf]
        %v7354 = vld [vmem:[%s7 + $0x34] sm:$0xf]
        %v7355 = vld [vmem:[%s7 + $0x38] sm:$0xf]
        %v7356 = vld [vmem:[%s7 + $0x3c] sm:$0xf]
        %v7357 = vld [vmem:[%s6] sm:$0x1]
        %v7359 = vlaneseq
        %v7360 = vshrl.u32 %v7359, 7
        %v7361 = vsub.s32 0, %v7360
        %v7362 = vrot.slane %v7357, %v7361
        %v7380 = vunpack.c.l.b16 %v7341
        %v7381 = vunpack.c.l.b16 %v7342
        %v7382 = vunpack.c.l.b16 %v7343
        %v7383 = vunpack.c.l.b16 %v7344
        %v7384 = vunpack.c.l.b16 %v7345
        %v7385 = vunpack.c.l.b16 %v7346
        %v7386 = vunpack.c.l.b16 %v7347
        %v7387 = vunpack.c.l.b16 %v7348
        %v7388 = vunpack.c.l.b16 %v7349
        %v7389 = vunpack.c.l.b16 %v7350
        %v7390 = vunpack.c.l.b16 %v7351
        %v7391 = vunpack.c.l.b16 %v7352
        %v7392 = vunpack.c.l.b16 %v7353
        %v7393 = vunpack.c.l.b16 %v7354
        %v7394 = vunpack.c.l.b16 %v7355
        %v7395 = vunpack.c.l.b16 %v7356
        %v7396 = vpack.c.b16 %v7381, %v7380
        %v7397 = vpack.c.b16 %v7383, %v7382
        %v7398 = vpack.c.b16 %v7385, %v7384
        %v7399 = vpack.c.b16 %v7387, %v7386
        %v7400 = vpack.c.b16 %v7389, %v7388
        %v7401 = vpack.c.b16 %v7391, %v7390
        %v7402 = vpack.c.b16 %v7393, %v7392
        %v7403 = vpack.c.b16 %v7395, %v7394
        %7412 = vmatprep.subr.bf16.mxu0 0
        %7413 = vmatpush1.bf16.msra.mxu0 %v7396
        %7414 = vmatprep.subr.bf16.mxu0 0
        %7415 = vmatpush1.bf16.msra.mxu0 %v7397
        %7416 = vmatprep.subr.bf16.mxu0 0
        %7417 = vmatpush1.bf16.msra.mxu0 %v7398
        %7418 = vmatprep.subr.bf16.mxu0 0
        %7419 = vmatpush1.bf16.msra.mxu0 %v7399
        %7420 = vmatprep.subr.bf16.mxu0 0
        %7421 = vmatpush1.bf16.msra.mxu0 %v7400
        %7422 = vmatprep.subr.bf16.mxu0 0
        %7423 = vmatpush1.bf16.msra.mxu0 %v7401
        %7424 = vmatprep.subr.bf16.mxu0 0
        %7425 = vmatpush1.bf16.msra.mxu0 %v7402
        %7426 = vmatprep.subr.bf16.mxu0 0
        %7427 = vmatpush1.bf16.msra.mxu0 %v7403
        %7428 = vmatprep.subr.bf16.mxu0 0
        %7429 = vmatpush1.bf16.msra.mxu0 0
        %7430 = vmatprep.subr.bf16.mxu0 0
        %7431 = vmatpush1.bf16.msra.mxu0 0
        %7432 = vmatprep.subr.bf16.mxu0 0
        %7433 = vmatpush1.bf16.msra.mxu0 0
        %7434 = vmatprep.subr.bf16.mxu0 0
        %7435 = vmatpush1.bf16.msra.mxu0 0
        %7436 = vmatprep.subr.bf16.mxu0 0
        %7437 = vmatpush1.bf16.msra.mxu0 0
        %7438 = vmatprep.subr.bf16.mxu0 0
        %7439 = vmatpush1.bf16.msra.mxu0 0
        %7440 = vmatprep.subr.bf16.mxu0 0
        %7441 = vmatpush1.bf16.msra.mxu0 0
        %7442 = vmatprep.subr.bf16.mxu0 0
        %7443 = vmatpush1.bf16.msra.mxu0 0
        %7444 = vmatprep.mubr.bf16.mxu0 0
        %7445 = vmatmul.mubr.bf16.gmra.mrb[0].mxu0 %v7325
        %v7446 = vpop.f32.mrb[0].mxu0
        %v7447 = vadd.f32 %v7362, %v7446
        %v7448 = vpop.f32.mrb[0].mxu0
        %v7449 = vpop.f32.mrb[0].mxu0
        %v7450 = vadd.f32 %v7362, %v7449
        %v7451 = vpop.f32.mrb[0].mxu0
        %7452 = vmatprep.mubr.bf16.mxu0 0
        %7453 = vmatmul.mubr.bf16.gmra.mrb[0].mxu0 %v7326
        %v7454 = vpop.f32.mrb[0].mxu0
        %v7455 = vadd.f32 %v7362, %v7454
        %v7456 = vpop.f32.mrb[0].mxu0
        %v7457 = vpop.f32.mrb[0].mxu0
        %v7458 = vadd.f32 %v7362, %v7457
        %v7459 = vpop.f32.mrb[0].mxu0
        %7460 = vmatprep.mubr.bf16.mxu0 0
        %7461 = vmatmul.mubr.bf16.gmra.mrb[0].mxu0 %v7327
        %v7462 = vpop.f32.mrb[0].mxu0
        %v7463 = vadd.f32 %v7362, %v7462
        %v7464 = vpop.f32.mrb[0].mxu0
        %v7465 = vpop.f32.mrb[0].mxu0
        %v7466 = vadd.f32 %v7362, %v7465
        %v7467 = vpop.f32.mrb[0].mxu0
        %7468 = vmatprep.mubr.bf16.mxu0 0
        %7469 = vmatmul.mubr.bf16.gmra.mrb[0].mxu0 %v7328
        %v7470 = vpop.f32.mrb[0].mxu0
        %v7471 = vadd.f32 %v7362, %v7470
        %v7472 = vpop.f32.mrb[0].mxu0
        %v7473 = vpop.f32.mrb[0].mxu0
        %v7474 = vadd.f32 %v7362, %v7473
        %v7475 = vpop.f32.mrb[0].mxu0
        %7476 = vmatprep.mubr.bf16.mxu0 0
        %7477 = vmatmul.mubr.bf16.gmra.mrb[0].mxu0 %v7329
        %v7478 = vpop.f32.mrb[0].mxu0
        %v7479 = vadd.f32 %v7362, %v7478
        %v7480 = vpop.f32.mrb[0].mxu0
        %v7481 = vpop.f32.mrb[0].mxu0
        %v7482 = vadd.f32 %v7362, %v7481
        %v7483 = vpop.f32.mrb[0].mxu0
        %7484 = vmatprep.mubr.bf16.mxu0 0
        %7485 = vmatmul.mubr.bf16.gmra.mrb[0].mxu0 %v7330
        %v7486 = vpop.f32.mrb[0].mxu0
        %v7487 = vadd.f32 %v7362, %v7486
        %v7488 = vpop.f32.mrb[0].mxu0
        %v7489 = vpop.f32.mrb[0].mxu0
        %v7490 = vadd.f32 %v7362, %v7489
        %v7491 = vpop.f32.mrb[0].mxu0
        %7492 = vmatprep.mubr.bf16.mxu0 0
        %7493 = vmatmul.mubr.bf16.gmra.mrb[0].mxu0 %v7331
        %v7494 = vpop.f32.mrb[0].mxu0
        %v7495 = vadd.f32 %v7362, %v7494
        %v7496 = vpop.f32.mrb[0].mxu0
        %v7497 = vpop.f32.mrb[0].mxu0
        %v7498 = vadd.f32 %v7362, %v7497
        %v7499 = vpop.f32.mrb[0].mxu0
        %7500 = vmatprep.mubr.bf16.mxu0 0
        %7501 = vmatmul.mubr.bf16.gmra.mrb[0].mxu0 %v7332
        %v7502 = vpop.f32.mrb[0].mxu0
        %v7503 = vadd.f32 %v7362, %v7502
        %v7504 = vpop.f32.mrb[0].mxu0
        %v7505 = vpop.f32.mrb[0].mxu0
        %v7506 = vadd.f32 %v7362, %v7505
        %v7507 = vpop.f32.mrb[0].mxu0
        %7508 = vmatprep.mubr.bf16.mxu0 0
        %7509 = vmatmul.mubr.bf16.gmra.mrb[0].mxu0 %v7333
        %v7510 = vpop.f32.mrb[0].mxu0
        %v7511 = vadd.f32 %v7362, %v7510
        %v7512 = vpop.f32.mrb[0].mxu0
        %v7513 = vpop.f32.mrb[0].mxu0
        %v7514 = vadd.f32 %v7362, %v7513
        %v7515 = vpop.f32.mrb[0].mxu0
        %7516 = vmatprep.mubr.bf16.mxu0 0
        %7517 = vmatmul.mubr.bf16.gmra.mrb[0].mxu0 %v7334
        %v7518 = vpop.f32.mrb[0].mxu0
        %v7519 = vadd.f32 %v7362, %v7518
        %v7520 = vpop.f32.mrb[0].mxu0
        %v7521 = vpop.f32.mrb[0].mxu0
        %v7522 = vadd.f32 %v7362, %v7521
        %v7523 = vpop.f32.mrb[0].mxu0
        %7524 = vmatprep.mubr.bf16.mxu0 0
        %7525 = vmatmul.mubr.bf16.gmra.mrb[0].mxu0 %v7335
        %v7526 = vpop.f32.mrb[0].mxu0
        %v7527 = vadd.f32 %v7362, %v7526
        %v7528 = vpop.f32.mrb[0].mxu0
        %v7529 = vpop.f32.mrb[0].mxu0
        %v7530 = vadd.f32 %v7362, %v7529
        %v7531 = vpop.f32.mrb[0].mxu0
        %7532 = vmatprep.mubr.bf16.mxu0 0
        %7533 = vmatmul.mubr.bf16.gmra.mrb[0].mxu0 %v7336
        %v7534 = vpop.f32.mrb[0].mxu0
        %v7535 = vadd.f32 %v7362, %v7534
        %v7536 = vpop.f32.mrb[0].mxu0
        %v7537 = vpop.f32.mrb[0].mxu0
        %v7538 = vadd.f32 %v7362, %v7537
        %v7539 = vpop.f32.mrb[0].mxu0
        %7540 = vmatprep.mubr.bf16.mxu0 0
        %7541 = vmatmul.mubr.bf16.gmra.mrb[0].mxu0 %v7337
        %v7542 = vpop.f32.mrb[0].mxu0
        %v7543 = vadd.f32 %v7362, %v7542
        %v7544 = vpop.f32.mrb[0].mxu0
        %v7545 = vpop.f32.mrb[0].mxu0
        %v7546 = vadd.f32 %v7362, %v7545
        %v7547 = vpop.f32.mrb[0].mxu0
        %7548 = vmatprep.mubr.bf16.mxu0 0
        %7549 = vmatmul.mubr.bf16.gmra.mrb[0].mxu0 %v7338
        %v7550 = vpop.f32.mrb[0].mxu0
        %v7551 = vadd.f32 %v7362, %v7550
        %v7552 = vpop.f32.mrb[0].mxu0
        %v7553 = vpop.f32.mrb[0].mxu0
        %v7554 = vadd.f32 %v7362, %v7553
        %v7555 = vpop.f32.mrb[0].mxu0
        %7556 = vmatprep.mubr.bf16.mxu0 0
        %7557 = vmatmul.mubr.bf16.gmra.mrb[0].mxu0 %v7339
        %v7558 = vpop.f32.mrb[0].mxu0
        %v7559 = vadd.f32 %v7362, %v7558
        %v7560 = vpop.f32.mrb[0].mxu0
        %v7561 = vpop.f32.mrb[0].mxu0
        %v7562 = vadd.f32 %v7362, %v7561
        %v7563 = vpop.f32.mrb[0].mxu0
        %7564 = vmatprep.mubr.bf16.mxu0 0
        %7565 = vmatmul.mubr.bf16.gmra.mrb[0].mxu0 %v7340
        %v7566 = vpop.f32.mrb[0].mxu0
        %v7567 = vadd.f32 %v7362, %v7566
        %v7568 = vpop.f32.mrb[0].mxu0
        %v7569 = vpop.f32.mrb[0].mxu0
        %v7570 = vadd.f32 %v7362, %v7569
        %v7571 = vpop.f32.mrb[0].mxu0
        %7572 = vdwg.mxu0
        %v7573 = vadd.f32 %v7447, %v350
        %v7574 = vadd.f32 %v7450, %v351
        %v7575 = vadd.f32 %v7455, %v352
        %v7576 = vadd.f32 %v7458, %v353
        %v7577 = vadd.f32 %v7463, %v354
        %v7578 = vadd.f32 %v7466, %v355
        %v7579 = vadd.f32 %v7471, %v356
        %v7580 = vadd.f32 %v7474, %v357
        %v7581 = vadd.f32 %v7479, %v358
        %v7582 = vadd.f32 %v7482, %v359
        %v7583 = vadd.f32 %v7487, %v360
        %v7584 = vadd.f32 %v7490, %v361
        %v7585 = vadd.f32 %v7495, %v362
        %v7586 = vadd.f32 %v7498, %v363
        %v7587 = vadd.f32 %v7503, %v364
        %v7588 = vadd.f32 %v7506, %v365
        %v7589 = vadd.f32 %v7511, %v366
        %v7590 = vadd.f32 %v7514, %v367
        %v7591 = vadd.f32 %v7519, %v368
        %v7592 = vadd.f32 %v7522, %v369
        %v7593 = vadd.f32 %v7527, %v370
        %v7594 = vadd.f32 %v7530, %v371
        %v7595 = vadd.f32 %v7535, %v372
        %v7596 = vadd.f32 %v7538, %v373
        %v7597 = vadd.f32 %v7543, %v374
        %v7598 = vadd.f32 %v7546, %v375
        %v7599 = vadd.f32 %v7551, %v376
        %v7600 = vadd.f32 %v7554, %v377
        %v7601 = vadd.f32 %v7559, %v378
        %v7602 = vadd.f32 %v7562, %v379
        %v7603 = vadd.f32 %v7567, %v380
        %v7604 = vadd.f32 %v7570, %v381
        %7605 = vst [vmem:[%s338] sm:$0xff] %v7573
        %7606 = vst [vmem:[%s338 + $0x8] sm:$0xff] %v7574
        %7607 = vst [vmem:[%s338 + $0x10] sm:$0xff] %v7575
        %7608 = vst [vmem:[%s338 + $0x18] sm:$0xff] %v7576
        %7609 = vst [vmem:[%s338 + $0x20] sm:$0xff] %v7577
        %7610 = vst [vmem:[%s338 + $0x28] sm:$0xff] %v7578
        %7611 = vst [vmem:[%s338 + $0x30] sm:$0xff] %v7579
        %7612 = vst [vmem:[%s338 + $0x38] sm:$0xff] %v7580
        %7613 = vst [vmem:[%s338 + $0x40] sm:$0xff] %v7581
        %7614 = vst [vmem:[%s338 + $0x48] sm:$0xff] %v7582
        %7615 = vst [vmem:[%s338 + $0x50] sm:$0xff] %v7583
        %7616 = vst [vmem:[%s338 + $0x58] sm:$0xff] %v7584
        %7617 = vst [vmem:[%s338 + $0x60] sm:$0xff] %v7585
        %7618 = vst [vmem:[%s338 + $0x68] sm:$0xff] %v7586
        %7619 = vst [vmem:[%s338 + $0x70] sm:$0xff] %v7587
        %7620 = vst [vmem:[%s338 + $0x78] sm:$0xff] %v7588
        %7621 = vst [vmem:[%s338 + $0x80] sm:$0xff] %v7589
        %7622 = vst [vmem:[%s338 + $0x88] sm:$0xff] %v7590
        %7623 = vst [vmem:[%s338 + $0x90] sm:$0xff] %v7591
        %7624 = vst [vmem:[%s338 + $0x98] sm:$0xff] %v7592
        %7625 = vst [vmem:[%s338 + $0xa0] sm:$0xff] %v7593
        %7626 = vst [vmem:[%s338 + $0xa8] sm:$0xff] %v7594
        %7627 = vst [vmem:[%s338 + $0xb0] sm:$0xff] %v7595
        %7628 = vst [vmem:[%s338 + $0xb8] sm:$0xff] %v7596
        %7629 = vst [vmem:[%s338 + $0xc0] sm:$0xff] %v7597
        %7630 = vst [vmem:[%s338 + $0xc8] sm:$0xff] %v7598
        %7631 = vst [vmem:[%s338 + $0xd0] sm:$0xff] %v7599
        %7632 = vst [vmem:[%s338 + $0xd8] sm:$0xff] %v7600
        %7633 = vst [vmem:[%s338 + $0xe0] sm:$0xff] %v7601
        %7634 = vst [vmem:[%s338 + $0xe8] sm:$0xff] %v7602
        %7635 = vst [vmem:[%s338 + $0xf0] sm:$0xff] %v7603
        %7636 = vst [vmem:[%s338 + $0xf8] sm:$0xff] %v7604
        %s7637 = sand.u32 %s207, 1
        %s7638 = scalar_lea.sflag [#allocation5], %s7637
        %s7639 = sand.u32 %s207, 1
        %s7640 = smul.addr %s7639, 256
        %s7641 = scalar_lea.vmem [#allocation8], %s7640
        // Predicated region
        $region65: #{tpu_custom_call.1} parent=51 // pred_check
          %p7642 = pneg %p217
        $region66: #{tpu_custom_call.1} parent=51 // pred_check_branch
          %7644 = sbr.rel (%p7642) target = $region68
        $region67: #{tpu_custom_call.1} parent=51 // pred_region
          %s7646 = ssub.s32 4096, 4096
          %7647 = vsyncadd %s7638, %s7646
          %s7648 = smul.addr %s26, 32
          %s7649 = smul.addr %s7648, 128
          %s7650 = scalar_lea.hbm %s8, %s7649
          %s7651 = sshll.u32 %s7641, 4
          %s7652 = int_to_ptr.vmem [resolvable:$true] %s7651
          %7657 = dma.vmem_to_hbm [thread:$0]  %s7652, 4096, %s7650, %s7638, 128, 128, 8
        $region68: #{tpu_custom_call.1} parent=51 // pred_fallthru
          _
      $region52: #{tpu_custom_call.1} parent=5 // pred_fallthru
        _
      %p7658 = scmp.le.s32.totalorder 2, %s21
      // Predicated region
      $region69: #{tpu_custom_call.1} parent=5 // pred_check
        %p7659 = pneg %p7658
      $region70: #{tpu_custom_call.1} parent=5 // pred_check_branch
        %7661 = sbr.rel (%p7659) target = $region72
      $region71: #{tpu_custom_call.1} parent=5 // pred_region
        %s7662 = ssub.s32 %s21, 2
        // Predicated region
        $region73: #{tpu_custom_call.1} parent=71 // pred_check
          %p7663 = pneg %p223
        $region74: #{tpu_custom_call.1} parent=71 // pred_check_branch
          %7665 = sbr.rel (%p7663) target = $region76
        $region75: #{tpu_custom_call.1} parent=71 // pred_region
          %s7666 = sand.u32 %s208, 1
          %s7667 = scalar_lea.sflag [#allocation5], %s7666
          %s7668 = sand.u32 %s208, 1
          %s7669 = smul.addr %s7668, 256
          %s7670 = scalar_lea.vmem [#allocation8], %s7669
          %7671 = dma.done %s7667, 4096
        $region76: #{tpu_custom_call.1} parent=71 // pred_fallthru
          _
      $region72: #{tpu_custom_call.1} parent=5 // pred_fallthru
        _
    $region6: #{tpu_custom_call.1} parent=1 // loop_footer
      %s25 = sadd.s32 1, %s21
    $region7: #{tpu_custom_call.1} parent=1 // loop_footer_branch
      %20 = sbr.rel target = $region3
    $region8: #{tpu_custom_call.1} parent=1 // loop_exit
      _
    %7672 = vsyncpa [#allocation4], 1
    %s7673 = scalar_lea.sflag [#allocation4], 1
    %7674 = vsyncpa %s7673, 1
    %7675 = vsyncpa [#allocation7], 1
    %7676 = vsyncpa [#allocation5], 1
    %s7677 = scalar_lea.sflag [#allocation5], 1
    %7678 = vsyncpa %s7677, 1

</llo_original>
